<compile_context>
chip_gen: v6e
topology: v6e:2x2x1
jax: 0.10.0
libtpu: 0.0.40
codegen_flags: <defaults>
</compile_context>

<pallas_src>
import functools
import math

import jax
import jax.numpy as jnp
from jax import lax
from jax.experimental import pallas as pl
from jax.experimental.pallas import tpu as pltpu

LATENT_DIM = 32


def _round_up(x, m):
    return (x + m - 1) // m * m


# ----------------------------------------------------------------------------
# In-kernel exact GELU (torch.nn.GELU() default: 0.5*x*(1+erf(x/sqrt(2))))
# ----------------------------------------------------------------------------
def _gelu(x):
    # erf via Abramowitz & Stegun 7.1.26, |err| <= 1.5e-7 (f32-exact match to
    # torch's erf-based GELU).  exp and the reciprocal go to the EUP slot.
    a1, a2, a3, a4, a5 = (0.254829592, -0.284496736, 1.421413741,
                          -1.453152027, 1.061405429)
    p = 0.3275911
    z = x * (1.0 / math.sqrt(2.0))
    s = jnp.where(z >= 0.0, 1.0, -1.0)
    az = jnp.abs(z)
    t = pl.reciprocal(1.0 + p * az, approx=True)      # EUP, not VALU divide
    poly = ((((a5 * t + a4) * t + a3) * t + a2) * t + a1) * t
    erf = s * (1.0 - poly * jnp.exp(-az * az))        # exp -> EUP
    return 0.5 * x * (1.0 + erf)


# ----------------------------------------------------------------------------
# Conv2d(k=2, s=1) + GELU (+ optional fused MaxPool2d(2)) as a lane-dense matmul
# ----------------------------------------------------------------------------
def _conv_gelu_pool_kernel(p_ref, w_ref, b_ref, o_ref, *, n_taps):
    # p_ref: (T, 4*Cin, TILE_M)  im2col patches, one slab per pool tap
    # w_ref: (Cout, 4*Cin), b_ref: (Cout, 1), o_ref: (Cout, TILE_M)
    w = w_ref[...]
    b = b_ref[...]
    out = _gelu(jnp.dot(w, p_ref[0], preferred_element_type=jnp.float32) + b)
    for t in range(1, n_taps):                        # fused MaxPool2d(2)
        y = _gelu(jnp.dot(w, p_ref[t], preferred_element_type=jnp.float32) + b)
        out = jnp.maximum(out, y)
    o_ref[...] = out.astype(o_ref.dtype)


def conv2x2_gelu(a, w_oihw, b, *, pool, tile_m=512):
    """a: (Cin, B, H, W) channel-first activation.  Returns (Cout, B, Ho, Wo)
    (or the pooled (Cout, B, Ho//2, Wo//2) when pool=True)."""
    Cin, B, H, W = a.shape
    Cout = w_oihw.shape[0]
    Ho, Wo = H - 1, W - 1

    if pool:
        Hp, Wp = Ho // 2, Wo // 2
        taps = []
        for dh in range(2):                 # pool-window offset
            for dw in range(2):
                cols = []
                for kh in range(2):         # conv kernel tap (im2col row blocks)
                    for kw in range(2):
                        s = a[:, :,
                              dh + kh: dh + kh + 2 * Hp - 1: 2,
                              dw + kw: dw + kw + 2 * Wp - 1: 2]
                        cols.append(s.reshape(Cin, B * Hp * Wp))
                taps.append(jnp.concatenate(cols, axis=0))       # (4*Cin, Mp)
        p = jnp.stack(taps, axis=0)                              # (4, 4*Cin, Mp)
        Hout, Wout = Hp, Wp
    else:
        cols = []
        for kh in range(2):
            for kw in range(2):
                s = a[:, :, kh: kh + Ho, kw: kw + Wo]
                cols.append(s.reshape(Cin, B * Ho * Wo))
        p = jnp.concatenate(cols, axis=0)[None]                  # (1, 4*Cin, M)
        Hout, Wout = Ho, Wo

    T, K, M = p.shape
    # PyTorch (Cout, Cin, 2, 2) -> (Cout, 4*Cin) with column = (kh*2+kw)*Cin+ci,
    # matching the patch row ordering above.
    w_mat = jnp.transpose(w_oihw, (0, 2, 3, 1)).reshape(Cout, K).astype(jnp.float32)
    b_col = b.reshape(Cout, 1).astype(jnp.float32)

    tm = min(tile_m, _round_up(M, 128))
    Mpad = _round_up(M, tm)
    if Mpad != M:
        p = jnp.pad(p, ((0, 0), (0, 0), (0, Mpad - M)))

    out = pl.pallas_call(
        functools.partial(_conv_gelu_pool_kernel, n_taps=T),
        out_shape=jax.ShapeDtypeStruct((Cout, Mpad), jnp.float32),
        grid=(Mpad // tm,),
        in_specs=[
            pl.BlockSpec((T, K, tm), lambda m: (0, 0, m)),
            pl.BlockSpec((Cout, K), lambda m: (0, 0)),
            pl.BlockSpec((Cout, 1), lambda m: (0, 0)),
        ],
        out_specs=pl.BlockSpec((Cout, tm), lambda m: (0, m)),
        compiler_params=pltpu.CompilerParams(
            dimension_semantics=("parallel",)),
    )(p.astype(jnp.float32), w_mat, b_col)

    return out[:, :M].reshape(Cout, B, Hout, Wout)


# ----------------------------------------------------------------------------
# Fused FC head: fc1 -> GELU -> fc2 -> GELU -> fc3 in one pallas_call
# ----------------------------------------------------------------------------
_NT = (((1,), (1,)), ((), ()))   # x @ W^T : consumes PyTorch (out, in) layout


def _fc_head_kernel(x_ref, w1_ref, b1_ref, w2_ref, b2_ref, w3_ref, b3_ref,
                    o_ref, acc_ref):
    k = pl.program_id(0)

    @pl.when(k == 0)
    def _():
        acc_ref[...] = jnp.zeros_like(acc_ref)

    # Stream fc1 over K chunks (weight DMA overlaps MXU work).
    acc_ref[...] += lax.dot_general(x_ref[...], w1_ref[...], _NT,
                                    preferred_element_type=jnp.float32)

    @pl.when(k == pl.num_programs(0) - 1)
    def _():
        h = _gelu(acc_ref[...] + b1_ref[...])
        h = _gelu(lax.dot_general(h, w2_ref[...], _NT,
                                  preferred_element_type=jnp.float32) + b2_ref[...])
        y = lax.dot_general(h, w3_ref[...], _NT,
                            preferred_element_type=jnp.float32) + b3_ref[...]
        o_ref[...] = y.astype(o_ref.dtype)


def fc_head(x, w1, b1, w2, b2, w3, b3, *, tile_k=1280):
    B, K1 = x.shape
    N1, N2, N3 = w1.shape[0], w2.shape[0], w3.shape[0]
    tk = tile_k if (K1 % tile_k == 0) else K1

    return pl.pallas_call(
        _fc_head_kernel,
        out_shape=jax.ShapeDtypeStruct((B, N3), jnp.float32),
        grid=(K1 // tk,),
        in_specs=[
            pl.BlockSpec((B, tk), lambda k: (0, k)),       # x chunk
            pl.BlockSpec((N1, tk), lambda k: (0, k)),      # fc1 weight chunk
            pl.BlockSpec((1, N1), lambda k: (0, 0)),       # fc1 bias (resident)
            pl.BlockSpec((N2, N1), lambda k: (0, 0)),      # fc2 weight (resident)
            pl.BlockSpec((1, N2), lambda k: (0, 0)),
            pl.BlockSpec((N3, N2), lambda k: (0, 0)),      # fc3 weight (resident)
            pl.BlockSpec((1, N3), lambda k: (0, 0)),
        ],
        out_specs=pl.BlockSpec((B, N3), lambda k: (0, 0)),
        scratch_shapes=[pltpu.VMEM((B, N1), jnp.float32)],
        compiler_params=pltpu.CompilerParams(
            dimension_semantics=("arbitrary",)),
    )(x.astype(jnp.float32), w1, b1.reshape(1, N1),
      w2, b2.reshape(1, N2), w3, b3.reshape(1, N3))


# ----------------------------------------------------------------------------
# Full encoder forward (matches the PyTorch module)
# ----------------------------------------------------------------------------
def encoder_forward(params, u_nchw, latent_dim=LATENT_DIM):
    """u_nchw: (B, 1, 46, 46) float32 (PyTorch NCHW convention)."""
    # channel-first layout (C, B, H, W): conv matmuls become (Cout, M) lane-dense
    x = jnp.transpose(u_nchw, (1, 0, 2, 3)).astype(jnp.float32)   # (1, B, 46, 46)
    x = conv2x2_gelu(x, params["conv1_w"], params["conv1_b"], pool=False)  # (8,B,45,45)
    x = conv2x2_gelu(x, params["conv2_w"], params["conv2_b"], pool=True)   # (16,B,22,22)
    x = conv2x2_gelu(x, params["conv3_w"], params["conv3_b"], pool=False)  # (32,B,21,21)
    x = conv2x2_gelu(x, params["conv4_w"], params["conv4_b"], pool=True)   # (64,B,10,10)

    # nn.Flatten flattens NCHW order: (C,B,H,W) -> (B, C*H*W)
    C, B, H, W = x.shape
    x = jnp.transpose(x, (1, 0, 2, 3)).reshape(B, C * H * W)                # (B, 6400)

    out = fc_head(x, params["fc1_w"], params["fc1_b"],
                  params["fc2_w"], params["fc2_b"],
                  params["fc3_w"], params["fc3_b"])                         # (B, 64)
    mean = out[:, :latent_dim]
    logvar = out[:, latent_dim:]
    return mean, logvar


# ----------------------------------------------------------------------------
# Deterministic parameter initialization (PyTorch shapes / conventions)
# ----------------------------------------------------------------------------
def init_params(key, latent_dim=LATENT_DIM):
    ks = jax.random.split(key, 14)

    def u(k, shape, fan_in):
        bound = 1.0 / math.sqrt(fan_in)
        return jax.random.uniform(k, shape, jnp.float32, -bound, bound)

    return {
        "conv1_w": u(ks[0], (8, 1, 2, 2), 1 * 4),    "conv1_b": u(ks[1], (8,), 1 * 4),
        "conv2_w": u(ks[2], (16, 8, 2, 2), 8 * 4),   "conv2_b": u(ks[3], (16,), 8 * 4),
        "conv3_w": u(ks[4], (32, 16, 2, 2), 16 * 4), "conv3_b": u(ks[5], (32,), 16 * 4),
        "conv4_w": u(ks[6], (64, 32, 2, 2), 32 * 4), "conv4_b": u(ks[7], (64,), 32 * 4),
        "fc1_w": u(ks[8], (256, 64 * 10 * 10), 6400), "fc1_b": u(ks[9], (256,), 6400),
        "fc2_w": u(ks[10], (128, 256), 256),          "fc2_b": u(ks[11], (128,), 256),
        "fc3_w": u(ks[12], (2 * latent_dim, 128), 128),
        "fc3_b": u(ks[13], (2 * latent_dim,), 128),
    }


if __name__ == "__main__":
    key = jax.random.PRNGKey(0)
    pkey, xkey = jax.random.split(key)
    params = init_params(pkey)

    # Spatial size is fixed to 46x46 by the Linear(64*10*10, 256) layer.
    u_in = jax.random.normal(xkey, (2, 1, 46, 46), jnp.float32)

    mean, logvar = jax.jit(encoder_forward)(params, u_in)
    jax.block_until_ready((mean, logvar))

    assert mean.shape == (2, LATENT_DIM) and logvar.shape == (2, LATENT_DIM)
    assert mean.dtype == jnp.float32 and logvar.dtype == jnp.float32
    assert bool(jnp.all(jnp.isfinite(mean))) and bool(jnp.all(jnp.isfinite(logvar)))
    print("KERNEL_OK")
</pallas_src>

<mosaic_0001>
module attributes {stable_mosaic.version = 11 : i64} {
  func.func @_conv_gelu_pool_kernel(%arg0: i32, %arg1: memref<1x4x512xf32, #tpu.memory_space<vmem>>, %arg2: memref<8x4xf32, #tpu.memory_space<vmem>>, %arg3: memref<8x1xf32, #tpu.memory_space<vmem>>, %arg4: memref<8x512xf32, #tpu.memory_space<vmem>>) attributes {dimension_semantics = [#tpu.dimension_semantics<parallel>], iteration_bounds = array<i64: 8>, scalar_prefetch = 0 : i64, scratch_operands = 0 : i64, tpu.core_type = #tpu.core_type<tc>, window_params = [{transform_indices = @transform_0, window_bounds = array<i64: 1, 4, 512>}, {pipeline_mode = #tpu.pipeline_mode<synchronous>, transform_indices = @transform_1, window_bounds = array<i64: 8, 4>}, {pipeline_mode = #tpu.pipeline_mode<synchronous>, transform_indices = @transform_2, window_bounds = array<i64: 8, 1>}, {transform_indices = @transform_3, window_bounds = array<i64: 8, 512>}]} {
    %c0 = arith.constant 0 : index
    %c0_0 = arith.constant 0 : index
    %0 = vector.load %arg2[%c0, %c0_0] : memref<8x4xf32, #tpu.memory_space<vmem>>, vector<8x4xf32>
    %c0_1 = arith.constant 0 : index
    %c0_2 = arith.constant 0 : index
    %1 = vector.load %arg3[%c0_1, %c0_2] : memref<8x1xf32, #tpu.memory_space<vmem>>, vector<8x1xf32>
    %c0_3 = arith.constant 0 : index
    %c0_4 = arith.constant 0 : index
    %c0_5 = arith.constant 0 : index
    %2 = vector.load %arg1[%c0_3, %c0_4, %c0_5] : memref<1x4x512xf32, #tpu.memory_space<vmem>>, vector<1x4x512xf32>
    %3 = vector.shape_cast %2 : vector<1x4x512xf32> to vector<4x512xf32>
    %cst = arith.constant dense<0.000000e+00> : vector<8x512xf32>
    %4 = tpu.matmul %0, %3, %cst {dimension_numbers = #tpu.dot_dimension_numbers<[1], [0], [0], [1], [0, 0, 1, 1], [], []>} : vector<8x4xf32>, vector<4x512xf32>, vector<8x512xf32> -> vector<8x512xf32>
    %5 = vector.broadcast %1 : vector<8x1xf32> to vector<8x512xf32>
    %6 = arith.addf %4, %5 : vector<8x512xf32>
    %cst_6 = arith.constant 0.707106769 : f32
    %7 = vector.broadcast %cst_6 : f32 to vector<8x512xf32>
    %8 = arith.mulf %6, %7 : vector<8x512xf32>
    %cst_7 = arith.constant 0.000000e+00 : f32
    %9 = vector.broadcast %cst_7 : f32 to vector<8x512xf32>
    %10 = arith.cmpf oge, %8, %9 : vector<8x512xf32>
    %cst_8 = arith.constant 1.000000e+00 : f32
    %cst_9 = arith.constant -1.000000e+00 : f32
    %11 = vector.broadcast %cst_8 : f32 to vector<8x512xf32>
    %12 = vector.broadcast %cst_9 : f32 to vector<8x512xf32>
    %13 = arith.select %10, %11, %12 : vector<8x512xi1>, vector<8x512xf32>
    %14 = math.absf %8 : vector<8x512xf32>
    %cst_10 = arith.constant 0.327591091 : f32
    %15 = vector.broadcast %cst_10 : f32 to vector<8x512xf32>
    %16 = arith.mulf %15, %14 : vector<8x512xf32>
    %cst_11 = arith.constant 1.000000e+00 : f32
    %17 = vector.broadcast %cst_11 : f32 to vector<8x512xf32>
    %18 = arith.addf %17, %16 : vector<8x512xf32>
    %19 = tpu.reciprocal %18 {approx = true} : vector<8x512xf32> -> vector<8x512xf32>
    %cst_12 = arith.constant 1.06140542 : f32
    %20 = vector.broadcast %cst_12 : f32 to vector<8x512xf32>
    %21 = arith.mulf %20, %19 : vector<8x512xf32>
    %cst_13 = arith.constant -1.45315206 : f32
    %22 = vector.broadcast %cst_13 : f32 to vector<8x512xf32>
    %23 = arith.addf %21, %22 : vector<8x512xf32>
    %24 = arith.mulf %23, %19 : vector<8x512xf32>
    %cst_14 = arith.constant 1.42141378 : f32
    %25 = vector.broadcast %cst_14 : f32 to vector<8x512xf32>
    %26 = arith.addf %24, %25 : vector<8x512xf32>
    %27 = arith.mulf %26, %19 : vector<8x512xf32>
    %cst_15 = arith.constant -0.284496725 : f32
    %28 = vector.broadcast %cst_15 : f32 to vector<8x512xf32>
    %29 = arith.addf %27, %28 : vector<8x512xf32>
    %30 = arith.mulf %29, %19 : vector<8x512xf32>
    %cst_16 = arith.constant 0.254829586 : f32
    %31 = vector.broadcast %cst_16 : f32 to vector<8x512xf32>
    %32 = arith.addf %30, %31 : vector<8x512xf32>
    %33 = arith.mulf %32, %19 : vector<8x512xf32>
    %cst_17 = arith.constant 0.000000e+00 : f32
    %34 = vector.broadcast %cst_17 : f32 to vector<8x512xf32>
    %35 = arith.subf %34, %14 : vector<8x512xf32>
    %36 = arith.mulf %35, %14 : vector<8x512xf32>
    %37 = math.exp %36 : vector<8x512xf32>
    %38 = arith.mulf %33, %37 : vector<8x512xf32>
    %cst_18 = arith.constant 1.000000e+00 : f32
    %39 = vector.broadcast %cst_18 : f32 to vector<8x512xf32>
    %40 = arith.subf %39, %38 : vector<8x512xf32>
    %41 = arith.mulf %13, %40 : vector<8x512xf32>
    %cst_19 = arith.constant 5.000000e-01 : f32
    %42 = vector.broadcast %cst_19 : f32 to vector<8x512xf32>
    %43 = arith.mulf %42, %6 : vector<8x512xf32>
    %cst_20 = arith.constant 1.000000e+00 : f32
    %44 = vector.broadcast %cst_20 : f32 to vector<8x512xf32>
    %45 = arith.addf %44, %41 : vector<8x512xf32>
    %46 = arith.mulf %43, %45 : vector<8x512xf32>
    %c0_21 = arith.constant 0 : index
    %c0_22 = arith.constant 0 : index
    %47 = vector.load %arg4[%c0_21, %c0_22] : memref<8x512xf32, #tpu.memory_space<vmem>>, vector<8x512xf32>
    tpu.vector_store %arg4[%c0_21, %c0_22], %46 {strides = array<i32>} : memref<8x512xf32, #tpu.memory_space<vmem>>, vector<8x512xf32>,
    return
  }
  func.func @transform_0(%arg0: i32) -> (i32, i32, i32) {
    %c0_i32 = arith.constant 0 : i32
    %c0_i32_0 = arith.constant 0 : i32
    %c0_i32_1 = arith.constant 0 : i32
    return %c0_i32, %c0_i32_0, %arg0 : i32, i32, i32
  }
  func.func @transform_1(%arg0: i32) -> (i32, i32) {
    %c0_i32 = arith.constant 0 : i32
    %c0_i32_0 = arith.constant 0 : i32
    %c0_i32_1 = arith.constant 0 : i32
    return %c0_i32, %c0_i32_0 : i32, i32
  }
  func.func @transform_2(%arg0: i32) -> (i32, i32) {
    %c0_i32 = arith.constant 0 : i32
    %c0_i32_0 = arith.constant 0 : i32
    %c0_i32_1 = arith.constant 0 : i32
    return %c0_i32, %c0_i32_0 : i32, i32
  }
  func.func @transform_3(%arg0: i32) -> (i32, i32) {
    %c0_i32 = arith.constant 0 : i32
    %c0_i32_0 = arith.constant 0 : i32
    return %c0_i32, %arg0 : i32, i32
  }
}

module attributes {stable_mosaic.version = 11 : i64} {
  func.func @_conv_gelu_pool_kernel(%arg0: i32, %arg1: memref<4x32x512xf32, #tpu.memory_space<vmem>>, %arg2: memref<16x32xf32, #tpu.memory_space<vmem>>, %arg3: memref<16x1xf32, #tpu.memory_space<vmem>>, %arg4: memref<16x512xf32, #tpu.memory_space<vmem>>) attributes {dimension_semantics = [#tpu.dimension_semantics<parallel>], iteration_bounds = array<i64: 2>, scalar_prefetch = 0 : i64, scratch_operands = 0 : i64, tpu.core_type = #tpu.core_type<tc>, window_params = [{transform_indices = @transform_0, window_bounds = array<i64: 4, 32, 512>}, {pipeline_mode = #tpu.pipeline_mode<synchronous>, transform_indices = @transform_1, window_bounds = array<i64: 16, 32>}, {pipeline_mode = #tpu.pipeline_mode<synchronous>, transform_indices = @transform_2, window_bounds = array<i64: 16, 1>}, {transform_indices = @transform_3, window_bounds = array<i64: 16, 512>}]} {
    %c0 = arith.constant 0 : index
    %c0_0 = arith.constant 0 : index
    %0 = vector.load %arg2[%c0, %c0_0] : memref<16x32xf32, #tpu.memory_space<vmem>>, vector<16x32xf32>
    %c0_1 = arith.constant 0 : index
    %c0_2 = arith.constant 0 : index
    %1 = vector.load %arg3[%c0_1, %c0_2] : memref<16x1xf32, #tpu.memory_space<vmem>>, vector<16x1xf32>
    %c0_3 = arith.constant 0 : index
    %c0_4 = arith.constant 0 : index
    %c0_5 = arith.constant 0 : index
    %2 = vector.load %arg1[%c0_3, %c0_4, %c0_5] : memref<4x32x512xf32, #tpu.memory_space<vmem>>, vector<1x32x512xf32>
    %3 = vector.shape_cast %2 : vector<1x32x512xf32> to vector<32x512xf32>
    %cst = arith.constant dense<0.000000e+00> : vector<16x512xf32>
    %4 = tpu.matmul %0, %3, %cst {dimension_numbers = #tpu.dot_dimension_numbers<[1], [0], [0], [1], [0, 0, 1, 1], [], []>} : vector<16x32xf32>, vector<32x512xf32>, vector<16x512xf32> -> vector<16x512xf32>
    %5 = vector.broadcast %1 : vector<16x1xf32> to vector<16x512xf32>
    %6 = arith.addf %4, %5 : vector<16x512xf32>
    %cst_6 = arith.constant 0.707106769 : f32
    %7 = vector.broadcast %cst_6 : f32 to vector<16x512xf32>
    %8 = arith.mulf %6, %7 : vector<16x512xf32>
    %cst_7 = arith.constant 0.000000e+00 : f32
    %9 = vector.broadcast %cst_7 : f32 to vector<16x512xf32>
    %10 = arith.cmpf oge, %8, %9 : vector<16x512xf32>
    %cst_8 = arith.constant 1.000000e+00 : f32
    %cst_9 = arith.constant -1.000000e+00 : f32
    %11 = vector.broadcast %cst_8 : f32 to vector<16x512xf32>
    %12 = vector.broadcast %cst_9 : f32 to vector<16x512xf32>
    %13 = arith.select %10, %11, %12 : vector<16x512xi1>, vector<16x512xf32>
    %14 = math.absf %8 : vector<16x512xf32>
    %cst_10 = arith.constant 0.327591091 : f32
    %15 = vector.broadcast %cst_10 : f32 to vector<16x512xf32>
    %16 = arith.mulf %15, %14 : vector<16x512xf32>
    %cst_11 = arith.constant 1.000000e+00 : f32
    %17 = vector.broadcast %cst_11 : f32 to vector<16x512xf32>
    %18 = arith.addf %17, %16 : vector<16x512xf32>
    %19 = tpu.reciprocal %18 {approx = true} : vector<16x512xf32> -> vector<16x512xf32>
    %cst_12 = arith.constant 1.06140542 : f32
    %20 = vector.broadcast %cst_12 : f32 to vector<16x512xf32>
    %21 = arith.mulf %20, %19 : vector<16x512xf32>
    %cst_13 = arith.constant -1.45315206 : f32
    %22 = vector.broadcast %cst_13 : f32 to vector<16x512xf32>
    %23 = arith.addf %21, %22 : vector<16x512xf32>
    %24 = arith.mulf %23, %19 : vector<16x512xf32>
    %cst_14 = arith.constant 1.42141378 : f32
    %25 = vector.broadcast %cst_14 : f32 to vector<16x512xf32>
    %26 = arith.addf %24, %25 : vector<16x512xf32>
    %27 = arith.mulf %26, %19 : vector<16x512xf32>
    %cst_15 = arith.constant -0.284496725 : f32
    %28 = vector.broadcast %cst_15 : f32 to vector<16x512xf32>
    %29 = arith.addf %27, %28 : vector<16x512xf32>
    %30 = arith.mulf %29, %19 : vector<16x512xf32>
    %cst_16 = arith.constant 0.254829586 : f32
    %31 = vector.broadcast %cst_16 : f32 to vector<16x512xf32>
    %32 = arith.addf %30, %31 : vector<16x512xf32>
    %33 = arith.mulf %32, %19 : vector<16x512xf32>
    %cst_17 = arith.constant 0.000000e+00 : f32
    %34 = vector.broadcast %cst_17 : f32 to vector<16x512xf32>
    %35 = arith.subf %34, %14 : vector<16x512xf32>
    %36 = arith.mulf %35, %14 : vector<16x512xf32>
    %37 = math.exp %36 : vector<16x512xf32>
    %38 = arith.mulf %33, %37 : vector<16x512xf32>
    %cst_18 = arith.constant 1.000000e+00 : f32
    %39 = vector.broadcast %cst_18 : f32 to vector<16x512xf32>
    %40 = arith.subf %39, %38 : vector<16x512xf32>
    %41 = arith.mulf %13, %40 : vector<16x512xf32>
    %cst_19 = arith.constant 5.000000e-01 : f32
    %42 = vector.broadcast %cst_19 : f32 to vector<16x512xf32>
    %43 = arith.mulf %42, %6 : vector<16x512xf32>
    %cst_20 = arith.constant 1.000000e+00 : f32
    %44 = vector.broadcast %cst_20 : f32 to vector<16x512xf32>
    %45 = arith.addf %44, %41 : vector<16x512xf32>
    %46 = arith.mulf %43, %45 : vector<16x512xf32>
    %c1 = arith.constant 1 : index
    %c0_21 = arith.constant 0 : index
    %c0_22 = arith.constant 0 : index
    %47 = vector.load %arg1[%c1, %c0_21, %c0_22] : memref<4x32x512xf32, #tpu.memory_space<vmem>>, vector<1x32x512xf32>
    %48 = vector.shape_cast %47 : vector<1x32x512xf32> to vector<32x512xf32>
    %cst_23 = arith.constant dense<0.000000e+00> : vector<16x512xf32>
    %49 = tpu.matmul %0, %48, %cst_23 {dimension_numbers = #tpu.dot_dimension_numbers<[1], [0], [0], [1], [0, 0, 1, 1], [], []>} : vector<16x32xf32>, vector<32x512xf32>, vector<16x512xf32> -> vector<16x512xf32>
    %50 = vector.broadcast %1 : vector<16x1xf32> to vector<16x512xf32>
    %51 = arith.addf %49, %50 : vector<16x512xf32>
    %cst_24 = arith.constant 0.707106769 : f32
    %52 = vector.broadcast %cst_24 : f32 to vector<16x512xf32>
    %53 = arith.mulf %51, %52 : vector<16x512xf32>
    %cst_25 = arith.constant 0.000000e+00 : f32
    %54 = vector.broadcast %cst_25 : f32 to vector<16x512xf32>
    %55 = arith.cmpf oge, %53, %54 : vector<16x512xf32>
    %cst_26 = arith.constant 1.000000e+00 : f32
    %cst_27 = arith.constant -1.000000e+00 : f32
    %56 = vector.broadcast %cst_26 : f32 to vector<16x512xf32>
    %57 = vector.broadcast %cst_27 : f32 to vector<16x512xf32>
    %58 = arith.select %55, %56, %57 : vector<16x512xi1>, vector<16x512xf32>
    %59 = math.absf %53 : vector<16x512xf32>
    %cst_28 = arith.constant 0.327591091 : f32
    %60 = vector.broadcast %cst_28 : f32 to vector<16x512xf32>
    %61 = arith.mulf %60, %59 : vector<16x512xf32>
    %cst_29 = arith.constant 1.000000e+00 : f32
    %62 = vector.broadcast %cst_29 : f32 to vector<16x512xf32>
    %63 = arith.addf %62, %61 : vector<16x512xf32>
    %64 = tpu.reciprocal %63 {approx = true} : vector<16x512xf32> -> vector<16x512xf32>
    %cst_30 = arith.constant 1.06140542 : f32
    %65 = vector.broadcast %cst_30 : f32 to vector<16x512xf32>
    %66 = arith.mulf %65, %64 : vector<16x512xf32>
    %cst_31 = arith.constant -1.45315206 : f32
    %67 = vector.broadcast %cst_31 : f32 to vector<16x512xf32>
    %68 = arith.addf %66, %67 : vector<16x512xf32>
    %69 = arith.mulf %68, %64 : vector<16x512xf32>
    %cst_32 = arith.constant 1.42141378 : f32
    %70 = vector.broadcast %cst_32 : f32 to vector<16x512xf32>
    %71 = arith.addf %69, %70 : vector<16x512xf32>
    %72 = arith.mulf %71, %64 : vector<16x512xf32>
    %cst_33 = arith.constant -0.284496725 : f32
    %73 = vector.broadcast %cst_33 : f32 to vector<16x512xf32>
    %74 = arith.addf %72, %73 : vector<16x512xf32>
    %75 = arith.mulf %74, %64 : vector<16x512xf32>
    %cst_34 = arith.constant 0.254829586 : f32
    %76 = vector.broadcast %cst_34 : f32 to vector<16x512xf32>
    %77 = arith.addf %75, %76 : vector<16x512xf32>
    %78 = arith.mulf %77, %64 : vector<16x512xf32>
    %cst_35 = arith.constant 0.000000e+00 : f32
    %79 = vector.broadcast %cst_35 : f32 to vector<16x512xf32>
    %80 = arith.subf %79, %59 : vector<16x512xf32>
    %81 = arith.mulf %80, %59 : vector<16x512xf32>
    %82 = math.exp %81 : vector<16x512xf32>
    %83 = arith.mulf %78, %82 : vector<16x512xf32>
    %cst_36 = arith.constant 1.000000e+00 : f32
    %84 = vector.broadcast %cst_36 : f32 to vector<16x512xf32>
    %85 = arith.subf %84, %83 : vector<16x512xf32>
    %86 = arith.mulf %58, %85 : vector<16x512xf32>
    %cst_37 = arith.constant 5.000000e-01 : f32
    %87 = vector.broadcast %cst_37 : f32 to vector<16x512xf32>
    %88 = arith.mulf %87, %51 : vector<16x512xf32>
    %cst_38 = arith.constant 1.000000e+00 : f32
    %89 = vector.broadcast %cst_38 : f32 to vector<16x512xf32>
    %90 = arith.addf %89, %86 : vector<16x512xf32>
    %91 = arith.mulf %88, %90 : vector<16x512xf32>
    %92 = arith.maximumf %46, %91 : vector<16x512xf32>
    %c2 = arith.constant 2 : index
    %c0_39 = arith.constant 0 : index
    %c0_40 = arith.constant 0 : index
    %93 = vector.load %arg1[%c2, %c0_39, %c0_40] : memref<4x32x512xf32, #tpu.memory_space<vmem>>, vector<1x32x512xf32>
    %94 = vector.shape_cast %93 : vector<1x32x512xf32> to vector<32x512xf32>
    %cst_41 = arith.constant dense<0.000000e+00> : vector<16x512xf32>
    %95 = tpu.matmul %0, %94, %cst_41 {dimension_numbers = #tpu.dot_dimension_numbers<[1], [0], [0], [1], [0, 0, 1, 1], [], []>} : vector<16x32xf32>, vector<32x512xf32>, vector<16x512xf32> -> vector<16x512xf32>
    %96 = vector.broadcast %1 : vector<16x1xf32> to vector<16x512xf32>
    %97 = arith.addf %95, %96 : vector<16x512xf32>
    %cst_42 = arith.constant 0.707106769 : f32
    %98 = vector.broadcast %cst_42 : f32 to vector<16x512xf32>
    %99 = arith.mulf %97, %98 : vector<16x512xf32>
    %cst_43 = arith.constant 0.000000e+00 : f32
    %100 = vector.broadcast %cst_43 : f32 to vector<16x512xf32>
    %101 = arith.cmpf oge, %99, %100 : vector<16x512xf32>
    %cst_44 = arith.constant 1.000000e+00 : f32
    %cst_45 = arith.constant -1.000000e+00 : f32
    %102 = vector.broadcast %cst_44 : f32 to vector<16x512xf32>
    %103 = vector.broadcast %cst_45 : f32 to vector<16x512xf32>
    %104 = arith.select %101, %102, %103 : vector<16x512xi1>, vector<16x512xf32>
    %105 = math.absf %99 : vector<16x512xf32>
    %cst_46 = arith.constant 0.327591091 : f32
    %106 = vector.broadcast %cst_46 : f32 to vector<16x512xf32>
    %107 = arith.mulf %106, %105 : vector<16x512xf32>
    %cst_47 = arith.constant 1.000000e+00 : f32
    %108 = vector.broadcast %cst_47 : f32 to vector<16x512xf32>
    %109 = arith.addf %108, %107 : vector<16x512xf32>
    %110 = tpu.reciprocal %109 {approx = true} : vector<16x512xf32> -> vector<16x512xf32>
    %cst_48 = arith.constant 1.06140542 : f32
    %111 = vector.broadcast %cst_48 : f32 to vector<16x512xf32>
    %112 = arith.mulf %111, %110 : vector<16x512xf32>
    %cst_49 = arith.constant -1.45315206 : f32
    %113 = vector.broadcast %cst_49 : f32 to vector<16x512xf32>
    %114 = arith.addf %112, %113 : vector<16x512xf32>
    %115 = arith.mulf %114, %110 : vector<16x512xf32>
    %cst_50 = arith.constant 1.42141378 : f32
    %116 = vector.broadcast %cst_50 : f32 to vector<16x512xf32>
    %117 = arith.addf %115, %116 : vector<16x512xf32>
    %118 = arith.mulf %117, %110 : vector<16x512xf32>
    %cst_51 = arith.constant -0.284496725 : f32
    %119 = vector.broadcast %cst_51 : f32 to vector<16x512xf32>
    %120 = arith.addf %118, %119 : vector<16x512xf32>
    %121 = arith.mulf %120, %110 : vector<16x512xf32>
    %cst_52 = arith.constant 0.254829586 : f32
    %122 = vector.broadcast %cst_52 : f32 to vector<16x512xf32>
    %123 = arith.addf %121, %122 : vector<16x512xf32>
    %124 = arith.mulf %123, %110 : vector<16x512xf32>
    %cst_53 = arith.constant 0.000000e+00 : f32
    %125 = vector.broadcast %cst_53 : f32 to vector<16x512xf32>
    %126 = arith.subf %125, %105 : vector<16x512xf32>
    %127 = arith.mulf %126, %105 : vector<16x512xf32>
    %128 = math.exp %127 : vector<16x512xf32>
    %129 = arith.mulf %124, %128 : vector<16x512xf32>
    %cst_54 = arith.constant 1.000000e+00 : f32
    %130 = vector.broadcast %cst_54 : f32 to vector<16x512xf32>
    %131 = arith.subf %130, %129 : vector<16x512xf32>
    %132 = arith.mulf %104, %131 : vector<16x512xf32>
    %cst_55 = arith.constant 5.000000e-01 : f32
    %133 = vector.broadcast %cst_55 : f32 to vector<16x512xf32>
    %134 = arith.mulf %133, %97 : vector<16x512xf32>
    %cst_56 = arith.constant 1.000000e+00 : f32
    %135 = vector.broadcast %cst_56 : f32 to vector<16x512xf32>
    %136 = arith.addf %135, %132 : vector<16x512xf32>
    %137 = arith.mulf %134, %136 : vector<16x512xf32>
    %138 = arith.maximumf %92, %137 : vector<16x512xf32>
    %c3 = arith.constant 3 : index
    %c0_57 = arith.constant 0 : index
    %c0_58 = arith.constant 0 : index
    %139 = vector.load %arg1[%c3, %c0_57, %c0_58] : memref<4x32x512xf32, #tpu.memory_space<vmem>>, vector<1x32x512xf32>
    %140 = vector.shape_cast %139 : vector<1x32x512xf32> to vector<32x512xf32>
    %cst_59 = arith.constant dense<0.000000e+00> : vector<16x512xf32>
    %141 = tpu.matmul %0, %140, %cst_59 {dimension_numbers = #tpu.dot_dimension_numbers<[1], [0], [0], [1], [0, 0, 1, 1], [], []>} : vector<16x32xf32>, vector<32x512xf32>, vector<16x512xf32> -> vector<16x512xf32>
    %142 = vector.broadcast %1 : vector<16x1xf32> to vector<16x512xf32>
    %143 = arith.addf %141, %142 : vector<16x512xf32>
    %cst_60 = arith.constant 0.707106769 : f32
    %144 = vector.broadcast %cst_60 : f32 to vector<16x512xf32>
    %145 = arith.mulf %143, %144 : vector<16x512xf32>
    %cst_61 = arith.constant 0.000000e+00 : f32
    %146 = vector.broadcast %cst_61 : f32 to vector<16x512xf32>
    %147 = arith.cmpf oge, %145, %146 : vector<16x512xf32>
    %cst_62 = arith.constant 1.000000e+00 : f32
    %cst_63 = arith.constant -1.000000e+00 : f32
    %148 = vector.broadcast %cst_62 : f32 to vector<16x512xf32>
    %149 = vector.broadcast %cst_63 : f32 to vector<16x512xf32>
    %150 = arith.select %147, %148, %149 : vector<16x512xi1>, vector<16x512xf32>
    %151 = math.absf %145 : vector<16x512xf32>
    %cst_64 = arith.constant 0.327591091 : f32
    %152 = vector.broadcast %cst_64 : f32 to vector<16x512xf32>
    %153 = arith.mulf %152, %151 : vector<16x512xf32>
    %cst_65 = arith.constant 1.000000e+00 : f32
    %154 = vector.broadcast %cst_65 : f32 to vector<16x512xf32>
    %155 = arith.addf %154, %153 : vector<16x512xf32>
    %156 = tpu.reciprocal %155 {approx = true} : vector<16x512xf32> -> vector<16x512xf32>
    %cst_66 = arith.constant 1.06140542 : f32
    %157 = vector.broadcast %cst_66 : f32 to vector<16x512xf32>
    %158 = arith.mulf %157, %156 : vector<16x512xf32>
    %cst_67 = arith.constant -1.45315206 : f32
    %159 = vector.broadcast %cst_67 : f32 to vector<16x512xf32>
    %160 = arith.addf %158, %159 : vector<16x512xf32>
    %161 = arith.mulf %160, %156 : vector<16x512xf32>
    %cst_68 = arith.constant 1.42141378 : f32
    %162 = vector.broadcast %cst_68 : f32 to vector<16x512xf32>
    %163 = arith.addf %161, %162 : vector<16x512xf32>
    %164 = arith.mulf %163, %156 : vector<16x512xf32>
    %cst_69 = arith.constant -0.284496725 : f32
    %165 = vector.broadcast %cst_69 : f32 to vector<16x512xf32>
    %166 = arith.addf %164, %165 : vector<16x512xf32>
    %167 = arith.mulf %166, %156 : vector<16x512xf32>
    %cst_70 = arith.constant 0.254829586 : f32
    %168 = vector.broadcast %cst_70 : f32 to vector<16x512xf32>
    %169 = arith.addf %167, %168 : vector<16x512xf32>
    %170 = arith.mulf %169, %156 : vector<16x512xf32>
    %cst_71 = arith.constant 0.000000e+00 : f32
    %171 = vector.broadcast %cst_71 : f32 to vector<16x512xf32>
    %172 = arith.subf %171, %151 : vector<16x512xf32>
    %173 = arith.mulf %172, %151 : vector<16x512xf32>
    %174 = math.exp %173 : vector<16x512xf32>
    %175 = arith.mulf %170, %174 : vector<16x512xf32>
    %cst_72 = arith.constant 1.000000e+00 : f32
    %176 = vector.broadcast %cst_72 : f32 to vector<16x512xf32>
    %177 = arith.subf %176, %175 : vector<16x512xf32>
    %178 = arith.mulf %150, %177 : vector<16x512xf32>
    %cst_73 = arith.constant 5.000000e-01 : f32
    %179 = vector.broadcast %cst_73 : f32 to vector<16x512xf32>
    %180 = arith.mulf %179, %143 : vector<16x512xf32>
    %cst_74 = arith.constant 1.000000e+00 : f32
    %181 = vector.broadcast %cst_74 : f32 to vector<16x512xf32>
    %182 = arith.addf %181, %178 : vector<16x512xf32>
    %183 = arith.mulf %180, %182 : vector<16x512xf32>
    %184 = arith.maximumf %138, %183 : vector<16x512xf32>
    %c0_75 = arith.constant 0 : index
    %c0_76 = arith.constant 0 : index
    %185 = vector.load %arg4[%c0_75, %c0_76] : memref<16x512xf32, #tpu.memory_space<vmem>>, vector<16x512xf32>
    tpu.vector_store %arg4[%c0_75, %c0_76], %184 {strides = array<i32>} : memref<16x512xf32, #tpu.memory_space<vmem>>, vector<16x512xf32>,
    return
  }
  func.func @transform_0(%arg0: i32) -> (i32, i32, i32) {
    %c0_i32 = arith.constant 0 : i32
    %c0_i32_0 = arith.constant 0 : i32
    %c0_i32_1 = arith.constant 0 : i32
    return %c0_i32, %c0_i32_0, %arg0 : i32, i32, i32
  }
  func.func @transform_1(%arg0: i32) -> (i32, i32) {
    %c0_i32 = arith.constant 0 : i32
    %c0_i32_0 = arith.constant 0 : i32
    %c0_i32_1 = arith.constant 0 : i32
    return %c0_i32, %c0_i32_0 : i32, i32
  }
  func.func @transform_2(%arg0: i32) -> (i32, i32) {
    %c0_i32 = arith.constant 0 : i32
    %c0_i32_0 = arith.constant 0 : i32
    %c0_i32_1 = arith.constant 0 : i32
    return %c0_i32, %c0_i32_0 : i32, i32
  }
  func.func @transform_3(%arg0: i32) -> (i32, i32) {
    %c0_i32 = arith.constant 0 : i32
    %c0_i32_0 = arith.constant 0 : i32
    return %c0_i32, %arg0 : i32, i32
  }
}

module attributes {stable_mosaic.version = 11 : i64} {
  func.func @_conv_gelu_pool_kernel(%arg0: i32, %arg1: memref<1x64x512xf32, #tpu.memory_space<vmem>>, %arg2: memref<32x64xf32, #tpu.memory_space<vmem>>, %arg3: memref<32x1xf32, #tpu.memory_space<vmem>>, %arg4: memref<32x512xf32, #tpu.memory_space<vmem>>) attributes {dimension_semantics = [#tpu.dimension_semantics<parallel>], iteration_bounds = array<i64: 2>, scalar_prefetch = 0 : i64, scratch_operands = 0 : i64, tpu.core_type = #tpu.core_type<tc>, window_params = [{transform_indices = @transform_0, window_bounds = array<i64: 1, 64, 512>}, {pipeline_mode = #tpu.pipeline_mode<synchronous>, transform_indices = @transform_1, window_bounds = array<i64: 32, 64>}, {pipeline_mode = #tpu.pipeline_mode<synchronous>, transform_indices = @transform_2, window_bounds = array<i64: 32, 1>}, {transform_indices = @transform_3, window_bounds = array<i64: 32, 512>}]} {
    %c0 = arith.constant 0 : index
    %c0_0 = arith.constant 0 : index
    %0 = vector.load %arg2[%c0, %c0_0] : memref<32x64xf32, #tpu.memory_space<vmem>>, vector<32x64xf32>
    %c0_1 = arith.constant 0 : index
    %c0_2 = arith.constant 0 : index
    %1 = vector.load %arg3[%c0_1, %c0_2] : memref<32x1xf32, #tpu.memory_space<vmem>>, vector<32x1xf32>
    %c0_3 = arith.constant 0 : index
    %c0_4 = arith.constant 0 : index
    %c0_5 = arith.constant 0 : index
    %2 = vector.load %arg1[%c0_3, %c0_4, %c0_5] : memref<1x64x512xf32, #tpu.memory_space<vmem>>, vector<1x64x512xf32>
    %3 = vector.shape_cast %2 : vector<1x64x512xf32> to vector<64x512xf32>
    %cst = arith.constant dense<0.000000e+00> : vector<32x512xf32>
    %4 = tpu.matmul %0, %3, %cst {dimension_numbers = #tpu.dot_dimension_numbers<[1], [0], [0], [1], [0, 0, 1, 1], [], []>} : vector<32x64xf32>, vector<64x512xf32>, vector<32x512xf32> -> vector<32x512xf32>
    %5 = vector.broadcast %1 : vector<32x1xf32> to vector<32x512xf32>
    %6 = arith.addf %4, %5 : vector<32x512xf32>
    %cst_6 = arith.constant 0.707106769 : f32
    %7 = vector.broadcast %cst_6 : f32 to vector<32x512xf32>
    %8 = arith.mulf %6, %7 : vector<32x512xf32>
    %cst_7 = arith.constant 0.000000e+00 : f32
    %9 = vector.broadcast %cst_7 : f32 to vector<32x512xf32>
    %10 = arith.cmpf oge, %8, %9 : vector<32x512xf32>
    %cst_8 = arith.constant 1.000000e+00 : f32
    %cst_9 = arith.constant -1.000000e+00 : f32
    %11 = vector.broadcast %cst_8 : f32 to vector<32x512xf32>
    %12 = vector.broadcast %cst_9 : f32 to vector<32x512xf32>
    %13 = arith.select %10, %11, %12 : vector<32x512xi1>, vector<32x512xf32>
    %14 = math.absf %8 : vector<32x512xf32>
    %cst_10 = arith.constant 0.327591091 : f32
    %15 = vector.broadcast %cst_10 : f32 to vector<32x512xf32>
    %16 = arith.mulf %15, %14 : vector<32x512xf32>
    %cst_11 = arith.constant 1.000000e+00 : f32
    %17 = vector.broadcast %cst_11 : f32 to vector<32x512xf32>
    %18 = arith.addf %17, %16 : vector<32x512xf32>
    %19 = tpu.reciprocal %18 {approx = true} : vector<32x512xf32> -> vector<32x512xf32>
    %cst_12 = arith.constant 1.06140542 : f32
    %20 = vector.broadcast %cst_12 : f32 to vector<32x512xf32>
    %21 = arith.mulf %20, %19 : vector<32x512xf32>
    %cst_13 = arith.constant -1.45315206 : f32
    %22 = vector.broadcast %cst_13 : f32 to vector<32x512xf32>
    %23 = arith.addf %21, %22 : vector<32x512xf32>
    %24 = arith.mulf %23, %19 : vector<32x512xf32>
    %cst_14 = arith.constant 1.42141378 : f32
    %25 = vector.broadcast %cst_14 : f32 to vector<32x512xf32>
    %26 = arith.addf %24, %25 : vector<32x512xf32>
    %27 = arith.mulf %26, %19 : vector<32x512xf32>
    %cst_15 = arith.constant -0.284496725 : f32
    %28 = vector.broadcast %cst_15 : f32 to vector<32x512xf32>
    %29 = arith.addf %27, %28 : vector<32x512xf32>
    %30 = arith.mulf %29, %19 : vector<32x512xf32>
    %cst_16 = arith.constant 0.254829586 : f32
    %31 = vector.broadcast %cst_16 : f32 to vector<32x512xf32>
    %32 = arith.addf %30, %31 : vector<32x512xf32>
    %33 = arith.mulf %32, %19 : vector<32x512xf32>
    %cst_17 = arith.constant 0.000000e+00 : f32
    %34 = vector.broadcast %cst_17 : f32 to vector<32x512xf32>
    %35 = arith.subf %34, %14 : vector<32x512xf32>
    %36 = arith.mulf %35, %14 : vector<32x512xf32>
    %37 = math.exp %36 : vector<32x512xf32>
    %38 = arith.mulf %33, %37 : vector<32x512xf32>
    %cst_18 = arith.constant 1.000000e+00 : f32
    %39 = vector.broadcast %cst_18 : f32 to vector<32x512xf32>
    %40 = arith.subf %39, %38 : vector<32x512xf32>
    %41 = arith.mulf %13, %40 : vector<32x512xf32>
    %cst_19 = arith.constant 5.000000e-01 : f32
    %42 = vector.broadcast %cst_19 : f32 to vector<32x512xf32>
    %43 = arith.mulf %42, %6 : vector<32x512xf32>
    %cst_20 = arith.constant 1.000000e+00 : f32
    %44 = vector.broadcast %cst_20 : f32 to vector<32x512xf32>
    %45 = arith.addf %44, %41 : vector<32x512xf32>
    %46 = arith.mulf %43, %45 : vector<32x512xf32>
    %c0_21 = arith.constant 0 : index
    %c0_22 = arith.constant 0 : index
    %47 = vector.load %arg4[%c0_21, %c0_22] : memref<32x512xf32, #tpu.memory_space<vmem>>, vector<32x512xf32>
    tpu.vector_store %arg4[%c0_21, %c0_22], %46 {strides = array<i32>} : memref<32x512xf32, #tpu.memory_space<vmem>>, vector<32x512xf32>,
    return
  }
  func.func @transform_0(%arg0: i32) -> (i32, i32, i32) {
    %c0_i32 = arith.constant 0 : i32
    %c0_i32_0 = arith.constant 0 : i32
    %c0_i32_1 = arith.constant 0 : i32
    return %c0_i32, %c0_i32_0, %arg0 : i32, i32, i32
  }
  func.func @transform_1(%arg0: i32) -> (i32, i32) {
    %c0_i32 = arith.constant 0 : i32
    %c0_i32_0 = arith.constant 0 : i32
    %c0_i32_1 = arith.constant 0 : i32
    return %c0_i32, %c0_i32_0 : i32, i32
  }
  func.func @transform_2(%arg0: i32) -> (i32, i32) {
    %c0_i32 = arith.constant 0 : i32
    %c0_i32_0 = arith.constant 0 : i32
    %c0_i32_1 = arith.constant 0 : i32
    return %c0_i32, %c0_i32_0 : i32, i32
  }
  func.func @transform_3(%arg0: i32) -> (i32, i32) {
    %c0_i32 = arith.constant 0 : i32
    %c0_i32_0 = arith.constant 0 : i32
    return %c0_i32, %arg0 : i32, i32
  }
}

module attributes {stable_mosaic.version = 11 : i64} {
  func.func @_conv_gelu_pool_kernel(%arg0: i32, %arg1: memref<4x128x256xf32, #tpu.memory_space<vmem>>, %arg2: memref<64x128xf32, #tpu.memory_space<vmem>>, %arg3: memref<64x1xf32, #tpu.memory_space<vmem>>, %arg4: memref<64x256xf32, #tpu.memory_space<vmem>>) attributes {dimension_semantics = [#tpu.dimension_semantics<parallel>], iteration_bounds = array<i64: 1>, scalar_prefetch = 0 : i64, scratch_operands = 0 : i64, tpu.core_type = #tpu.core_type<tc>, window_params = [{transform_indices = @transform_0, window_bounds = array<i64: 4, 128, 256>}, {pipeline_mode = #tpu.pipeline_mode<synchronous>, transform_indices = @transform_1, window_bounds = array<i64: 64, 128>}, {pipeline_mode = #tpu.pipeline_mode<synchronous>, transform_indices = @transform_2, window_bounds = array<i64: 64, 1>}, {transform_indices = @transform_3, window_bounds = array<i64: 64, 256>}]} {
    %c0 = arith.constant 0 : index
    %c0_0 = arith.constant 0 : index
    %0 = vector.load %arg2[%c0, %c0_0] : memref<64x128xf32, #tpu.memory_space<vmem>>, vector<64x128xf32>
    %c0_1 = arith.constant 0 : index
    %c0_2 = arith.constant 0 : index
    %1 = vector.load %arg3[%c0_1, %c0_2] : memref<64x1xf32, #tpu.memory_space<vmem>>, vector<64x1xf32>
    %c0_3 = arith.constant 0 : index
    %c0_4 = arith.constant 0 : index
    %c0_5 = arith.constant 0 : index
    %2 = vector.load %arg1[%c0_3, %c0_4, %c0_5] : memref<4x128x256xf32, #tpu.memory_space<vmem>>, vector<1x128x256xf32>
    %3 = vector.shape_cast %2 : vector<1x128x256xf32> to vector<128x256xf32>
    %cst = arith.constant dense<0.000000e+00> : vector<64x256xf32>
    %4 = tpu.matmul %0, %3, %cst {dimension_numbers = #tpu.dot_dimension_numbers<[1], [0], [0], [1], [0, 0, 1, 1], [], []>} : vector<64x128xf32>, vector<128x256xf32>, vector<64x256xf32> -> vector<64x256xf32>
    %5 = vector.broadcast %1 : vector<64x1xf32> to vector<64x256xf32>
    %6 = arith.addf %4, %5 : vector<64x256xf32>
    %cst_6 = arith.constant 0.707106769 : f32
    %7 = vector.broadcast %cst_6 : f32 to vector<64x256xf32>
    %8 = arith.mulf %6, %7 : vector<64x256xf32>
    %cst_7 = arith.constant 0.000000e+00 : f32
    %9 = vector.broadcast %cst_7 : f32 to vector<64x256xf32>
    %10 = arith.cmpf oge, %8, %9 : vector<64x256xf32>
    %cst_8 = arith.constant 1.000000e+00 : f32
    %cst_9 = arith.constant -1.000000e+00 : f32
    %11 = vector.broadcast %cst_8 : f32 to vector<64x256xf32>
    %12 = vector.broadcast %cst_9 : f32 to vector<64x256xf32>
    %13 = arith.select %10, %11, %12 : vector<64x256xi1>, vector<64x256xf32>
    %14 = math.absf %8 : vector<64x256xf32>
    %cst_10 = arith.constant 0.327591091 : f32
    %15 = vector.broadcast %cst_10 : f32 to vector<64x256xf32>
    %16 = arith.mulf %15, %14 : vector<64x256xf32>
    %cst_11 = arith.constant 1.000000e+00 : f32
    %17 = vector.broadcast %cst_11 : f32 to vector<64x256xf32>
    %18 = arith.addf %17, %16 : vector<64x256xf32>
    %19 = tpu.reciprocal %18 {approx = true} : vector<64x256xf32> -> vector<64x256xf32>
    %cst_12 = arith.constant 1.06140542 : f32
    %20 = vector.broadcast %cst_12 : f32 to vector<64x256xf32>
    %21 = arith.mulf %20, %19 : vector<64x256xf32>
    %cst_13 = arith.constant -1.45315206 : f32
    %22 = vector.broadcast %cst_13 : f32 to vector<64x256xf32>
    %23 = arith.addf %21, %22 : vector<64x256xf32>
    %24 = arith.mulf %23, %19 : vector<64x256xf32>
    %cst_14 = arith.constant 1.42141378 : f32
    %25 = vector.broadcast %cst_14 : f32 to vector<64x256xf32>
    %26 = arith.addf %24, %25 : vector<64x256xf32>
    %27 = arith.mulf %26, %19 : vector<64x256xf32>
    %cst_15 = arith.constant -0.284496725 : f32
    %28 = vector.broadcast %cst_15 : f32 to vector<64x256xf32>
    %29 = arith.addf %27, %28 : vector<64x256xf32>
    %30 = arith.mulf %29, %19 : vector<64x256xf32>
    %cst_16 = arith.constant 0.254829586 : f32
    %31 = vector.broadcast %cst_16 : f32 to vector<64x256xf32>
    %32 = arith.addf %30, %31 : vector<64x256xf32>
    %33 = arith.mulf %32, %19 : vector<64x256xf32>
    %cst_17 = arith.constant 0.000000e+00 : f32
    %34 = vector.broadcast %cst_17 : f32 to vector<64x256xf32>
    %35 = arith.subf %34, %14 : vector<64x256xf32>
    %36 = arith.mulf %35, %14 : vector<64x256xf32>
    %37 = math.exp %36 : vector<64x256xf32>
    %38 = arith.mulf %33, %37 : vector<64x256xf32>
    %cst_18 = arith.constant 1.000000e+00 : f32
    %39 = vector.broadcast %cst_18 : f32 to vector<64x256xf32>
    %40 = arith.subf %39, %38 : vector<64x256xf32>
    %41 = arith.mulf %13, %40 : vector<64x256xf32>
    %cst_19 = arith.constant 5.000000e-01 : f32
    %42 = vector.broadcast %cst_19 : f32 to vector<64x256xf32>
    %43 = arith.mulf %42, %6 : vector<64x256xf32>
    %cst_20 = arith.constant 1.000000e+00 : f32
    %44 = vector.broadcast %cst_20 : f32 to vector<64x256xf32>
    %45 = arith.addf %44, %41 : vector<64x256xf32>
    %46 = arith.mulf %43, %45 : vector<64x256xf32>
    %c1 = arith.constant 1 : index
    %c0_21 = arith.constant 0 : index
    %c0_22 = arith.constant 0 : index
    %47 = vector.load %arg1[%c1, %c0_21, %c0_22] : memref<4x128x256xf32, #tpu.memory_space<vmem>>, vector<1x128x256xf32>
    %48 = vector.shape_cast %47 : vector<1x128x256xf32> to vector<128x256xf32>
    %cst_23 = arith.constant dense<0.000000e+00> : vector<64x256xf32>
    %49 = tpu.matmul %0, %48, %cst_23 {dimension_numbers = #tpu.dot_dimension_numbers<[1], [0], [0], [1], [0, 0, 1, 1], [], []>} : vector<64x128xf32>, vector<128x256xf32>, vector<64x256xf32> -> vector<64x256xf32>
    %50 = vector.broadcast %1 : vector<64x1xf32> to vector<64x256xf32>
    %51 = arith.addf %49, %50 : vector<64x256xf32>
    %cst_24 = arith.constant 0.707106769 : f32
    %52 = vector.broadcast %cst_24 : f32 to vector<64x256xf32>
    %53 = arith.mulf %51, %52 : vector<64x256xf32>
    %cst_25 = arith.constant 0.000000e+00 : f32
    %54 = vector.broadcast %cst_25 : f32 to vector<64x256xf32>
    %55 = arith.cmpf oge, %53, %54 : vector<64x256xf32>
    %cst_26 = arith.constant 1.000000e+00 : f32
    %cst_27 = arith.constant -1.000000e+00 : f32
    %56 = vector.broadcast %cst_26 : f32 to vector<64x256xf32>
    %57 = vector.broadcast %cst_27 : f32 to vector<64x256xf32>
    %58 = arith.select %55, %56, %57 : vector<64x256xi1>, vector<64x256xf32>
    %59 = math.absf %53 : vector<64x256xf32>
    %cst_28 = arith.constant 0.327591091 : f32
    %60 = vector.broadcast %cst_28 : f32 to vector<64x256xf32>
    %61 = arith.mulf %60, %59 : vector<64x256xf32>
    %cst_29 = arith.constant 1.000000e+00 : f32
    %62 = vector.broadcast %cst_29 : f32 to vector<64x256xf32>
    %63 = arith.addf %62, %61 : vector<64x256xf32>
    %64 = tpu.reciprocal %63 {approx = true} : vector<64x256xf32> -> vector<64x256xf32>
    %cst_30 = arith.constant 1.06140542 : f32
    %65 = vector.broadcast %cst_30 : f32 to vector<64x256xf32>
    %66 = arith.mulf %65, %64 : vector<64x256xf32>
    %cst_31 = arith.constant -1.45315206 : f32
    %67 = vector.broadcast %cst_31 : f32 to vector<64x256xf32>
    %68 = arith.addf %66, %67 : vector<64x256xf32>
    %69 = arith.mulf %68, %64 : vector<64x256xf32>
    %cst_32 = arith.constant 1.42141378 : f32
    %70 = vector.broadcast %cst_32 : f32 to vector<64x256xf32>
    %71 = arith.addf %69, %70 : vector<64x256xf32>
    %72 = arith.mulf %71, %64 : vector<64x256xf32>
    %cst_33 = arith.constant -0.284496725 : f32
    %73 = vector.broadcast %cst_33 : f32 to vector<64x256xf32>
    %74 = arith.addf %72, %73 : vector<64x256xf32>
    %75 = arith.mulf %74, %64 : vector<64x256xf32>
    %cst_34 = arith.constant 0.254829586 : f32
    %76 = vector.broadcast %cst_34 : f32 to vector<64x256xf32>
    %77 = arith.addf %75, %76 : vector<64x256xf32>
    %78 = arith.mulf %77, %64 : vector<64x256xf32>
    %cst_35 = arith.constant 0.000000e+00 : f32
    %79 = vector.broadcast %cst_35 : f32 to vector<64x256xf32>
    %80 = arith.subf %79, %59 : vector<64x256xf32>
    %81 = arith.mulf %80, %59 : vector<64x256xf32>
    %82 = math.exp %81 : vector<64x256xf32>
    %83 = arith.mulf %78, %82 : vector<64x256xf32>
    %cst_36 = arith.constant 1.000000e+00 : f32
    %84 = vector.broadcast %cst_36 : f32 to vector<64x256xf32>
    %85 = arith.subf %84, %83 : vector<64x256xf32>
    %86 = arith.mulf %58, %85 : vector<64x256xf32>
    %cst_37 = arith.constant 5.000000e-01 : f32
    %87 = vector.broadcast %cst_37 : f32 to vector<64x256xf32>
    %88 = arith.mulf %87, %51 : vector<64x256xf32>
    %cst_38 = arith.constant 1.000000e+00 : f32
    %89 = vector.broadcast %cst_38 : f32 to vector<64x256xf32>
    %90 = arith.addf %89, %86 : vector<64x256xf32>
    %91 = arith.mulf %88, %90 : vector<64x256xf32>
    %92 = arith.maximumf %46, %91 : vector<64x256xf32>
    %c2 = arith.constant 2 : index
    %c0_39 = arith.constant 0 : index
    %c0_40 = arith.constant 0 : index
    %93 = vector.load %arg1[%c2, %c0_39, %c0_40] : memref<4x128x256xf32, #tpu.memory_space<vmem>>, vector<1x128x256xf32>
    %94 = vector.shape_cast %93 : vector<1x128x256xf32> to vector<128x256xf32>
    %cst_41 = arith.constant dense<0.000000e+00> : vector<64x256xf32>
    %95 = tpu.matmul %0, %94, %cst_41 {dimension_numbers = #tpu.dot_dimension_numbers<[1], [0], [0], [1], [0, 0, 1, 1], [], []>} : vector<64x128xf32>, vector<128x256xf32>, vector<64x256xf32> -> vector<64x256xf32>
    %96 = vector.broadcast %1 : vector<64x1xf32> to vector<64x256xf32>
    %97 = arith.addf %95, %96 : vector<64x256xf32>
    %cst_42 = arith.constant 0.707106769 : f32
    %98 = vector.broadcast %cst_42 : f32 to vector<64x256xf32>
    %99 = arith.mulf %97, %98 : vector<64x256xf32>
    %cst_43 = arith.constant 0.000000e+00 : f32
    %100 = vector.broadcast %cst_43 : f32 to vector<64x256xf32>
    %101 = arith.cmpf oge, %99, %100 : vector<64x256xf32>
    %cst_44 = arith.constant 1.000000e+00 : f32
    %cst_45 = arith.constant -1.000000e+00 : f32
    %102 = vector.broadcast %cst_44 : f32 to vector<64x256xf32>
    %103 = vector.broadcast %cst_45 : f32 to vector<64x256xf32>
    %104 = arith.select %101, %102, %103 : vector<64x256xi1>, vector<64x256xf32>
    %105 = math.absf %99 : vector<64x256xf32>
    %cst_46 = arith.constant 0.327591091 : f32
    %106 = vector.broadcast %cst_46 : f32 to vector<64x256xf32>
    %107 = arith.mulf %106, %105 : vector<64x256xf32>
    %cst_47 = arith.constant 1.000000e+00 : f32
    %108 = vector.broadcast %cst_47 : f32 to vector<64x256xf32>
    %109 = arith.addf %108, %107 : vector<64x256xf32>
    %110 = tpu.reciprocal %109 {approx = true} : vector<64x256xf32> -> vector<64x256xf32>
    %cst_48 = arith.constant 1.06140542 : f32
    %111 = vector.broadcast %cst_48 : f32 to vector<64x256xf32>
    %112 = arith.mulf %111, %110 : vector<64x256xf32>
    %cst_49 = arith.constant -1.45315206 : f32
    %113 = vector.broadcast %cst_49 : f32 to vector<64x256xf32>
    %114 = arith.addf %112, %113 : vector<64x256xf32>
    %115 = arith.mulf %114, %110 : vector<64x256xf32>
    %cst_50 = arith.constant 1.42141378 : f32
    %116 = vector.broadcast %cst_50 : f32 to vector<64x256xf32>
    %117 = arith.addf %115, %116 : vector<64x256xf32>
    %118 = arith.mulf %117, %110 : vector<64x256xf32>
    %cst_51 = arith.constant -0.284496725 : f32
    %119 = vector.broadcast %cst_51 : f32 to vector<64x256xf32>
    %120 = arith.addf %118, %119 : vector<64x256xf32>
    %121 = arith.mulf %120, %110 : vector<64x256xf32>
    %cst_52 = arith.constant 0.254829586 : f32
    %122 = vector.broadcast %cst_52 : f32 to vector<64x256xf32>
    %123 = arith.addf %121, %122 : vector<64x256xf32>
    %124 = arith.mulf %123, %110 : vector<64x256xf32>
    %cst_53 = arith.constant 0.000000e+00 : f32
    %125 = vector.broadcast %cst_53 : f32 to vector<64x256xf32>
    %126 = arith.subf %125, %105 : vector<64x256xf32>
    %127 = arith.mulf %126, %105 : vector<64x256xf32>
    %128 = math.exp %127 : vector<64x256xf32>
    %129 = arith.mulf %124, %128 : vector<64x256xf32>
    %cst_54 = arith.constant 1.000000e+00 : f32
    %130 = vector.broadcast %cst_54 : f32 to vector<64x256xf32>
    %131 = arith.subf %130, %129 : vector<64x256xf32>
    %132 = arith.mulf %104, %131 : vector<64x256xf32>
    %cst_55 = arith.constant 5.000000e-01 : f32
    %133 = vector.broadcast %cst_55 : f32 to vector<64x256xf32>
    %134 = arith.mulf %133, %97 : vector<64x256xf32>
    %cst_56 = arith.constant 1.000000e+00 : f32
    %135 = vector.broadcast %cst_56 : f32 to vector<64x256xf32>
    %136 = arith.addf %135, %132 : vector<64x256xf32>
    %137 = arith.mulf %134, %136 : vector<64x256xf32>
    %138 = arith.maximumf %92, %137 : vector<64x256xf32>
    %c3 = arith.constant 3 : index
    %c0_57 = arith.constant 0 : index
    %c0_58 = arith.constant 0 : index
    %139 = vector.load %arg1[%c3, %c0_57, %c0_58] : memref<4x128x256xf32, #tpu.memory_space<vmem>>, vector<1x128x256xf32>
    %140 = vector.shape_cast %139 : vector<1x128x256xf32> to vector<128x256xf32>
    %cst_59 = arith.constant dense<0.000000e+00> : vector<64x256xf32>
    %141 = tpu.matmul %0, %140, %cst_59 {dimension_numbers = #tpu.dot_dimension_numbers<[1], [0], [0], [1], [0, 0, 1, 1], [], []>} : vector<64x128xf32>, vector<128x256xf32>, vector<64x256xf32> -> vector<64x256xf32>
    %142 = vector.broadcast %1 : vector<64x1xf32> to vector<64x256xf32>
    %143 = arith.addf %141, %142 : vector<64x256xf32>
    %cst_60 = arith.constant 0.707106769 : f32
    %144 = vector.broadcast %cst_60 : f32 to vector<64x256xf32>
    %145 = arith.mulf %143, %144 : vector<64x256xf32>
    %cst_61 = arith.constant 0.000000e+00 : f32
    %146 = vector.broadcast %cst_61 : f32 to vector<64x256xf32>
    %147 = arith.cmpf oge, %145, %146 : vector<64x256xf32>
    %cst_62 = arith.constant 1.000000e+00 : f32
    %cst_63 = arith.constant -1.000000e+00 : f32
    %148 = vector.broadcast %cst_62 : f32 to vector<64x256xf32>
    %149 = vector.broadcast %cst_63 : f32 to vector<64x256xf32>
    %150 = arith.select %147, %148, %149 : vector<64x256xi1>, vector<64x256xf32>
    %151 = math.absf %145 : vector<64x256xf32>
    %cst_64 = arith.constant 0.327591091 : f32
    %152 = vector.broadcast %cst_64 : f32 to vector<64x256xf32>
    %153 = arith.mulf %152, %151 : vector<64x256xf32>
    %cst_65 = arith.constant 1.000000e+00 : f32
    %154 = vector.broadcast %cst_65 : f32 to vector<64x256xf32>
    %155 = arith.addf %154, %153 : vector<64x256xf32>
    %156 = tpu.reciprocal %155 {approx = true} : vector<64x256xf32> -> vector<64x256xf32>
    %cst_66 = arith.constant 1.06140542 : f32
    %157 = vector.broadcast %cst_66 : f32 to vector<64x256xf32>
    %158 = arith.mulf %157, %156 : vector<64x256xf32>
    %cst_67 = arith.constant -1.45315206 : f32
    %159 = vector.broadcast %cst_67 : f32 to vector<64x256xf32>
    %160 = arith.addf %158, %159 : vector<64x256xf32>
    %161 = arith.mulf %160, %156 : vector<64x256xf32>
    %cst_68 = arith.constant 1.42141378 : f32
    %162 = vector.broadcast %cst_68 : f32 to vector<64x256xf32>
    %163 = arith.addf %161, %162 : vector<64x256xf32>
    %164 = arith.mulf %163, %156 : vector<64x256xf32>
    %cst_69 = arith.constant -0.284496725 : f32
    %165 = vector.broadcast %cst_69 : f32 to vector<64x256xf32>
    %166 = arith.addf %164, %165 : vector<64x256xf32>
    %167 = arith.mulf %166, %156 : vector<64x256xf32>
    %cst_70 = arith.constant 0.254829586 : f32
    %168 = vector.broadcast %cst_70 : f32 to vector<64x256xf32>
    %169 = arith.addf %167, %168 : vector<64x256xf32>
    %170 = arith.mulf %169, %156 : vector<64x256xf32>
    %cst_71 = arith.constant 0.000000e+00 : f32
    %171 = vector.broadcast %cst_71 : f32 to vector<64x256xf32>
    %172 = arith.subf %171, %151 : vector<64x256xf32>
    %173 = arith.mulf %172, %151 : vector<64x256xf32>
    %174 = math.exp %173 : vector<64x256xf32>
    %175 = arith.mulf %170, %174 : vector<64x256xf32>
    %cst_72 = arith.constant 1.000000e+00 : f32
    %176 = vector.broadcast %cst_72 : f32 to vector<64x256xf32>
    %177 = arith.subf %176, %175 : vector<64x256xf32>
    %178 = arith.mulf %150, %177 : vector<64x256xf32>
    %cst_73 = arith.constant 5.000000e-01 : f32
    %179 = vector.broadcast %cst_73 : f32 to vector<64x256xf32>
    %180 = arith.mulf %179, %143 : vector<64x256xf32>
    %cst_74 = arith.constant 1.000000e+00 : f32
    %181 = vector.broadcast %cst_74 : f32 to vector<64x256xf32>
    %182 = arith.addf %181, %178 : vector<64x256xf32>
    %183 = arith.mulf %180, %182 : vector<64x256xf32>
    %184 = arith.maximumf %138, %183 : vector<64x256xf32>
    %c0_75 = arith.constant 0 : index
    %c0_76 = arith.constant 0 : index
    %185 = vector.load %arg4[%c0_75, %c0_76] : memref<64x256xf32, #tpu.memory_space<vmem>>, vector<64x256xf32>
    tpu.vector_store %arg4[%c0_75, %c0_76], %184 {strides = array<i32>} : memref<64x256xf32, #tpu.memory_space<vmem>>, vector<64x256xf32>,
    return
  }
  func.func @transform_0(%arg0: i32) -> (i32, i32, i32) {
    %c0_i32 = arith.constant 0 : i32
    %c0_i32_0 = arith.constant 0 : i32
    %c0_i32_1 = arith.constant 0 : i32
    return %c0_i32, %c0_i32_0, %arg0 : i32, i32, i32
  }
  func.func @transform_1(%arg0: i32) -> (i32, i32) {
    %c0_i32 = arith.constant 0 : i32
    %c0_i32_0 = arith.constant 0 : i32
    %c0_i32_1 = arith.constant 0 : i32
    return %c0_i32, %c0_i32_0 : i32, i32
  }
  func.func @transform_2(%arg0: i32) -> (i32, i32) {
    %c0_i32 = arith.constant 0 : i32
    %c0_i32_0 = arith.constant 0 : i32
    %c0_i32_1 = arith.constant 0 : i32
    return %c0_i32, %c0_i32_0 : i32, i32
  }
  func.func @transform_3(%arg0: i32) -> (i32, i32) {
    %c0_i32 = arith.constant 0 : i32
    %c0_i32_0 = arith.constant 0 : i32
    return %c0_i32, %arg0 : i32, i32
  }
}

module attributes {stable_mosaic.version = 11 : i64} {
  func.func @_fc_head_kernel(%arg0: i32, %arg1: memref<2x1280xf32, #tpu.memory_space<vmem>>, %arg2: memref<256x1280xf32, #tpu.memory_space<vmem>>, %arg3: memref<1x256xf32, #tpu.memory_space<vmem>>, %arg4: memref<128x256xf32, #tpu.memory_space<vmem>>, %arg5: memref<1x128xf32, #tpu.memory_space<vmem>>, %arg6: memref<64x128xf32, #tpu.memory_space<vmem>>, %arg7: memref<1x64xf32, #tpu.memory_space<vmem>>, %arg8: memref<2x64xf32, #tpu.memory_space<vmem>>, %arg9: memref<2x256xf32, #tpu.memory_space<vmem>>) attributes {dimension_semantics = [#tpu.dimension_semantics<arbitrary>], iteration_bounds = array<i64: 5>, scalar_prefetch = 0 : i64, scratch_operands = 1 : i64, tpu.core_type = #tpu.core_type<tc>, window_params = [{transform_indices = @transform_0, window_bounds = array<i64: 2, 1280>}, {transform_indices = @transform_1, window_bounds = array<i64: 256, 1280>}, {pipeline_mode = #tpu.pipeline_mode<synchronous>, transform_indices = @transform_2, window_bounds = array<i64: 1, 256>}, {pipeline_mode = #tpu.pipeline_mode<synchronous>, transform_indices = @transform_3, window_bounds = array<i64: 128, 256>}, {pipeline_mode = #tpu.pipeline_mode<synchronous>, transform_indices = @transform_4, window_bounds = array<i64: 1, 128>}, {pipeline_mode = #tpu.pipeline_mode<synchronous>, transform_indices = @transform_5, window_bounds = array<i64: 64, 128>}, {pipeline_mode = #tpu.pipeline_mode<synchronous>, transform_indices = @transform_6, window_bounds = array<i64: 1, 64>}, {pipeline_mode = #tpu.pipeline_mode<synchronous>, transform_indices = @transform_7, window_bounds = array<i64: 2, 64>}]} {
    %c0_i32 = arith.constant 0 : i32
    %0 = arith.cmpi eq, %arg0, %c0_i32 : i32
    %1 = arith.extui %0 : i1 to i32
    %c0_i32_0 = arith.constant 0 : i32
    %2 = arith.cmpi ne, %1, %c0_i32_0 : i32
    scf.if %2 {
      %cst_9 = arith.constant 0.000000e+00 : f32
      %12 = vector.broadcast %cst_9 : f32 to vector<2x256xf32>
      %c0_10 = arith.constant 0 : index
      %c0_11 = arith.constant 0 : index
      %13 = vector.load %arg9[%c0_10, %c0_11] : memref<2x256xf32, #tpu.memory_space<vmem>>, vector<2x256xf32>
      tpu.vector_store %arg9[%c0_10, %c0_11], %12 {strides = array<i32>} : memref<2x256xf32, #tpu.memory_space<vmem>>, vector<2x256xf32>,
    } else {
    }
    %c0 = arith.constant 0 : index
    %c0_1 = arith.constant 0 : index
    %3 = vector.load %arg9[%c0, %c0_1] : memref<2x256xf32, #tpu.memory_space<vmem>>, vector<2x256xf32>
    %c0_2 = arith.constant 0 : index
    %c0_3 = arith.constant 0 : index
    %4 = vector.load %arg1[%c0_2, %c0_3] : memref<2x1280xf32, #tpu.memory_space<vmem>>, vector<2x1280xf32>
    %c0_4 = arith.constant 0 : index
    %c0_5 = arith.constant 0 : index
    %5 = vector.load %arg2[%c0_4, %c0_5] : memref<256x1280xf32, #tpu.memory_space<vmem>>, vector<256x1280xf32>
    %cst = arith.constant dense<0.000000e+00> : vector<2x256xf32>
    %6 = tpu.matmul %4, %5, %cst {dimension_numbers = #tpu.dot_dimension_numbers<[1], [1], [0], [0], [0, 0, 1, 0], [], []>} : vector<2x1280xf32>, vector<256x1280xf32>, vector<2x256xf32> -> vector<2x256xf32>
    %7 = arith.addf %3, %6 : vector<2x256xf32>
    %c0_6 = arith.constant 0 : index
    %c0_7 = arith.constant 0 : index
    %8 = vector.load %arg9[%c0_6, %c0_7] : memref<2x256xf32, #tpu.memory_space<vmem>>, vector<2x256xf32>
    tpu.vector_store %arg9[%c0_6, %c0_7], %7 {strides = array<i32>} : memref<2x256xf32, #tpu.memory_space<vmem>>, vector<2x256xf32>,
    %c4_i32 = arith.constant 4 : i32
    %9 = arith.cmpi eq, %arg0, %c4_i32 : i32
    %10 = arith.extui %9 : i1 to i32
    %c0_i32_8 = arith.constant 0 : i32
    %11 = arith.cmpi ne, %10, %c0_i32_8 : i32
    scf.if %11 {
      %c0_9 = arith.constant 0 : index
      %c0_10 = arith.constant 0 : index
      %12 = vector.load %arg9[%c0_9, %c0_10] : memref<2x256xf32, #tpu.memory_space<vmem>>, vector<2x256xf32>
      %c0_11 = arith.constant 0 : index
      %c0_12 = arith.constant 0 : index
      %13 = vector.load %arg3[%c0_11, %c0_12] : memref<1x256xf32, #tpu.memory_space<vmem>>, vector<1x256xf32>
      %14 = vector.broadcast %13 : vector<1x256xf32> to vector<2x256xf32>
      %15 = arith.addf %12, %14 : vector<2x256xf32>
      %cst_13 = arith.constant 0.707106769 : f32
      %16 = vector.broadcast %cst_13 : f32 to vector<2x256xf32>
      %17 = arith.mulf %15, %16 : vector<2x256xf32>
      %cst_14 = arith.constant 0.000000e+00 : f32
      %18 = vector.broadcast %cst_14 : f32 to vector<2x256xf32>
      %19 = arith.cmpf oge, %17, %18 : vector<2x256xf32>
      %cst_15 = arith.constant 1.000000e+00 : f32
      %cst_16 = arith.constant -1.000000e+00 : f32
      %20 = vector.broadcast %cst_15 : f32 to vector<2x256xf32>
      %21 = vector.broadcast %cst_16 : f32 to vector<2x256xf32>
      %22 = arith.select %19, %20, %21 : vector<2x256xi1>, vector<2x256xf32>
      %23 = math.absf %17 : vector<2x256xf32>
      %cst_17 = arith.constant 0.327591091 : f32
      %24 = vector.broadcast %cst_17 : f32 to vector<2x256xf32>
      %25 = arith.mulf %24, %23 : vector<2x256xf32>
      %cst_18 = arith.constant 1.000000e+00 : f32
      %26 = vector.broadcast %cst_18 : f32 to vector<2x256xf32>
      %27 = arith.addf %26, %25 : vector<2x256xf32>
      %28 = tpu.reciprocal %27 {approx = true} : vector<2x256xf32> -> vector<2x256xf32>
      %cst_19 = arith.constant 1.06140542 : f32
      %29 = vector.broadcast %cst_19 : f32 to vector<2x256xf32>
      %30 = arith.mulf %29, %28 : vector<2x256xf32>
      %cst_20 = arith.constant -1.45315206 : f32
      %31 = vector.broadcast %cst_20 : f32 to vector<2x256xf32>
      %32 = arith.addf %30, %31 : vector<2x256xf32>
      %33 = arith.mulf %32, %28 : vector<2x256xf32>
      %cst_21 = arith.constant 1.42141378 : f32
      %34 = vector.broadcast %cst_21 : f32 to vector<2x256xf32>
      %35 = arith.addf %33, %34 : vector<2x256xf32>
      %36 = arith.mulf %35, %28 : vector<2x256xf32>
      %cst_22 = arith.constant -0.284496725 : f32
      %37 = vector.broadcast %cst_22 : f32 to vector<2x256xf32>
      %38 = arith.addf %36, %37 : vector<2x256xf32>
      %39 = arith.mulf %38, %28 : vector<2x256xf32>
      %cst_23 = arith.constant 0.254829586 : f32
      %40 = vector.broadcast %cst_23 : f32 to vector<2x256xf32>
      %41 = arith.addf %39, %40 : vector<2x256xf32>
      %42 = arith.mulf %41, %28 : vector<2x256xf32>
      %cst_24 = arith.constant 0.000000e+00 : f32
      %43 = vector.broadcast %cst_24 : f32 to vector<2x256xf32>
      %44 = arith.subf %43, %23 : vector<2x256xf32>
      %45 = arith.mulf %44, %23 : vector<2x256xf32>
      %46 = math.exp %45 : vector<2x256xf32>
      %47 = arith.mulf %42, %46 : vector<2x256xf32>
      %cst_25 = arith.constant 1.000000e+00 : f32
      %48 = vector.broadcast %cst_25 : f32 to vector<2x256xf32>
      %49 = arith.subf %48, %47 : vector<2x256xf32>
      %50 = arith.mulf %22, %49 : vector<2x256xf32>
      %cst_26 = arith.constant 5.000000e-01 : f32
      %51 = vector.broadcast %cst_26 : f32 to vector<2x256xf32>
      %52 = arith.mulf %51, %15 : vector<2x256xf32>
      %cst_27 = arith.constant 1.000000e+00 : f32
      %53 = vector.broadcast %cst_27 : f32 to vector<2x256xf32>
      %54 = arith.addf %53, %50 : vector<2x256xf32>
      %55 = arith.mulf %52, %54 : vector<2x256xf32>
      %c0_28 = arith.constant 0 : index
      %c0_29 = arith.constant 0 : index
      %56 = vector.load %arg4[%c0_28, %c0_29] : memref<128x256xf32, #tpu.memory_space<vmem>>, vector<128x256xf32>
      %cst_30 = arith.constant dense<0.000000e+00> : vector<2x128xf32>
      %57 = tpu.matmul %55, %56, %cst_30 {dimension_numbers = #tpu.dot_dimension_numbers<[1], [1], [0], [0], [0, 0, 1, 0], [], []>} : vector<2x256xf32>, vector<128x256xf32>, vector<2x128xf32> -> vector<2x128xf32>
      %c0_31 = arith.constant 0 : index
      %c0_32 = arith.constant 0 : index
      %58 = vector.load %arg5[%c0_31, %c0_32] : memref<1x128xf32, #tpu.memory_space<vmem>>, vector<1x128xf32>
      %59 = vector.broadcast %58 : vector<1x128xf32> to vector<2x128xf32>
      %60 = arith.addf %57, %59 : vector<2x128xf32>
      %cst_33 = arith.constant 0.707106769 : f32
      %61 = vector.broadcast %cst_33 : f32 to vector<2x128xf32>
      %62 = arith.mulf %60, %61 : vector<2x128xf32>
      %cst_34 = arith.constant 0.000000e+00 : f32
      %63 = vector.broadcast %cst_34 : f32 to vector<2x128xf32>
      %64 = arith.cmpf oge, %62, %63 : vector<2x128xf32>
      %cst_35 = arith.constant 1.000000e+00 : f32
      %cst_36 = arith.constant -1.000000e+00 : f32
      %65 = vector.broadcast %cst_35 : f32 to vector<2x128xf32>
      %66 = vector.broadcast %cst_36 : f32 to vector<2x128xf32>
      %67 = arith.select %64, %65, %66 : vector<2x128xi1>, vector<2x128xf32>
      %68 = math.absf %62 : vector<2x128xf32>
      %cst_37 = arith.constant 0.327591091 : f32
      %69 = vector.broadcast %cst_37 : f32 to vector<2x128xf32>
      %70 = arith.mulf %69, %68 : vector<2x128xf32>
      %cst_38 = arith.constant 1.000000e+00 : f32
      %71 = vector.broadcast %cst_38 : f32 to vector<2x128xf32>
      %72 = arith.addf %71, %70 : vector<2x128xf32>
      %73 = tpu.reciprocal %72 {approx = true} : vector<2x128xf32> -> vector<2x128xf32>
      %cst_39 = arith.constant 1.06140542 : f32
      %74 = vector.broadcast %cst_39 : f32 to vector<2x128xf32>
      %75 = arith.mulf %74, %73 : vector<2x128xf32>
      %cst_40 = arith.constant -1.45315206 : f32
      %76 = vector.broadcast %cst_40 : f32 to vector<2x128xf32>
      %77 = arith.addf %75, %76 : vector<2x128xf32>
      %78 = arith.mulf %77, %73 : vector<2x128xf32>
      %cst_41 = arith.constant 1.42141378 : f32
      %79 = vector.broadcast %cst_41 : f32 to vector<2x128xf32>
      %80 = arith.addf %78, %79 : vector<2x128xf32>
      %81 = arith.mulf %80, %73 : vector<2x128xf32>
      %cst_42 = arith.constant -0.284496725 : f32
      %82 = vector.broadcast %cst_42 : f32 to vector<2x128xf32>
      %83 = arith.addf %81, %82 : vector<2x128xf32>
      %84 = arith.mulf %83, %73 : vector<2x128xf32>
      %cst_43 = arith.constant 0.254829586 : f32
      %85 = vector.broadcast %cst_43 : f32 to vector<2x128xf32>
      %86 = arith.addf %84, %85 : vector<2x128xf32>
      %87 = arith.mulf %86, %73 : vector<2x128xf32>
      %cst_44 = arith.constant 0.000000e+00 : f32
      %88 = vector.broadcast %cst_44 : f32 to vector<2x128xf32>
      %89 = arith.subf %88, %68 : vector<2x128xf32>
      %90 = arith.mulf %89, %68 : vector<2x128xf32>
      %91 = math.exp %90 : vector<2x128xf32>
      %92 = arith.mulf %87, %91 : vector<2x128xf32>
      %cst_45 = arith.constant 1.000000e+00 : f32
      %93 = vector.broadcast %cst_45 : f32 to vector<2x128xf32>
      %94 = arith.subf %93, %92 : vector<2x128xf32>
      %95 = arith.mulf %67, %94 : vector<2x128xf32>
      %cst_46 = arith.constant 5.000000e-01 : f32
      %96 = vector.broadcast %cst_46 : f32 to vector<2x128xf32>
      %97 = arith.mulf %96, %60 : vector<2x128xf32>
      %cst_47 = arith.constant 1.000000e+00 : f32
      %98 = vector.broadcast %cst_47 : f32 to vector<2x128xf32>
      %99 = arith.addf %98, %95 : vector<2x128xf32>
      %100 = arith.mulf %97, %99 : vector<2x128xf32>
      %c0_48 = arith.constant 0 : index
      %c0_49 = arith.constant 0 : index
      %101 = vector.load %arg6[%c0_48, %c0_49] : memref<64x128xf32, #tpu.memory_space<vmem>>, vector<64x128xf32>
      %cst_50 = arith.constant dense<0.000000e+00> : vector<2x64xf32>
      %102 = tpu.matmul %100, %101, %cst_50 {dimension_numbers = #tpu.dot_dimension_numbers<[1], [1], [0], [0], [0, 0, 1, 0], [], []>} : vector<2x128xf32>, vector<64x128xf32>, vector<2x64xf32> -> vector<2x64xf32>
      %c0_51 = arith.constant 0 : index
      %c0_52 = arith.constant 0 : index
      %103 = vector.load %arg7[%c0_51, %c0_52] : memref<1x64xf32, #tpu.memory_space<vmem>>, vector<1x64xf32>
      %104 = vector.broadcast %103 : vector<1x64xf32> to vector<2x64xf32>
      %105 = arith.addf %102, %104 : vector<2x64xf32>
      %c0_53 = arith.constant 0 : index
      %c0_54 = arith.constant 0 : index
      %106 = vector.load %arg8[%c0_53, %c0_54] : memref<2x64xf32, #tpu.memory_space<vmem>>, vector<2x64xf32>
      tpu.vector_store %arg8[%c0_53, %c0_54], %105 {strides = array<i32>} : memref<2x64xf32, #tpu.memory_space<vmem>>, vector<2x64xf32>,
    } else {
    }
    return
  }
  func.func @transform_0(%arg0: i32) -> (i32, i32) {
    %c0_i32 = arith.constant 0 : i32
    %c0_i32_0 = arith.constant 0 : i32
    return %c0_i32, %arg0 : i32, i32
  }
  func.func @transform_1(%arg0: i32) -> (i32, i32) {
    %c0_i32 = arith.constant 0 : i32
    %c0_i32_0 = arith.constant 0 : i32
    return %c0_i32, %arg0 : i32, i32
  }
  func.func @transform_2(%arg0: i32) -> (i32, i32) {
    %c0_i32 = arith.constant 0 : i32
    %c0_i32_0 = arith.constant 0 : i32
    %c0_i32_1 = arith.constant 0 : i32
    return %c0_i32, %c0_i32_0 : i32, i32
  }
  func.func @transform_3(%arg0: i32) -> (i32, i32) {
    %c0_i32 = arith.constant 0 : i32
    %c0_i32_0 = arith.constant 0 : i32
    %c0_i32_1 = arith.constant 0 : i32
    return %c0_i32, %c0_i32_0 : i32, i32
  }
  func.func @transform_4(%arg0: i32) -> (i32, i32) {
    %c0_i32 = arith.constant 0 : i32
    %c0_i32_0 = arith.constant 0 : i32
    %c0_i32_1 = arith.constant 0 : i32
    return %c0_i32, %c0_i32_0 : i32, i32
  }
  func.func @transform_5(%arg0: i32) -> (i32, i32) {
    %c0_i32 = arith.constant 0 : i32
    %c0_i32_0 = arith.constant 0 : i32
    %c0_i32_1 = arith.constant 0 : i32
    return %c0_i32, %c0_i32_0 : i32, i32
  }
  func.func @transform_6(%arg0: i32) -> (i32, i32) {
    %c0_i32 = arith.constant 0 : i32
    %c0_i32_0 = arith.constant 0 : i32
    %c0_i32_1 = arith.constant 0 : i32
    return %c0_i32, %c0_i32_0 : i32, i32
  }
  func.func @transform_7(%arg0: i32) -> (i32, i32) {
    %c0_i32 = arith.constant 0 : i32
    %c0_i32_0 = arith.constant 0 : i32
    %c0_i32_1 = arith.constant 0 : i32
    return %c0_i32, %c0_i32_0 : i32, i32
  }
}

</mosaic_0001>

<llo_original>
// kernel: encoder_forward.5
$region0: #{encoder_forward.5}
  #allocation0 [shape = 'u32[]', space=smem, size = 0x4, offset = 0x4, fixed_abs, tag = 'smem constant byte address 0x4 - core index']
  #allocation1 [shape = 'u32[144,128]{1,0:T(1,128)}', space=vmem, size = 0x12000, scoped, tag = 'internal scratch']
  %s0 = inlined_call_operand.vmem [shape: f32[1,4,4096], index: 0, kind: input, shape index: {}]
  %s1 = inlined_call_operand.vmem [shape: f32[8,4], index: 1, kind: input, shape index: {}]
  %s2 = inlined_call_operand.vmem [shape: f32[8,1], index: 2, kind: input, shape index: {}]
  %s3 = inlined_call_operand.vmem [shape: f32[8,4096], index: 3, kind: output, shape index: {}]
  %s4 = sld [smem:[#allocation0]]
  $region45: #{encoder_forward.5} parent=0
    _
  %s6 = ssub.s32 1, %s4
  %s7 = scalar_select 0, %s6, %s4
  loop: start=0, step=1, limit=10
  $region2: #{encoder_forward.5} parent=0 // loop_pre_header
    _
  $region3: #{encoder_forward.5} parent=0 // loop_header
    %s9 = sphi 0, %s13
    %p10 = scmp.ge.s32.totalorder %s9, 10
    %s19 = sphi 0, %s21
    %s22 = sphi 0, %s19
    %s23 = sphi 0, %s22
    %s39 = sphi 0, %s23
    %s43 = sphi 0, %s43
    %s45 = sphi 0, %s43
    %s46 = sphi 0, %s45
    %s60 = sphi 0, %s46
    %s64 = sphi 0, %s64
    %s66 = sphi 0, %s64
    %s67 = sphi 0, %s66
    %s81 = sphi 0, %s67
    %s87 = sphi 0, %s89
    %s90 = sphi 0, %s87
    %s91 = sphi 0, %s90
    %s107 = sphi 0, %s91
  $region4: #{encoder_forward.5} parent=0 // loop_header_branch
    %12 = sbr.rel (%p10) target = $region8
  $region5: #{encoder_forward.5} parent=0 // loop_body
    %s14 = ssub.s32 %s9, 1
    %s15 = ssub.s32 %s9, 2
    %s16 = sadd.s32 %s9, 1
    %s17 = ssub.s32 %s9, %s16
    %p18 = scmp.eq.s32.totalorder %s17, 0
    %s20 = sadd.s32 %s19, 1
    %s21 = scalar_select %p18, %s19, %s20
    %p24 = pneg %p18
    %p25 = scmp.eq.s32.totalorder %s9, 7
    %p26 = por %p24, %p25
    %p27 = scmp.ne.s32.totalorder %s19, %s22
    %p28 = scmp.eq.s32.totalorder %s9, 0
    %p29 = por %p27, %p28
    %p30 = scmp.ne.s32.totalorder %s19, %s22
    %p31 = scmp.eq.s32.totalorder %s14, 7
    %p32 = por %p30, %p31
    %p33 = scmp.ne.s32.totalorder %s22, %s23
    %p34 = scmp.eq.s32.totalorder %s14, 0
    %p35 = por %p33, %p34
    %p36 = scmp.ne.s32.totalorder %s22, %s23
    %p37 = scmp.eq.s32.totalorder %s15, 7
    %p38 = por %p36, %p37
    %p40 = scmp.ne.s32.totalorder %s23, %s39
    %p41 = scmp.eq.s32.totalorder %s15, 0
    %p42 = por %p40, %p41
    %s44 = sadd.s32 %s43, 1
    %p47 = scmp.eq.s32.totalorder %s9, 7
    %p48 = scmp.ne.s32.totalorder %s43, %s45
    %p49 = scmp.eq.s32.totalorder %s9, 0
    %p50 = por %p48, %p49
    %p51 = scmp.ne.s32.totalorder %s43, %s45
    %p52 = scmp.eq.s32.totalorder %s14, 7
    %p53 = por %p51, %p52
    %p54 = scmp.ne.s32.totalorder %s45, %s46
    %p55 = scmp.eq.s32.totalorder %s14, 0
    %p56 = por %p54, %p55
    %p57 = scmp.ne.s32.totalorder %s45, %s46
    %p58 = scmp.eq.s32.totalorder %s15, 7
    %p59 = por %p57, %p58
    %p61 = scmp.ne.s32.totalorder %s46, %s60
    %p62 = scmp.eq.s32.totalorder %s15, 0
    %p63 = por %p61, %p62
    %s65 = sadd.s32 %s64, 1
    %p68 = scmp.eq.s32.totalorder %s9, 7
    %p69 = scmp.ne.s32.totalorder %s64, %s66
    %p70 = scmp.eq.s32.totalorder %s9, 0
    %p71 = por %p69, %p70
    %p72 = scmp.ne.s32.totalorder %s64, %s66
    %p73 = scmp.eq.s32.totalorder %s14, 7
    %p74 = por %p72, %p73
    %p75 = scmp.ne.s32.totalorder %s66, %s67
    %p76 = scmp.eq.s32.totalorder %s14, 0
    %p77 = por %p75, %p76
    %p78 = scmp.ne.s32.totalorder %s66, %s67
    %p79 = scmp.eq.s32.totalorder %s15, 7
    %p80 = por %p78, %p79
    %p82 = scmp.ne.s32.totalorder %s67, %s81
    %p83 = scmp.eq.s32.totalorder %s15, 0
    %p84 = por %p82, %p83
    %s85 = ssub.s32 %s9, %s16
    %p86 = scmp.eq.s32.totalorder %s85, 0
    %s88 = sadd.s32 %s87, 1
    %s89 = scalar_select %p86, %s87, %s88
    %p92 = pneg %p86
    %p93 = scmp.eq.s32.totalorder %s9, 7
    %p94 = por %p92, %p93
    %p95 = scmp.ne.s32.totalorder %s87, %s90
    %p96 = scmp.eq.s32.totalorder %s9, 0
    %p97 = por %p95, %p96
    %p98 = scmp.ne.s32.totalorder %s87, %s90
    %p99 = scmp.eq.s32.totalorder %s14, 7
    %p100 = por %p98, %p99
    %p101 = scmp.ne.s32.totalorder %s90, %s91
    %p102 = scmp.eq.s32.totalorder %s14, 0
    %p103 = por %p101, %p102
    %p104 = scmp.ne.s32.totalorder %s90, %s91
    %p105 = scmp.eq.s32.totalorder %s15, 7
    %p106 = por %p104, %p105
    %p108 = scmp.ne.s32.totalorder %s91, %s107
    %p109 = scmp.eq.s32.totalorder %s15, 0
    %p110 = por %p108, %p109
    %p111 = scmp.le.s32.totalorder 1, %s9
    %p112 = scmp.lt.s32.totalorder %s9, 9
    %p113 = pnand %p111, %p112
    %p114 = pneg %p113
    // Predicated region
    $region9: #{encoder_forward.5} parent=5 // pred_check
      _
    $region10: #{encoder_forward.5} parent=5 // pred_check_branch
      %116 = sbr.rel (%p113) target = $region12
    $region11: #{encoder_forward.5} parent=5 // pred_region
      %s117 = ssub.s32 %s9, 1
      // Predicated region
      $region13: #{encoder_forward.5} parent=11 // pred_check
        %p118 = pneg %p56
      $region14: #{encoder_forward.5} parent=11 // pred_check_branch
        %120 = sbr.rel (%p118) target = $region16
      $region15: #{encoder_forward.5} parent=11 // pred_region
        _
      $region16: #{encoder_forward.5} parent=11 // pred_fallthru
        _
      // Predicated region
      $region17: #{encoder_forward.5} parent=11 // pred_check
        %p121 = pneg %p77
      $region18: #{encoder_forward.5} parent=11 // pred_check_branch
        %123 = sbr.rel (%p121) target = $region20
      $region19: #{encoder_forward.5} parent=11 // pred_region
        _
      $region20: #{encoder_forward.5} parent=11 // pred_fallthru
        _
    $region12: #{encoder_forward.5} parent=5 // pred_fallthru
      _
    %p124 = scmp.lt.s32.totalorder %s9, 8
    // Predicated region
    $region21: #{encoder_forward.5} parent=5 // pred_check
      %p125 = pneg %p124
    $region22: #{encoder_forward.5} parent=5 // pred_check_branch
      %127 = sbr.rel (%p125) target = $region24
    $region23: #{encoder_forward.5} parent=5 // pred_region
      // Predicated region
      $region25: #{encoder_forward.5} parent=23 // pred_check
        %p128 = pneg %p29
      $region26: #{encoder_forward.5} parent=23 // pred_check_branch
        %130 = sbr.rel (%p128) target = $region28
      $region27: #{encoder_forward.5} parent=23 // pred_region
        %s131 = smul.u32 4, %s9
        %p132 = scmp.lt.s32.totalorder %s131, 31
        %s133 = scalar_select %p132, %s131, 31
        %s134 = smul.addr %s133, 4
        %s135 = scalar_lea.vmem %s0, %s134
        %s136 = smul.u32 4, %s9
      $region28: #{encoder_forward.5} parent=23 // pred_fallthru
        _
    $region24: #{encoder_forward.5} parent=5 // pred_fallthru
      _
    %p137 = scmp.le.s32.totalorder 1, %s9
    %p138 = scmp.lt.s32.totalorder %s9, 9
    %p139 = pnand %p137, %p138
    %p140 = pneg %p139
    // Predicated region
    $region29: #{encoder_forward.5} parent=5 // pred_check
      _
    $region30: #{encoder_forward.5} parent=5 // pred_check_branch
      %142 = sbr.rel (%p139) target = $region32
    $region31: #{encoder_forward.5} parent=5 // pred_region
      %s143 = ssub.s32 %s9, 1
      %s144 = smul.u32 4, %s14
      %p145 = scmp.lt.s32.totalorder %s144, 31
      %s146 = scalar_select %p145, %s144, 31
      %s147 = smul.addr %s146, 4
      %s148 = scalar_lea.vmem %s0, %s147
      %p149 = pneg %p35
      %p150 = pneg %p32
      %p151 = pneg %p56
      %p152 = pneg %p53
      %p153 = pneg %p77
      %p154 = pneg %p74
      %p155 = pneg %p103
      %p156 = pneg %p100
      %s157 = smul.u32 4, %s14
      %p158 = scmp.lt.s32.totalorder %s157, 31
      %s159 = scalar_select %p158, %s157, 31
      %s160 = smul.addr %s159, 8
      %s161 = scalar_lea.vmem %s3, %s160
      %s162 = smul.u32 4, %s14
      %p163 = scmp.lt.s32.totalorder %s162, 31
      %s164 = scalar_select %p163, %s162, 31
      %s165 = smul.addr %s164, 4
      %s166 = scalar_lea.vmem %s0, %s165
      %s167 = smul.u32 4, %s14
      %s168 = smul.u32 4, %s14
      %p169 = scmp.lt.s32.totalorder %s168, 31
      %s170 = scalar_select %p169, %s168, 31
      %s171 = smul.addr %s170, 8
      %s172 = scalar_lea.vmem %s3, %s171
      %s173 = smul.u32 4, %s14
      %v174 = vld [vmem:[%s1] sm:$0xff]
      %v175 = vld [vmem:[%s2] sm:$0xff]
      %v176 = vld [vmem:[%s166] sm:$0xff]
      %v177 = vld [vmem:[%s166 + $0x8] sm:$0xff]
      %179 = vset.pattern.permute.xlu0 0
      %180 = vperm.xlu0 %179, %v175
      %v181 = vpop.permute.xlu0 %180
      %v185 = vcombine.high %v176, %v176
      %v186 = vcombine.high %v177, %v177
      %vm187 = vcmask 31744
      %v189 = vsel %vm187, %v174, 0
      %vm191 = vcmask 1043456
      %v192 = vsel %vm191, %v176, 0
      %v194 = vsel %vm191, %v185, 0
      %v196 = vsel %vm191, %v177, 0
      %v198 = vsel %vm191, %v186, 0
      %200 = vmatprep.subr.mxu0 0.0
      %201 = vmatpush1.msra.mxu0 0.0
      %202 = vmatprep.subr.mxu0 0.0
      %203 = vmatpush1.msra.mxu0 0.0
      %204 = vmatprep.subr.mxu0 0.0
      %205 = vmatpush1.msra.mxu0 0.0
      %206 = vmatprep.subr.mxu0 0.0
      %207 = vmatpush1.msra.mxu0 0.0
      %208 = vmatprep.subr.mxu0 0.0
      %209 = vmatpush1.msra.mxu0 0.0
      %210 = vmatprep.subr.mxu0 0.0
      %211 = vmatpush1.msra.mxu0 0.0
      %212 = vmatprep.subr.mxu0 0.0
      %213 = vmatpush1.msra.mxu0 0.0
      %214 = vmatprep.subr.mxu0 0.0
      %215 = vmatpush1.msra.mxu0 0.0
      %216 = vmatprep.subr.mxu0 0.0
      %217 = vmatpush1.msra.mxu0 0.0
      %218 = vmatprep.subr.mxu0 0.0
      %219 = vmatpush1.msra.mxu0 0.0
      %220 = vmatprep.subr.mxu0 0.0
      %221 = vmatpush1.msra.mxu0 0.0
      %222 = vmatprep.subr.mxu0 0.0
      %223 = vmatpush1.msra.mxu0 0.0
      %224 = vmatprep.subr.mxu0 0.0
      %225 = vmatpush1.msra.mxu0 0.0
      %226 = vmatprep.subr.mxu0 0.0
      %227 = vmatpush1.msra.mxu0 0.0
      %228 = vmatprep.subr.mxu0 0.0
      %229 = vmatpush1.msra.mxu0 0.0
      %230 = vmatprep.subr.mxu0 %v194
      %231 = vmatpush1.msra.mxu0 %v192
      %232 = vmatprep.subr.mxu0 0.0
      %233 = vmatpush2.msra.mxu0 0.0
      %234 = vmatprep.subr.mxu0 0.0
      %235 = vmatpush2.msra.mxu0 0.0
      %236 = vmatprep.subr.mxu0 0.0
      %237 = vmatpush2.msra.mxu0 0.0
      %238 = vmatprep.subr.mxu0 0.0
      %239 = vmatpush2.msra.mxu0 0.0
      %240 = vmatprep.subr.mxu0 0.0
      %241 = vmatpush2.msra.mxu0 0.0
      %242 = vmatprep.subr.mxu0 0.0
      %243 = vmatpush2.msra.mxu0 0.0
      %244 = vmatprep.subr.mxu0 0.0
      %245 = vmatpush2.msra.mxu0 0.0
      %246 = vmatprep.subr.mxu0 0.0
      %247 = vmatpush2.msra.mxu0 0.0
      %248 = vmatprep.subr.mxu0 0.0
      %249 = vmatpush2.msra.mxu0 0.0
      %250 = vmatprep.subr.mxu0 0.0
      %251 = vmatpush2.msra.mxu0 0.0
      %252 = vmatprep.subr.mxu0 0.0
      %253 = vmatpush2.msra.mxu0 0.0
      %254 = vmatprep.subr.mxu0 0.0
      %255 = vmatpush2.msra.mxu0 0.0
      %256 = vmatprep.subr.mxu0 0.0
      %257 = vmatpush2.msra.mxu0 0.0
      %258 = vmatprep.subr.mxu0 0.0
      %259 = vmatpush2.msra.mxu0 0.0
      %260 = vmatprep.subr.mxu0 0.0
      %261 = vmatpush2.msra.mxu0 0.0
      %262 = vmatprep.subr.mxu0 0.0
      %263 = vmatpush2.msra.mxu0 0.0
      %264 = vmatprep.mubr.f32.mxu0 0.0
      %265 = vmatmul.mubr.f32.gmra.mxu0 %v189
      %v266 = vpop.f32.mrf.mxu0
      %v267 = vadd.f32 %v181, %v266
      %v268 = vpop.f32.mrf.mxu0
      %v269 = vadd.f32 %v181, %v268
      %270 = vdwg.mxu0
      %271 = vmatprep.subr.mxu0 0.0
      %272 = vmatpush1.msra.mxu0 0.0
      %273 = vmatprep.subr.mxu0 0.0
      %274 = vmatpush1.msra.mxu0 0.0
      %275 = vmatprep.subr.mxu0 0.0
      %276 = vmatpush1.msra.mxu0 0.0
      %277 = vmatprep.subr.mxu0 0.0
      %278 = vmatpush1.msra.mxu0 0.0
      %279 = vmatprep.subr.mxu0 0.0
      %280 = vmatpush1.msra.mxu0 0.0
      %281 = vmatprep.subr.mxu0 0.0
      %282 = vmatpush1.msra.mxu0 0.0
      %283 = vmatprep.subr.mxu0 0.0
      %284 = vmatpush1.msra.mxu0 0.0
      %285 = vmatprep.subr.mxu0 0.0
      %286 = vmatpush1.msra.mxu0 0.0
      %287 = vmatprep.subr.mxu0 0.0
      %288 = vmatpush1.msra.mxu0 0.0
      %289 = vmatprep.subr.mxu0 0.0
      %290 = vmatpush1.msra.mxu0 0.0
      %291 = vmatprep.subr.mxu0 0.0
      %292 = vmatpush1.msra.mxu0 0.0
      %293 = vmatprep.subr.mxu0 0.0
      %294 = vmatpush1.msra.mxu0 0.0
      %295 = vmatprep.subr.mxu0 0.0
      %296 = vmatpush1.msra.mxu0 0.0
      %297 = vmatprep.subr.mxu0 0.0
      %298 = vmatpush1.msra.mxu0 0.0
      %299 = vmatprep.subr.mxu0 0.0
      %300 = vmatpush1.msra.mxu0 0.0
      %301 = vmatprep.subr.mxu0 %v198
      %302 = vmatpush1.msra.mxu0 %v196
      %303 = vmatprep.subr.mxu0 0.0
      %304 = vmatpush2.msra.mxu0 0.0
      %305 = vmatprep.subr.mxu0 0.0
      %306 = vmatpush2.msra.mxu0 0.0
      %307 = vmatprep.subr.mxu0 0.0
      %308 = vmatpush2.msra.mxu0 0.0
      %309 = vmatprep.subr.mxu0 0.0
      %310 = vmatpush2.msra.mxu0 0.0
      %311 = vmatprep.subr.mxu0 0.0
      %312 = vmatpush2.msra.mxu0 0.0
      %313 = vmatprep.subr.mxu0 0.0
      %314 = vmatpush2.msra.mxu0 0.0
      %315 = vmatprep.subr.mxu0 0.0
      %316 = vmatpush2.msra.mxu0 0.0
      %317 = vmatprep.subr.mxu0 0.0
      %318 = vmatpush2.msra.mxu0 0.0
      %319 = vmatprep.subr.mxu0 0.0
      %320 = vmatpush2.msra.mxu0 0.0
      %321 = vmatprep.subr.mxu0 0.0
      %322 = vmatpush2.msra.mxu0 0.0
      %323 = vmatprep.subr.mxu0 0.0
      %324 = vmatpush2.msra.mxu0 0.0
      %325 = vmatprep.subr.mxu0 0.0
      %326 = vmatpush2.msra.mxu0 0.0
      %327 = vmatprep.subr.mxu0 0.0
      %328 = vmatpush2.msra.mxu0 0.0
      %329 = vmatprep.subr.mxu0 0.0
      %330 = vmatpush2.msra.mxu0 0.0
      %331 = vmatprep.subr.mxu0 0.0
      %332 = vmatpush2.msra.mxu0 0.0
      %333 = vmatprep.subr.mxu0 0.0
      %334 = vmatpush2.msra.mxu0 0.0
      %335 = vmatprep.mubr.f32.mxu0 0.0
      %336 = vmatmul.mubr.f32.gmra.mxu0 %v189
      %v337 = vpop.f32.mrf.mxu0
      %v338 = vadd.f32 %v181, %v337
      %v339 = vpop.f32.mrf.mxu0
      %v340 = vadd.f32 %v181, %v339
      %341 = vdwg.mxu0
      %v342 = vmul.f32 %v267, 0.70710677
      %v343 = vmul.f32 %v269, 0.70710677
      %v344 = vmul.f32 %v338, 0.70710677
      %v345 = vmul.f32 %v340, 0.70710677
      %vm346 = vcmp.ge.f32.partialorder %v342, 0.0
      %vm347 = vcmp.ge.f32.partialorder %v343, 0.0
      %vm348 = vcmp.ge.f32.partialorder %v344, 0.0
      %vm349 = vcmp.ge.f32.partialorder %v345, 0.0
      %v350 = vsel %vm346, 1.0, -1.0
      %v351 = vsel %vm347, 1.0, -1.0
      %v352 = vsel %vm348, 1.0, -1.0
      %v353 = vsel %vm349, 1.0, -1.0
      %v354 = vand.u32 2147483647, %v342
      %v355 = vand.u32 2147483647, %v343
      %v356 = vand.u32 2147483647, %v344
      %v357 = vand.u32 2147483647, %v345
      %v358 = vmul.f32 %v354, 0.3275911
      %v359 = vmul.f32 %v355, 0.3275911
      %v360 = vmul.f32 %v356, 0.3275911
      %v361 = vmul.f32 %v357, 0.3275911
      %v362 = vadd.f32 %v358, 1.0
      %v363 = vadd.f32 %v359, 1.0
      %v364 = vadd.f32 %v360, 1.0
      %v365 = vadd.f32 %v361, 1.0
      %v366 = vrcp.pop %v362
      %v367 = vrcp.pop %v363
      %v368 = vrcp.pop %v364
      %v369 = vrcp.pop %v365
      %v370 = vmul.f32 %v366, 1.0614054
      %v371 = vmul.f32 %v367, 1.0614054
      %v372 = vmul.f32 %v368, 1.0614054
      %v373 = vmul.f32 %v369, 1.0614054
      %v374 = vadd.f32 %v370, -1.4531521
      %v375 = vadd.f32 %v371, -1.4531521
      %v376 = vadd.f32 %v372, -1.4531521
      %v377 = vadd.f32 %v373, -1.4531521
      %v378 = vmul.f32 %v374, %v366
      %v379 = vmul.f32 %v375, %v367
      %v380 = vmul.f32 %v376, %v368
      %v381 = vmul.f32 %v377, %v369
      %v382 = vadd.f32 %v378, 1.4214138
      %v383 = vadd.f32 %v379, 1.4214138
      %v384 = vadd.f32 %v380, 1.4214138
      %v385 = vadd.f32 %v381, 1.4214138
      %v386 = vmul.f32 %v382, %v366
      %v387 = vmul.f32 %v383, %v367
      %v388 = vmul.f32 %v384, %v368
      %v389 = vmul.f32 %v385, %v369
      %v390 = vadd.f32 %v386, -0.28449672
      %v391 = vadd.f32 %v387, -0.28449672
      %v392 = vadd.f32 %v388, -0.28449672
      %v393 = vadd.f32 %v389, -0.28449672
      %v394 = vmul.f32 %v390, %v366
      %v395 = vmul.f32 %v391, %v367
      %v396 = vmul.f32 %v392, %v368
      %v397 = vmul.f32 %v393, %v369
      %v398 = vadd.f32 %v394, 0.2548296
      %v399 = vadd.f32 %v395, 0.2548296
      %v400 = vadd.f32 %v396, 0.2548296
      %v401 = vadd.f32 %v397, 0.2548296
      %v402 = vmul.f32 %v398, %v366
      %v403 = vmul.f32 %v399, %v367
      %v404 = vmul.f32 %v400, %v368
      %v405 = vmul.f32 %v401, %v369
      %v406 = vsub.f32 0.0, %v354
      %v407 = vsub.f32 0.0, %v355
      %v408 = vsub.f32 0.0, %v356
      %v409 = vsub.f32 0.0, %v357
      %v410 = vmul.f32 %v406, %v354
      %v411 = vmul.f32 %v407, %v355
      %v412 = vmul.f32 %v408, %v356
      %v413 = vmul.f32 %v409, %v357
      %v414 = vmul.f32 %v410, 1.442695
      %v415 = vpow.pop %v414
      %v416 = vmul.f32 %v411, 1.442695
      %v417 = vpow.pop %v416
      %v418 = vmul.f32 %v412, 1.442695
      %v419 = vpow.pop %v418
      %v420 = vmul.f32 %v413, 1.442695
      %v421 = vpow.pop %v420
      %v422 = vmul.f32 %v402, %v415
      %v423 = vmul.f32 %v403, %v417
      %v424 = vmul.f32 %v404, %v419
      %v425 = vmul.f32 %v405, %v421
      %v426 = vsub.f32 1.0, %v422
      %v427 = vsub.f32 1.0, %v423
      %v428 = vsub.f32 1.0, %v424
      %v429 = vsub.f32 1.0, %v425
      %v430 = vmul.f32 %v350, %v426
      %v431 = vmul.f32 %v351, %v427
      %v432 = vmul.f32 %v352, %v428
      %v433 = vmul.f32 %v353, %v429
      %v434 = vmul.f32 %v267, 0.5
      %v435 = vmul.f32 %v269, 0.5
      %v436 = vmul.f32 %v338, 0.5
      %v437 = vmul.f32 %v340, 0.5
      %v438 = vadd.f32 %v430, 1.0
      %v439 = vadd.f32 %v431, 1.0
      %v440 = vadd.f32 %v432, 1.0
      %v441 = vadd.f32 %v433, 1.0
      %v442 = vmul.f32 %v434, %v438
      %v443 = vmul.f32 %v435, %v439
      %v444 = vmul.f32 %v436, %v440
      %v445 = vmul.f32 %v437, %v441
      %446 = vst [vmem:[%s172] sm:$0xff] %v442
      %447 = vst [vmem:[%s172 + $0x8] sm:$0xff] %v443
      %448 = vst [vmem:[%s172 + $0x10] sm:$0xff] %v444
      %449 = vst [vmem:[%s172 + $0x18] sm:$0xff] %v445
      %s450 = smul.u32 4, %s14
      %p451 = scmp.lt.s32.totalorder %s450, 31
      %s452 = scalar_select %p451, %s450, 31
      %s453 = smul.addr %s452, 8
      %s454 = scalar_lea.vmem %s3, %s453
      // Predicated region
      $region33: #{encoder_forward.5} parent=31 // pred_check
        %p455 = pneg %p100
      $region34: #{encoder_forward.5} parent=31 // pred_check_branch
        %457 = sbr.rel (%p455) target = $region36
      $region35: #{encoder_forward.5} parent=31 // pred_region
        %s458 = smul.u32 4, %s14
      $region36: #{encoder_forward.5} parent=31 // pred_fallthru
        _
    $region32: #{encoder_forward.5} parent=5 // pred_fallthru
      _
    %p459 = scmp.le.s32.totalorder 2, %s9
    // Predicated region
    $region37: #{encoder_forward.5} parent=5 // pred_check
      %p460 = pneg %p459
    $region38: #{encoder_forward.5} parent=5 // pred_check_branch
      %462 = sbr.rel (%p460) target = $region40
    $region39: #{encoder_forward.5} parent=5 // pred_region
      %s463 = ssub.s32 %s9, 2
      // Predicated region
      $region41: #{encoder_forward.5} parent=39 // pred_check
        %p464 = pneg %p106
      $region42: #{encoder_forward.5} parent=39 // pred_check_branch
        %466 = sbr.rel (%p464) target = $region44
      $region43: #{encoder_forward.5} parent=39 // pred_region
        %s467 = smul.u32 4, %s15
        %p468 = scmp.lt.s32.totalorder %s467, 31
        %s469 = scalar_select %p468, %s467, 31
        %s470 = smul.addr %s469, 8
        %s471 = scalar_lea.vmem %s3, %s470
      $region44: #{encoder_forward.5} parent=39 // pred_fallthru
        _
    $region40: #{encoder_forward.5} parent=5 // pred_fallthru
      _
  $region6: #{encoder_forward.5} parent=0 // loop_footer
    %s13 = sadd.s32 1, %s9
  $region7: #{encoder_forward.5} parent=0 // loop_footer_branch
    %8 = sbr.rel target = $region3
  $region8: #{encoder_forward.5} parent=0 // loop_exit
    _

// kernel: encoder_forward.6
$region0: #{encoder_forward.6}
  #allocation0 [shape = 'u32[]', space=smem, size = 0x4, offset = 0x4, fixed_abs, tag = 'smem constant byte address 0x4 - core index']
  #allocation1 [shape = 'u32[144,128]{1,0:T(1,128)}', space=vmem, size = 0x12000, scoped, tag = 'internal scratch']
  %s0 = inlined_call_operand.vmem [shape: f32[4,32,1024], index: 0, kind: input, shape index: {}]
  %s1 = inlined_call_operand.vmem [shape: f32[16,32], index: 1, kind: input, shape index: {}]
  %s2 = inlined_call_operand.vmem [shape: f32[16,1], index: 2, kind: input, shape index: {}]
  %s3 = inlined_call_operand.vmem [shape: f32[16,1024], index: 3, kind: output, shape index: {}]
  %s4 = sld [smem:[#allocation0]]
  $region87: #{encoder_forward.6} parent=0
    _
  %s6 = ssub.s32 1, %s4
  %s7 = scalar_select 0, %s6, %s4
  $region1: #{encoder_forward.6} parent=0
    #allocation2 [shape = 'u8[524288]{0}', space=vmem, size = 0x80000, scoped, tag = 'input window, operand 0']
    #allocation3 [shape = 'u8[65536]{0}', space=vmem, size = 0x10000, scoped, tag = 'output window, operand 0']
    loop: start=0, step=1, limit=4
    $region2: #{encoder_forward.6} parent=1 // loop_pre_header
      _
    $region3: #{encoder_forward.6} parent=1 // loop_header
      %s9 = sphi 0, %s13
      %p10 = scmp.ge.s32.totalorder %s9, 4
      %s19 = sphi 0, %s21
      %s22 = sphi 0, %s19
      %s23 = sphi 0, %s22
      %s39 = sphi 0, %s23
      %s43 = sphi 0, %s43
      %s45 = sphi 0, %s43
      %s46 = sphi 0, %s45
      %s60 = sphi 0, %s46
      %s64 = sphi 0, %s64
      %s66 = sphi 0, %s64
      %s67 = sphi 0, %s66
      %s81 = sphi 0, %s67
      %s87 = sphi 0, %s89
      %s90 = sphi 0, %s87
      %s91 = sphi 0, %s90
      %s107 = sphi 0, %s91
    $region4: #{encoder_forward.6} parent=1 // loop_header_branch
      %12 = sbr.rel (%p10) target = $region8
    $region5: #{encoder_forward.6} parent=1 // loop_body
      %s14 = ssub.s32 %s9, 1
      %s15 = ssub.s32 %s9, 2
      %s16 = sadd.s32 %s9, 1
      %s17 = ssub.s32 %s9, %s16
      %p18 = scmp.eq.s32.totalorder %s17, 0
      %s20 = sadd.s32 %s19, 1
      %s21 = scalar_select %p18, %s19, %s20
      %p24 = pneg %p18
      %p25 = scmp.eq.s32.totalorder %s9, 1
      %p26 = por %p24, %p25
      %p27 = scmp.ne.s32.totalorder %s19, %s22
      %p28 = scmp.eq.s32.totalorder %s9, 0
      %p29 = por %p27, %p28
      %p30 = scmp.ne.s32.totalorder %s19, %s22
      %p31 = scmp.eq.s32.totalorder %s14, 1
      %p32 = por %p30, %p31
      %p33 = scmp.ne.s32.totalorder %s22, %s23
      %p34 = scmp.eq.s32.totalorder %s14, 0
      %p35 = por %p33, %p34
      %p36 = scmp.ne.s32.totalorder %s22, %s23
      %p37 = scmp.eq.s32.totalorder %s15, 1
      %p38 = por %p36, %p37
      %p40 = scmp.ne.s32.totalorder %s23, %s39
      %p41 = scmp.eq.s32.totalorder %s15, 0
      %p42 = por %p40, %p41
      %s44 = sadd.s32 %s43, 1
      %p47 = scmp.eq.s32.totalorder %s9, 1
      %p48 = scmp.ne.s32.totalorder %s43, %s45
      %p49 = scmp.eq.s32.totalorder %s9, 0
      %p50 = por %p48, %p49
      %p51 = scmp.ne.s32.totalorder %s43, %s45
      %p52 = scmp.eq.s32.totalorder %s14, 1
      %p53 = por %p51, %p52
      %p54 = scmp.ne.s32.totalorder %s45, %s46
      %p55 = scmp.eq.s32.totalorder %s14, 0
      %p56 = por %p54, %p55
      %p57 = scmp.ne.s32.totalorder %s45, %s46
      %p58 = scmp.eq.s32.totalorder %s15, 1
      %p59 = por %p57, %p58
      %p61 = scmp.ne.s32.totalorder %s46, %s60
      %p62 = scmp.eq.s32.totalorder %s15, 0
      %p63 = por %p61, %p62
      %s65 = sadd.s32 %s64, 1
      %p68 = scmp.eq.s32.totalorder %s9, 1
      %p69 = scmp.ne.s32.totalorder %s64, %s66
      %p70 = scmp.eq.s32.totalorder %s9, 0
      %p71 = por %p69, %p70
      %p72 = scmp.ne.s32.totalorder %s64, %s66
      %p73 = scmp.eq.s32.totalorder %s14, 1
      %p74 = por %p72, %p73
      %p75 = scmp.ne.s32.totalorder %s66, %s67
      %p76 = scmp.eq.s32.totalorder %s14, 0
      %p77 = por %p75, %p76
      %p78 = scmp.ne.s32.totalorder %s66, %s67
      %p79 = scmp.eq.s32.totalorder %s15, 1
      %p80 = por %p78, %p79
      %p82 = scmp.ne.s32.totalorder %s67, %s81
      %p83 = scmp.eq.s32.totalorder %s15, 0
      %p84 = por %p82, %p83
      %s85 = ssub.s32 %s9, %s16
      %p86 = scmp.eq.s32.totalorder %s85, 0
      %s88 = sadd.s32 %s87, 1
      %s89 = scalar_select %p86, %s87, %s88
      %p92 = pneg %p86
      %p93 = scmp.eq.s32.totalorder %s9, 1
      %p94 = por %p92, %p93
      %p95 = scmp.ne.s32.totalorder %s87, %s90
      %p96 = scmp.eq.s32.totalorder %s9, 0
      %p97 = por %p95, %p96
      %p98 = scmp.ne.s32.totalorder %s87, %s90
      %p99 = scmp.eq.s32.totalorder %s14, 1
      %p100 = por %p98, %p99
      %p101 = scmp.ne.s32.totalorder %s90, %s91
      %p102 = scmp.eq.s32.totalorder %s14, 0
      %p103 = por %p101, %p102
      %p104 = scmp.ne.s32.totalorder %s90, %s91
      %p105 = scmp.eq.s32.totalorder %s15, 1
      %p106 = por %p104, %p105
      %p108 = scmp.ne.s32.totalorder %s91, %s107
      %p109 = scmp.eq.s32.totalorder %s15, 0
      %p110 = por %p108, %p109
      %p111 = scmp.le.s32.totalorder 1, %s9
      %p112 = scmp.lt.s32.totalorder %s9, 3
      %p113 = pnand %p111, %p112
      %p114 = pneg %p113
      // Predicated region
      $region9: #{encoder_forward.6} parent=5 // pred_check
        _
      $region10: #{encoder_forward.6} parent=5 // pred_check_branch
        %116 = sbr.rel (%p113) target = $region12
      $region11: #{encoder_forward.6} parent=5 // pred_region
        %s117 = ssub.s32 %s9, 1
        // Predicated region
        $region13: #{encoder_forward.6} parent=11 // pred_check
          %p118 = pneg %p56
        $region14: #{encoder_forward.6} parent=11 // pred_check_branch
          %120 = sbr.rel (%p118) target = $region16
        $region15: #{encoder_forward.6} parent=11 // pred_region
          _
        $region16: #{encoder_forward.6} parent=11 // pred_fallthru
          _
        // Predicated region
        $region17: #{encoder_forward.6} parent=11 // pred_check
          %p121 = pneg %p77
        $region18: #{encoder_forward.6} parent=11 // pred_check_branch
          %123 = sbr.rel (%p121) target = $region20
        $region19: #{encoder_forward.6} parent=11 // pred_region
          _
        $region20: #{encoder_forward.6} parent=11 // pred_fallthru
          _
      $region12: #{encoder_forward.6} parent=5 // pred_fallthru
        _
      %p124 = scmp.lt.s32.totalorder %s9, 2
      // Predicated region
      $region21: #{encoder_forward.6} parent=5 // pred_check
        %p125 = pneg %p124
      $region22: #{encoder_forward.6} parent=5 // pred_check_branch
        %127 = sbr.rel (%p125) target = $region24
      $region23: #{encoder_forward.6} parent=5 // pred_region
        // Predicated region
        $region25: #{encoder_forward.6} parent=23 // pred_check
          %p128 = pneg %p29
        $region26: #{encoder_forward.6} parent=23 // pred_check_branch
          %130 = sbr.rel (%p128) target = $region28
        $region27: #{encoder_forward.6} parent=23 // pred_region
          %s131 = sand.u32 %s19, 1
          %s132 = sand.u32 %s19, 1
          %s133 = smul.addr %s132, 512
          %s134 = scalar_lea.vmem [#allocation2], %s133
          %s135 = smul.u32 4, %s9
          %s136 = smul.addr %s135, 8
          %s137 = scalar_lea.vmem %s0, %s136
          // Predicated region
          $region29: #{encoder_forward.6} parent=27 // pred_check
            _
          $region30: #{encoder_forward.6} parent=27 // pred_check_branch
            %139 = sbr.rel (0) target = $region32
          $region31: #{encoder_forward.6} parent=27 // pred_region
            // Predicated region
            $region33: #{encoder_forward.6} parent=31 // pred_check
              _
            $region34: #{encoder_forward.6} parent=31 // pred_check_branch
              %141 = sbr.rel (0) target = $region36
            $region35: #{encoder_forward.6} parent=31 // pred_region
              loop: start=0, step=1, limit=1
              $region37: #{encoder_forward.6} parent=35 // loop_pre_header
                _
              $region38: #{encoder_forward.6} parent=35 // loop_header
                %s143 = sphi 0, %s147
                %p144 = scmp.ge.s32.totalorder %s143, 1
                %s148 = sphi %s137, %s137
                %s149 = sphi %s134, %s134
              $region39: #{encoder_forward.6} parent=35 // loop_header_branch
                %146 = sbr.rel (%p144) target = $region43
              $region40: #{encoder_forward.6} parent=35 // loop_body
                %v150 = vld [vmem:[%s148] sm:$0xff]
                %151 = vst [vmem:[%s149] sm:$0xff] %v150
                %v152 = vld [vmem:[%s148 + $0x8] sm:$0xff]
                %153 = vst [vmem:[%s149 + $0x8] sm:$0xff] %v152
                %v154 = vld [vmem:[%s148 + $0x10] sm:$0xff]
                %155 = vst [vmem:[%s149 + $0x10] sm:$0xff] %v154
                %v156 = vld [vmem:[%s148 + $0x18] sm:$0xff]
                %157 = vst [vmem:[%s149 + $0x18] sm:$0xff] %v156
                %v158 = vld [vmem:[%s148 + $0x40] sm:$0xff]
                %159 = vst [vmem:[%s149 + $0x20] sm:$0xff] %v158
                %v160 = vld [vmem:[%s148 + $0x48] sm:$0xff]
                %161 = vst [vmem:[%s149 + $0x28] sm:$0xff] %v160
                %v162 = vld [vmem:[%s148 + $0x50] sm:$0xff]
                %163 = vst [vmem:[%s149 + $0x30] sm:$0xff] %v162
                %v164 = vld [vmem:[%s148 + $0x58] sm:$0xff]
                %165 = vst [vmem:[%s149 + $0x38] sm:$0xff] %v164
                %v166 = vld [vmem:[%s148 + $0x80] sm:$0xff]
                %167 = vst [vmem:[%s149 + $0x40] sm:$0xff] %v166
                %v168 = vld [vmem:[%s148 + $0x88] sm:$0xff]
                %169 = vst [vmem:[%s149 + $0x48] sm:$0xff] %v168
                %v170 = vld [vmem:[%s148 + $0x90] sm:$0xff]
                %171 = vst [vmem:[%s149 + $0x50] sm:$0xff] %v170
                %v172 = vld [vmem:[%s148 + $0x98] sm:$0xff]
                %173 = vst [vmem:[%s149 + $0x58] sm:$0xff] %v172
                %v174 = vld [vmem:[%s148 + $0xc0] sm:$0xff]
                %175 = vst [vmem:[%s149 + $0x60] sm:$0xff] %v174
                %v176 = vld [vmem:[%s148 + $0xc8] sm:$0xff]
                %177 = vst [vmem:[%s149 + $0x68] sm:$0xff] %v176
                %v178 = vld [vmem:[%s148 + $0xd0] sm:$0xff]
                %179 = vst [vmem:[%s149 + $0x70] sm:$0xff] %v178
                %v180 = vld [vmem:[%s148 + $0xd8] sm:$0xff]
                %181 = vst [vmem:[%s149 + $0x78] sm:$0xff] %v180
                %v182 = vld [vmem:[%s148 + $0x100] sm:$0xff]
                %183 = vst [vmem:[%s149 + $0x80] sm:$0xff] %v182
                %v184 = vld [vmem:[%s148 + $0x108] sm:$0xff]
                %185 = vst [vmem:[%s149 + $0x88] sm:$0xff] %v184
                %v186 = vld [vmem:[%s148 + $0x110] sm:$0xff]
                %187 = vst [vmem:[%s149 + $0x90] sm:$0xff] %v186
                %v188 = vld [vmem:[%s148 + $0x118] sm:$0xff]
                %189 = vst [vmem:[%s149 + $0x98] sm:$0xff] %v188
                %v190 = vld [vmem:[%s148 + $0x140] sm:$0xff]
                %191 = vst [vmem:[%s149 + $0xa0] sm:$0xff] %v190
                %v192 = vld [vmem:[%s148 + $0x148] sm:$0xff]
                %193 = vst [vmem:[%s149 + $0xa8] sm:$0xff] %v192
                %v194 = vld [vmem:[%s148 + $0x150] sm:$0xff]
                %195 = vst [vmem:[%s149 + $0xb0] sm:$0xff] %v194
                %v196 = vld [vmem:[%s148 + $0x158] sm:$0xff]
                %197 = vst [vmem:[%s149 + $0xb8] sm:$0xff] %v196
                %v198 = vld [vmem:[%s148 + $0x180] sm:$0xff]
                %199 = vst [vmem:[%s149 + $0xc0] sm:$0xff] %v198
                %v200 = vld [vmem:[%s148 + $0x188] sm:$0xff]
                %201 = vst [vmem:[%s149 + $0xc8] sm:$0xff] %v200
                %v202 = vld [vmem:[%s148 + $0x190] sm:$0xff]
                %203 = vst [vmem:[%s149 + $0xd0] sm:$0xff] %v202
                %v204 = vld [vmem:[%s148 + $0x198] sm:$0xff]
                %205 = vst [vmem:[%s149 + $0xd8] sm:$0xff] %v204
                %v206 = vld [vmem:[%s148 + $0x1c0] sm:$0xff]
                %207 = vst [vmem:[%s149 + $0xe0] sm:$0xff] %v206
                %v208 = vld [vmem:[%s148 + $0x1c8] sm:$0xff]
                %209 = vst [vmem:[%s149 + $0xe8] sm:$0xff] %v208
                %v210 = vld [vmem:[%s148 + $0x1d0] sm:$0xff]
                %211 = vst [vmem:[%s149 + $0xf0] sm:$0xff] %v210
                %v212 = vld [vmem:[%s148 + $0x1d8] sm:$0xff]
                %213 = vst [vmem:[%s149 + $0xf8] sm:$0xff] %v212
                %v214 = vld [vmem:[%s148 + $0x200] sm:$0xff]
                %215 = vst [vmem:[%s149 + $0x100] sm:$0xff] %v214
                %v216 = vld [vmem:[%s148 + $0x208] sm:$0xff]
                %217 = vst [vmem:[%s149 + $0x108] sm:$0xff] %v216
                %v218 = vld [vmem:[%s148 + $0x210] sm:$0xff]
                %219 = vst [vmem:[%s149 + $0x110] sm:$0xff] %v218
                %v220 = vld [vmem:[%s148 + $0x218] sm:$0xff]
                %221 = vst [vmem:[%s149 + $0x118] sm:$0xff] %v220
                %v222 = vld [vmem:[%s148 + $0x240] sm:$0xff]
                %223 = vst [vmem:[%s149 + $0x120] sm:$0xff] %v222
                %v224 = vld [vmem:[%s148 + $0x248] sm:$0xff]
                %225 = vst [vmem:[%s149 + $0x128] sm:$0xff] %v224
                %v226 = vld [vmem:[%s148 + $0x250] sm:$0xff]
                %227 = vst [vmem:[%s149 + $0x130] sm:$0xff] %v226
                %v228 = vld [vmem:[%s148 + $0x258] sm:$0xff]
                %229 = vst [vmem:[%s149 + $0x138] sm:$0xff] %v228
                %v230 = vld [vmem:[%s148 + $0x280] sm:$0xff]
                %231 = vst [vmem:[%s149 + $0x140] sm:$0xff] %v230
                %v232 = vld [vmem:[%s148 + $0x288] sm:$0xff]
                %233 = vst [vmem:[%s149 + $0x148] sm:$0xff] %v232
                %v234 = vld [vmem:[%s148 + $0x290] sm:$0xff]
                %235 = vst [vmem:[%s149 + $0x150] sm:$0xff] %v234
                %v236 = vld [vmem:[%s148 + $0x298] sm:$0xff]
                %237 = vst [vmem:[%s149 + $0x158] sm:$0xff] %v236
                %v238 = vld [vmem:[%s148 + $0x2c0] sm:$0xff]
                %239 = vst [vmem:[%s149 + $0x160] sm:$0xff] %v238
                %v240 = vld [vmem:[%s148 + $0x2c8] sm:$0xff]
                %241 = vst [vmem:[%s149 + $0x168] sm:$0xff] %v240
                %v242 = vld [vmem:[%s148 + $0x2d0] sm:$0xff]
                %243 = vst [vmem:[%s149 + $0x170] sm:$0xff] %v242
                %v244 = vld [vmem:[%s148 + $0x2d8] sm:$0xff]
                %245 = vst [vmem:[%s149 + $0x178] sm:$0xff] %v244
                %v246 = vld [vmem:[%s148 + $0x300] sm:$0xff]
                %247 = vst [vmem:[%s149 + $0x180] sm:$0xff] %v246
                %v248 = vld [vmem:[%s148 + $0x308] sm:$0xff]
                %249 = vst [vmem:[%s149 + $0x188] sm:$0xff] %v248
                %v250 = vld [vmem:[%s148 + $0x310] sm:$0xff]
                %251 = vst [vmem:[%s149 + $0x190] sm:$0xff] %v250
                %v252 = vld [vmem:[%s148 + $0x318] sm:$0xff]
                %253 = vst [vmem:[%s149 + $0x198] sm:$0xff] %v252
                %v254 = vld [vmem:[%s148 + $0x340] sm:$0xff]
                %255 = vst [vmem:[%s149 + $0x1a0] sm:$0xff] %v254
                %v256 = vld [vmem:[%s148 + $0x348] sm:$0xff]
                %257 = vst [vmem:[%s149 + $0x1a8] sm:$0xff] %v256
                %v258 = vld [vmem:[%s148 + $0x350] sm:$0xff]
                %259 = vst [vmem:[%s149 + $0x1b0] sm:$0xff] %v258
                %v260 = vld [vmem:[%s148 + $0x358] sm:$0xff]
                %261 = vst [vmem:[%s149 + $0x1b8] sm:$0xff] %v260
                %v262 = vld [vmem:[%s148 + $0x380] sm:$0xff]
                %263 = vst [vmem:[%s149 + $0x1c0] sm:$0xff] %v262
                %v264 = vld [vmem:[%s148 + $0x388] sm:$0xff]
                %265 = vst [vmem:[%s149 + $0x1c8] sm:$0xff] %v264
                %v266 = vld [vmem:[%s148 + $0x390] sm:$0xff]
                %267 = vst [vmem:[%s149 + $0x1d0] sm:$0xff] %v266
                %v268 = vld [vmem:[%s148 + $0x398] sm:$0xff]
                %269 = vst [vmem:[%s149 + $0x1d8] sm:$0xff] %v268
                %v270 = vld [vmem:[%s148 + $0x3c0] sm:$0xff]
                %271 = vst [vmem:[%s149 + $0x1e0] sm:$0xff] %v270
                %v272 = vld [vmem:[%s148 + $0x3c8] sm:$0xff]
                %273 = vst [vmem:[%s149 + $0x1e8] sm:$0xff] %v272
                %v274 = vld [vmem:[%s148 + $0x3d0] sm:$0xff]
                %275 = vst [vmem:[%s149 + $0x1f0] sm:$0xff] %v274
                %v276 = vld [vmem:[%s148 + $0x3d8] sm:$0xff]
                %277 = vst [vmem:[%s149 + $0x1f8] sm:$0xff] %v276
              $region41: #{encoder_forward.6} parent=35 // loop_footer
                %s147 = sadd.s32 1, %s143
              $region42: #{encoder_forward.6} parent=35 // loop_footer_branch
                %142 = sbr.rel target = $region38
              $region43: #{encoder_forward.6} parent=35 // loop_exit
                _
            $region36: #{encoder_forward.6} parent=31 // pred_fallthru
              _
            // Predicated region
            $region44: #{encoder_forward.6} parent=31 // pred_check
              _
            $region45: #{encoder_forward.6} parent=31 // pred_check_branch
              %279 = sbr.rel target = $region47
            $region46: #{encoder_forward.6} parent=31 // pred_region
              _
            $region47: #{encoder_forward.6} parent=31 // pred_fallthru
              _
          $region32: #{encoder_forward.6} parent=27 // pred_fallthru
            _
          %280 = vnop
        $region28: #{encoder_forward.6} parent=23 // pred_fallthru
          _
      $region24: #{encoder_forward.6} parent=5 // pred_fallthru
        _
      %p281 = scmp.le.s32.totalorder 1, %s9
      %p282 = scmp.lt.s32.totalorder %s9, 3
      %p283 = pnand %p281, %p282
      %p284 = pneg %p283
      // Predicated region
      $region48: #{encoder_forward.6} parent=5 // pred_check
        _
      $region49: #{encoder_forward.6} parent=5 // pred_check_branch
        %286 = sbr.rel (%p283) target = $region51
      $region50: #{encoder_forward.6} parent=5 // pred_region
        %s287 = ssub.s32 %s9, 1
        %s288 = sand.u32 %s22, 1
        %s289 = sand.u32 %s22, 1
        %s290 = smul.addr %s289, 512
        %s291 = scalar_lea.vmem [#allocation2], %s290
        // Predicated region
        $region52: #{encoder_forward.6} parent=50 // pred_check
          %p292 = pneg %p35
        $region53: #{encoder_forward.6} parent=50 // pred_check_branch
          %294 = sbr.rel (%p292) target = $region55
        $region54: #{encoder_forward.6} parent=50 // pred_region
          _
        $region55: #{encoder_forward.6} parent=50 // pred_fallthru
          _
        %s295 = sand.u32 %s22, 1
        %s296 = sand.u32 %s22, 1
        %s297 = smul.addr %s296, 512
        %s298 = scalar_lea.vmem [#allocation2], %s297
        %p299 = pneg %p35
        %p300 = pneg %p32
        %p301 = pneg %p56
        %p302 = pneg %p53
        %p303 = pneg %p77
        %p304 = pneg %p74
        %p305 = pneg %p103
        %p306 = pneg %p100
        %s307 = sand.u32 %s90, 1
        %s308 = sand.u32 %s90, 1
        %s309 = smul.addr %s308, 64
        %s310 = scalar_lea.vmem [#allocation3], %s309
        %s311 = smul.u32 4, %s14
        %s312 = smul.u32 4, %s14
        %v313 = vld [vmem:[%s1] sm:$0xff]
        %v314 = vld [vmem:[%s1 + $0x8] sm:$0xff]
        %v315 = vld [vmem:[%s2] sm:$0xff]
        %v316 = vld [vmem:[%s2 + $0x8] sm:$0xff]
        %v317 = vld [vmem:[%s291] sm:$0xff]
        %v318 = vld [vmem:[%s291 + $0x8] sm:$0xff]
        %v319 = vld [vmem:[%s291 + $0x10] sm:$0xff]
        %v320 = vld [vmem:[%s291 + $0x18] sm:$0xff]
        %v321 = vld [vmem:[%s291 + $0x20] sm:$0xff]
        %v322 = vld [vmem:[%s291 + $0x28] sm:$0xff]
        %v323 = vld [vmem:[%s291 + $0x30] sm:$0xff]
        %v324 = vld [vmem:[%s291 + $0x38] sm:$0xff]
        %v325 = vld [vmem:[%s291 + $0x40] sm:$0xff]
        %v326 = vld [vmem:[%s291 + $0x48] sm:$0xff]
        %v327 = vld [vmem:[%s291 + $0x50] sm:$0xff]
        %v328 = vld [vmem:[%s291 + $0x58] sm:$0xff]
        %v329 = vld [vmem:[%s291 + $0x60] sm:$0xff]
        %v330 = vld [vmem:[%s291 + $0x68] sm:$0xff]
        %v331 = vld [vmem:[%s291 + $0x70] sm:$0xff]
        %v332 = vld [vmem:[%s291 + $0x78] sm:$0xff]
        %334 = vset.pattern.permute.xlu0 0
        %335 = vperm.xlu0 %334, %v315
        %v336 = vpop.permute.xlu0 %335
        %339 = vset.pattern.permute.xlu0 0
        %340 = vperm.xlu0 %339, %v316
        %v341 = vpop.permute.xlu0 %340
        %vm343 = vcmask 261120
        %v345 = vsel %vm343, %v313, 0
        %v348 = vsel %vm343, %v314, 0
        %350 = vmatprep.subr.mxu0 0.0
        %351 = vmatpush1.msra.mxu0 0.0
        %352 = vmatprep.subr.mxu0 0.0
        %353 = vmatpush1.msra.mxu0 0.0
        %354 = vmatprep.subr.mxu0 0.0
        %355 = vmatpush1.msra.mxu0 0.0
        %356 = vmatprep.subr.mxu0 0.0
        %357 = vmatpush1.msra.mxu0 0.0
        %358 = vmatprep.subr.mxu0 0.0
        %359 = vmatpush1.msra.mxu0 0.0
        %360 = vmatprep.subr.mxu0 0.0
        %361 = vmatpush1.msra.mxu0 0.0
        %362 = vmatprep.subr.mxu0 0.0
        %363 = vmatpush1.msra.mxu0 0.0
        %364 = vmatprep.subr.mxu0 0.0
        %365 = vmatpush1.msra.mxu0 0.0
        %366 = vmatprep.subr.mxu0 0.0
        %367 = vmatpush1.msra.mxu0 0.0
        %368 = vmatprep.subr.mxu0 0.0
        %369 = vmatpush1.msra.mxu0 0.0
        %370 = vmatprep.subr.mxu0 0.0
        %371 = vmatpush1.msra.mxu0 0.0
        %372 = vmatprep.subr.mxu0 0.0
        %373 = vmatpush1.msra.mxu0 0.0
        %374 = vmatprep.subr.mxu0 %v330
        %375 = vmatpush1.msra.mxu0 %v329
        %376 = vmatprep.subr.mxu0 %v326
        %377 = vmatpush1.msra.mxu0 %v325
        %378 = vmatprep.subr.mxu0 %v322
        %379 = vmatpush1.msra.mxu0 %v321
        %380 = vmatprep.subr.mxu0 %v318
        %381 = vmatpush1.msra.mxu0 %v317
        %382 = vmatprep.subr.mxu0 0.0
        %383 = vmatpush2.msra.mxu0 0.0
        %384 = vmatprep.subr.mxu0 0.0
        %385 = vmatpush2.msra.mxu0 0.0
        %386 = vmatprep.subr.mxu0 0.0
        %387 = vmatpush2.msra.mxu0 0.0
        %388 = vmatprep.subr.mxu0 0.0
        %389 = vmatpush2.msra.mxu0 0.0
        %390 = vmatprep.subr.mxu0 0.0
        %391 = vmatpush2.msra.mxu0 0.0
        %392 = vmatprep.subr.mxu0 0.0
        %393 = vmatpush2.msra.mxu0 0.0
        %394 = vmatprep.subr.mxu0 0.0
        %395 = vmatpush2.msra.mxu0 0.0
        %396 = vmatprep.subr.mxu0 0.0
        %397 = vmatpush2.msra.mxu0 0.0
        %398 = vmatprep.subr.mxu0 0.0
        %399 = vmatpush2.msra.mxu0 0.0
        %400 = vmatprep.subr.mxu0 0.0
        %401 = vmatpush2.msra.mxu0 0.0
        %402 = vmatprep.subr.mxu0 0.0
        %403 = vmatpush2.msra.mxu0 0.0
        %404 = vmatprep.subr.mxu0 0.0
        %405 = vmatpush2.msra.mxu0 0.0
        %406 = vmatprep.subr.mxu0 0.0
        %407 = vmatpush2.msra.mxu0 0.0
        %408 = vmatprep.subr.mxu0 0.0
        %409 = vmatpush2.msra.mxu0 0.0
        %410 = vmatprep.subr.mxu0 0.0
        %411 = vmatpush2.msra.mxu0 0.0
        %412 = vmatprep.subr.mxu0 0.0
        %413 = vmatpush2.msra.mxu0 0.0
        %414 = vmatprep.mubr.f32.mxu0 0.0
        %415 = vmatmul.mubr.f32.gmra.mxu0 %v345
        %v416 = vpop.f32.mrf.mxu0
        %v417 = vadd.f32 %v336, %v416
        %v418 = vpop.f32.mrf.mxu0
        %v419 = vadd.f32 %v336, %v418
        %420 = vmatprep.mubr.f32.mxu0 0.0
        %421 = vmatmul.mubr.f32.gmra.mxu0 %v348
        %v422 = vpop.f32.mrf.mxu0
        %v423 = vadd.f32 %v341, %v422
        %v424 = vpop.f32.mrf.mxu0
        %v425 = vadd.f32 %v341, %v424
        %426 = vdwg.mxu0
        %427 = vmatprep.subr.mxu0 0.0
        %428 = vmatpush1.msra.mxu0 0.0
        %429 = vmatprep.subr.mxu0 0.0
        %430 = vmatpush1.msra.mxu0 0.0
        %431 = vmatprep.subr.mxu0 0.0
        %432 = vmatpush1.msra.mxu0 0.0
        %433 = vmatprep.subr.mxu0 0.0
        %434 = vmatpush1.msra.mxu0 0.0
        %435 = vmatprep.subr.mxu0 0.0
        %436 = vmatpush1.msra.mxu0 0.0
        %437 = vmatprep.subr.mxu0 0.0
        %438 = vmatpush1.msra.mxu0 0.0
        %439 = vmatprep.subr.mxu0 0.0
        %440 = vmatpush1.msra.mxu0 0.0
        %441 = vmatprep.subr.mxu0 0.0
        %442 = vmatpush1.msra.mxu0 0.0
        %443 = vmatprep.subr.mxu0 0.0
        %444 = vmatpush1.msra.mxu0 0.0
        %445 = vmatprep.subr.mxu0 0.0
        %446 = vmatpush1.msra.mxu0 0.0
        %447 = vmatprep.subr.mxu0 0.0
        %448 = vmatpush1.msra.mxu0 0.0
        %449 = vmatprep.subr.mxu0 0.0
        %450 = vmatpush1.msra.mxu0 0.0
        %451 = vmatprep.subr.mxu0 %v332
        %452 = vmatpush1.msra.mxu0 %v331
        %453 = vmatprep.subr.mxu0 %v328
        %454 = vmatpush1.msra.mxu0 %v327
        %455 = vmatprep.subr.mxu0 %v324
        %456 = vmatpush1.msra.mxu0 %v323
        %457 = vmatprep.subr.mxu0 %v320
        %458 = vmatpush1.msra.mxu0 %v319
        %459 = vmatprep.subr.mxu0 0.0
        %460 = vmatpush2.msra.mxu0 0.0
        %461 = vmatprep.subr.mxu0 0.0
        %462 = vmatpush2.msra.mxu0 0.0
        %463 = vmatprep.subr.mxu0 0.0
        %464 = vmatpush2.msra.mxu0 0.0
        %465 = vmatprep.subr.mxu0 0.0
        %466 = vmatpush2.msra.mxu0 0.0
        %467 = vmatprep.subr.mxu0 0.0
        %468 = vmatpush2.msra.mxu0 0.0
        %469 = vmatprep.subr.mxu0 0.0
        %470 = vmatpush2.msra.mxu0 0.0
        %471 = vmatprep.subr.mxu0 0.0
        %472 = vmatpush2.msra.mxu0 0.0
        %473 = vmatprep.subr.mxu0 0.0
        %474 = vmatpush2.msra.mxu0 0.0
        %475 = vmatprep.subr.mxu0 0.0
        %476 = vmatpush2.msra.mxu0 0.0
        %477 = vmatprep.subr.mxu0 0.0
        %478 = vmatpush2.msra.mxu0 0.0
        %479 = vmatprep.subr.mxu0 0.0
        %480 = vmatpush2.msra.mxu0 0.0
        %481 = vmatprep.subr.mxu0 0.0
        %482 = vmatpush2.msra.mxu0 0.0
        %483 = vmatprep.subr.mxu0 0.0
        %484 = vmatpush2.msra.mxu0 0.0
        %485 = vmatprep.subr.mxu0 0.0
        %486 = vmatpush2.msra.mxu0 0.0
        %487 = vmatprep.subr.mxu0 0.0
        %488 = vmatpush2.msra.mxu0 0.0
        %489 = vmatprep.subr.mxu0 0.0
        %490 = vmatpush2.msra.mxu0 0.0
        %491 = vmatprep.mubr.f32.mxu0 0.0
        %492 = vmatmul.mubr.f32.gmra.mxu0 %v345
        %v493 = vpop.f32.mrf.mxu0
        %v494 = vadd.f32 %v336, %v493
        %v495 = vpop.f32.mrf.mxu0
        %v496 = vadd.f32 %v336, %v495
        %497 = vmatprep.mubr.f32.mxu0 0.0
        %498 = vmatmul.mubr.f32.gmra.mxu0 %v348
        %v499 = vpop.f32.mrf.mxu0
        %v500 = vadd.f32 %v341, %v499
        %v501 = vpop.f32.mrf.mxu0
        %v502 = vadd.f32 %v341, %v501
        %503 = vdwg.mxu0
        %v504 = vmul.f32 %v417, 0.70710677
        %v505 = vmul.f32 %v419, 0.70710677
        %v506 = vmul.f32 %v494, 0.70710677
        %v507 = vmul.f32 %v496, 0.70710677
        %v508 = vmul.f32 %v423, 0.70710677
        %v509 = vmul.f32 %v425, 0.70710677
        %v510 = vmul.f32 %v500, 0.70710677
        %v511 = vmul.f32 %v502, 0.70710677
        %vm512 = vcmp.ge.f32.partialorder %v504, 0.0
        %vm513 = vcmp.ge.f32.partialorder %v505, 0.0
        %vm514 = vcmp.ge.f32.partialorder %v506, 0.0
        %vm515 = vcmp.ge.f32.partialorder %v507, 0.0
        %vm516 = vcmp.ge.f32.partialorder %v508, 0.0
        %vm517 = vcmp.ge.f32.partialorder %v509, 0.0
        %vm518 = vcmp.ge.f32.partialorder %v510, 0.0
        %vm519 = vcmp.ge.f32.partialorder %v511, 0.0
        %v520 = vsel %vm512, 1.0, -1.0
        %v521 = vsel %vm513, 1.0, -1.0
        %v522 = vsel %vm514, 1.0, -1.0
        %v523 = vsel %vm515, 1.0, -1.0
        %v524 = vsel %vm516, 1.0, -1.0
        %v525 = vsel %vm517, 1.0, -1.0
        %v526 = vsel %vm518, 1.0, -1.0
        %v527 = vsel %vm519, 1.0, -1.0
        %v528 = vand.u32 2147483647, %v504
        %v529 = vand.u32 2147483647, %v505
        %v530 = vand.u32 2147483647, %v506
        %v531 = vand.u32 2147483647, %v507
        %v532 = vand.u32 2147483647, %v508
        %v533 = vand.u32 2147483647, %v509
        %v534 = vand.u32 2147483647, %v510
        %v535 = vand.u32 2147483647, %v511
        %v536 = vmul.f32 %v528, 0.3275911
        %v537 = vmul.f32 %v529, 0.3275911
        %v538 = vmul.f32 %v530, 0.3275911
        %v539 = vmul.f32 %v531, 0.3275911
        %v540 = vmul.f32 %v532, 0.3275911
        %v541 = vmul.f32 %v533, 0.3275911
        %v542 = vmul.f32 %v534, 0.3275911
        %v543 = vmul.f32 %v535, 0.3275911
        %v544 = vadd.f32 %v536, 1.0
        %v545 = vadd.f32 %v537, 1.0
        %v546 = vadd.f32 %v538, 1.0
        %v547 = vadd.f32 %v539, 1.0
        %v548 = vadd.f32 %v540, 1.0
        %v549 = vadd.f32 %v541, 1.0
        %v550 = vadd.f32 %v542, 1.0
        %v551 = vadd.f32 %v543, 1.0
        %v552 = vrcp.pop %v544
        %v553 = vrcp.pop %v545
        %v554 = vrcp.pop %v546
        %v555 = vrcp.pop %v547
        %v556 = vrcp.pop %v548
        %v557 = vrcp.pop %v549
        %v558 = vrcp.pop %v550
        %v559 = vrcp.pop %v551
        %v560 = vmul.f32 %v552, 1.0614054
        %v561 = vmul.f32 %v553, 1.0614054
        %v562 = vmul.f32 %v554, 1.0614054
        %v563 = vmul.f32 %v555, 1.0614054
        %v564 = vmul.f32 %v556, 1.0614054
        %v565 = vmul.f32 %v557, 1.0614054
        %v566 = vmul.f32 %v558, 1.0614054
        %v567 = vmul.f32 %v559, 1.0614054
        %v568 = vadd.f32 %v560, -1.4531521
        %v569 = vadd.f32 %v561, -1.4531521
        %v570 = vadd.f32 %v562, -1.4531521
        %v571 = vadd.f32 %v563, -1.4531521
        %v572 = vadd.f32 %v564, -1.4531521
        %v573 = vadd.f32 %v565, -1.4531521
        %v574 = vadd.f32 %v566, -1.4531521
        %v575 = vadd.f32 %v567, -1.4531521
        %v576 = vmul.f32 %v568, %v552
        %v577 = vmul.f32 %v569, %v553
        %v578 = vmul.f32 %v570, %v554
        %v579 = vmul.f32 %v571, %v555
        %v580 = vmul.f32 %v572, %v556
        %v581 = vmul.f32 %v573, %v557
        %v582 = vmul.f32 %v574, %v558
        %v583 = vmul.f32 %v575, %v559
        %v584 = vadd.f32 %v576, 1.4214138
        %v585 = vadd.f32 %v577, 1.4214138
        %v586 = vadd.f32 %v578, 1.4214138
        %v587 = vadd.f32 %v579, 1.4214138
        %v588 = vadd.f32 %v580, 1.4214138
        %v589 = vadd.f32 %v581, 1.4214138
        %v590 = vadd.f32 %v582, 1.4214138
        %v591 = vadd.f32 %v583, 1.4214138
        %v592 = vmul.f32 %v584, %v552
        %v593 = vmul.f32 %v585, %v553
        %v594 = vmul.f32 %v586, %v554
        %v595 = vmul.f32 %v587, %v555
        %v596 = vmul.f32 %v588, %v556
        %v597 = vmul.f32 %v589, %v557
        %v598 = vmul.f32 %v590, %v558
        %v599 = vmul.f32 %v591, %v559
        %v600 = vadd.f32 %v592, -0.28449672
        %v601 = vadd.f32 %v593, -0.28449672
        %v602 = vadd.f32 %v594, -0.28449672
        %v603 = vadd.f32 %v595, -0.28449672
        %v604 = vadd.f32 %v596, -0.28449672
        %v605 = vadd.f32 %v597, -0.28449672
        %v606 = vadd.f32 %v598, -0.28449672
        %v607 = vadd.f32 %v599, -0.28449672
        %v608 = vmul.f32 %v600, %v552
        %v609 = vmul.f32 %v601, %v553
        %v610 = vmul.f32 %v602, %v554
        %v611 = vmul.f32 %v603, %v555
        %v612 = vmul.f32 %v604, %v556
        %v613 = vmul.f32 %v605, %v557
        %v614 = vmul.f32 %v606, %v558
        %v615 = vmul.f32 %v607, %v559
        %v616 = vadd.f32 %v608, 0.2548296
        %v617 = vadd.f32 %v609, 0.2548296
        %v618 = vadd.f32 %v610, 0.2548296
        %v619 = vadd.f32 %v611, 0.2548296
        %v620 = vadd.f32 %v612, 0.2548296
        %v621 = vadd.f32 %v613, 0.2548296
        %v622 = vadd.f32 %v614, 0.2548296
        %v623 = vadd.f32 %v615, 0.2548296
        %v624 = vmul.f32 %v616, %v552
        %v625 = vmul.f32 %v617, %v553
        %v626 = vmul.f32 %v618, %v554
        %v627 = vmul.f32 %v619, %v555
        %v628 = vmul.f32 %v620, %v556
        %v629 = vmul.f32 %v621, %v557
        %v630 = vmul.f32 %v622, %v558
        %v631 = vmul.f32 %v623, %v559
        %v632 = vsub.f32 0.0, %v528
        %v633 = vsub.f32 0.0, %v529
        %v634 = vsub.f32 0.0, %v530
        %v635 = vsub.f32 0.0, %v531
        %v636 = vsub.f32 0.0, %v532
        %v637 = vsub.f32 0.0, %v533
        %v638 = vsub.f32 0.0, %v534
        %v639 = vsub.f32 0.0, %v535
        %v640 = vmul.f32 %v632, %v528
        %v641 = vmul.f32 %v633, %v529
        %v642 = vmul.f32 %v634, %v530
        %v643 = vmul.f32 %v635, %v531
        %v644 = vmul.f32 %v636, %v532
        %v645 = vmul.f32 %v637, %v533
        %v646 = vmul.f32 %v638, %v534
        %v647 = vmul.f32 %v639, %v535
        %v648 = vmul.f32 %v640, 1.442695
        %v649 = vpow.pop %v648
        %v650 = vmul.f32 %v641, 1.442695
        %v651 = vpow.pop %v650
        %v652 = vmul.f32 %v642, 1.442695
        %v653 = vpow.pop %v652
        %v654 = vmul.f32 %v643, 1.442695
        %v655 = vpow.pop %v654
        %v656 = vmul.f32 %v644, 1.442695
        %v657 = vpow.pop %v656
        %v658 = vmul.f32 %v645, 1.442695
        %v659 = vpow.pop %v658
        %v660 = vmul.f32 %v646, 1.442695
        %v661 = vpow.pop %v660
        %v662 = vmul.f32 %v647, 1.442695
        %v663 = vpow.pop %v662
        %v664 = vmul.f32 %v624, %v649
        %v665 = vmul.f32 %v625, %v651
        %v666 = vmul.f32 %v626, %v653
        %v667 = vmul.f32 %v627, %v655
        %v668 = vmul.f32 %v628, %v657
        %v669 = vmul.f32 %v629, %v659
        %v670 = vmul.f32 %v630, %v661
        %v671 = vmul.f32 %v631, %v663
        %v672 = vsub.f32 1.0, %v664
        %v673 = vsub.f32 1.0, %v665
        %v674 = vsub.f32 1.0, %v666
        %v675 = vsub.f32 1.0, %v667
        %v676 = vsub.f32 1.0, %v668
        %v677 = vsub.f32 1.0, %v669
        %v678 = vsub.f32 1.0, %v670
        %v679 = vsub.f32 1.0, %v671
        %v680 = vmul.f32 %v520, %v672
        %v681 = vmul.f32 %v521, %v673
        %v682 = vmul.f32 %v522, %v674
        %v683 = vmul.f32 %v523, %v675
        %v684 = vmul.f32 %v524, %v676
        %v685 = vmul.f32 %v525, %v677
        %v686 = vmul.f32 %v526, %v678
        %v687 = vmul.f32 %v527, %v679
        %v688 = vmul.f32 %v417, 0.5
        %v689 = vmul.f32 %v419, 0.5
        %v690 = vmul.f32 %v494, 0.5
        %v691 = vmul.f32 %v496, 0.5
        %v692 = vmul.f32 %v423, 0.5
        %v693 = vmul.f32 %v425, 0.5
        %v694 = vmul.f32 %v500, 0.5
        %v695 = vmul.f32 %v502, 0.5
        %v696 = vadd.f32 %v680, 1.0
        %v697 = vadd.f32 %v681, 1.0
        %v698 = vadd.f32 %v682, 1.0
        %v699 = vadd.f32 %v683, 1.0
        %v700 = vadd.f32 %v684, 1.0
        %v701 = vadd.f32 %v685, 1.0
        %v702 = vadd.f32 %v686, 1.0
        %v703 = vadd.f32 %v687, 1.0
        %v704 = vmul.f32 %v688, %v696
        %v705 = vmul.f32 %v689, %v697
        %v706 = vmul.f32 %v690, %v698
        %v707 = vmul.f32 %v691, %v699
        %v708 = vmul.f32 %v692, %v700
        %v709 = vmul.f32 %v693, %v701
        %v710 = vmul.f32 %v694, %v702
        %v711 = vmul.f32 %v695, %v703
        %s712 = scalar_lea.vmem %s291, 128 [#allocation2]
        %v713 = vld [vmem:[%s712] sm:$0xff]
        %v714 = vld [vmem:[%s712 + $0x8] sm:$0xff]
        %v715 = vld [vmem:[%s712 + $0x10] sm:$0xff]
        %v716 = vld [vmem:[%s712 + $0x18] sm:$0xff]
        %v717 = vld [vmem:[%s712 + $0x20] sm:$0xff]
        %v718 = vld [vmem:[%s712 + $0x28] sm:$0xff]
        %v719 = vld [vmem:[%s712 + $0x30] sm:$0xff]
        %v720 = vld [vmem:[%s712 + $0x38] sm:$0xff]
        %v721 = vld [vmem:[%s712 + $0x40] sm:$0xff]
        %v722 = vld [vmem:[%s712 + $0x48] sm:$0xff]
        %v723 = vld [vmem:[%s712 + $0x50] sm:$0xff]
        %v724 = vld [vmem:[%s712 + $0x58] sm:$0xff]
        %v725 = vld [vmem:[%s712 + $0x60] sm:$0xff]
        %v726 = vld [vmem:[%s712 + $0x68] sm:$0xff]
        %v727 = vld [vmem:[%s712 + $0x70] sm:$0xff]
        %v728 = vld [vmem:[%s712 + $0x78] sm:$0xff]
        %729 = vmatprep.subr.mxu0 0.0
        %730 = vmatpush1.msra.mxu0 0.0
        %731 = vmatprep.subr.mxu0 0.0
        %732 = vmatpush1.msra.mxu0 0.0
        %733 = vmatprep.subr.mxu0 0.0
        %734 = vmatpush1.msra.mxu0 0.0
        %735 = vmatprep.subr.mxu0 0.0
        %736 = vmatpush1.msra.mxu0 0.0
        %737 = vmatprep.subr.mxu0 0.0
        %738 = vmatpush1.msra.mxu0 0.0
        %739 = vmatprep.subr.mxu0 0.0
        %740 = vmatpush1.msra.mxu0 0.0
        %741 = vmatprep.subr.mxu0 0.0
        %742 = vmatpush1.msra.mxu0 0.0
        %743 = vmatprep.subr.mxu0 0.0
        %744 = vmatpush1.msra.mxu0 0.0
        %745 = vmatprep.subr.mxu0 0.0
        %746 = vmatpush1.msra.mxu0 0.0
        %747 = vmatprep.subr.mxu0 0.0
        %748 = vmatpush1.msra.mxu0 0.0
        %749 = vmatprep.subr.mxu0 0.0
        %750 = vmatpush1.msra.mxu0 0.0
        %751 = vmatprep.subr.mxu0 0.0
        %752 = vmatpush1.msra.mxu0 0.0
        %753 = vmatprep.subr.mxu0 %v726
        %754 = vmatpush1.msra.mxu0 %v725
        %755 = vmatprep.subr.mxu0 %v722
        %756 = vmatpush1.msra.mxu0 %v721
        %757 = vmatprep.subr.mxu0 %v718
        %758 = vmatpush1.msra.mxu0 %v717
        %759 = vmatprep.subr.mxu0 %v714
        %760 = vmatpush1.msra.mxu0 %v713
        %761 = vmatprep.subr.mxu0 0.0
        %762 = vmatpush2.msra.mxu0 0.0
        %763 = vmatprep.subr.mxu0 0.0
        %764 = vmatpush2.msra.mxu0 0.0
        %765 = vmatprep.subr.mxu0 0.0
        %766 = vmatpush2.msra.mxu0 0.0
        %767 = vmatprep.subr.mxu0 0.0
        %768 = vmatpush2.msra.mxu0 0.0
        %769 = vmatprep.subr.mxu0 0.0
        %770 = vmatpush2.msra.mxu0 0.0
        %771 = vmatprep.subr.mxu0 0.0
        %772 = vmatpush2.msra.mxu0 0.0
        %773 = vmatprep.subr.mxu0 0.0
        %774 = vmatpush2.msra.mxu0 0.0
        %775 = vmatprep.subr.mxu0 0.0
        %776 = vmatpush2.msra.mxu0 0.0
        %777 = vmatprep.subr.mxu0 0.0
        %778 = vmatpush2.msra.mxu0 0.0
        %779 = vmatprep.subr.mxu0 0.0
        %780 = vmatpush2.msra.mxu0 0.0
        %781 = vmatprep.subr.mxu0 0.0
        %782 = vmatpush2.msra.mxu0 0.0
        %783 = vmatprep.subr.mxu0 0.0
        %784 = vmatpush2.msra.mxu0 0.0
        %785 = vmatprep.subr.mxu0 0.0
        %786 = vmatpush2.msra.mxu0 0.0
        %787 = vmatprep.subr.mxu0 0.0
        %788 = vmatpush2.msra.mxu0 0.0
        %789 = vmatprep.subr.mxu0 0.0
        %790 = vmatpush2.msra.mxu0 0.0
        %791 = vmatprep.subr.mxu0 0.0
        %792 = vmatpush2.msra.mxu0 0.0
        %793 = vmatprep.mubr.f32.mxu0 0.0
        %794 = vmatmul.mubr.f32.gmra.mxu0 %v345
        %v795 = vpop.f32.mrf.mxu0
        %v796 = vadd.f32 %v336, %v795
        %v797 = vpop.f32.mrf.mxu0
        %v798 = vadd.f32 %v336, %v797
        %799 = vmatprep.mubr.f32.mxu0 0.0
        %800 = vmatmul.mubr.f32.gmra.mxu0 %v348
        %v801 = vpop.f32.mrf.mxu0
        %v802 = vadd.f32 %v341, %v801
        %v803 = vpop.f32.mrf.mxu0
        %v804 = vadd.f32 %v341, %v803
        %805 = vdwg.mxu0
        %806 = vmatprep.subr.mxu0 0.0
        %807 = vmatpush1.msra.mxu0 0.0
        %808 = vmatprep.subr.mxu0 0.0
        %809 = vmatpush1.msra.mxu0 0.0
        %810 = vmatprep.subr.mxu0 0.0
        %811 = vmatpush1.msra.mxu0 0.0
        %812 = vmatprep.subr.mxu0 0.0
        %813 = vmatpush1.msra.mxu0 0.0
        %814 = vmatprep.subr.mxu0 0.0
        %815 = vmatpush1.msra.mxu0 0.0
        %816 = vmatprep.subr.mxu0 0.0
        %817 = vmatpush1.msra.mxu0 0.0
        %818 = vmatprep.subr.mxu0 0.0
        %819 = vmatpush1.msra.mxu0 0.0
        %820 = vmatprep.subr.mxu0 0.0
        %821 = vmatpush1.msra.mxu0 0.0
        %822 = vmatprep.subr.mxu0 0.0
        %823 = vmatpush1.msra.mxu0 0.0
        %824 = vmatprep.subr.mxu0 0.0
        %825 = vmatpush1.msra.mxu0 0.0
        %826 = vmatprep.subr.mxu0 0.0
        %827 = vmatpush1.msra.mxu0 0.0
        %828 = vmatprep.subr.mxu0 0.0
        %829 = vmatpush1.msra.mxu0 0.0
        %830 = vmatprep.subr.mxu0 %v728
        %831 = vmatpush1.msra.mxu0 %v727
        %832 = vmatprep.subr.mxu0 %v724
        %833 = vmatpush1.msra.mxu0 %v723
        %834 = vmatprep.subr.mxu0 %v720
        %835 = vmatpush1.msra.mxu0 %v719
        %836 = vmatprep.subr.mxu0 %v716
        %837 = vmatpush1.msra.mxu0 %v715
        %838 = vmatprep.subr.mxu0 0.0
        %839 = vmatpush2.msra.mxu0 0.0
        %840 = vmatprep.subr.mxu0 0.0
        %841 = vmatpush2.msra.mxu0 0.0
        %842 = vmatprep.subr.mxu0 0.0
        %843 = vmatpush2.msra.mxu0 0.0
        %844 = vmatprep.subr.mxu0 0.0
        %845 = vmatpush2.msra.mxu0 0.0
        %846 = vmatprep.subr.mxu0 0.0
        %847 = vmatpush2.msra.mxu0 0.0
        %848 = vmatprep.subr.mxu0 0.0
        %849 = vmatpush2.msra.mxu0 0.0
        %850 = vmatprep.subr.mxu0 0.0
        %851 = vmatpush2.msra.mxu0 0.0
        %852 = vmatprep.subr.mxu0 0.0
        %853 = vmatpush2.msra.mxu0 0.0
        %854 = vmatprep.subr.mxu0 0.0
        %855 = vmatpush2.msra.mxu0 0.0
        %856 = vmatprep.subr.mxu0 0.0
        %857 = vmatpush2.msra.mxu0 0.0
        %858 = vmatprep.subr.mxu0 0.0
        %859 = vmatpush2.msra.mxu0 0.0
        %860 = vmatprep.subr.mxu0 0.0
        %861 = vmatpush2.msra.mxu0 0.0
        %862 = vmatprep.subr.mxu0 0.0
        %863 = vmatpush2.msra.mxu0 0.0
        %864 = vmatprep.subr.mxu0 0.0
        %865 = vmatpush2.msra.mxu0 0.0
        %866 = vmatprep.subr.mxu0 0.0
        %867 = vmatpush2.msra.mxu0 0.0
        %868 = vmatprep.subr.mxu0 0.0
        %869 = vmatpush2.msra.mxu0 0.0
        %870 = vmatprep.mubr.f32.mxu0 0.0
        %871 = vmatmul.mubr.f32.gmra.mxu0 %v345
        %v872 = vpop.f32.mrf.mxu0
        %v873 = vadd.f32 %v336, %v872
        %v874 = vpop.f32.mrf.mxu0
        %v875 = vadd.f32 %v336, %v874
        %876 = vmatprep.mubr.f32.mxu0 0.0
        %877 = vmatmul.mubr.f32.gmra.mxu0 %v348
        %v878 = vpop.f32.mrf.mxu0
        %v879 = vadd.f32 %v341, %v878
        %v880 = vpop.f32.mrf.mxu0
        %v881 = vadd.f32 %v341, %v880
        %882 = vdwg.mxu0
        %v883 = vmul.f32 %v796, 0.70710677
        %v884 = vmul.f32 %v798, 0.70710677
        %v885 = vmul.f32 %v873, 0.70710677
        %v886 = vmul.f32 %v875, 0.70710677
        %v887 = vmul.f32 %v802, 0.70710677
        %v888 = vmul.f32 %v804, 0.70710677
        %v889 = vmul.f32 %v879, 0.70710677
        %v890 = vmul.f32 %v881, 0.70710677
        %vm891 = vcmp.ge.f32.partialorder %v883, 0.0
        %vm892 = vcmp.ge.f32.partialorder %v884, 0.0
        %vm893 = vcmp.ge.f32.partialorder %v885, 0.0
        %vm894 = vcmp.ge.f32.partialorder %v886, 0.0
        %vm895 = vcmp.ge.f32.partialorder %v887, 0.0
        %vm896 = vcmp.ge.f32.partialorder %v888, 0.0
        %vm897 = vcmp.ge.f32.partialorder %v889, 0.0
        %vm898 = vcmp.ge.f32.partialorder %v890, 0.0
        %v899 = vsel %vm891, 1.0, -1.0
        %v900 = vsel %vm892, 1.0, -1.0
        %v901 = vsel %vm893, 1.0, -1.0
        %v902 = vsel %vm894, 1.0, -1.0
        %v903 = vsel %vm895, 1.0, -1.0
        %v904 = vsel %vm896, 1.0, -1.0
        %v905 = vsel %vm897, 1.0, -1.0
        %v906 = vsel %vm898, 1.0, -1.0
        %v907 = vand.u32 2147483647, %v883
        %v908 = vand.u32 2147483647, %v884
        %v909 = vand.u32 2147483647, %v885
        %v910 = vand.u32 2147483647, %v886
        %v911 = vand.u32 2147483647, %v887
        %v912 = vand.u32 2147483647, %v888
        %v913 = vand.u32 2147483647, %v889
        %v914 = vand.u32 2147483647, %v890
        %v915 = vmul.f32 %v907, 0.3275911
        %v916 = vmul.f32 %v908, 0.3275911
        %v917 = vmul.f32 %v909, 0.3275911
        %v918 = vmul.f32 %v910, 0.3275911
        %v919 = vmul.f32 %v911, 0.3275911
        %v920 = vmul.f32 %v912, 0.3275911
        %v921 = vmul.f32 %v913, 0.3275911
        %v922 = vmul.f32 %v914, 0.3275911
        %v923 = vadd.f32 %v915, 1.0
        %v924 = vadd.f32 %v916, 1.0
        %v925 = vadd.f32 %v917, 1.0
        %v926 = vadd.f32 %v918, 1.0
        %v927 = vadd.f32 %v919, 1.0
        %v928 = vadd.f32 %v920, 1.0
        %v929 = vadd.f32 %v921, 1.0
        %v930 = vadd.f32 %v922, 1.0
        %v931 = vrcp.pop %v923
        %v932 = vrcp.pop %v924
        %v933 = vrcp.pop %v925
        %v934 = vrcp.pop %v926
        %v935 = vrcp.pop %v927
        %v936 = vrcp.pop %v928
        %v937 = vrcp.pop %v929
        %v938 = vrcp.pop %v930
        %v939 = vmul.f32 %v931, 1.0614054
        %v940 = vmul.f32 %v932, 1.0614054
        %v941 = vmul.f32 %v933, 1.0614054
        %v942 = vmul.f32 %v934, 1.0614054
        %v943 = vmul.f32 %v935, 1.0614054
        %v944 = vmul.f32 %v936, 1.0614054
        %v945 = vmul.f32 %v937, 1.0614054
        %v946 = vmul.f32 %v938, 1.0614054
        %v947 = vadd.f32 %v939, -1.4531521
        %v948 = vadd.f32 %v940, -1.4531521
        %v949 = vadd.f32 %v941, -1.4531521
        %v950 = vadd.f32 %v942, -1.4531521
        %v951 = vadd.f32 %v943, -1.4531521
        %v952 = vadd.f32 %v944, -1.4531521
        %v953 = vadd.f32 %v945, -1.4531521
        %v954 = vadd.f32 %v946, -1.4531521
        %v955 = vmul.f32 %v947, %v931
        %v956 = vmul.f32 %v948, %v932
        %v957 = vmul.f32 %v949, %v933
        %v958 = vmul.f32 %v950, %v934
        %v959 = vmul.f32 %v951, %v935
        %v960 = vmul.f32 %v952, %v936
        %v961 = vmul.f32 %v953, %v937
        %v962 = vmul.f32 %v954, %v938
        %v963 = vadd.f32 %v955, 1.4214138
        %v964 = vadd.f32 %v956, 1.4214138
        %v965 = vadd.f32 %v957, 1.4214138
        %v966 = vadd.f32 %v958, 1.4214138
        %v967 = vadd.f32 %v959, 1.4214138
        %v968 = vadd.f32 %v960, 1.4214138
        %v969 = vadd.f32 %v961, 1.4214138
        %v970 = vadd.f32 %v962, 1.4214138
        %v971 = vmul.f32 %v963, %v931
        %v972 = vmul.f32 %v964, %v932
        %v973 = vmul.f32 %v965, %v933
        %v974 = vmul.f32 %v966, %v934
        %v975 = vmul.f32 %v967, %v935
        %v976 = vmul.f32 %v968, %v936
        %v977 = vmul.f32 %v969, %v937
        %v978 = vmul.f32 %v970, %v938
        %v979 = vadd.f32 %v971, -0.28449672
        %v980 = vadd.f32 %v972, -0.28449672
        %v981 = vadd.f32 %v973, -0.28449672
        %v982 = vadd.f32 %v974, -0.28449672
        %v983 = vadd.f32 %v975, -0.28449672
        %v984 = vadd.f32 %v976, -0.28449672
        %v985 = vadd.f32 %v977, -0.28449672
        %v986 = vadd.f32 %v978, -0.28449672
        %v987 = vmul.f32 %v979, %v931
        %v988 = vmul.f32 %v980, %v932
        %v989 = vmul.f32 %v981, %v933
        %v990 = vmul.f32 %v982, %v934
        %v991 = vmul.f32 %v983, %v935
        %v992 = vmul.f32 %v984, %v936
        %v993 = vmul.f32 %v985, %v937
        %v994 = vmul.f32 %v986, %v938
        %v995 = vadd.f32 %v987, 0.2548296
        %v996 = vadd.f32 %v988, 0.2548296
        %v997 = vadd.f32 %v989, 0.2548296
        %v998 = vadd.f32 %v990, 0.2548296
        %v999 = vadd.f32 %v991, 0.2548296
        %v1000 = vadd.f32 %v992, 0.2548296
        %v1001 = vadd.f32 %v993, 0.2548296
        %v1002 = vadd.f32 %v994, 0.2548296
        %v1003 = vmul.f32 %v995, %v931
        %v1004 = vmul.f32 %v996, %v932
        %v1005 = vmul.f32 %v997, %v933
        %v1006 = vmul.f32 %v998, %v934
        %v1007 = vmul.f32 %v999, %v935
        %v1008 = vmul.f32 %v1000, %v936
        %v1009 = vmul.f32 %v1001, %v937
        %v1010 = vmul.f32 %v1002, %v938
        %v1011 = vsub.f32 0.0, %v907
        %v1012 = vsub.f32 0.0, %v908
        %v1013 = vsub.f32 0.0, %v909
        %v1014 = vsub.f32 0.0, %v910
        %v1015 = vsub.f32 0.0, %v911
        %v1016 = vsub.f32 0.0, %v912
        %v1017 = vsub.f32 0.0, %v913
        %v1018 = vsub.f32 0.0, %v914
        %v1019 = vmul.f32 %v1011, %v907
        %v1020 = vmul.f32 %v1012, %v908
        %v1021 = vmul.f32 %v1013, %v909
        %v1022 = vmul.f32 %v1014, %v910
        %v1023 = vmul.f32 %v1015, %v911
        %v1024 = vmul.f32 %v1016, %v912
        %v1025 = vmul.f32 %v1017, %v913
        %v1026 = vmul.f32 %v1018, %v914
        %v1027 = vmul.f32 %v1019, 1.442695
        %v1028 = vpow.pop %v1027
        %v1029 = vmul.f32 %v1020, 1.442695
        %v1030 = vpow.pop %v1029
        %v1031 = vmul.f32 %v1021, 1.442695
        %v1032 = vpow.pop %v1031
        %v1033 = vmul.f32 %v1022, 1.442695
        %v1034 = vpow.pop %v1033
        %v1035 = vmul.f32 %v1023, 1.442695
        %v1036 = vpow.pop %v1035
        %v1037 = vmul.f32 %v1024, 1.442695
        %v1038 = vpow.pop %v1037
        %v1039 = vmul.f32 %v1025, 1.442695
        %v1040 = vpow.pop %v1039
        %v1041 = vmul.f32 %v1026, 1.442695
        %v1042 = vpow.pop %v1041
        %v1043 = vmul.f32 %v1003, %v1028
        %v1044 = vmul.f32 %v1004, %v1030
        %v1045 = vmul.f32 %v1005, %v1032
        %v1046 = vmul.f32 %v1006, %v1034
        %v1047 = vmul.f32 %v1007, %v1036
        %v1048 = vmul.f32 %v1008, %v1038
        %v1049 = vmul.f32 %v1009, %v1040
        %v1050 = vmul.f32 %v1010, %v1042
        %v1051 = vsub.f32 1.0, %v1043
        %v1052 = vsub.f32 1.0, %v1044
        %v1053 = vsub.f32 1.0, %v1045
        %v1054 = vsub.f32 1.0, %v1046
        %v1055 = vsub.f32 1.0, %v1047
        %v1056 = vsub.f32 1.0, %v1048
        %v1057 = vsub.f32 1.0, %v1049
        %v1058 = vsub.f32 1.0, %v1050
        %v1059 = vmul.f32 %v899, %v1051
        %v1060 = vmul.f32 %v900, %v1052
        %v1061 = vmul.f32 %v901, %v1053
        %v1062 = vmul.f32 %v902, %v1054
        %v1063 = vmul.f32 %v903, %v1055
        %v1064 = vmul.f32 %v904, %v1056
        %v1065 = vmul.f32 %v905, %v1057
        %v1066 = vmul.f32 %v906, %v1058
        %v1067 = vmul.f32 %v796, 0.5
        %v1068 = vmul.f32 %v798, 0.5
        %v1069 = vmul.f32 %v873, 0.5
        %v1070 = vmul.f32 %v875, 0.5
        %v1071 = vmul.f32 %v802, 0.5
        %v1072 = vmul.f32 %v804, 0.5
        %v1073 = vmul.f32 %v879, 0.5
        %v1074 = vmul.f32 %v881, 0.5
        %v1075 = vadd.f32 %v1059, 1.0
        %v1076 = vadd.f32 %v1060, 1.0
        %v1077 = vadd.f32 %v1061, 1.0
        %v1078 = vadd.f32 %v1062, 1.0
        %v1079 = vadd.f32 %v1063, 1.0
        %v1080 = vadd.f32 %v1064, 1.0
        %v1081 = vadd.f32 %v1065, 1.0
        %v1082 = vadd.f32 %v1066, 1.0
        %v1083 = vmul.f32 %v1067, %v1075
        %v1084 = vmul.f32 %v1068, %v1076
        %v1085 = vmul.f32 %v1069, %v1077
        %v1086 = vmul.f32 %v1070, %v1078
        %v1087 = vmul.f32 %v1071, %v1079
        %v1088 = vmul.f32 %v1072, %v1080
        %v1089 = vmul.f32 %v1073, %v1081
        %v1090 = vmul.f32 %v1074, %v1082
        %v1091 = vmax.f32 %v704, %v1083
        %v1092 = vmax.f32 %v705, %v1084
        %v1093 = vmax.f32 %v706, %v1085
        %v1094 = vmax.f32 %v707, %v1086
        %v1095 = vmax.f32 %v708, %v1087
        %v1096 = vmax.f32 %v709, %v1088
        %v1097 = vmax.f32 %v710, %v1089
        %v1098 = vmax.f32 %v711, %v1090
        %s1099 = scalar_lea.vmem %s291, 256 [#allocation2]
        %v1100 = vld [vmem:[%s1099] sm:$0xff]
        %v1101 = vld [vmem:[%s1099 + $0x8] sm:$0xff]
        %v1102 = vld [vmem:[%s1099 + $0x10] sm:$0xff]
        %v1103 = vld [vmem:[%s1099 + $0x18] sm:$0xff]
        %v1104 = vld [vmem:[%s1099 + $0x20] sm:$0xff]
        %v1105 = vld [vmem:[%s1099 + $0x28] sm:$0xff]
        %v1106 = vld [vmem:[%s1099 + $0x30] sm:$0xff]
        %v1107 = vld [vmem:[%s1099 + $0x38] sm:$0xff]
        %v1108 = vld [vmem:[%s1099 + $0x40] sm:$0xff]
        %v1109 = vld [vmem:[%s1099 + $0x48] sm:$0xff]
        %v1110 = vld [vmem:[%s1099 + $0x50] sm:$0xff]
        %v1111 = vld [vmem:[%s1099 + $0x58] sm:$0xff]
        %v1112 = vld [vmem:[%s1099 + $0x60] sm:$0xff]
        %v1113 = vld [vmem:[%s1099 + $0x68] sm:$0xff]
        %v1114 = vld [vmem:[%s1099 + $0x70] sm:$0xff]
        %v1115 = vld [vmem:[%s1099 + $0x78] sm:$0xff]
        %1116 = vmatprep.subr.mxu0 0.0
        %1117 = vmatpush1.msra.mxu0 0.0
        %1118 = vmatprep.subr.mxu0 0.0
        %1119 = vmatpush1.msra.mxu0 0.0
        %1120 = vmatprep.subr.mxu0 0.0
        %1121 = vmatpush1.msra.mxu0 0.0
        %1122 = vmatprep.subr.mxu0 0.0
        %1123 = vmatpush1.msra.mxu0 0.0
        %1124 = vmatprep.subr.mxu0 0.0
        %1125 = vmatpush1.msra.mxu0 0.0
        %1126 = vmatprep.subr.mxu0 0.0
        %1127 = vmatpush1.msra.mxu0 0.0
        %1128 = vmatprep.subr.mxu0 0.0
        %1129 = vmatpush1.msra.mxu0 0.0
        %1130 = vmatprep.subr.mxu0 0.0
        %1131 = vmatpush1.msra.mxu0 0.0
        %1132 = vmatprep.subr.mxu0 0.0
        %1133 = vmatpush1.msra.mxu0 0.0
        %1134 = vmatprep.subr.mxu0 0.0
        %1135 = vmatpush1.msra.mxu0 0.0
        %1136 = vmatprep.subr.mxu0 0.0
        %1137 = vmatpush1.msra.mxu0 0.0
        %1138 = vmatprep.subr.mxu0 0.0
        %1139 = vmatpush1.msra.mxu0 0.0
        %1140 = vmatprep.subr.mxu0 %v1113
        %1141 = vmatpush1.msra.mxu0 %v1112
        %1142 = vmatprep.subr.mxu0 %v1109
        %1143 = vmatpush1.msra.mxu0 %v1108
        %1144 = vmatprep.subr.mxu0 %v1105
        %1145 = vmatpush1.msra.mxu0 %v1104
        %1146 = vmatprep.subr.mxu0 %v1101
        %1147 = vmatpush1.msra.mxu0 %v1100
        %1148 = vmatprep.subr.mxu0 0.0
        %1149 = vmatpush2.msra.mxu0 0.0
        %1150 = vmatprep.subr.mxu0 0.0
        %1151 = vmatpush2.msra.mxu0 0.0
        %1152 = vmatprep.subr.mxu0 0.0
        %1153 = vmatpush2.msra.mxu0 0.0
        %1154 = vmatprep.subr.mxu0 0.0
        %1155 = vmatpush2.msra.mxu0 0.0
        %1156 = vmatprep.subr.mxu0 0.0
        %1157 = vmatpush2.msra.mxu0 0.0
        %1158 = vmatprep.subr.mxu0 0.0
        %1159 = vmatpush2.msra.mxu0 0.0
        %1160 = vmatprep.subr.mxu0 0.0
        %1161 = vmatpush2.msra.mxu0 0.0
        %1162 = vmatprep.subr.mxu0 0.0
        %1163 = vmatpush2.msra.mxu0 0.0
        %1164 = vmatprep.subr.mxu0 0.0
        %1165 = vmatpush2.msra.mxu0 0.0
        %1166 = vmatprep.subr.mxu0 0.0
        %1167 = vmatpush2.msra.mxu0 0.0
        %1168 = vmatprep.subr.mxu0 0.0
        %1169 = vmatpush2.msra.mxu0 0.0
        %1170 = vmatprep.subr.mxu0 0.0
        %1171 = vmatpush2.msra.mxu0 0.0
        %1172 = vmatprep.subr.mxu0 0.0
        %1173 = vmatpush2.msra.mxu0 0.0
        %1174 = vmatprep.subr.mxu0 0.0
        %1175 = vmatpush2.msra.mxu0 0.0
        %1176 = vmatprep.subr.mxu0 0.0
        %1177 = vmatpush2.msra.mxu0 0.0
        %1178 = vmatprep.subr.mxu0 0.0
        %1179 = vmatpush2.msra.mxu0 0.0
        %1180 = vmatprep.mubr.f32.mxu0 0.0
        %1181 = vmatmul.mubr.f32.gmra.mxu0 %v345
        %v1182 = vpop.f32.mrf.mxu0
        %v1183 = vadd.f32 %v336, %v1182
        %v1184 = vpop.f32.mrf.mxu0
        %v1185 = vadd.f32 %v336, %v1184
        %1186 = vmatprep.mubr.f32.mxu0 0.0
        %1187 = vmatmul.mubr.f32.gmra.mxu0 %v348
        %v1188 = vpop.f32.mrf.mxu0
        %v1189 = vadd.f32 %v341, %v1188
        %v1190 = vpop.f32.mrf.mxu0
        %v1191 = vadd.f32 %v341, %v1190
        %1192 = vdwg.mxu0
        %1193 = vmatprep.subr.mxu0 0.0
        %1194 = vmatpush1.msra.mxu0 0.0
        %1195 = vmatprep.subr.mxu0 0.0
        %1196 = vmatpush1.msra.mxu0 0.0
        %1197 = vmatprep.subr.mxu0 0.0
        %1198 = vmatpush1.msra.mxu0 0.0
        %1199 = vmatprep.subr.mxu0 0.0
        %1200 = vmatpush1.msra.mxu0 0.0
        %1201 = vmatprep.subr.mxu0 0.0
        %1202 = vmatpush1.msra.mxu0 0.0
        %1203 = vmatprep.subr.mxu0 0.0
        %1204 = vmatpush1.msra.mxu0 0.0
        %1205 = vmatprep.subr.mxu0 0.0
        %1206 = vmatpush1.msra.mxu0 0.0
        %1207 = vmatprep.subr.mxu0 0.0
        %1208 = vmatpush1.msra.mxu0 0.0
        %1209 = vmatprep.subr.mxu0 0.0
        %1210 = vmatpush1.msra.mxu0 0.0
        %1211 = vmatprep.subr.mxu0 0.0
        %1212 = vmatpush1.msra.mxu0 0.0
        %1213 = vmatprep.subr.mxu0 0.0
        %1214 = vmatpush1.msra.mxu0 0.0
        %1215 = vmatprep.subr.mxu0 0.0
        %1216 = vmatpush1.msra.mxu0 0.0
        %1217 = vmatprep.subr.mxu0 %v1115
        %1218 = vmatpush1.msra.mxu0 %v1114
        %1219 = vmatprep.subr.mxu0 %v1111
        %1220 = vmatpush1.msra.mxu0 %v1110
        %1221 = vmatprep.subr.mxu0 %v1107
        %1222 = vmatpush1.msra.mxu0 %v1106
        %1223 = vmatprep.subr.mxu0 %v1103
        %1224 = vmatpush1.msra.mxu0 %v1102
        %1225 = vmatprep.subr.mxu0 0.0
        %1226 = vmatpush2.msra.mxu0 0.0
        %1227 = vmatprep.subr.mxu0 0.0
        %1228 = vmatpush2.msra.mxu0 0.0
        %1229 = vmatprep.subr.mxu0 0.0
        %1230 = vmatpush2.msra.mxu0 0.0
        %1231 = vmatprep.subr.mxu0 0.0
        %1232 = vmatpush2.msra.mxu0 0.0
        %1233 = vmatprep.subr.mxu0 0.0
        %1234 = vmatpush2.msra.mxu0 0.0
        %1235 = vmatprep.subr.mxu0 0.0
        %1236 = vmatpush2.msra.mxu0 0.0
        %1237 = vmatprep.subr.mxu0 0.0
        %1238 = vmatpush2.msra.mxu0 0.0
        %1239 = vmatprep.subr.mxu0 0.0
        %1240 = vmatpush2.msra.mxu0 0.0
        %1241 = vmatprep.subr.mxu0 0.0
        %1242 = vmatpush2.msra.mxu0 0.0
        %1243 = vmatprep.subr.mxu0 0.0
        %1244 = vmatpush2.msra.mxu0 0.0
        %1245 = vmatprep.subr.mxu0 0.0
        %1246 = vmatpush2.msra.mxu0 0.0
        %1247 = vmatprep.subr.mxu0 0.0
        %1248 = vmatpush2.msra.mxu0 0.0
        %1249 = vmatprep.subr.mxu0 0.0
        %1250 = vmatpush2.msra.mxu0 0.0
        %1251 = vmatprep.subr.mxu0 0.0
        %1252 = vmatpush2.msra.mxu0 0.0
        %1253 = vmatprep.subr.mxu0 0.0
        %1254 = vmatpush2.msra.mxu0 0.0
        %1255 = vmatprep.subr.mxu0 0.0
        %1256 = vmatpush2.msra.mxu0 0.0
        %1257 = vmatprep.mubr.f32.mxu0 0.0
        %1258 = vmatmul.mubr.f32.gmra.mxu0 %v345
        %v1259 = vpop.f32.mrf.mxu0
        %v1260 = vadd.f32 %v336, %v1259
        %v1261 = vpop.f32.mrf.mxu0
        %v1262 = vadd.f32 %v336, %v1261
        %1263 = vmatprep.mubr.f32.mxu0 0.0
        %1264 = vmatmul.mubr.f32.gmra.mxu0 %v348
        %v1265 = vpop.f32.mrf.mxu0
        %v1266 = vadd.f32 %v341, %v1265
        %v1267 = vpop.f32.mrf.mxu0
        %v1268 = vadd.f32 %v341, %v1267
        %1269 = vdwg.mxu0
        %v1270 = vmul.f32 %v1183, 0.70710677
        %v1271 = vmul.f32 %v1185, 0.70710677
        %v1272 = vmul.f32 %v1260, 0.70710677
        %v1273 = vmul.f32 %v1262, 0.70710677
        %v1274 = vmul.f32 %v1189, 0.70710677
        %v1275 = vmul.f32 %v1191, 0.70710677
        %v1276 = vmul.f32 %v1266, 0.70710677
        %v1277 = vmul.f32 %v1268, 0.70710677
        %vm1278 = vcmp.ge.f32.partialorder %v1270, 0.0
        %vm1279 = vcmp.ge.f32.partialorder %v1271, 0.0
        %vm1280 = vcmp.ge.f32.partialorder %v1272, 0.0
        %vm1281 = vcmp.ge.f32.partialorder %v1273, 0.0
        %vm1282 = vcmp.ge.f32.partialorder %v1274, 0.0
        %vm1283 = vcmp.ge.f32.partialorder %v1275, 0.0
        %vm1284 = vcmp.ge.f32.partialorder %v1276, 0.0
        %vm1285 = vcmp.ge.f32.partialorder %v1277, 0.0
        %v1286 = vsel %vm1278, 1.0, -1.0
        %v1287 = vsel %vm1279, 1.0, -1.0
        %v1288 = vsel %vm1280, 1.0, -1.0
        %v1289 = vsel %vm1281, 1.0, -1.0
        %v1290 = vsel %vm1282, 1.0, -1.0
        %v1291 = vsel %vm1283, 1.0, -1.0
        %v1292 = vsel %vm1284, 1.0, -1.0
        %v1293 = vsel %vm1285, 1.0, -1.0
        %v1294 = vand.u32 2147483647, %v1270
        %v1295 = vand.u32 2147483647, %v1271
        %v1296 = vand.u32 2147483647, %v1272
        %v1297 = vand.u32 2147483647, %v1273
        %v1298 = vand.u32 2147483647, %v1274
        %v1299 = vand.u32 2147483647, %v1275
        %v1300 = vand.u32 2147483647, %v1276
        %v1301 = vand.u32 2147483647, %v1277
        %v1302 = vmul.f32 %v1294, 0.3275911
        %v1303 = vmul.f32 %v1295, 0.3275911
        %v1304 = vmul.f32 %v1296, 0.3275911
        %v1305 = vmul.f32 %v1297, 0.3275911
        %v1306 = vmul.f32 %v1298, 0.3275911
        %v1307 = vmul.f32 %v1299, 0.3275911
        %v1308 = vmul.f32 %v1300, 0.3275911
        %v1309 = vmul.f32 %v1301, 0.3275911
        %v1310 = vadd.f32 %v1302, 1.0
        %v1311 = vadd.f32 %v1303, 1.0
        %v1312 = vadd.f32 %v1304, 1.0
        %v1313 = vadd.f32 %v1305, 1.0
        %v1314 = vadd.f32 %v1306, 1.0
        %v1315 = vadd.f32 %v1307, 1.0
        %v1316 = vadd.f32 %v1308, 1.0
        %v1317 = vadd.f32 %v1309, 1.0
        %v1318 = vrcp.pop %v1310
        %v1319 = vrcp.pop %v1311
        %v1320 = vrcp.pop %v1312
        %v1321 = vrcp.pop %v1313
        %v1322 = vrcp.pop %v1314
        %v1323 = vrcp.pop %v1315
        %v1324 = vrcp.pop %v1316
        %v1325 = vrcp.pop %v1317
        %v1326 = vmul.f32 %v1318, 1.0614054
        %v1327 = vmul.f32 %v1319, 1.0614054
        %v1328 = vmul.f32 %v1320, 1.0614054
        %v1329 = vmul.f32 %v1321, 1.0614054
        %v1330 = vmul.f32 %v1322, 1.0614054
        %v1331 = vmul.f32 %v1323, 1.0614054
        %v1332 = vmul.f32 %v1324, 1.0614054
        %v1333 = vmul.f32 %v1325, 1.0614054
        %v1334 = vadd.f32 %v1326, -1.4531521
        %v1335 = vadd.f32 %v1327, -1.4531521
        %v1336 = vadd.f32 %v1328, -1.4531521
        %v1337 = vadd.f32 %v1329, -1.4531521
        %v1338 = vadd.f32 %v1330, -1.4531521
        %v1339 = vadd.f32 %v1331, -1.4531521
        %v1340 = vadd.f32 %v1332, -1.4531521
        %v1341 = vadd.f32 %v1333, -1.4531521
        %v1342 = vmul.f32 %v1334, %v1318
        %v1343 = vmul.f32 %v1335, %v1319
        %v1344 = vmul.f32 %v1336, %v1320
        %v1345 = vmul.f32 %v1337, %v1321
        %v1346 = vmul.f32 %v1338, %v1322
        %v1347 = vmul.f32 %v1339, %v1323
        %v1348 = vmul.f32 %v1340, %v1324
        %v1349 = vmul.f32 %v1341, %v1325
        %v1350 = vadd.f32 %v1342, 1.4214138
        %v1351 = vadd.f32 %v1343, 1.4214138
        %v1352 = vadd.f32 %v1344, 1.4214138
        %v1353 = vadd.f32 %v1345, 1.4214138
        %v1354 = vadd.f32 %v1346, 1.4214138
        %v1355 = vadd.f32 %v1347, 1.4214138
        %v1356 = vadd.f32 %v1348, 1.4214138
        %v1357 = vadd.f32 %v1349, 1.4214138
        %v1358 = vmul.f32 %v1350, %v1318
        %v1359 = vmul.f32 %v1351, %v1319
        %v1360 = vmul.f32 %v1352, %v1320
        %v1361 = vmul.f32 %v1353, %v1321
        %v1362 = vmul.f32 %v1354, %v1322
        %v1363 = vmul.f32 %v1355, %v1323
        %v1364 = vmul.f32 %v1356, %v1324
        %v1365 = vmul.f32 %v1357, %v1325
        %v1366 = vadd.f32 %v1358, -0.28449672
        %v1367 = vadd.f32 %v1359, -0.28449672
        %v1368 = vadd.f32 %v1360, -0.28449672
        %v1369 = vadd.f32 %v1361, -0.28449672
        %v1370 = vadd.f32 %v1362, -0.28449672
        %v1371 = vadd.f32 %v1363, -0.28449672
        %v1372 = vadd.f32 %v1364, -0.28449672
        %v1373 = vadd.f32 %v1365, -0.28449672
        %v1374 = vmul.f32 %v1366, %v1318
        %v1375 = vmul.f32 %v1367, %v1319
        %v1376 = vmul.f32 %v1368, %v1320
        %v1377 = vmul.f32 %v1369, %v1321
        %v1378 = vmul.f32 %v1370, %v1322
        %v1379 = vmul.f32 %v1371, %v1323
        %v1380 = vmul.f32 %v1372, %v1324
        %v1381 = vmul.f32 %v1373, %v1325
        %v1382 = vadd.f32 %v1374, 0.2548296
        %v1383 = vadd.f32 %v1375, 0.2548296
        %v1384 = vadd.f32 %v1376, 0.2548296
        %v1385 = vadd.f32 %v1377, 0.2548296
        %v1386 = vadd.f32 %v1378, 0.2548296
        %v1387 = vadd.f32 %v1379, 0.2548296
        %v1388 = vadd.f32 %v1380, 0.2548296
        %v1389 = vadd.f32 %v1381, 0.2548296
        %v1390 = vmul.f32 %v1382, %v1318
        %v1391 = vmul.f32 %v1383, %v1319
        %v1392 = vmul.f32 %v1384, %v1320
        %v1393 = vmul.f32 %v1385, %v1321
        %v1394 = vmul.f32 %v1386, %v1322
        %v1395 = vmul.f32 %v1387, %v1323
        %v1396 = vmul.f32 %v1388, %v1324
        %v1397 = vmul.f32 %v1389, %v1325
        %v1398 = vsub.f32 0.0, %v1294
        %v1399 = vsub.f32 0.0, %v1295
        %v1400 = vsub.f32 0.0, %v1296
        %v1401 = vsub.f32 0.0, %v1297
        %v1402 = vsub.f32 0.0, %v1298
        %v1403 = vsub.f32 0.0, %v1299
        %v1404 = vsub.f32 0.0, %v1300
        %v1405 = vsub.f32 0.0, %v1301
        %v1406 = vmul.f32 %v1398, %v1294
        %v1407 = vmul.f32 %v1399, %v1295
        %v1408 = vmul.f32 %v1400, %v1296
        %v1409 = vmul.f32 %v1401, %v1297
        %v1410 = vmul.f32 %v1402, %v1298
        %v1411 = vmul.f32 %v1403, %v1299
        %v1412 = vmul.f32 %v1404, %v1300
        %v1413 = vmul.f32 %v1405, %v1301
        %v1414 = vmul.f32 %v1406, 1.442695
        %v1415 = vpow.pop %v1414
        %v1416 = vmul.f32 %v1407, 1.442695
        %v1417 = vpow.pop %v1416
        %v1418 = vmul.f32 %v1408, 1.442695
        %v1419 = vpow.pop %v1418
        %v1420 = vmul.f32 %v1409, 1.442695
        %v1421 = vpow.pop %v1420
        %v1422 = vmul.f32 %v1410, 1.442695
        %v1423 = vpow.pop %v1422
        %v1424 = vmul.f32 %v1411, 1.442695
        %v1425 = vpow.pop %v1424
        %v1426 = vmul.f32 %v1412, 1.442695
        %v1427 = vpow.pop %v1426
        %v1428 = vmul.f32 %v1413, 1.442695
        %v1429 = vpow.pop %v1428
        %v1430 = vmul.f32 %v1390, %v1415
        %v1431 = vmul.f32 %v1391, %v1417
        %v1432 = vmul.f32 %v1392, %v1419
        %v1433 = vmul.f32 %v1393, %v1421
        %v1434 = vmul.f32 %v1394, %v1423
        %v1435 = vmul.f32 %v1395, %v1425
        %v1436 = vmul.f32 %v1396, %v1427
        %v1437 = vmul.f32 %v1397, %v1429
        %v1438 = vsub.f32 1.0, %v1430
        %v1439 = vsub.f32 1.0, %v1431
        %v1440 = vsub.f32 1.0, %v1432
        %v1441 = vsub.f32 1.0, %v1433
        %v1442 = vsub.f32 1.0, %v1434
        %v1443 = vsub.f32 1.0, %v1435
        %v1444 = vsub.f32 1.0, %v1436
        %v1445 = vsub.f32 1.0, %v1437
        %v1446 = vmul.f32 %v1286, %v1438
        %v1447 = vmul.f32 %v1287, %v1439
        %v1448 = vmul.f32 %v1288, %v1440
        %v1449 = vmul.f32 %v1289, %v1441
        %v1450 = vmul.f32 %v1290, %v1442
        %v1451 = vmul.f32 %v1291, %v1443
        %v1452 = vmul.f32 %v1292, %v1444
        %v1453 = vmul.f32 %v1293, %v1445
        %v1454 = vmul.f32 %v1183, 0.5
        %v1455 = vmul.f32 %v1185, 0.5
        %v1456 = vmul.f32 %v1260, 0.5
        %v1457 = vmul.f32 %v1262, 0.5
        %v1458 = vmul.f32 %v1189, 0.5
        %v1459 = vmul.f32 %v1191, 0.5
        %v1460 = vmul.f32 %v1266, 0.5
        %v1461 = vmul.f32 %v1268, 0.5
        %v1462 = vadd.f32 %v1446, 1.0
        %v1463 = vadd.f32 %v1447, 1.0
        %v1464 = vadd.f32 %v1448, 1.0
        %v1465 = vadd.f32 %v1449, 1.0
        %v1466 = vadd.f32 %v1450, 1.0
        %v1467 = vadd.f32 %v1451, 1.0
        %v1468 = vadd.f32 %v1452, 1.0
        %v1469 = vadd.f32 %v1453, 1.0
        %v1470 = vmul.f32 %v1454, %v1462
        %v1471 = vmul.f32 %v1455, %v1463
        %v1472 = vmul.f32 %v1456, %v1464
        %v1473 = vmul.f32 %v1457, %v1465
        %v1474 = vmul.f32 %v1458, %v1466
        %v1475 = vmul.f32 %v1459, %v1467
        %v1476 = vmul.f32 %v1460, %v1468
        %v1477 = vmul.f32 %v1461, %v1469
        %v1478 = vmax.f32 %v1091, %v1470
        %v1479 = vmax.f32 %v1092, %v1471
        %v1480 = vmax.f32 %v1093, %v1472
        %v1481 = vmax.f32 %v1094, %v1473
        %v1482 = vmax.f32 %v1095, %v1474
        %v1483 = vmax.f32 %v1096, %v1475
        %v1484 = vmax.f32 %v1097, %v1476
        %v1485 = vmax.f32 %v1098, %v1477
        %s1486 = scalar_lea.vmem %s291, 384 [#allocation2]
        %v1487 = vld [vmem:[%s1486] sm:$0xff]
        %v1488 = vld [vmem:[%s1486 + $0x8] sm:$0xff]
        %v1489 = vld [vmem:[%s1486 + $0x10] sm:$0xff]
        %v1490 = vld [vmem:[%s1486 + $0x18] sm:$0xff]
        %v1491 = vld [vmem:[%s1486 + $0x20] sm:$0xff]
        %v1492 = vld [vmem:[%s1486 + $0x28] sm:$0xff]
        %v1493 = vld [vmem:[%s1486 + $0x30] sm:$0xff]
        %v1494 = vld [vmem:[%s1486 + $0x38] sm:$0xff]
        %v1495 = vld [vmem:[%s1486 + $0x40] sm:$0xff]
        %v1496 = vld [vmem:[%s1486 + $0x48] sm:$0xff]
        %v1497 = vld [vmem:[%s1486 + $0x50] sm:$0xff]
        %v1498 = vld [vmem:[%s1486 + $0x58] sm:$0xff]
        %v1499 = vld [vmem:[%s1486 + $0x60] sm:$0xff]
        %v1500 = vld [vmem:[%s1486 + $0x68] sm:$0xff]
        %v1501 = vld [vmem:[%s1486 + $0x70] sm:$0xff]
        %v1502 = vld [vmem:[%s1486 + $0x78] sm:$0xff]
        %1503 = vmatprep.subr.mxu0 0.0
        %1504 = vmatpush1.msra.mxu0 0.0
        %1505 = vmatprep.subr.mxu0 0.0
        %1506 = vmatpush1.msra.mxu0 0.0
        %1507 = vmatprep.subr.mxu0 0.0
        %1508 = vmatpush1.msra.mxu0 0.0
        %1509 = vmatprep.subr.mxu0 0.0
        %1510 = vmatpush1.msra.mxu0 0.0
        %1511 = vmatprep.subr.mxu0 0.0
        %1512 = vmatpush1.msra.mxu0 0.0
        %1513 = vmatprep.subr.mxu0 0.0
        %1514 = vmatpush1.msra.mxu0 0.0
        %1515 = vmatprep.subr.mxu0 0.0
        %1516 = vmatpush1.msra.mxu0 0.0
        %1517 = vmatprep.subr.mxu0 0.0
        %1518 = vmatpush1.msra.mxu0 0.0
        %1519 = vmatprep.subr.mxu0 0.0
        %1520 = vmatpush1.msra.mxu0 0.0
        %1521 = vmatprep.subr.mxu0 0.0
        %1522 = vmatpush1.msra.mxu0 0.0
        %1523 = vmatprep.subr.mxu0 0.0
        %1524 = vmatpush1.msra.mxu0 0.0
        %1525 = vmatprep.subr.mxu0 0.0
        %1526 = vmatpush1.msra.mxu0 0.0
        %1527 = vmatprep.subr.mxu0 %v1500
        %1528 = vmatpush1.msra.mxu0 %v1499
        %1529 = vmatprep.subr.mxu0 %v1496
        %1530 = vmatpush1.msra.mxu0 %v1495
        %1531 = vmatprep.subr.mxu0 %v1492
        %1532 = vmatpush1.msra.mxu0 %v1491
        %1533 = vmatprep.subr.mxu0 %v1488
        %1534 = vmatpush1.msra.mxu0 %v1487
        %1535 = vmatprep.subr.mxu0 0.0
        %1536 = vmatpush2.msra.mxu0 0.0
        %1537 = vmatprep.subr.mxu0 0.0
        %1538 = vmatpush2.msra.mxu0 0.0
        %1539 = vmatprep.subr.mxu0 0.0
        %1540 = vmatpush2.msra.mxu0 0.0
        %1541 = vmatprep.subr.mxu0 0.0
        %1542 = vmatpush2.msra.mxu0 0.0
        %1543 = vmatprep.subr.mxu0 0.0
        %1544 = vmatpush2.msra.mxu0 0.0
        %1545 = vmatprep.subr.mxu0 0.0
        %1546 = vmatpush2.msra.mxu0 0.0
        %1547 = vmatprep.subr.mxu0 0.0
        %1548 = vmatpush2.msra.mxu0 0.0
        %1549 = vmatprep.subr.mxu0 0.0
        %1550 = vmatpush2.msra.mxu0 0.0
        %1551 = vmatprep.subr.mxu0 0.0
        %1552 = vmatpush2.msra.mxu0 0.0
        %1553 = vmatprep.subr.mxu0 0.0
        %1554 = vmatpush2.msra.mxu0 0.0
        %1555 = vmatprep.subr.mxu0 0.0
        %1556 = vmatpush2.msra.mxu0 0.0
        %1557 = vmatprep.subr.mxu0 0.0
        %1558 = vmatpush2.msra.mxu0 0.0
        %1559 = vmatprep.subr.mxu0 0.0
        %1560 = vmatpush2.msra.mxu0 0.0
        %1561 = vmatprep.subr.mxu0 0.0
        %1562 = vmatpush2.msra.mxu0 0.0
        %1563 = vmatprep.subr.mxu0 0.0
        %1564 = vmatpush2.msra.mxu0 0.0
        %1565 = vmatprep.subr.mxu0 0.0
        %1566 = vmatpush2.msra.mxu0 0.0
        %1567 = vmatprep.mubr.f32.mxu0 0.0
        %1568 = vmatmul.mubr.f32.gmra.mxu0 %v345
        %v1569 = vpop.f32.mrf.mxu0
        %v1570 = vadd.f32 %v336, %v1569
        %v1571 = vpop.f32.mrf.mxu0
        %v1572 = vadd.f32 %v336, %v1571
        %1573 = vmatprep.mubr.f32.mxu0 0.0
        %1574 = vmatmul.mubr.f32.gmra.mxu0 %v348
        %v1575 = vpop.f32.mrf.mxu0
        %v1576 = vadd.f32 %v341, %v1575
        %v1577 = vpop.f32.mrf.mxu0
        %v1578 = vadd.f32 %v341, %v1577
        %1579 = vdwg.mxu0
        %1580 = vmatprep.subr.mxu0 0.0
        %1581 = vmatpush1.msra.mxu0 0.0
        %1582 = vmatprep.subr.mxu0 0.0
        %1583 = vmatpush1.msra.mxu0 0.0
        %1584 = vmatprep.subr.mxu0 0.0
        %1585 = vmatpush1.msra.mxu0 0.0
        %1586 = vmatprep.subr.mxu0 0.0
        %1587 = vmatpush1.msra.mxu0 0.0
        %1588 = vmatprep.subr.mxu0 0.0
        %1589 = vmatpush1.msra.mxu0 0.0
        %1590 = vmatprep.subr.mxu0 0.0
        %1591 = vmatpush1.msra.mxu0 0.0
        %1592 = vmatprep.subr.mxu0 0.0
        %1593 = vmatpush1.msra.mxu0 0.0
        %1594 = vmatprep.subr.mxu0 0.0
        %1595 = vmatpush1.msra.mxu0 0.0
        %1596 = vmatprep.subr.mxu0 0.0
        %1597 = vmatpush1.msra.mxu0 0.0
        %1598 = vmatprep.subr.mxu0 0.0
        %1599 = vmatpush1.msra.mxu0 0.0
        %1600 = vmatprep.subr.mxu0 0.0
        %1601 = vmatpush1.msra.mxu0 0.0
        %1602 = vmatprep.subr.mxu0 0.0
        %1603 = vmatpush1.msra.mxu0 0.0
        %1604 = vmatprep.subr.mxu0 %v1502
        %1605 = vmatpush1.msra.mxu0 %v1501
        %1606 = vmatprep.subr.mxu0 %v1498
        %1607 = vmatpush1.msra.mxu0 %v1497
        %1608 = vmatprep.subr.mxu0 %v1494
        %1609 = vmatpush1.msra.mxu0 %v1493
        %1610 = vmatprep.subr.mxu0 %v1490
        %1611 = vmatpush1.msra.mxu0 %v1489
        %1612 = vmatprep.subr.mxu0 0.0
        %1613 = vmatpush2.msra.mxu0 0.0
        %1614 = vmatprep.subr.mxu0 0.0
        %1615 = vmatpush2.msra.mxu0 0.0
        %1616 = vmatprep.subr.mxu0 0.0
        %1617 = vmatpush2.msra.mxu0 0.0
        %1618 = vmatprep.subr.mxu0 0.0
        %1619 = vmatpush2.msra.mxu0 0.0
        %1620 = vmatprep.subr.mxu0 0.0
        %1621 = vmatpush2.msra.mxu0 0.0
        %1622 = vmatprep.subr.mxu0 0.0
        %1623 = vmatpush2.msra.mxu0 0.0
        %1624 = vmatprep.subr.mxu0 0.0
        %1625 = vmatpush2.msra.mxu0 0.0
        %1626 = vmatprep.subr.mxu0 0.0
        %1627 = vmatpush2.msra.mxu0 0.0
        %1628 = vmatprep.subr.mxu0 0.0
        %1629 = vmatpush2.msra.mxu0 0.0
        %1630 = vmatprep.subr.mxu0 0.0
        %1631 = vmatpush2.msra.mxu0 0.0
        %1632 = vmatprep.subr.mxu0 0.0
        %1633 = vmatpush2.msra.mxu0 0.0
        %1634 = vmatprep.subr.mxu0 0.0
        %1635 = vmatpush2.msra.mxu0 0.0
        %1636 = vmatprep.subr.mxu0 0.0
        %1637 = vmatpush2.msra.mxu0 0.0
        %1638 = vmatprep.subr.mxu0 0.0
        %1639 = vmatpush2.msra.mxu0 0.0
        %1640 = vmatprep.subr.mxu0 0.0
        %1641 = vmatpush2.msra.mxu0 0.0
        %1642 = vmatprep.subr.mxu0 0.0
        %1643 = vmatpush2.msra.mxu0 0.0
        %1644 = vmatprep.mubr.f32.mxu0 0.0
        %1645 = vmatmul.mubr.f32.gmra.mxu0 %v345
        %v1646 = vpop.f32.mrf.mxu0
        %v1647 = vadd.f32 %v336, %v1646
        %v1648 = vpop.f32.mrf.mxu0
        %v1649 = vadd.f32 %v336, %v1648
        %1650 = vmatprep.mubr.f32.mxu0 0.0
        %1651 = vmatmul.mubr.f32.gmra.mxu0 %v348
        %v1652 = vpop.f32.mrf.mxu0
        %v1653 = vadd.f32 %v341, %v1652
        %v1654 = vpop.f32.mrf.mxu0
        %v1655 = vadd.f32 %v341, %v1654
        %1656 = vdwg.mxu0
        %v1657 = vmul.f32 %v1570, 0.70710677
        %v1658 = vmul.f32 %v1572, 0.70710677
        %v1659 = vmul.f32 %v1647, 0.70710677
        %v1660 = vmul.f32 %v1649, 0.70710677
        %v1661 = vmul.f32 %v1576, 0.70710677
        %v1662 = vmul.f32 %v1578, 0.70710677
        %v1663 = vmul.f32 %v1653, 0.70710677
        %v1664 = vmul.f32 %v1655, 0.70710677
        %vm1665 = vcmp.ge.f32.partialorder %v1657, 0.0
        %vm1666 = vcmp.ge.f32.partialorder %v1658, 0.0
        %vm1667 = vcmp.ge.f32.partialorder %v1659, 0.0
        %vm1668 = vcmp.ge.f32.partialorder %v1660, 0.0
        %vm1669 = vcmp.ge.f32.partialorder %v1661, 0.0
        %vm1670 = vcmp.ge.f32.partialorder %v1662, 0.0
        %vm1671 = vcmp.ge.f32.partialorder %v1663, 0.0
        %vm1672 = vcmp.ge.f32.partialorder %v1664, 0.0
        %v1673 = vsel %vm1665, 1.0, -1.0
        %v1674 = vsel %vm1666, 1.0, -1.0
        %v1675 = vsel %vm1667, 1.0, -1.0
        %v1676 = vsel %vm1668, 1.0, -1.0
        %v1677 = vsel %vm1669, 1.0, -1.0
        %v1678 = vsel %vm1670, 1.0, -1.0
        %v1679 = vsel %vm1671, 1.0, -1.0
        %v1680 = vsel %vm1672, 1.0, -1.0
        %v1681 = vand.u32 2147483647, %v1657
        %v1682 = vand.u32 2147483647, %v1658
        %v1683 = vand.u32 2147483647, %v1659
        %v1684 = vand.u32 2147483647, %v1660
        %v1685 = vand.u32 2147483647, %v1661
        %v1686 = vand.u32 2147483647, %v1662
        %v1687 = vand.u32 2147483647, %v1663
        %v1688 = vand.u32 2147483647, %v1664
        %v1689 = vmul.f32 %v1681, 0.3275911
        %v1690 = vmul.f32 %v1682, 0.3275911
        %v1691 = vmul.f32 %v1683, 0.3275911
        %v1692 = vmul.f32 %v1684, 0.3275911
        %v1693 = vmul.f32 %v1685, 0.3275911
        %v1694 = vmul.f32 %v1686, 0.3275911
        %v1695 = vmul.f32 %v1687, 0.3275911
        %v1696 = vmul.f32 %v1688, 0.3275911
        %v1697 = vadd.f32 %v1689, 1.0
        %v1698 = vadd.f32 %v1690, 1.0
        %v1699 = vadd.f32 %v1691, 1.0
        %v1700 = vadd.f32 %v1692, 1.0
        %v1701 = vadd.f32 %v1693, 1.0
        %v1702 = vadd.f32 %v1694, 1.0
        %v1703 = vadd.f32 %v1695, 1.0
        %v1704 = vadd.f32 %v1696, 1.0
        %v1705 = vrcp.pop %v1697
        %v1706 = vrcp.pop %v1698
        %v1707 = vrcp.pop %v1699
        %v1708 = vrcp.pop %v1700
        %v1709 = vrcp.pop %v1701
        %v1710 = vrcp.pop %v1702
        %v1711 = vrcp.pop %v1703
        %v1712 = vrcp.pop %v1704
        %v1713 = vmul.f32 %v1705, 1.0614054
        %v1714 = vmul.f32 %v1706, 1.0614054
        %v1715 = vmul.f32 %v1707, 1.0614054
        %v1716 = vmul.f32 %v1708, 1.0614054
        %v1717 = vmul.f32 %v1709, 1.0614054
        %v1718 = vmul.f32 %v1710, 1.0614054
        %v1719 = vmul.f32 %v1711, 1.0614054
        %v1720 = vmul.f32 %v1712, 1.0614054
        %v1721 = vadd.f32 %v1713, -1.4531521
        %v1722 = vadd.f32 %v1714, -1.4531521
        %v1723 = vadd.f32 %v1715, -1.4531521
        %v1724 = vadd.f32 %v1716, -1.4531521
        %v1725 = vadd.f32 %v1717, -1.4531521
        %v1726 = vadd.f32 %v1718, -1.4531521
        %v1727 = vadd.f32 %v1719, -1.4531521
        %v1728 = vadd.f32 %v1720, -1.4531521
        %v1729 = vmul.f32 %v1721, %v1705
        %v1730 = vmul.f32 %v1722, %v1706
        %v1731 = vmul.f32 %v1723, %v1707
        %v1732 = vmul.f32 %v1724, %v1708
        %v1733 = vmul.f32 %v1725, %v1709
        %v1734 = vmul.f32 %v1726, %v1710
        %v1735 = vmul.f32 %v1727, %v1711
        %v1736 = vmul.f32 %v1728, %v1712
        %v1737 = vadd.f32 %v1729, 1.4214138
        %v1738 = vadd.f32 %v1730, 1.4214138
        %v1739 = vadd.f32 %v1731, 1.4214138
        %v1740 = vadd.f32 %v1732, 1.4214138
        %v1741 = vadd.f32 %v1733, 1.4214138
        %v1742 = vadd.f32 %v1734, 1.4214138
        %v1743 = vadd.f32 %v1735, 1.4214138
        %v1744 = vadd.f32 %v1736, 1.4214138
        %v1745 = vmul.f32 %v1737, %v1705
        %v1746 = vmul.f32 %v1738, %v1706
        %v1747 = vmul.f32 %v1739, %v1707
        %v1748 = vmul.f32 %v1740, %v1708
        %v1749 = vmul.f32 %v1741, %v1709
        %v1750 = vmul.f32 %v1742, %v1710
        %v1751 = vmul.f32 %v1743, %v1711
        %v1752 = vmul.f32 %v1744, %v1712
        %v1753 = vadd.f32 %v1745, -0.28449672
        %v1754 = vadd.f32 %v1746, -0.28449672
        %v1755 = vadd.f32 %v1747, -0.28449672
        %v1756 = vadd.f32 %v1748, -0.28449672
        %v1757 = vadd.f32 %v1749, -0.28449672
        %v1758 = vadd.f32 %v1750, -0.28449672
        %v1759 = vadd.f32 %v1751, -0.28449672
        %v1760 = vadd.f32 %v1752, -0.28449672
        %v1761 = vmul.f32 %v1753, %v1705
        %v1762 = vmul.f32 %v1754, %v1706
        %v1763 = vmul.f32 %v1755, %v1707
        %v1764 = vmul.f32 %v1756, %v1708
        %v1765 = vmul.f32 %v1757, %v1709
        %v1766 = vmul.f32 %v1758, %v1710
        %v1767 = vmul.f32 %v1759, %v1711
        %v1768 = vmul.f32 %v1760, %v1712
        %v1769 = vadd.f32 %v1761, 0.2548296
        %v1770 = vadd.f32 %v1762, 0.2548296
        %v1771 = vadd.f32 %v1763, 0.2548296
        %v1772 = vadd.f32 %v1764, 0.2548296
        %v1773 = vadd.f32 %v1765, 0.2548296
        %v1774 = vadd.f32 %v1766, 0.2548296
        %v1775 = vadd.f32 %v1767, 0.2548296
        %v1776 = vadd.f32 %v1768, 0.2548296
        %v1777 = vmul.f32 %v1769, %v1705
        %v1778 = vmul.f32 %v1770, %v1706
        %v1779 = vmul.f32 %v1771, %v1707
        %v1780 = vmul.f32 %v1772, %v1708
        %v1781 = vmul.f32 %v1773, %v1709
        %v1782 = vmul.f32 %v1774, %v1710
        %v1783 = vmul.f32 %v1775, %v1711
        %v1784 = vmul.f32 %v1776, %v1712
        %v1785 = vsub.f32 0.0, %v1681
        %v1786 = vsub.f32 0.0, %v1682
        %v1787 = vsub.f32 0.0, %v1683
        %v1788 = vsub.f32 0.0, %v1684
        %v1789 = vsub.f32 0.0, %v1685
        %v1790 = vsub.f32 0.0, %v1686
        %v1791 = vsub.f32 0.0, %v1687
        %v1792 = vsub.f32 0.0, %v1688
        %v1793 = vmul.f32 %v1785, %v1681
        %v1794 = vmul.f32 %v1786, %v1682
        %v1795 = vmul.f32 %v1787, %v1683
        %v1796 = vmul.f32 %v1788, %v1684
        %v1797 = vmul.f32 %v1789, %v1685
        %v1798 = vmul.f32 %v1790, %v1686
        %v1799 = vmul.f32 %v1791, %v1687
        %v1800 = vmul.f32 %v1792, %v1688
        %v1801 = vmul.f32 %v1793, 1.442695
        %v1802 = vpow.pop %v1801
        %v1803 = vmul.f32 %v1794, 1.442695
        %v1804 = vpow.pop %v1803
        %v1805 = vmul.f32 %v1795, 1.442695
        %v1806 = vpow.pop %v1805
        %v1807 = vmul.f32 %v1796, 1.442695
        %v1808 = vpow.pop %v1807
        %v1809 = vmul.f32 %v1797, 1.442695
        %v1810 = vpow.pop %v1809
        %v1811 = vmul.f32 %v1798, 1.442695
        %v1812 = vpow.pop %v1811
        %v1813 = vmul.f32 %v1799, 1.442695
        %v1814 = vpow.pop %v1813
        %v1815 = vmul.f32 %v1800, 1.442695
        %v1816 = vpow.pop %v1815
        %v1817 = vmul.f32 %v1777, %v1802
        %v1818 = vmul.f32 %v1778, %v1804
        %v1819 = vmul.f32 %v1779, %v1806
        %v1820 = vmul.f32 %v1780, %v1808
        %v1821 = vmul.f32 %v1781, %v1810
        %v1822 = vmul.f32 %v1782, %v1812
        %v1823 = vmul.f32 %v1783, %v1814
        %v1824 = vmul.f32 %v1784, %v1816
        %v1825 = vsub.f32 1.0, %v1817
        %v1826 = vsub.f32 1.0, %v1818
        %v1827 = vsub.f32 1.0, %v1819
        %v1828 = vsub.f32 1.0, %v1820
        %v1829 = vsub.f32 1.0, %v1821
        %v1830 = vsub.f32 1.0, %v1822
        %v1831 = vsub.f32 1.0, %v1823
        %v1832 = vsub.f32 1.0, %v1824
        %v1833 = vmul.f32 %v1673, %v1825
        %v1834 = vmul.f32 %v1674, %v1826
        %v1835 = vmul.f32 %v1675, %v1827
        %v1836 = vmul.f32 %v1676, %v1828
        %v1837 = vmul.f32 %v1677, %v1829
        %v1838 = vmul.f32 %v1678, %v1830
        %v1839 = vmul.f32 %v1679, %v1831
        %v1840 = vmul.f32 %v1680, %v1832
        %v1841 = vmul.f32 %v1570, 0.5
        %v1842 = vmul.f32 %v1572, 0.5
        %v1843 = vmul.f32 %v1647, 0.5
        %v1844 = vmul.f32 %v1649, 0.5
        %v1845 = vmul.f32 %v1576, 0.5
        %v1846 = vmul.f32 %v1578, 0.5
        %v1847 = vmul.f32 %v1653, 0.5
        %v1848 = vmul.f32 %v1655, 0.5
        %v1849 = vadd.f32 %v1833, 1.0
        %v1850 = vadd.f32 %v1834, 1.0
        %v1851 = vadd.f32 %v1835, 1.0
        %v1852 = vadd.f32 %v1836, 1.0
        %v1853 = vadd.f32 %v1837, 1.0
        %v1854 = vadd.f32 %v1838, 1.0
        %v1855 = vadd.f32 %v1839, 1.0
        %v1856 = vadd.f32 %v1840, 1.0
        %v1857 = vmul.f32 %v1841, %v1849
        %v1858 = vmul.f32 %v1842, %v1850
        %v1859 = vmul.f32 %v1843, %v1851
        %v1860 = vmul.f32 %v1844, %v1852
        %v1861 = vmul.f32 %v1845, %v1853
        %v1862 = vmul.f32 %v1846, %v1854
        %v1863 = vmul.f32 %v1847, %v1855
        %v1864 = vmul.f32 %v1848, %v1856
        %v1865 = vmax.f32 %v1478, %v1857
        %v1866 = vmax.f32 %v1479, %v1858
        %v1867 = vmax.f32 %v1480, %v1859
        %v1868 = vmax.f32 %v1481, %v1860
        %v1869 = vmax.f32 %v1482, %v1861
        %v1870 = vmax.f32 %v1483, %v1862
        %v1871 = vmax.f32 %v1484, %v1863
        %v1872 = vmax.f32 %v1485, %v1864
        %1873 = vst [vmem:[%s310] sm:$0xff] %v1865
        %1874 = vst [vmem:[%s310 + $0x8] sm:$0xff] %v1866
        %1875 = vst [vmem:[%s310 + $0x10] sm:$0xff] %v1867
        %1876 = vst [vmem:[%s310 + $0x18] sm:$0xff] %v1868
        %1877 = vst [vmem:[%s310 + $0x20] sm:$0xff] %v1869
        %1878 = vst [vmem:[%s310 + $0x28] sm:$0xff] %v1870
        %1879 = vst [vmem:[%s310 + $0x30] sm:$0xff] %v1871
        %1880 = vst [vmem:[%s310 + $0x38] sm:$0xff] %v1872
        %s1881 = sand.u32 %s90, 1
        %s1882 = sand.u32 %s90, 1
        %s1883 = smul.addr %s1882, 64
        %s1884 = scalar_lea.vmem [#allocation3], %s1883
        // Predicated region
        $region56: #{encoder_forward.6} parent=50 // pred_check
          %p1885 = pneg %p100
        $region57: #{encoder_forward.6} parent=50 // pred_check_branch
          %1887 = sbr.rel (%p1885) target = $region59
        $region58: #{encoder_forward.6} parent=50 // pred_region
          %s1888 = smul.u32 4, %s14
          %s1889 = smul.addr %s1888, 8
          %s1890 = scalar_lea.vmem %s3, %s1889
          // Predicated region
          $region60: #{encoder_forward.6} parent=58 // pred_check
            _
          $region61: #{encoder_forward.6} parent=58 // pred_check_branch
            %1892 = sbr.rel (0) target = $region63
          $region62: #{encoder_forward.6} parent=58 // pred_region
            // Predicated region
            $region64: #{encoder_forward.6} parent=62 // pred_check
              _
            $region65: #{encoder_forward.6} parent=62 // pred_check_branch
              %1894 = sbr.rel (0) target = $region67
            $region66: #{encoder_forward.6} parent=62 // pred_region
              loop: start=0, step=1, limit=1
              $region68: #{encoder_forward.6} parent=66 // loop_pre_header
                _
              $region69: #{encoder_forward.6} parent=66 // loop_header
                %s1896 = sphi 0, %s1900
                %p1897 = scmp.ge.s32.totalorder %s1896, 1
                %s1901 = sphi %s1884, %s1884
                %s1902 = sphi %s1890, %s1890
              $region70: #{encoder_forward.6} parent=66 // loop_header_branch
                %1899 = sbr.rel (%p1897) target = $region74
              $region71: #{encoder_forward.6} parent=66 // loop_body
                %v1903 = vld [vmem:[%s1901] sm:$0xff]
                %1904 = vst [vmem:[%s1902] sm:$0xff] %v1903
                %v1905 = vld [vmem:[%s1901 + $0x8] sm:$0xff]
                %1906 = vst [vmem:[%s1902 + $0x8] sm:$0xff] %v1905
                %v1907 = vld [vmem:[%s1901 + $0x10] sm:$0xff]
                %1908 = vst [vmem:[%s1902 + $0x10] sm:$0xff] %v1907
                %v1909 = vld [vmem:[%s1901 + $0x18] sm:$0xff]
                %1910 = vst [vmem:[%s1902 + $0x18] sm:$0xff] %v1909
                %v1911 = vld [vmem:[%s1901 + $0x20] sm:$0xff]
                %1912 = vst [vmem:[%s1902 + $0x40] sm:$0xff] %v1911
                %v1913 = vld [vmem:[%s1901 + $0x28] sm:$0xff]
                %1914 = vst [vmem:[%s1902 + $0x48] sm:$0xff] %v1913
                %v1915 = vld [vmem:[%s1901 + $0x30] sm:$0xff]
                %1916 = vst [vmem:[%s1902 + $0x50] sm:$0xff] %v1915
                %v1917 = vld [vmem:[%s1901 + $0x38] sm:$0xff]
                %1918 = vst [vmem:[%s1902 + $0x58] sm:$0xff] %v1917
              $region72: #{encoder_forward.6} parent=66 // loop_footer
                %s1900 = sadd.s32 1, %s1896
              $region73: #{encoder_forward.6} parent=66 // loop_footer_branch
                %1895 = sbr.rel target = $region69
              $region74: #{encoder_forward.6} parent=66 // loop_exit
                _
            $region67: #{encoder_forward.6} parent=62 // pred_fallthru
              _
            // Predicated region
            $region75: #{encoder_forward.6} parent=62 // pred_check
              _
            $region76: #{encoder_forward.6} parent=62 // pred_check_branch
              %1920 = sbr.rel target = $region78
            $region77: #{encoder_forward.6} parent=62 // pred_region
              _
            $region78: #{encoder_forward.6} parent=62 // pred_fallthru
              _
          $region63: #{encoder_forward.6} parent=58 // pred_fallthru
            _
          %1921 = vnop
        $region59: #{encoder_forward.6} parent=50 // pred_fallthru
          _
      $region51: #{encoder_forward.6} parent=5 // pred_fallthru
        _
      %p1922 = scmp.le.s32.totalorder 2, %s9
      // Predicated region
      $region79: #{encoder_forward.6} parent=5 // pred_check
        %p1923 = pneg %p1922
      $region80: #{encoder_forward.6} parent=5 // pred_check_branch
        %1925 = sbr.rel (%p1923) target = $region82
      $region81: #{encoder_forward.6} parent=5 // pred_region
        %s1926 = ssub.s32 %s9, 2
        // Predicated region
        $region83: #{encoder_forward.6} parent=81 // pred_check
          %p1927 = pneg %p106
        $region84: #{encoder_forward.6} parent=81 // pred_check_branch
          %1929 = sbr.rel (%p1927) target = $region86
        $region85: #{encoder_forward.6} parent=81 // pred_region
          %s1930 = sand.u32 %s91, 1
          %s1931 = sand.u32 %s91, 1
          %s1932 = smul.addr %s1931, 64
          %s1933 = scalar_lea.vmem [#allocation3], %s1932
        $region86: #{encoder_forward.6} parent=81 // pred_fallthru
          _
      $region82: #{encoder_forward.6} parent=5 // pred_fallthru
        _
    $region6: #{encoder_forward.6} parent=1 // loop_footer
      %s13 = sadd.s32 1, %s9
    $region7: #{encoder_forward.6} parent=1 // loop_footer_branch
      %8 = sbr.rel target = $region3
    $region8: #{encoder_forward.6} parent=1 // loop_exit
      _

// kernel: encoder_forward.7
$region0: #{encoder_forward.7}
  #allocation0 [shape = 'u32[]', space=smem, size = 0x4, offset = 0x4, fixed_abs, tag = 'smem constant byte address 0x4 - core index']
  #allocation1 [shape = 'u32[144,128]{1,0:T(1,128)}', space=vmem, size = 0x12000, scoped, tag = 'internal scratch']
  %s0 = inlined_call_operand.vmem [shape: f32[1,64,1024], index: 0, kind: input, shape index: {}]
  %s1 = inlined_call_operand.vmem [shape: f32[32,64], index: 1, kind: input, shape index: {}]
  %s2 = inlined_call_operand.vmem [shape: f32[32,1], index: 2, kind: input, shape index: {}]
  %s3 = inlined_call_operand.vmem [shape: f32[32,1024], index: 3, kind: output, shape index: {}]
  %s4 = sld [smem:[#allocation0]]
  $region87: #{encoder_forward.7} parent=0
    _
  %s6 = ssub.s32 1, %s4
  %s7 = scalar_select 0, %s6, %s4
  $region1: #{encoder_forward.7} parent=0
    #allocation2 [shape = 'u8[262144]{0}', space=vmem, size = 0x40000, scoped, tag = 'input window, operand 0']
    #allocation3 [shape = 'u8[131072]{0}', space=vmem, size = 0x20000, scoped, tag = 'output window, operand 0']
    loop: start=0, step=1, limit=4
    $region2: #{encoder_forward.7} parent=1 // loop_pre_header
      _
    $region3: #{encoder_forward.7} parent=1 // loop_header
      %s9 = sphi 0, %s13
      %p10 = scmp.ge.s32.totalorder %s9, 4
      %s19 = sphi 0, %s21
      %s22 = sphi 0, %s19
      %s23 = sphi 0, %s22
      %s39 = sphi 0, %s23
      %s43 = sphi 0, %s43
      %s45 = sphi 0, %s43
      %s46 = sphi 0, %s45
      %s60 = sphi 0, %s46
      %s64 = sphi 0, %s64
      %s66 = sphi 0, %s64
      %s67 = sphi 0, %s66
      %s81 = sphi 0, %s67
      %s87 = sphi 0, %s89
      %s90 = sphi 0, %s87
      %s91 = sphi 0, %s90
      %s107 = sphi 0, %s91
    $region4: #{encoder_forward.7} parent=1 // loop_header_branch
      %12 = sbr.rel (%p10) target = $region8
    $region5: #{encoder_forward.7} parent=1 // loop_body
      %s14 = ssub.s32 %s9, 1
      %s15 = ssub.s32 %s9, 2
      %s16 = sadd.s32 %s9, 1
      %s17 = ssub.s32 %s9, %s16
      %p18 = scmp.eq.s32.totalorder %s17, 0
      %s20 = sadd.s32 %s19, 1
      %s21 = scalar_select %p18, %s19, %s20
      %p24 = pneg %p18
      %p25 = scmp.eq.s32.totalorder %s9, 1
      %p26 = por %p24, %p25
      %p27 = scmp.ne.s32.totalorder %s19, %s22
      %p28 = scmp.eq.s32.totalorder %s9, 0
      %p29 = por %p27, %p28
      %p30 = scmp.ne.s32.totalorder %s19, %s22
      %p31 = scmp.eq.s32.totalorder %s14, 1
      %p32 = por %p30, %p31
      %p33 = scmp.ne.s32.totalorder %s22, %s23
      %p34 = scmp.eq.s32.totalorder %s14, 0
      %p35 = por %p33, %p34
      %p36 = scmp.ne.s32.totalorder %s22, %s23
      %p37 = scmp.eq.s32.totalorder %s15, 1
      %p38 = por %p36, %p37
      %p40 = scmp.ne.s32.totalorder %s23, %s39
      %p41 = scmp.eq.s32.totalorder %s15, 0
      %p42 = por %p40, %p41
      %s44 = sadd.s32 %s43, 1
      %p47 = scmp.eq.s32.totalorder %s9, 1
      %p48 = scmp.ne.s32.totalorder %s43, %s45
      %p49 = scmp.eq.s32.totalorder %s9, 0
      %p50 = por %p48, %p49
      %p51 = scmp.ne.s32.totalorder %s43, %s45
      %p52 = scmp.eq.s32.totalorder %s14, 1
      %p53 = por %p51, %p52
      %p54 = scmp.ne.s32.totalorder %s45, %s46
      %p55 = scmp.eq.s32.totalorder %s14, 0
      %p56 = por %p54, %p55
      %p57 = scmp.ne.s32.totalorder %s45, %s46
      %p58 = scmp.eq.s32.totalorder %s15, 1
      %p59 = por %p57, %p58
      %p61 = scmp.ne.s32.totalorder %s46, %s60
      %p62 = scmp.eq.s32.totalorder %s15, 0
      %p63 = por %p61, %p62
      %s65 = sadd.s32 %s64, 1
      %p68 = scmp.eq.s32.totalorder %s9, 1
      %p69 = scmp.ne.s32.totalorder %s64, %s66
      %p70 = scmp.eq.s32.totalorder %s9, 0
      %p71 = por %p69, %p70
      %p72 = scmp.ne.s32.totalorder %s64, %s66
      %p73 = scmp.eq.s32.totalorder %s14, 1
      %p74 = por %p72, %p73
      %p75 = scmp.ne.s32.totalorder %s66, %s67
      %p76 = scmp.eq.s32.totalorder %s14, 0
      %p77 = por %p75, %p76
      %p78 = scmp.ne.s32.totalorder %s66, %s67
      %p79 = scmp.eq.s32.totalorder %s15, 1
      %p80 = por %p78, %p79
      %p82 = scmp.ne.s32.totalorder %s67, %s81
      %p83 = scmp.eq.s32.totalorder %s15, 0
      %p84 = por %p82, %p83
      %s85 = ssub.s32 %s9, %s16
      %p86 = scmp.eq.s32.totalorder %s85, 0
      %s88 = sadd.s32 %s87, 1
      %s89 = scalar_select %p86, %s87, %s88
      %p92 = pneg %p86
      %p93 = scmp.eq.s32.totalorder %s9, 1
      %p94 = por %p92, %p93
      %p95 = scmp.ne.s32.totalorder %s87, %s90
      %p96 = scmp.eq.s32.totalorder %s9, 0
      %p97 = por %p95, %p96
      %p98 = scmp.ne.s32.totalorder %s87, %s90
      %p99 = scmp.eq.s32.totalorder %s14, 1
      %p100 = por %p98, %p99
      %p101 = scmp.ne.s32.totalorder %s90, %s91
      %p102 = scmp.eq.s32.totalorder %s14, 0
      %p103 = por %p101, %p102
      %p104 = scmp.ne.s32.totalorder %s90, %s91
      %p105 = scmp.eq.s32.totalorder %s15, 1
      %p106 = por %p104, %p105
      %p108 = scmp.ne.s32.totalorder %s91, %s107
      %p109 = scmp.eq.s32.totalorder %s15, 0
      %p110 = por %p108, %p109
      %p111 = scmp.le.s32.totalorder 1, %s9
      %p112 = scmp.lt.s32.totalorder %s9, 3
      %p113 = pnand %p111, %p112
      %p114 = pneg %p113
      // Predicated region
      $region9: #{encoder_forward.7} parent=5 // pred_check
        _
      $region10: #{encoder_forward.7} parent=5 // pred_check_branch
        %116 = sbr.rel (%p113) target = $region12
      $region11: #{encoder_forward.7} parent=5 // pred_region
        %s117 = ssub.s32 %s9, 1
        // Predicated region
        $region13: #{encoder_forward.7} parent=11 // pred_check
          %p118 = pneg %p56
        $region14: #{encoder_forward.7} parent=11 // pred_check_branch
          %120 = sbr.rel (%p118) target = $region16
        $region15: #{encoder_forward.7} parent=11 // pred_region
          _
        $region16: #{encoder_forward.7} parent=11 // pred_fallthru
          _
        // Predicated region
        $region17: #{encoder_forward.7} parent=11 // pred_check
          %p121 = pneg %p77
        $region18: #{encoder_forward.7} parent=11 // pred_check_branch
          %123 = sbr.rel (%p121) target = $region20
        $region19: #{encoder_forward.7} parent=11 // pred_region
          _
        $region20: #{encoder_forward.7} parent=11 // pred_fallthru
          _
      $region12: #{encoder_forward.7} parent=5 // pred_fallthru
        _
      %p124 = scmp.lt.s32.totalorder %s9, 2
      // Predicated region
      $region21: #{encoder_forward.7} parent=5 // pred_check
        %p125 = pneg %p124
      $region22: #{encoder_forward.7} parent=5 // pred_check_branch
        %127 = sbr.rel (%p125) target = $region24
      $region23: #{encoder_forward.7} parent=5 // pred_region
        // Predicated region
        $region25: #{encoder_forward.7} parent=23 // pred_check
          %p128 = pneg %p29
        $region26: #{encoder_forward.7} parent=23 // pred_check_branch
          %130 = sbr.rel (%p128) target = $region28
        $region27: #{encoder_forward.7} parent=23 // pred_region
          %s131 = sand.u32 %s19, 1
          %s132 = sand.u32 %s19, 1
          %s133 = smul.addr %s132, 256
          %s134 = scalar_lea.vmem [#allocation2], %s133
          %s135 = smul.u32 4, %s9
          %s136 = smul.addr %s135, 8
          %s137 = scalar_lea.vmem %s0, %s136
          // Predicated region
          $region29: #{encoder_forward.7} parent=27 // pred_check
            _
          $region30: #{encoder_forward.7} parent=27 // pred_check_branch
            %139 = sbr.rel (0) target = $region32
          $region31: #{encoder_forward.7} parent=27 // pred_region
            // Predicated region
            $region33: #{encoder_forward.7} parent=31 // pred_check
              _
            $region34: #{encoder_forward.7} parent=31 // pred_check_branch
              %141 = sbr.rel (0) target = $region36
            $region35: #{encoder_forward.7} parent=31 // pred_region
              loop: start=0, step=1, limit=1
              $region37: #{encoder_forward.7} parent=35 // loop_pre_header
                _
              $region38: #{encoder_forward.7} parent=35 // loop_header
                %s143 = sphi 0, %s147
                %p144 = scmp.ge.s32.totalorder %s143, 1
                %s148 = sphi %s137, %s137
                %s149 = sphi %s134, %s134
              $region39: #{encoder_forward.7} parent=35 // loop_header_branch
                %146 = sbr.rel (%p144) target = $region43
              $region40: #{encoder_forward.7} parent=35 // loop_body
                %v150 = vld [vmem:[%s148] sm:$0xff]
                %151 = vst [vmem:[%s149] sm:$0xff] %v150
                %v152 = vld [vmem:[%s148 + $0x8] sm:$0xff]
                %153 = vst [vmem:[%s149 + $0x8] sm:$0xff] %v152
                %v154 = vld [vmem:[%s148 + $0x10] sm:$0xff]
                %155 = vst [vmem:[%s149 + $0x10] sm:$0xff] %v154
                %v156 = vld [vmem:[%s148 + $0x18] sm:$0xff]
                %157 = vst [vmem:[%s149 + $0x18] sm:$0xff] %v156
                %v158 = vld [vmem:[%s148 + $0x40] sm:$0xff]
                %159 = vst [vmem:[%s149 + $0x20] sm:$0xff] %v158
                %v160 = vld [vmem:[%s148 + $0x48] sm:$0xff]
                %161 = vst [vmem:[%s149 + $0x28] sm:$0xff] %v160
                %v162 = vld [vmem:[%s148 + $0x50] sm:$0xff]
                %163 = vst [vmem:[%s149 + $0x30] sm:$0xff] %v162
                %v164 = vld [vmem:[%s148 + $0x58] sm:$0xff]
                %165 = vst [vmem:[%s149 + $0x38] sm:$0xff] %v164
                %v166 = vld [vmem:[%s148 + $0x80] sm:$0xff]
                %167 = vst [vmem:[%s149 + $0x40] sm:$0xff] %v166
                %v168 = vld [vmem:[%s148 + $0x88] sm:$0xff]
                %169 = vst [vmem:[%s149 + $0x48] sm:$0xff] %v168
                %v170 = vld [vmem:[%s148 + $0x90] sm:$0xff]
                %171 = vst [vmem:[%s149 + $0x50] sm:$0xff] %v170
                %v172 = vld [vmem:[%s148 + $0x98] sm:$0xff]
                %173 = vst [vmem:[%s149 + $0x58] sm:$0xff] %v172
                %v174 = vld [vmem:[%s148 + $0xc0] sm:$0xff]
                %175 = vst [vmem:[%s149 + $0x60] sm:$0xff] %v174
                %v176 = vld [vmem:[%s148 + $0xc8] sm:$0xff]
                %177 = vst [vmem:[%s149 + $0x68] sm:$0xff] %v176
                %v178 = vld [vmem:[%s148 + $0xd0] sm:$0xff]
                %179 = vst [vmem:[%s149 + $0x70] sm:$0xff] %v178
                %v180 = vld [vmem:[%s148 + $0xd8] sm:$0xff]
                %181 = vst [vmem:[%s149 + $0x78] sm:$0xff] %v180
                %v182 = vld [vmem:[%s148 + $0x100] sm:$0xff]
                %183 = vst [vmem:[%s149 + $0x80] sm:$0xff] %v182
                %v184 = vld [vmem:[%s148 + $0x108] sm:$0xff]
                %185 = vst [vmem:[%s149 + $0x88] sm:$0xff] %v184
                %v186 = vld [vmem:[%s148 + $0x110] sm:$0xff]
                %187 = vst [vmem:[%s149 + $0x90] sm:$0xff] %v186
                %v188 = vld [vmem:[%s148 + $0x118] sm:$0xff]
                %189 = vst [vmem:[%s149 + $0x98] sm:$0xff] %v188
                %v190 = vld [vmem:[%s148 + $0x140] sm:$0xff]
                %191 = vst [vmem:[%s149 + $0xa0] sm:$0xff] %v190
                %v192 = vld [vmem:[%s148 + $0x148] sm:$0xff]
                %193 = vst [vmem:[%s149 + $0xa8] sm:$0xff] %v192
                %v194 = vld [vmem:[%s148 + $0x150] sm:$0xff]
                %195 = vst [vmem:[%s149 + $0xb0] sm:$0xff] %v194
                %v196 = vld [vmem:[%s148 + $0x158] sm:$0xff]
                %197 = vst [vmem:[%s149 + $0xb8] sm:$0xff] %v196
                %v198 = vld [vmem:[%s148 + $0x180] sm:$0xff]
                %199 = vst [vmem:[%s149 + $0xc0] sm:$0xff] %v198
                %v200 = vld [vmem:[%s148 + $0x188] sm:$0xff]
                %201 = vst [vmem:[%s149 + $0xc8] sm:$0xff] %v200
                %v202 = vld [vmem:[%s148 + $0x190] sm:$0xff]
                %203 = vst [vmem:[%s149 + $0xd0] sm:$0xff] %v202
                %v204 = vld [vmem:[%s148 + $0x198] sm:$0xff]
                %205 = vst [vmem:[%s149 + $0xd8] sm:$0xff] %v204
                %v206 = vld [vmem:[%s148 + $0x1c0] sm:$0xff]
                %207 = vst [vmem:[%s149 + $0xe0] sm:$0xff] %v206
                %v208 = vld [vmem:[%s148 + $0x1c8] sm:$0xff]
                %209 = vst [vmem:[%s149 + $0xe8] sm:$0xff] %v208
                %v210 = vld [vmem:[%s148 + $0x1d0] sm:$0xff]
                %211 = vst [vmem:[%s149 + $0xf0] sm:$0xff] %v210
                %v212 = vld [vmem:[%s148 + $0x1d8] sm:$0xff]
                %213 = vst [vmem:[%s149 + $0xf8] sm:$0xff] %v212
              $region41: #{encoder_forward.7} parent=35 // loop_footer
                %s147 = sadd.s32 1, %s143
              $region42: #{encoder_forward.7} parent=35 // loop_footer_branch
                %142 = sbr.rel target = $region38
              $region43: #{encoder_forward.7} parent=35 // loop_exit
                _
            $region36: #{encoder_forward.7} parent=31 // pred_fallthru
              _
            // Predicated region
            $region44: #{encoder_forward.7} parent=31 // pred_check
              _
            $region45: #{encoder_forward.7} parent=31 // pred_check_branch
              %215 = sbr.rel target = $region47
            $region46: #{encoder_forward.7} parent=31 // pred_region
              _
            $region47: #{encoder_forward.7} parent=31 // pred_fallthru
              _
          $region32: #{encoder_forward.7} parent=27 // pred_fallthru
            _
          %216 = vnop
        $region28: #{encoder_forward.7} parent=23 // pred_fallthru
          _
      $region24: #{encoder_forward.7} parent=5 // pred_fallthru
        _
      %p217 = scmp.le.s32.totalorder 1, %s9
      %p218 = scmp.lt.s32.totalorder %s9, 3
      %p219 = pnand %p217, %p218
      %p220 = pneg %p219
      // Predicated region
      $region48: #{encoder_forward.7} parent=5 // pred_check
        _
      $region49: #{encoder_forward.7} parent=5 // pred_check_branch
        %222 = sbr.rel (%p219) target = $region51
      $region50: #{encoder_forward.7} parent=5 // pred_region
        %s223 = ssub.s32 %s9, 1
        %s224 = sand.u32 %s22, 1
        %s225 = sand.u32 %s22, 1
        %s226 = smul.addr %s225, 256
        %s227 = scalar_lea.vmem [#allocation2], %s226
        // Predicated region
        $region52: #{encoder_forward.7} parent=50 // pred_check
          %p228 = pneg %p35
        $region53: #{encoder_forward.7} parent=50 // pred_check_branch
          %230 = sbr.rel (%p228) target = $region55
        $region54: #{encoder_forward.7} parent=50 // pred_region
          _
        $region55: #{encoder_forward.7} parent=50 // pred_fallthru
          _
        %s231 = sand.u32 %s22, 1
        %s232 = sand.u32 %s22, 1
        %s233 = smul.addr %s232, 256
        %s234 = scalar_lea.vmem [#allocation2], %s233
        %p235 = pneg %p35
        %p236 = pneg %p32
        %p237 = pneg %p56
        %p238 = pneg %p53
        %p239 = pneg %p77
        %p240 = pneg %p74
        %p241 = pneg %p103
        %p242 = pneg %p100
        %s243 = sand.u32 %s90, 1
        %s244 = sand.u32 %s90, 1
        %s245 = smul.addr %s244, 128
        %s246 = scalar_lea.vmem [#allocation3], %s245
        %s247 = smul.u32 4, %s14
        %s248 = smul.u32 4, %s14
        %v249 = vld [vmem:[%s1] sm:$0xff]
        %v250 = vld [vmem:[%s1 + $0x8] sm:$0xff]
        %v251 = vld [vmem:[%s1 + $0x10] sm:$0xff]
        %v252 = vld [vmem:[%s1 + $0x18] sm:$0xff]
        %v253 = vld [vmem:[%s2] sm:$0xff]
        %v254 = vld [vmem:[%s2 + $0x8] sm:$0xff]
        %v255 = vld [vmem:[%s2 + $0x10] sm:$0xff]
        %v256 = vld [vmem:[%s2 + $0x18] sm:$0xff]
        %v257 = vld [vmem:[%s227] sm:$0xff]
        %v258 = vld [vmem:[%s227 + $0x8] sm:$0xff]
        %v259 = vld [vmem:[%s227 + $0x10] sm:$0xff]
        %v260 = vld [vmem:[%s227 + $0x18] sm:$0xff]
        %v261 = vld [vmem:[%s227 + $0x20] sm:$0xff]
        %v262 = vld [vmem:[%s227 + $0x28] sm:$0xff]
        %v263 = vld [vmem:[%s227 + $0x30] sm:$0xff]
        %v264 = vld [vmem:[%s227 + $0x38] sm:$0xff]
        %v265 = vld [vmem:[%s227 + $0x40] sm:$0xff]
        %v266 = vld [vmem:[%s227 + $0x48] sm:$0xff]
        %v267 = vld [vmem:[%s227 + $0x50] sm:$0xff]
        %v268 = vld [vmem:[%s227 + $0x58] sm:$0xff]
        %v269 = vld [vmem:[%s227 + $0x60] sm:$0xff]
        %v270 = vld [vmem:[%s227 + $0x68] sm:$0xff]
        %v271 = vld [vmem:[%s227 + $0x70] sm:$0xff]
        %v272 = vld [vmem:[%s227 + $0x78] sm:$0xff]
        %v273 = vld [vmem:[%s227 + $0x80] sm:$0xff]
        %v274 = vld [vmem:[%s227 + $0x88] sm:$0xff]
        %v275 = vld [vmem:[%s227 + $0x90] sm:$0xff]
        %v276 = vld [vmem:[%s227 + $0x98] sm:$0xff]
        %v277 = vld [vmem:[%s227 + $0xa0] sm:$0xff]
        %v278 = vld [vmem:[%s227 + $0xa8] sm:$0xff]
        %v279 = vld [vmem:[%s227 + $0xb0] sm:$0xff]
        %v280 = vld [vmem:[%s227 + $0xb8] sm:$0xff]
        %v281 = vld [vmem:[%s227 + $0xc0] sm:$0xff]
        %v282 = vld [vmem:[%s227 + $0xc8] sm:$0xff]
        %v283 = vld [vmem:[%s227 + $0xd0] sm:$0xff]
        %v284 = vld [vmem:[%s227 + $0xd8] sm:$0xff]
        %v285 = vld [vmem:[%s227 + $0xe0] sm:$0xff]
        %v286 = vld [vmem:[%s227 + $0xe8] sm:$0xff]
        %v287 = vld [vmem:[%s227 + $0xf0] sm:$0xff]
        %v288 = vld [vmem:[%s227 + $0xf8] sm:$0xff]
        %290 = vset.pattern.permute.xlu0 0
        %291 = vperm.xlu0 %290, %v253
        %v292 = vpop.permute.xlu0 %291
        %295 = vset.pattern.permute.xlu0 0
        %296 = vperm.xlu0 %295, %v254
        %v297 = vpop.permute.xlu0 %296
        %300 = vset.pattern.permute.xlu0 0
        %301 = vperm.xlu0 %300, %v255
        %v302 = vpop.permute.xlu0 %301
        %305 = vset.pattern.permute.xlu0 0
        %306 = vperm.xlu0 %305, %v256
        %v307 = vpop.permute.xlu0 %306
        %vm309 = vcmask 523264
        %v311 = vsel %vm309, %v249, 0
        %v314 = vsel %vm309, %v250, 0
        %v317 = vsel %vm309, %v251, 0
        %v320 = vsel %vm309, %v252, 0
        %322 = vmatprep.subr.mxu0 0.0
        %323 = vmatpush1.msra.mxu0 0.0
        %324 = vmatprep.subr.mxu0 0.0
        %325 = vmatpush1.msra.mxu0 0.0
        %326 = vmatprep.subr.mxu0 0.0
        %327 = vmatpush1.msra.mxu0 0.0
        %328 = vmatprep.subr.mxu0 0.0
        %329 = vmatpush1.msra.mxu0 0.0
        %330 = vmatprep.subr.mxu0 0.0
        %331 = vmatpush1.msra.mxu0 0.0
        %332 = vmatprep.subr.mxu0 0.0
        %333 = vmatpush1.msra.mxu0 0.0
        %334 = vmatprep.subr.mxu0 0.0
        %335 = vmatpush1.msra.mxu0 0.0
        %336 = vmatprep.subr.mxu0 0.0
        %337 = vmatpush1.msra.mxu0 0.0
        %338 = vmatprep.subr.mxu0 %v286
        %339 = vmatpush1.msra.mxu0 %v285
        %340 = vmatprep.subr.mxu0 %v282
        %341 = vmatpush1.msra.mxu0 %v281
        %342 = vmatprep.subr.mxu0 %v278
        %343 = vmatpush1.msra.mxu0 %v277
        %344 = vmatprep.subr.mxu0 %v274
        %345 = vmatpush1.msra.mxu0 %v273
        %346 = vmatprep.subr.mxu0 %v270
        %347 = vmatpush1.msra.mxu0 %v269
        %348 = vmatprep.subr.mxu0 %v266
        %349 = vmatpush1.msra.mxu0 %v265
        %350 = vmatprep.subr.mxu0 %v262
        %351 = vmatpush1.msra.mxu0 %v261
        %352 = vmatprep.subr.mxu0 %v258
        %353 = vmatpush1.msra.mxu0 %v257
        %354 = vmatprep.subr.mxu0 0.0
        %355 = vmatpush2.msra.mxu0 0.0
        %356 = vmatprep.subr.mxu0 0.0
        %357 = vmatpush2.msra.mxu0 0.0
        %358 = vmatprep.subr.mxu0 0.0
        %359 = vmatpush2.msra.mxu0 0.0
        %360 = vmatprep.subr.mxu0 0.0
        %361 = vmatpush2.msra.mxu0 0.0
        %362 = vmatprep.subr.mxu0 0.0
        %363 = vmatpush2.msra.mxu0 0.0
        %364 = vmatprep.subr.mxu0 0.0
        %365 = vmatpush2.msra.mxu0 0.0
        %366 = vmatprep.subr.mxu0 0.0
        %367 = vmatpush2.msra.mxu0 0.0
        %368 = vmatprep.subr.mxu0 0.0
        %369 = vmatpush2.msra.mxu0 0.0
        %370 = vmatprep.subr.mxu0 0.0
        %371 = vmatpush2.msra.mxu0 0.0
        %372 = vmatprep.subr.mxu0 0.0
        %373 = vmatpush2.msra.mxu0 0.0
        %374 = vmatprep.subr.mxu0 0.0
        %375 = vmatpush2.msra.mxu0 0.0
        %376 = vmatprep.subr.mxu0 0.0
        %377 = vmatpush2.msra.mxu0 0.0
        %378 = vmatprep.subr.mxu0 0.0
        %379 = vmatpush2.msra.mxu0 0.0
        %380 = vmatprep.subr.mxu0 0.0
        %381 = vmatpush2.msra.mxu0 0.0
        %382 = vmatprep.subr.mxu0 0.0
        %383 = vmatpush2.msra.mxu0 0.0
        %384 = vmatprep.subr.mxu0 0.0
        %385 = vmatpush2.msra.mxu0 0.0
        %386 = vmatprep.mubr.f32.mxu0 0.0
        %387 = vmatmul.mubr.f32.gmra.mxu0 %v311
        %v388 = vpop.f32.mrf.mxu0
        %v389 = vadd.f32 %v292, %v388
        %v390 = vpop.f32.mrf.mxu0
        %v391 = vadd.f32 %v292, %v390
        %392 = vmatprep.mubr.f32.mxu0 0.0
        %393 = vmatmul.mubr.f32.gmra.mxu0 %v314
        %v394 = vpop.f32.mrf.mxu0
        %v395 = vadd.f32 %v297, %v394
        %v396 = vpop.f32.mrf.mxu0
        %v397 = vadd.f32 %v297, %v396
        %398 = vmatprep.mubr.f32.mxu0 0.0
        %399 = vmatmul.mubr.f32.gmra.mxu0 %v317
        %v400 = vpop.f32.mrf.mxu0
        %v401 = vadd.f32 %v302, %v400
        %v402 = vpop.f32.mrf.mxu0
        %v403 = vadd.f32 %v302, %v402
        %404 = vmatprep.mubr.f32.mxu0 0.0
        %405 = vmatmul.mubr.f32.gmra.mxu0 %v320
        %v406 = vpop.f32.mrf.mxu0
        %v407 = vadd.f32 %v307, %v406
        %v408 = vpop.f32.mrf.mxu0
        %v409 = vadd.f32 %v307, %v408
        %410 = vdwg.mxu0
        %411 = vmatprep.subr.mxu0 0.0
        %412 = vmatpush1.msra.mxu0 0.0
        %413 = vmatprep.subr.mxu0 0.0
        %414 = vmatpush1.msra.mxu0 0.0
        %415 = vmatprep.subr.mxu0 0.0
        %416 = vmatpush1.msra.mxu0 0.0
        %417 = vmatprep.subr.mxu0 0.0
        %418 = vmatpush1.msra.mxu0 0.0
        %419 = vmatprep.subr.mxu0 0.0
        %420 = vmatpush1.msra.mxu0 0.0
        %421 = vmatprep.subr.mxu0 0.0
        %422 = vmatpush1.msra.mxu0 0.0
        %423 = vmatprep.subr.mxu0 0.0
        %424 = vmatpush1.msra.mxu0 0.0
        %425 = vmatprep.subr.mxu0 0.0
        %426 = vmatpush1.msra.mxu0 0.0
        %427 = vmatprep.subr.mxu0 %v288
        %428 = vmatpush1.msra.mxu0 %v287
        %429 = vmatprep.subr.mxu0 %v284
        %430 = vmatpush1.msra.mxu0 %v283
        %431 = vmatprep.subr.mxu0 %v280
        %432 = vmatpush1.msra.mxu0 %v279
        %433 = vmatprep.subr.mxu0 %v276
        %434 = vmatpush1.msra.mxu0 %v275
        %435 = vmatprep.subr.mxu0 %v272
        %436 = vmatpush1.msra.mxu0 %v271
        %437 = vmatprep.subr.mxu0 %v268
        %438 = vmatpush1.msra.mxu0 %v267
        %439 = vmatprep.subr.mxu0 %v264
        %440 = vmatpush1.msra.mxu0 %v263
        %441 = vmatprep.subr.mxu0 %v260
        %442 = vmatpush1.msra.mxu0 %v259
        %443 = vmatprep.subr.mxu0 0.0
        %444 = vmatpush2.msra.mxu0 0.0
        %445 = vmatprep.subr.mxu0 0.0
        %446 = vmatpush2.msra.mxu0 0.0
        %447 = vmatprep.subr.mxu0 0.0
        %448 = vmatpush2.msra.mxu0 0.0
        %449 = vmatprep.subr.mxu0 0.0
        %450 = vmatpush2.msra.mxu0 0.0
        %451 = vmatprep.subr.mxu0 0.0
        %452 = vmatpush2.msra.mxu0 0.0
        %453 = vmatprep.subr.mxu0 0.0
        %454 = vmatpush2.msra.mxu0 0.0
        %455 = vmatprep.subr.mxu0 0.0
        %456 = vmatpush2.msra.mxu0 0.0
        %457 = vmatprep.subr.mxu0 0.0
        %458 = vmatpush2.msra.mxu0 0.0
        %459 = vmatprep.subr.mxu0 0.0
        %460 = vmatpush2.msra.mxu0 0.0
        %461 = vmatprep.subr.mxu0 0.0
        %462 = vmatpush2.msra.mxu0 0.0
        %463 = vmatprep.subr.mxu0 0.0
        %464 = vmatpush2.msra.mxu0 0.0
        %465 = vmatprep.subr.mxu0 0.0
        %466 = vmatpush2.msra.mxu0 0.0
        %467 = vmatprep.subr.mxu0 0.0
        %468 = vmatpush2.msra.mxu0 0.0
        %469 = vmatprep.subr.mxu0 0.0
        %470 = vmatpush2.msra.mxu0 0.0
        %471 = vmatprep.subr.mxu0 0.0
        %472 = vmatpush2.msra.mxu0 0.0
        %473 = vmatprep.subr.mxu0 0.0
        %474 = vmatpush2.msra.mxu0 0.0
        %475 = vmatprep.mubr.f32.mxu0 0.0
        %476 = vmatmul.mubr.f32.gmra.mxu0 %v311
        %v477 = vpop.f32.mrf.mxu0
        %v478 = vadd.f32 %v292, %v477
        %v479 = vpop.f32.mrf.mxu0
        %v480 = vadd.f32 %v292, %v479
        %481 = vmatprep.mubr.f32.mxu0 0.0
        %482 = vmatmul.mubr.f32.gmra.mxu0 %v314
        %v483 = vpop.f32.mrf.mxu0
        %v484 = vadd.f32 %v297, %v483
        %v485 = vpop.f32.mrf.mxu0
        %v486 = vadd.f32 %v297, %v485
        %487 = vmatprep.mubr.f32.mxu0 0.0
        %488 = vmatmul.mubr.f32.gmra.mxu0 %v317
        %v489 = vpop.f32.mrf.mxu0
        %v490 = vadd.f32 %v302, %v489
        %v491 = vpop.f32.mrf.mxu0
        %v492 = vadd.f32 %v302, %v491
        %493 = vmatprep.mubr.f32.mxu0 0.0
        %494 = vmatmul.mubr.f32.gmra.mxu0 %v320
        %v495 = vpop.f32.mrf.mxu0
        %v496 = vadd.f32 %v307, %v495
        %v497 = vpop.f32.mrf.mxu0
        %v498 = vadd.f32 %v307, %v497
        %499 = vdwg.mxu0
        %v500 = vmul.f32 %v389, 0.70710677
        %v501 = vmul.f32 %v391, 0.70710677
        %v502 = vmul.f32 %v478, 0.70710677
        %v503 = vmul.f32 %v480, 0.70710677
        %v504 = vmul.f32 %v395, 0.70710677
        %v505 = vmul.f32 %v397, 0.70710677
        %v506 = vmul.f32 %v484, 0.70710677
        %v507 = vmul.f32 %v486, 0.70710677
        %v508 = vmul.f32 %v401, 0.70710677
        %v509 = vmul.f32 %v403, 0.70710677
        %v510 = vmul.f32 %v490, 0.70710677
        %v511 = vmul.f32 %v492, 0.70710677
        %v512 = vmul.f32 %v407, 0.70710677
        %v513 = vmul.f32 %v409, 0.70710677
        %v514 = vmul.f32 %v496, 0.70710677
        %v515 = vmul.f32 %v498, 0.70710677
        %vm516 = vcmp.ge.f32.partialorder %v500, 0.0
        %vm517 = vcmp.ge.f32.partialorder %v501, 0.0
        %vm518 = vcmp.ge.f32.partialorder %v502, 0.0
        %vm519 = vcmp.ge.f32.partialorder %v503, 0.0
        %vm520 = vcmp.ge.f32.partialorder %v504, 0.0
        %vm521 = vcmp.ge.f32.partialorder %v505, 0.0
        %vm522 = vcmp.ge.f32.partialorder %v506, 0.0
        %vm523 = vcmp.ge.f32.partialorder %v507, 0.0
        %vm524 = vcmp.ge.f32.partialorder %v508, 0.0
        %vm525 = vcmp.ge.f32.partialorder %v509, 0.0
        %vm526 = vcmp.ge.f32.partialorder %v510, 0.0
        %vm527 = vcmp.ge.f32.partialorder %v511, 0.0
        %vm528 = vcmp.ge.f32.partialorder %v512, 0.0
        %vm529 = vcmp.ge.f32.partialorder %v513, 0.0
        %vm530 = vcmp.ge.f32.partialorder %v514, 0.0
        %vm531 = vcmp.ge.f32.partialorder %v515, 0.0
        %v532 = vsel %vm516, 1.0, -1.0
        %v533 = vsel %vm517, 1.0, -1.0
        %v534 = vsel %vm518, 1.0, -1.0
        %v535 = vsel %vm519, 1.0, -1.0
        %v536 = vsel %vm520, 1.0, -1.0
        %v537 = vsel %vm521, 1.0, -1.0
        %v538 = vsel %vm522, 1.0, -1.0
        %v539 = vsel %vm523, 1.0, -1.0
        %v540 = vsel %vm524, 1.0, -1.0
        %v541 = vsel %vm525, 1.0, -1.0
        %v542 = vsel %vm526, 1.0, -1.0
        %v543 = vsel %vm527, 1.0, -1.0
        %v544 = vsel %vm528, 1.0, -1.0
        %v545 = vsel %vm529, 1.0, -1.0
        %v546 = vsel %vm530, 1.0, -1.0
        %v547 = vsel %vm531, 1.0, -1.0
        %v548 = vand.u32 2147483647, %v500
        %v549 = vand.u32 2147483647, %v501
        %v550 = vand.u32 2147483647, %v502
        %v551 = vand.u32 2147483647, %v503
        %v552 = vand.u32 2147483647, %v504
        %v553 = vand.u32 2147483647, %v505
        %v554 = vand.u32 2147483647, %v506
        %v555 = vand.u32 2147483647, %v507
        %v556 = vand.u32 2147483647, %v508
        %v557 = vand.u32 2147483647, %v509
        %v558 = vand.u32 2147483647, %v510
        %v559 = vand.u32 2147483647, %v511
        %v560 = vand.u32 2147483647, %v512
        %v561 = vand.u32 2147483647, %v513
        %v562 = vand.u32 2147483647, %v514
        %v563 = vand.u32 2147483647, %v515
        %v564 = vmul.f32 %v548, 0.3275911
        %v565 = vmul.f32 %v549, 0.3275911
        %v566 = vmul.f32 %v550, 0.3275911
        %v567 = vmul.f32 %v551, 0.3275911
        %v568 = vmul.f32 %v552, 0.3275911
        %v569 = vmul.f32 %v553, 0.3275911
        %v570 = vmul.f32 %v554, 0.3275911
        %v571 = vmul.f32 %v555, 0.3275911
        %v572 = vmul.f32 %v556, 0.3275911
        %v573 = vmul.f32 %v557, 0.3275911
        %v574 = vmul.f32 %v558, 0.3275911
        %v575 = vmul.f32 %v559, 0.3275911
        %v576 = vmul.f32 %v560, 0.3275911
        %v577 = vmul.f32 %v561, 0.3275911
        %v578 = vmul.f32 %v562, 0.3275911
        %v579 = vmul.f32 %v563, 0.3275911
        %v580 = vadd.f32 %v564, 1.0
        %v581 = vadd.f32 %v565, 1.0
        %v582 = vadd.f32 %v566, 1.0
        %v583 = vadd.f32 %v567, 1.0
        %v584 = vadd.f32 %v568, 1.0
        %v585 = vadd.f32 %v569, 1.0
        %v586 = vadd.f32 %v570, 1.0
        %v587 = vadd.f32 %v571, 1.0
        %v588 = vadd.f32 %v572, 1.0
        %v589 = vadd.f32 %v573, 1.0
        %v590 = vadd.f32 %v574, 1.0
        %v591 = vadd.f32 %v575, 1.0
        %v592 = vadd.f32 %v576, 1.0
        %v593 = vadd.f32 %v577, 1.0
        %v594 = vadd.f32 %v578, 1.0
        %v595 = vadd.f32 %v579, 1.0
        %v596 = vrcp.pop %v580
        %v597 = vrcp.pop %v581
        %v598 = vrcp.pop %v582
        %v599 = vrcp.pop %v583
        %v600 = vrcp.pop %v584
        %v601 = vrcp.pop %v585
        %v602 = vrcp.pop %v586
        %v603 = vrcp.pop %v587
        %v604 = vrcp.pop %v588
        %v605 = vrcp.pop %v589
        %v606 = vrcp.pop %v590
        %v607 = vrcp.pop %v591
        %v608 = vrcp.pop %v592
        %v609 = vrcp.pop %v593
        %v610 = vrcp.pop %v594
        %v611 = vrcp.pop %v595
        %v612 = vmul.f32 %v596, 1.0614054
        %v613 = vmul.f32 %v597, 1.0614054
        %v614 = vmul.f32 %v598, 1.0614054
        %v615 = vmul.f32 %v599, 1.0614054
        %v616 = vmul.f32 %v600, 1.0614054
        %v617 = vmul.f32 %v601, 1.0614054
        %v618 = vmul.f32 %v602, 1.0614054
        %v619 = vmul.f32 %v603, 1.0614054
        %v620 = vmul.f32 %v604, 1.0614054
        %v621 = vmul.f32 %v605, 1.0614054
        %v622 = vmul.f32 %v606, 1.0614054
        %v623 = vmul.f32 %v607, 1.0614054
        %v624 = vmul.f32 %v608, 1.0614054
        %v625 = vmul.f32 %v609, 1.0614054
        %v626 = vmul.f32 %v610, 1.0614054
        %v627 = vmul.f32 %v611, 1.0614054
        %v628 = vadd.f32 %v612, -1.4531521
        %v629 = vadd.f32 %v613, -1.4531521
        %v630 = vadd.f32 %v614, -1.4531521
        %v631 = vadd.f32 %v615, -1.4531521
        %v632 = vadd.f32 %v616, -1.4531521
        %v633 = vadd.f32 %v617, -1.4531521
        %v634 = vadd.f32 %v618, -1.4531521
        %v635 = vadd.f32 %v619, -1.4531521
        %v636 = vadd.f32 %v620, -1.4531521
        %v637 = vadd.f32 %v621, -1.4531521
        %v638 = vadd.f32 %v622, -1.4531521
        %v639 = vadd.f32 %v623, -1.4531521
        %v640 = vadd.f32 %v624, -1.4531521
        %v641 = vadd.f32 %v625, -1.4531521
        %v642 = vadd.f32 %v626, -1.4531521
        %v643 = vadd.f32 %v627, -1.4531521
        %v644 = vmul.f32 %v628, %v596
        %v645 = vmul.f32 %v629, %v597
        %v646 = vmul.f32 %v630, %v598
        %v647 = vmul.f32 %v631, %v599
        %v648 = vmul.f32 %v632, %v600
        %v649 = vmul.f32 %v633, %v601
        %v650 = vmul.f32 %v634, %v602
        %v651 = vmul.f32 %v635, %v603
        %v652 = vmul.f32 %v636, %v604
        %v653 = vmul.f32 %v637, %v605
        %v654 = vmul.f32 %v638, %v606
        %v655 = vmul.f32 %v639, %v607
        %v656 = vmul.f32 %v640, %v608
        %v657 = vmul.f32 %v641, %v609
        %v658 = vmul.f32 %v642, %v610
        %v659 = vmul.f32 %v643, %v611
        %v660 = vadd.f32 %v644, 1.4214138
        %v661 = vadd.f32 %v645, 1.4214138
        %v662 = vadd.f32 %v646, 1.4214138
        %v663 = vadd.f32 %v647, 1.4214138
        %v664 = vadd.f32 %v648, 1.4214138
        %v665 = vadd.f32 %v649, 1.4214138
        %v666 = vadd.f32 %v650, 1.4214138
        %v667 = vadd.f32 %v651, 1.4214138
        %v668 = vadd.f32 %v652, 1.4214138
        %v669 = vadd.f32 %v653, 1.4214138
        %v670 = vadd.f32 %v654, 1.4214138
        %v671 = vadd.f32 %v655, 1.4214138
        %v672 = vadd.f32 %v656, 1.4214138
        %v673 = vadd.f32 %v657, 1.4214138
        %v674 = vadd.f32 %v658, 1.4214138
        %v675 = vadd.f32 %v659, 1.4214138
        %v676 = vmul.f32 %v660, %v596
        %v677 = vmul.f32 %v661, %v597
        %v678 = vmul.f32 %v662, %v598
        %v679 = vmul.f32 %v663, %v599
        %v680 = vmul.f32 %v664, %v600
        %v681 = vmul.f32 %v665, %v601
        %v682 = vmul.f32 %v666, %v602
        %v683 = vmul.f32 %v667, %v603
        %v684 = vmul.f32 %v668, %v604
        %v685 = vmul.f32 %v669, %v605
        %v686 = vmul.f32 %v670, %v606
        %v687 = vmul.f32 %v671, %v607
        %v688 = vmul.f32 %v672, %v608
        %v689 = vmul.f32 %v673, %v609
        %v690 = vmul.f32 %v674, %v610
        %v691 = vmul.f32 %v675, %v611
        %v692 = vadd.f32 %v676, -0.28449672
        %v693 = vadd.f32 %v677, -0.28449672
        %v694 = vadd.f32 %v678, -0.28449672
        %v695 = vadd.f32 %v679, -0.28449672
        %v696 = vadd.f32 %v680, -0.28449672
        %v697 = vadd.f32 %v681, -0.28449672
        %v698 = vadd.f32 %v682, -0.28449672
        %v699 = vadd.f32 %v683, -0.28449672
        %v700 = vadd.f32 %v684, -0.28449672
        %v701 = vadd.f32 %v685, -0.28449672
        %v702 = vadd.f32 %v686, -0.28449672
        %v703 = vadd.f32 %v687, -0.28449672
        %v704 = vadd.f32 %v688, -0.28449672
        %v705 = vadd.f32 %v689, -0.28449672
        %v706 = vadd.f32 %v690, -0.28449672
        %v707 = vadd.f32 %v691, -0.28449672
        %v708 = vmul.f32 %v692, %v596
        %v709 = vmul.f32 %v693, %v597
        %v710 = vmul.f32 %v694, %v598
        %v711 = vmul.f32 %v695, %v599
        %v712 = vmul.f32 %v696, %v600
        %v713 = vmul.f32 %v697, %v601
        %v714 = vmul.f32 %v698, %v602
        %v715 = vmul.f32 %v699, %v603
        %v716 = vmul.f32 %v700, %v604
        %v717 = vmul.f32 %v701, %v605
        %v718 = vmul.f32 %v702, %v606
        %v719 = vmul.f32 %v703, %v607
        %v720 = vmul.f32 %v704, %v608
        %v721 = vmul.f32 %v705, %v609
        %v722 = vmul.f32 %v706, %v610
        %v723 = vmul.f32 %v707, %v611
        %v724 = vadd.f32 %v708, 0.2548296
        %v725 = vadd.f32 %v709, 0.2548296
        %v726 = vadd.f32 %v710, 0.2548296
        %v727 = vadd.f32 %v711, 0.2548296
        %v728 = vadd.f32 %v712, 0.2548296
        %v729 = vadd.f32 %v713, 0.2548296
        %v730 = vadd.f32 %v714, 0.2548296
        %v731 = vadd.f32 %v715, 0.2548296
        %v732 = vadd.f32 %v716, 0.2548296
        %v733 = vadd.f32 %v717, 0.2548296
        %v734 = vadd.f32 %v718, 0.2548296
        %v735 = vadd.f32 %v719, 0.2548296
        %v736 = vadd.f32 %v720, 0.2548296
        %v737 = vadd.f32 %v721, 0.2548296
        %v738 = vadd.f32 %v722, 0.2548296
        %v739 = vadd.f32 %v723, 0.2548296
        %v740 = vmul.f32 %v724, %v596
        %v741 = vmul.f32 %v725, %v597
        %v742 = vmul.f32 %v726, %v598
        %v743 = vmul.f32 %v727, %v599
        %v744 = vmul.f32 %v728, %v600
        %v745 = vmul.f32 %v729, %v601
        %v746 = vmul.f32 %v730, %v602
        %v747 = vmul.f32 %v731, %v603
        %v748 = vmul.f32 %v732, %v604
        %v749 = vmul.f32 %v733, %v605
        %v750 = vmul.f32 %v734, %v606
        %v751 = vmul.f32 %v735, %v607
        %v752 = vmul.f32 %v736, %v608
        %v753 = vmul.f32 %v737, %v609
        %v754 = vmul.f32 %v738, %v610
        %v755 = vmul.f32 %v739, %v611
        %v756 = vsub.f32 0.0, %v548
        %v757 = vsub.f32 0.0, %v549
        %v758 = vsub.f32 0.0, %v550
        %v759 = vsub.f32 0.0, %v551
        %v760 = vsub.f32 0.0, %v552
        %v761 = vsub.f32 0.0, %v553
        %v762 = vsub.f32 0.0, %v554
        %v763 = vsub.f32 0.0, %v555
        %v764 = vsub.f32 0.0, %v556
        %v765 = vsub.f32 0.0, %v557
        %v766 = vsub.f32 0.0, %v558
        %v767 = vsub.f32 0.0, %v559
        %v768 = vsub.f32 0.0, %v560
        %v769 = vsub.f32 0.0, %v561
        %v770 = vsub.f32 0.0, %v562
        %v771 = vsub.f32 0.0, %v563
        %v772 = vmul.f32 %v756, %v548
        %v773 = vmul.f32 %v757, %v549
        %v774 = vmul.f32 %v758, %v550
        %v775 = vmul.f32 %v759, %v551
        %v776 = vmul.f32 %v760, %v552
        %v777 = vmul.f32 %v761, %v553
        %v778 = vmul.f32 %v762, %v554
        %v779 = vmul.f32 %v763, %v555
        %v780 = vmul.f32 %v764, %v556
        %v781 = vmul.f32 %v765, %v557
        %v782 = vmul.f32 %v766, %v558
        %v783 = vmul.f32 %v767, %v559
        %v784 = vmul.f32 %v768, %v560
        %v785 = vmul.f32 %v769, %v561
        %v786 = vmul.f32 %v770, %v562
        %v787 = vmul.f32 %v771, %v563
        %v788 = vmul.f32 %v772, 1.442695
        %v789 = vpow.pop %v788
        %v790 = vmul.f32 %v773, 1.442695
        %v791 = vpow.pop %v790
        %v792 = vmul.f32 %v774, 1.442695
        %v793 = vpow.pop %v792
        %v794 = vmul.f32 %v775, 1.442695
        %v795 = vpow.pop %v794
        %v796 = vmul.f32 %v776, 1.442695
        %v797 = vpow.pop %v796
        %v798 = vmul.f32 %v777, 1.442695
        %v799 = vpow.pop %v798
        %v800 = vmul.f32 %v778, 1.442695
        %v801 = vpow.pop %v800
        %v802 = vmul.f32 %v779, 1.442695
        %v803 = vpow.pop %v802
        %v804 = vmul.f32 %v780, 1.442695
        %v805 = vpow.pop %v804
        %v806 = vmul.f32 %v781, 1.442695
        %v807 = vpow.pop %v806
        %v808 = vmul.f32 %v782, 1.442695
        %v809 = vpow.pop %v808
        %v810 = vmul.f32 %v783, 1.442695
        %v811 = vpow.pop %v810
        %v812 = vmul.f32 %v784, 1.442695
        %v813 = vpow.pop %v812
        %v814 = vmul.f32 %v785, 1.442695
        %v815 = vpow.pop %v814
        %v816 = vmul.f32 %v786, 1.442695
        %v817 = vpow.pop %v816
        %v818 = vmul.f32 %v787, 1.442695
        %v819 = vpow.pop %v818
        %v820 = vmul.f32 %v740, %v789
        %v821 = vmul.f32 %v741, %v791
        %v822 = vmul.f32 %v742, %v793
        %v823 = vmul.f32 %v743, %v795
        %v824 = vmul.f32 %v744, %v797
        %v825 = vmul.f32 %v745, %v799
        %v826 = vmul.f32 %v746, %v801
        %v827 = vmul.f32 %v747, %v803
        %v828 = vmul.f32 %v748, %v805
        %v829 = vmul.f32 %v749, %v807
        %v830 = vmul.f32 %v750, %v809
        %v831 = vmul.f32 %v751, %v811
        %v832 = vmul.f32 %v752, %v813
        %v833 = vmul.f32 %v753, %v815
        %v834 = vmul.f32 %v754, %v817
        %v835 = vmul.f32 %v755, %v819
        %v836 = vsub.f32 1.0, %v820
        %v837 = vsub.f32 1.0, %v821
        %v838 = vsub.f32 1.0, %v822
        %v839 = vsub.f32 1.0, %v823
        %v840 = vsub.f32 1.0, %v824
        %v841 = vsub.f32 1.0, %v825
        %v842 = vsub.f32 1.0, %v826
        %v843 = vsub.f32 1.0, %v827
        %v844 = vsub.f32 1.0, %v828
        %v845 = vsub.f32 1.0, %v829
        %v846 = vsub.f32 1.0, %v830
        %v847 = vsub.f32 1.0, %v831
        %v848 = vsub.f32 1.0, %v832
        %v849 = vsub.f32 1.0, %v833
        %v850 = vsub.f32 1.0, %v834
        %v851 = vsub.f32 1.0, %v835
        %v852 = vmul.f32 %v532, %v836
        %v853 = vmul.f32 %v533, %v837
        %v854 = vmul.f32 %v534, %v838
        %v855 = vmul.f32 %v535, %v839
        %v856 = vmul.f32 %v536, %v840
        %v857 = vmul.f32 %v537, %v841
        %v858 = vmul.f32 %v538, %v842
        %v859 = vmul.f32 %v539, %v843
        %v860 = vmul.f32 %v540, %v844
        %v861 = vmul.f32 %v541, %v845
        %v862 = vmul.f32 %v542, %v846
        %v863 = vmul.f32 %v543, %v847
        %v864 = vmul.f32 %v544, %v848
        %v865 = vmul.f32 %v545, %v849
        %v866 = vmul.f32 %v546, %v850
        %v867 = vmul.f32 %v547, %v851
        %v868 = vmul.f32 %v389, 0.5
        %v869 = vmul.f32 %v391, 0.5
        %v870 = vmul.f32 %v478, 0.5
        %v871 = vmul.f32 %v480, 0.5
        %v872 = vmul.f32 %v395, 0.5
        %v873 = vmul.f32 %v397, 0.5
        %v874 = vmul.f32 %v484, 0.5
        %v875 = vmul.f32 %v486, 0.5
        %v876 = vmul.f32 %v401, 0.5
        %v877 = vmul.f32 %v403, 0.5
        %v878 = vmul.f32 %v490, 0.5
        %v879 = vmul.f32 %v492, 0.5
        %v880 = vmul.f32 %v407, 0.5
        %v881 = vmul.f32 %v409, 0.5
        %v882 = vmul.f32 %v496, 0.5
        %v883 = vmul.f32 %v498, 0.5
        %v884 = vadd.f32 %v852, 1.0
        %v885 = vadd.f32 %v853, 1.0
        %v886 = vadd.f32 %v854, 1.0
        %v887 = vadd.f32 %v855, 1.0
        %v888 = vadd.f32 %v856, 1.0
        %v889 = vadd.f32 %v857, 1.0
        %v890 = vadd.f32 %v858, 1.0
        %v891 = vadd.f32 %v859, 1.0
        %v892 = vadd.f32 %v860, 1.0
        %v893 = vadd.f32 %v861, 1.0
        %v894 = vadd.f32 %v862, 1.0
        %v895 = vadd.f32 %v863, 1.0
        %v896 = vadd.f32 %v864, 1.0
        %v897 = vadd.f32 %v865, 1.0
        %v898 = vadd.f32 %v866, 1.0
        %v899 = vadd.f32 %v867, 1.0
        %v900 = vmul.f32 %v868, %v884
        %v901 = vmul.f32 %v869, %v885
        %v902 = vmul.f32 %v870, %v886
        %v903 = vmul.f32 %v871, %v887
        %v904 = vmul.f32 %v872, %v888
        %v905 = vmul.f32 %v873, %v889
        %v906 = vmul.f32 %v874, %v890
        %v907 = vmul.f32 %v875, %v891
        %v908 = vmul.f32 %v876, %v892
        %v909 = vmul.f32 %v877, %v893
        %v910 = vmul.f32 %v878, %v894
        %v911 = vmul.f32 %v879, %v895
        %v912 = vmul.f32 %v880, %v896
        %v913 = vmul.f32 %v881, %v897
        %v914 = vmul.f32 %v882, %v898
        %v915 = vmul.f32 %v883, %v899
        %916 = vst [vmem:[%s246] sm:$0xff] %v900
        %917 = vst [vmem:[%s246 + $0x8] sm:$0xff] %v901
        %918 = vst [vmem:[%s246 + $0x10] sm:$0xff] %v902
        %919 = vst [vmem:[%s246 + $0x18] sm:$0xff] %v903
        %920 = vst [vmem:[%s246 + $0x20] sm:$0xff] %v904
        %921 = vst [vmem:[%s246 + $0x28] sm:$0xff] %v905
        %922 = vst [vmem:[%s246 + $0x30] sm:$0xff] %v906
        %923 = vst [vmem:[%s246 + $0x38] sm:$0xff] %v907
        %924 = vst [vmem:[%s246 + $0x40] sm:$0xff] %v908
        %925 = vst [vmem:[%s246 + $0x48] sm:$0xff] %v909
        %926 = vst [vmem:[%s246 + $0x50] sm:$0xff] %v910
        %927 = vst [vmem:[%s246 + $0x58] sm:$0xff] %v911
        %928 = vst [vmem:[%s246 + $0x60] sm:$0xff] %v912
        %929 = vst [vmem:[%s246 + $0x68] sm:$0xff] %v913
        %930 = vst [vmem:[%s246 + $0x70] sm:$0xff] %v914
        %931 = vst [vmem:[%s246 + $0x78] sm:$0xff] %v915
        %s932 = sand.u32 %s90, 1
        %s933 = sand.u32 %s90, 1
        %s934 = smul.addr %s933, 128
        %s935 = scalar_lea.vmem [#allocation3], %s934
        // Predicated region
        $region56: #{encoder_forward.7} parent=50 // pred_check
          %p936 = pneg %p100
        $region57: #{encoder_forward.7} parent=50 // pred_check_branch
          %938 = sbr.rel (%p936) target = $region59
        $region58: #{encoder_forward.7} parent=50 // pred_region
          %s939 = smul.u32 4, %s14
          %s940 = smul.addr %s939, 8
          %s941 = scalar_lea.vmem %s3, %s940
          // Predicated region
          $region60: #{encoder_forward.7} parent=58 // pred_check
            _
          $region61: #{encoder_forward.7} parent=58 // pred_check_branch
            %943 = sbr.rel (0) target = $region63
          $region62: #{encoder_forward.7} parent=58 // pred_region
            // Predicated region
            $region64: #{encoder_forward.7} parent=62 // pred_check
              _
            $region65: #{encoder_forward.7} parent=62 // pred_check_branch
              %945 = sbr.rel (0) target = $region67
            $region66: #{encoder_forward.7} parent=62 // pred_region
              loop: start=0, step=1, limit=1
              $region68: #{encoder_forward.7} parent=66 // loop_pre_header
                _
              $region69: #{encoder_forward.7} parent=66 // loop_header
                %s947 = sphi 0, %s951
                %p948 = scmp.ge.s32.totalorder %s947, 1
                %s952 = sphi %s935, %s935
                %s953 = sphi %s941, %s941
              $region70: #{encoder_forward.7} parent=66 // loop_header_branch
                %950 = sbr.rel (%p948) target = $region74
              $region71: #{encoder_forward.7} parent=66 // loop_body
                %v954 = vld [vmem:[%s952] sm:$0xff]
                %955 = vst [vmem:[%s953] sm:$0xff] %v954
                %v956 = vld [vmem:[%s952 + $0x8] sm:$0xff]
                %957 = vst [vmem:[%s953 + $0x8] sm:$0xff] %v956
                %v958 = vld [vmem:[%s952 + $0x10] sm:$0xff]
                %959 = vst [vmem:[%s953 + $0x10] sm:$0xff] %v958
                %v960 = vld [vmem:[%s952 + $0x18] sm:$0xff]
                %961 = vst [vmem:[%s953 + $0x18] sm:$0xff] %v960
                %v962 = vld [vmem:[%s952 + $0x20] sm:$0xff]
                %963 = vst [vmem:[%s953 + $0x40] sm:$0xff] %v962
                %v964 = vld [vmem:[%s952 + $0x28] sm:$0xff]
                %965 = vst [vmem:[%s953 + $0x48] sm:$0xff] %v964
                %v966 = vld [vmem:[%s952 + $0x30] sm:$0xff]
                %967 = vst [vmem:[%s953 + $0x50] sm:$0xff] %v966
                %v968 = vld [vmem:[%s952 + $0x38] sm:$0xff]
                %969 = vst [vmem:[%s953 + $0x58] sm:$0xff] %v968
                %v970 = vld [vmem:[%s952 + $0x40] sm:$0xff]
                %971 = vst [vmem:[%s953 + $0x80] sm:$0xff] %v970
                %v972 = vld [vmem:[%s952 + $0x48] sm:$0xff]
                %973 = vst [vmem:[%s953 + $0x88] sm:$0xff] %v972
                %v974 = vld [vmem:[%s952 + $0x50] sm:$0xff]
                %975 = vst [vmem:[%s953 + $0x90] sm:$0xff] %v974
                %v976 = vld [vmem:[%s952 + $0x58] sm:$0xff]
                %977 = vst [vmem:[%s953 + $0x98] sm:$0xff] %v976
                %v978 = vld [vmem:[%s952 + $0x60] sm:$0xff]
                %979 = vst [vmem:[%s953 + $0xc0] sm:$0xff] %v978
                %v980 = vld [vmem:[%s952 + $0x68] sm:$0xff]
                %981 = vst [vmem:[%s953 + $0xc8] sm:$0xff] %v980
                %v982 = vld [vmem:[%s952 + $0x70] sm:$0xff]
                %983 = vst [vmem:[%s953 + $0xd0] sm:$0xff] %v982
                %v984 = vld [vmem:[%s952 + $0x78] sm:$0xff]
                %985 = vst [vmem:[%s953 + $0xd8] sm:$0xff] %v984
              $region72: #{encoder_forward.7} parent=66 // loop_footer
                %s951 = sadd.s32 1, %s947
              $region73: #{encoder_forward.7} parent=66 // loop_footer_branch
                %946 = sbr.rel target = $region69
              $region74: #{encoder_forward.7} parent=66 // loop_exit
                _
            $region67: #{encoder_forward.7} parent=62 // pred_fallthru
              _
            // Predicated region
            $region75: #{encoder_forward.7} parent=62 // pred_check
              _
            $region76: #{encoder_forward.7} parent=62 // pred_check_branch
              %987 = sbr.rel target = $region78
            $region77: #{encoder_forward.7} parent=62 // pred_region
              _
            $region78: #{encoder_forward.7} parent=62 // pred_fallthru
              _
          $region63: #{encoder_forward.7} parent=58 // pred_fallthru
            _
          %988 = vnop
        $region59: #{encoder_forward.7} parent=50 // pred_fallthru
          _
      $region51: #{encoder_forward.7} parent=5 // pred_fallthru
        _
      %p989 = scmp.le.s32.totalorder 2, %s9
      // Predicated region
      $region79: #{encoder_forward.7} parent=5 // pred_check
        %p990 = pneg %p989
      $region80: #{encoder_forward.7} parent=5 // pred_check_branch
        %992 = sbr.rel (%p990) target = $region82
      $region81: #{encoder_forward.7} parent=5 // pred_region
        %s993 = ssub.s32 %s9, 2
        // Predicated region
        $region83: #{encoder_forward.7} parent=81 // pred_check
          %p994 = pneg %p106
        $region84: #{encoder_forward.7} parent=81 // pred_check_branch
          %996 = sbr.rel (%p994) target = $region86
        $region85: #{encoder_forward.7} parent=81 // pred_region
          %s997 = sand.u32 %s91, 1
          %s998 = sand.u32 %s91, 1
          %s999 = smul.addr %s998, 128
          %s1000 = scalar_lea.vmem [#allocation3], %s999
        $region86: #{encoder_forward.7} parent=81 // pred_fallthru
          _
      $region82: #{encoder_forward.7} parent=5 // pred_fallthru
        _
    $region6: #{encoder_forward.7} parent=1 // loop_footer
      %s13 = sadd.s32 1, %s9
    $region7: #{encoder_forward.7} parent=1 // loop_footer_branch
      %8 = sbr.rel target = $region3
    $region8: #{encoder_forward.7} parent=1 // loop_exit
      _

// kernel: encoder_forward.8
$region0: #{encoder_forward.8}
  #allocation0 [shape = 'u32[]', space=smem, size = 0x4, offset = 0x4, fixed_abs, tag = 'smem constant byte address 0x4 - core index']
  #allocation1 [shape = 'u32[144,128]{1,0:T(1,128)}', space=vmem, size = 0x12000, scoped, tag = 'internal scratch']
  %s0 = inlined_call_operand.vmem [shape: f32[4,128,256], index: 0, kind: input, shape index: {}]
  %s1 = inlined_call_operand.vmem [shape: f32[64,128], index: 1, kind: input, shape index: {}]
  %s2 = inlined_call_operand.vmem [shape: f32[64,1], index: 2, kind: input, shape index: {}]
  %s3 = inlined_call_operand.vmem [shape: f32[64,256], index: 3, kind: output, shape index: {}]
  %s4 = sld [smem:[#allocation0]]
  $region22: #{encoder_forward.8} parent=0
    _
  %s6 = ssub.s32 1, %s4
  %s7 = scalar_select 0, %s6, %s4
  // Predicated region
  $region2: #{encoder_forward.8} parent=0 // pred_check
    _
  $region3: #{encoder_forward.8} parent=0 // pred_check_branch
    %9 = sbr.rel (0) target = $region5
  $region4: #{encoder_forward.8} parent=0 // pred_region
    _
  $region5: #{encoder_forward.8} parent=0 // pred_fallthru
    _
  // Predicated region
  $region6: #{encoder_forward.8} parent=0 // pred_check
    _
  $region7: #{encoder_forward.8} parent=0 // pred_check_branch
    %11 = sbr.rel (0) target = $region9
  $region8: #{encoder_forward.8} parent=0 // pred_region
    _
  $region9: #{encoder_forward.8} parent=0 // pred_fallthru
    _
  // Predicated region
  $region10: #{encoder_forward.8} parent=0 // pred_check
    _
  $region11: #{encoder_forward.8} parent=0 // pred_check_branch
    %13 = sbr.rel (0) target = $region13
  $region12: #{encoder_forward.8} parent=0 // pred_region
    _
  $region13: #{encoder_forward.8} parent=0 // pred_fallthru
    _
  %v14 = vld [vmem:[%s1] sm:$0xff]
  %v15 = vld [vmem:[%s1 + $0x8] sm:$0xff]
  %v16 = vld [vmem:[%s1 + $0x10] sm:$0xff]
  %v17 = vld [vmem:[%s1 + $0x18] sm:$0xff]
  %v18 = vld [vmem:[%s1 + $0x20] sm:$0xff]
  %v19 = vld [vmem:[%s1 + $0x28] sm:$0xff]
  %v20 = vld [vmem:[%s1 + $0x30] sm:$0xff]
  %v21 = vld [vmem:[%s1 + $0x38] sm:$0xff]
  %v22 = vld [vmem:[%s2] sm:$0xff]
  %v23 = vld [vmem:[%s2 + $0x8] sm:$0xff]
  %v24 = vld [vmem:[%s2 + $0x10] sm:$0xff]
  %v25 = vld [vmem:[%s2 + $0x18] sm:$0xff]
  %v26 = vld [vmem:[%s2 + $0x20] sm:$0xff]
  %v27 = vld [vmem:[%s2 + $0x28] sm:$0xff]
  %v28 = vld [vmem:[%s2 + $0x30] sm:$0xff]
  %v29 = vld [vmem:[%s2 + $0x38] sm:$0xff]
  %v30 = vld [vmem:[%s0] sm:$0xff]
  %v31 = vld [vmem:[%s0 + $0x8] sm:$0xff]
  %v32 = vld [vmem:[%s0 + $0x10] sm:$0xff]
  %v33 = vld [vmem:[%s0 + $0x18] sm:$0xff]
  %v34 = vld [vmem:[%s0 + $0x20] sm:$0xff]
  %v35 = vld [vmem:[%s0 + $0x28] sm:$0xff]
  %v36 = vld [vmem:[%s0 + $0x30] sm:$0xff]
  %v37 = vld [vmem:[%s0 + $0x38] sm:$0xff]
  %v38 = vld [vmem:[%s0 + $0x40] sm:$0xff]
  %v39 = vld [vmem:[%s0 + $0x48] sm:$0xff]
  %v40 = vld [vmem:[%s0 + $0x50] sm:$0xff]
  %v41 = vld [vmem:[%s0 + $0x58] sm:$0xff]
  %v42 = vld [vmem:[%s0 + $0x60] sm:$0xff]
  %v43 = vld [vmem:[%s0 + $0x68] sm:$0xff]
  %v44 = vld [vmem:[%s0 + $0x70] sm:$0xff]
  %v45 = vld [vmem:[%s0 + $0x78] sm:$0xff]
  %v46 = vld [vmem:[%s0 + $0x80] sm:$0xff]
  %v47 = vld [vmem:[%s0 + $0x88] sm:$0xff]
  %v48 = vld [vmem:[%s0 + $0x90] sm:$0xff]
  %v49 = vld [vmem:[%s0 + $0x98] sm:$0xff]
  %v50 = vld [vmem:[%s0 + $0xa0] sm:$0xff]
  %v51 = vld [vmem:[%s0 + $0xa8] sm:$0xff]
  %v52 = vld [vmem:[%s0 + $0xb0] sm:$0xff]
  %v53 = vld [vmem:[%s0 + $0xb8] sm:$0xff]
  %v54 = vld [vmem:[%s0 + $0xc0] sm:$0xff]
  %v55 = vld [vmem:[%s0 + $0xc8] sm:$0xff]
  %v56 = vld [vmem:[%s0 + $0xd0] sm:$0xff]
  %v57 = vld [vmem:[%s0 + $0xd8] sm:$0xff]
  %v58 = vld [vmem:[%s0 + $0xe0] sm:$0xff]
  %v59 = vld [vmem:[%s0 + $0xe8] sm:$0xff]
  %v60 = vld [vmem:[%s0 + $0xf0] sm:$0xff]
  %v61 = vld [vmem:[%s0 + $0xf8] sm:$0xff]
  %63 = vset.pattern.permute.xlu0 0
  %64 = vperm.xlu0 %63, %v22
  %v65 = vpop.permute.xlu0 %64
  %68 = vset.pattern.permute.xlu0 0
  %69 = vperm.xlu0 %68, %v23
  %v70 = vpop.permute.xlu0 %69
  %73 = vset.pattern.permute.xlu0 0
  %74 = vperm.xlu0 %73, %v24
  %v75 = vpop.permute.xlu0 %74
  %78 = vset.pattern.permute.xlu0 0
  %79 = vperm.xlu0 %78, %v25
  %v80 = vpop.permute.xlu0 %79
  %83 = vset.pattern.permute.xlu0 0
  %84 = vperm.xlu0 %83, %v26
  %v85 = vpop.permute.xlu0 %84
  %88 = vset.pattern.permute.xlu0 0
  %89 = vperm.xlu0 %88, %v27
  %v90 = vpop.permute.xlu0 %89
  %93 = vset.pattern.permute.xlu0 0
  %94 = vperm.xlu0 %93, %v28
  %v95 = vpop.permute.xlu0 %94
  %98 = vset.pattern.permute.xlu0 0
  %99 = vperm.xlu0 %98, %v29
  %v100 = vpop.permute.xlu0 %99
  %102 = vmatprep.subr.mxu0 %v61
  %103 = vmatpush1.msra.mxu0 %v60
  %104 = vmatprep.subr.mxu0 %v59
  %105 = vmatpush1.msra.mxu0 %v58
  %106 = vmatprep.subr.mxu0 %v57
  %107 = vmatpush1.msra.mxu0 %v56
  %108 = vmatprep.subr.mxu0 %v55
  %109 = vmatpush1.msra.mxu0 %v54
  %110 = vmatprep.subr.mxu0 %v53
  %111 = vmatpush1.msra.mxu0 %v52
  %112 = vmatprep.subr.mxu0 %v51
  %113 = vmatpush1.msra.mxu0 %v50
  %114 = vmatprep.subr.mxu0 %v49
  %115 = vmatpush1.msra.mxu0 %v48
  %116 = vmatprep.subr.mxu0 %v47
  %117 = vmatpush1.msra.mxu0 %v46
  %118 = vmatprep.subr.mxu0 %v45
  %119 = vmatpush1.msra.mxu0 %v44
  %120 = vmatprep.subr.mxu0 %v43
  %121 = vmatpush1.msra.mxu0 %v42
  %122 = vmatprep.subr.mxu0 %v41
  %123 = vmatpush1.msra.mxu0 %v40
  %124 = vmatprep.subr.mxu0 %v39
  %125 = vmatpush1.msra.mxu0 %v38
  %126 = vmatprep.subr.mxu0 %v37
  %127 = vmatpush1.msra.mxu0 %v36
  %128 = vmatprep.subr.mxu0 %v35
  %129 = vmatpush1.msra.mxu0 %v34
  %130 = vmatprep.subr.mxu0 %v33
  %131 = vmatpush1.msra.mxu0 %v32
  %132 = vmatprep.subr.mxu0 %v31
  %133 = vmatpush1.msra.mxu0 %v30
  %134 = vmatprep.subr.mxu0 0.0
  %135 = vmatpush2.msra.mxu0 0.0
  %136 = vmatprep.subr.mxu0 0.0
  %137 = vmatpush2.msra.mxu0 0.0
  %138 = vmatprep.subr.mxu0 0.0
  %139 = vmatpush2.msra.mxu0 0.0
  %140 = vmatprep.subr.mxu0 0.0
  %141 = vmatpush2.msra.mxu0 0.0
  %142 = vmatprep.subr.mxu0 0.0
  %143 = vmatpush2.msra.mxu0 0.0
  %144 = vmatprep.subr.mxu0 0.0
  %145 = vmatpush2.msra.mxu0 0.0
  %146 = vmatprep.subr.mxu0 0.0
  %147 = vmatpush2.msra.mxu0 0.0
  %148 = vmatprep.subr.mxu0 0.0
  %149 = vmatpush2.msra.mxu0 0.0
  %150 = vmatprep.subr.mxu0 0.0
  %151 = vmatpush2.msra.mxu0 0.0
  %152 = vmatprep.subr.mxu0 0.0
  %153 = vmatpush2.msra.mxu0 0.0
  %154 = vmatprep.subr.mxu0 0.0
  %155 = vmatpush2.msra.mxu0 0.0
  %156 = vmatprep.subr.mxu0 0.0
  %157 = vmatpush2.msra.mxu0 0.0
  %158 = vmatprep.subr.mxu0 0.0
  %159 = vmatpush2.msra.mxu0 0.0
  %160 = vmatprep.subr.mxu0 0.0
  %161 = vmatpush2.msra.mxu0 0.0
  %162 = vmatprep.subr.mxu0 0.0
  %163 = vmatpush2.msra.mxu0 0.0
  %164 = vmatprep.subr.mxu0 0.0
  %165 = vmatpush2.msra.mxu0 0.0
  %166 = vmatprep.mubr.f32.mxu0 0.0
  %167 = vmatmul.mubr.f32.gmra.mxu0 %v14
  %v168 = vpop.f32.mrf.mxu0
  %v169 = vadd.f32 %v65, %v168
  %v170 = vpop.f32.mrf.mxu0
  %v171 = vadd.f32 %v65, %v170
  %172 = vmatprep.mubr.f32.mxu0 0.0
  %173 = vmatmul.mubr.f32.gmra.mxu0 %v15
  %v174 = vpop.f32.mrf.mxu0
  %v175 = vadd.f32 %v70, %v174
  %v176 = vpop.f32.mrf.mxu0
  %v177 = vadd.f32 %v70, %v176
  %178 = vmatprep.mubr.f32.mxu0 0.0
  %179 = vmatmul.mubr.f32.gmra.mxu0 %v16
  %v180 = vpop.f32.mrf.mxu0
  %v181 = vadd.f32 %v75, %v180
  %v182 = vpop.f32.mrf.mxu0
  %v183 = vadd.f32 %v75, %v182
  %184 = vmatprep.mubr.f32.mxu0 0.0
  %185 = vmatmul.mubr.f32.gmra.mxu0 %v17
  %v186 = vpop.f32.mrf.mxu0
  %v187 = vadd.f32 %v80, %v186
  %v188 = vpop.f32.mrf.mxu0
  %v189 = vadd.f32 %v80, %v188
  %190 = vmatprep.mubr.f32.mxu0 0.0
  %191 = vmatmul.mubr.f32.gmra.mxu0 %v18
  %v192 = vpop.f32.mrf.mxu0
  %v193 = vadd.f32 %v85, %v192
  %v194 = vpop.f32.mrf.mxu0
  %v195 = vadd.f32 %v85, %v194
  %196 = vmatprep.mubr.f32.mxu0 0.0
  %197 = vmatmul.mubr.f32.gmra.mxu0 %v19
  %v198 = vpop.f32.mrf.mxu0
  %v199 = vadd.f32 %v90, %v198
  %v200 = vpop.f32.mrf.mxu0
  %v201 = vadd.f32 %v90, %v200
  %202 = vmatprep.mubr.f32.mxu0 0.0
  %203 = vmatmul.mubr.f32.gmra.mxu0 %v20
  %v204 = vpop.f32.mrf.mxu0
  %v205 = vadd.f32 %v95, %v204
  %v206 = vpop.f32.mrf.mxu0
  %v207 = vadd.f32 %v95, %v206
  %208 = vmatprep.mubr.f32.mxu0 0.0
  %209 = vmatmul.mubr.f32.gmra.mxu0 %v21
  %v210 = vpop.f32.mrf.mxu0
  %v211 = vadd.f32 %v100, %v210
  %v212 = vpop.f32.mrf.mxu0
  %v213 = vadd.f32 %v100, %v212
  %214 = vdwg.mxu0
  %v215 = vmul.f32 %v169, 0.70710677
  %v216 = vmul.f32 %v171, 0.70710677
  %v217 = vmul.f32 %v175, 0.70710677
  %v218 = vmul.f32 %v177, 0.70710677
  %v219 = vmul.f32 %v181, 0.70710677
  %v220 = vmul.f32 %v183, 0.70710677
  %v221 = vmul.f32 %v187, 0.70710677
  %v222 = vmul.f32 %v189, 0.70710677
  %v223 = vmul.f32 %v193, 0.70710677
  %v224 = vmul.f32 %v195, 0.70710677
  %v225 = vmul.f32 %v199, 0.70710677
  %v226 = vmul.f32 %v201, 0.70710677
  %v227 = vmul.f32 %v205, 0.70710677
  %v228 = vmul.f32 %v207, 0.70710677
  %v229 = vmul.f32 %v211, 0.70710677
  %v230 = vmul.f32 %v213, 0.70710677
  %vm231 = vcmp.ge.f32.partialorder %v215, 0.0
  %vm232 = vcmp.ge.f32.partialorder %v216, 0.0
  %vm233 = vcmp.ge.f32.partialorder %v217, 0.0
  %vm234 = vcmp.ge.f32.partialorder %v218, 0.0
  %vm235 = vcmp.ge.f32.partialorder %v219, 0.0
  %vm236 = vcmp.ge.f32.partialorder %v220, 0.0
  %vm237 = vcmp.ge.f32.partialorder %v221, 0.0
  %vm238 = vcmp.ge.f32.partialorder %v222, 0.0
  %vm239 = vcmp.ge.f32.partialorder %v223, 0.0
  %vm240 = vcmp.ge.f32.partialorder %v224, 0.0
  %vm241 = vcmp.ge.f32.partialorder %v225, 0.0
  %vm242 = vcmp.ge.f32.partialorder %v226, 0.0
  %vm243 = vcmp.ge.f32.partialorder %v227, 0.0
  %vm244 = vcmp.ge.f32.partialorder %v228, 0.0
  %vm245 = vcmp.ge.f32.partialorder %v229, 0.0
  %vm246 = vcmp.ge.f32.partialorder %v230, 0.0
  %v247 = vsel %vm231, 1.0, -1.0
  %v248 = vsel %vm232, 1.0, -1.0
  %v249 = vsel %vm233, 1.0, -1.0
  %v250 = vsel %vm234, 1.0, -1.0
  %v251 = vsel %vm235, 1.0, -1.0
  %v252 = vsel %vm236, 1.0, -1.0
  %v253 = vsel %vm237, 1.0, -1.0
  %v254 = vsel %vm238, 1.0, -1.0
  %v255 = vsel %vm239, 1.0, -1.0
  %v256 = vsel %vm240, 1.0, -1.0
  %v257 = vsel %vm241, 1.0, -1.0
  %v258 = vsel %vm242, 1.0, -1.0
  %v259 = vsel %vm243, 1.0, -1.0
  %v260 = vsel %vm244, 1.0, -1.0
  %v261 = vsel %vm245, 1.0, -1.0
  %v262 = vsel %vm246, 1.0, -1.0
  %v263 = vand.u32 2147483647, %v215
  %v264 = vand.u32 2147483647, %v216
  %v265 = vand.u32 2147483647, %v217
  %v266 = vand.u32 2147483647, %v218
  %v267 = vand.u32 2147483647, %v219
  %v268 = vand.u32 2147483647, %v220
  %v269 = vand.u32 2147483647, %v221
  %v270 = vand.u32 2147483647, %v222
  %v271 = vand.u32 2147483647, %v223
  %v272 = vand.u32 2147483647, %v224
  %v273 = vand.u32 2147483647, %v225
  %v274 = vand.u32 2147483647, %v226
  %v275 = vand.u32 2147483647, %v227
  %v276 = vand.u32 2147483647, %v228
  %v277 = vand.u32 2147483647, %v229
  %v278 = vand.u32 2147483647, %v230
  %v279 = vmul.f32 %v263, 0.3275911
  %v280 = vmul.f32 %v264, 0.3275911
  %v281 = vmul.f32 %v265, 0.3275911
  %v282 = vmul.f32 %v266, 0.3275911
  %v283 = vmul.f32 %v267, 0.3275911
  %v284 = vmul.f32 %v268, 0.3275911
  %v285 = vmul.f32 %v269, 0.3275911
  %v286 = vmul.f32 %v270, 0.3275911
  %v287 = vmul.f32 %v271, 0.3275911
  %v288 = vmul.f32 %v272, 0.3275911
  %v289 = vmul.f32 %v273, 0.3275911
  %v290 = vmul.f32 %v274, 0.3275911
  %v291 = vmul.f32 %v275, 0.3275911
  %v292 = vmul.f32 %v276, 0.3275911
  %v293 = vmul.f32 %v277, 0.3275911
  %v294 = vmul.f32 %v278, 0.3275911
  %v295 = vadd.f32 %v279, 1.0
  %v296 = vadd.f32 %v280, 1.0
  %v297 = vadd.f32 %v281, 1.0
  %v298 = vadd.f32 %v282, 1.0
  %v299 = vadd.f32 %v283, 1.0
  %v300 = vadd.f32 %v284, 1.0
  %v301 = vadd.f32 %v285, 1.0
  %v302 = vadd.f32 %v286, 1.0
  %v303 = vadd.f32 %v287, 1.0
  %v304 = vadd.f32 %v288, 1.0
  %v305 = vadd.f32 %v289, 1.0
  %v306 = vadd.f32 %v290, 1.0
  %v307 = vadd.f32 %v291, 1.0
  %v308 = vadd.f32 %v292, 1.0
  %v309 = vadd.f32 %v293, 1.0
  %v310 = vadd.f32 %v294, 1.0
  %v311 = vrcp.pop %v295
  %v312 = vrcp.pop %v296
  %v313 = vrcp.pop %v297
  %v314 = vrcp.pop %v298
  %v315 = vrcp.pop %v299
  %v316 = vrcp.pop %v300
  %v317 = vrcp.pop %v301
  %v318 = vrcp.pop %v302
  %v319 = vrcp.pop %v303
  %v320 = vrcp.pop %v304
  %v321 = vrcp.pop %v305
  %v322 = vrcp.pop %v306
  %v323 = vrcp.pop %v307
  %v324 = vrcp.pop %v308
  %v325 = vrcp.pop %v309
  %v326 = vrcp.pop %v310
  %v327 = vmul.f32 %v311, 1.0614054
  %v328 = vmul.f32 %v312, 1.0614054
  %v329 = vmul.f32 %v313, 1.0614054
  %v330 = vmul.f32 %v314, 1.0614054
  %v331 = vmul.f32 %v315, 1.0614054
  %v332 = vmul.f32 %v316, 1.0614054
  %v333 = vmul.f32 %v317, 1.0614054
  %v334 = vmul.f32 %v318, 1.0614054
  %v335 = vmul.f32 %v319, 1.0614054
  %v336 = vmul.f32 %v320, 1.0614054
  %v337 = vmul.f32 %v321, 1.0614054
  %v338 = vmul.f32 %v322, 1.0614054
  %v339 = vmul.f32 %v323, 1.0614054
  %v340 = vmul.f32 %v324, 1.0614054
  %v341 = vmul.f32 %v325, 1.0614054
  %v342 = vmul.f32 %v326, 1.0614054
  %v343 = vadd.f32 %v327, -1.4531521
  %v344 = vadd.f32 %v328, -1.4531521
  %v345 = vadd.f32 %v329, -1.4531521
  %v346 = vadd.f32 %v330, -1.4531521
  %v347 = vadd.f32 %v331, -1.4531521
  %v348 = vadd.f32 %v332, -1.4531521
  %v349 = vadd.f32 %v333, -1.4531521
  %v350 = vadd.f32 %v334, -1.4531521
  %v351 = vadd.f32 %v335, -1.4531521
  %v352 = vadd.f32 %v336, -1.4531521
  %v353 = vadd.f32 %v337, -1.4531521
  %v354 = vadd.f32 %v338, -1.4531521
  %v355 = vadd.f32 %v339, -1.4531521
  %v356 = vadd.f32 %v340, -1.4531521
  %v357 = vadd.f32 %v341, -1.4531521
  %v358 = vadd.f32 %v342, -1.4531521
  %v359 = vmul.f32 %v343, %v311
  %v360 = vmul.f32 %v344, %v312
  %v361 = vmul.f32 %v345, %v313
  %v362 = vmul.f32 %v346, %v314
  %v363 = vmul.f32 %v347, %v315
  %v364 = vmul.f32 %v348, %v316
  %v365 = vmul.f32 %v349, %v317
  %v366 = vmul.f32 %v350, %v318
  %v367 = vmul.f32 %v351, %v319
  %v368 = vmul.f32 %v352, %v320
  %v369 = vmul.f32 %v353, %v321
  %v370 = vmul.f32 %v354, %v322
  %v371 = vmul.f32 %v355, %v323
  %v372 = vmul.f32 %v356, %v324
  %v373 = vmul.f32 %v357, %v325
  %v374 = vmul.f32 %v358, %v326
  %v375 = vadd.f32 %v359, 1.4214138
  %v376 = vadd.f32 %v360, 1.4214138
  %v377 = vadd.f32 %v361, 1.4214138
  %v378 = vadd.f32 %v362, 1.4214138
  %v379 = vadd.f32 %v363, 1.4214138
  %v380 = vadd.f32 %v364, 1.4214138
  %v381 = vadd.f32 %v365, 1.4214138
  %v382 = vadd.f32 %v366, 1.4214138
  %v383 = vadd.f32 %v367, 1.4214138
  %v384 = vadd.f32 %v368, 1.4214138
  %v385 = vadd.f32 %v369, 1.4214138
  %v386 = vadd.f32 %v370, 1.4214138
  %v387 = vadd.f32 %v371, 1.4214138
  %v388 = vadd.f32 %v372, 1.4214138
  %v389 = vadd.f32 %v373, 1.4214138
  %v390 = vadd.f32 %v374, 1.4214138
  %v391 = vmul.f32 %v375, %v311
  %v392 = vmul.f32 %v376, %v312
  %v393 = vmul.f32 %v377, %v313
  %v394 = vmul.f32 %v378, %v314
  %v395 = vmul.f32 %v379, %v315
  %v396 = vmul.f32 %v380, %v316
  %v397 = vmul.f32 %v381, %v317
  %v398 = vmul.f32 %v382, %v318
  %v399 = vmul.f32 %v383, %v319
  %v400 = vmul.f32 %v384, %v320
  %v401 = vmul.f32 %v385, %v321
  %v402 = vmul.f32 %v386, %v322
  %v403 = vmul.f32 %v387, %v323
  %v404 = vmul.f32 %v388, %v324
  %v405 = vmul.f32 %v389, %v325
  %v406 = vmul.f32 %v390, %v326
  %v407 = vadd.f32 %v391, -0.28449672
  %v408 = vadd.f32 %v392, -0.28449672
  %v409 = vadd.f32 %v393, -0.28449672
  %v410 = vadd.f32 %v394, -0.28449672
  %v411 = vadd.f32 %v395, -0.28449672
  %v412 = vadd.f32 %v396, -0.28449672
  %v413 = vadd.f32 %v397, -0.28449672
  %v414 = vadd.f32 %v398, -0.28449672
  %v415 = vadd.f32 %v399, -0.28449672
  %v416 = vadd.f32 %v400, -0.28449672
  %v417 = vadd.f32 %v401, -0.28449672
  %v418 = vadd.f32 %v402, -0.28449672
  %v419 = vadd.f32 %v403, -0.28449672
  %v420 = vadd.f32 %v404, -0.28449672
  %v421 = vadd.f32 %v405, -0.28449672
  %v422 = vadd.f32 %v406, -0.28449672
  %v423 = vmul.f32 %v407, %v311
  %v424 = vmul.f32 %v408, %v312
  %v425 = vmul.f32 %v409, %v313
  %v426 = vmul.f32 %v410, %v314
  %v427 = vmul.f32 %v411, %v315
  %v428 = vmul.f32 %v412, %v316
  %v429 = vmul.f32 %v413, %v317
  %v430 = vmul.f32 %v414, %v318
  %v431 = vmul.f32 %v415, %v319
  %v432 = vmul.f32 %v416, %v320
  %v433 = vmul.f32 %v417, %v321
  %v434 = vmul.f32 %v418, %v322
  %v435 = vmul.f32 %v419, %v323
  %v436 = vmul.f32 %v420, %v324
  %v437 = vmul.f32 %v421, %v325
  %v438 = vmul.f32 %v422, %v326
  %v439 = vadd.f32 %v423, 0.2548296
  %v440 = vadd.f32 %v424, 0.2548296
  %v441 = vadd.f32 %v425, 0.2548296
  %v442 = vadd.f32 %v426, 0.2548296
  %v443 = vadd.f32 %v427, 0.2548296
  %v444 = vadd.f32 %v428, 0.2548296
  %v445 = vadd.f32 %v429, 0.2548296
  %v446 = vadd.f32 %v430, 0.2548296
  %v447 = vadd.f32 %v431, 0.2548296
  %v448 = vadd.f32 %v432, 0.2548296
  %v449 = vadd.f32 %v433, 0.2548296
  %v450 = vadd.f32 %v434, 0.2548296
  %v451 = vadd.f32 %v435, 0.2548296
  %v452 = vadd.f32 %v436, 0.2548296
  %v453 = vadd.f32 %v437, 0.2548296
  %v454 = vadd.f32 %v438, 0.2548296
  %v455 = vmul.f32 %v439, %v311
  %v456 = vmul.f32 %v440, %v312
  %v457 = vmul.f32 %v441, %v313
  %v458 = vmul.f32 %v442, %v314
  %v459 = vmul.f32 %v443, %v315
  %v460 = vmul.f32 %v444, %v316
  %v461 = vmul.f32 %v445, %v317
  %v462 = vmul.f32 %v446, %v318
  %v463 = vmul.f32 %v447, %v319
  %v464 = vmul.f32 %v448, %v320
  %v465 = vmul.f32 %v449, %v321
  %v466 = vmul.f32 %v450, %v322
  %v467 = vmul.f32 %v451, %v323
  %v468 = vmul.f32 %v452, %v324
  %v469 = vmul.f32 %v453, %v325
  %v470 = vmul.f32 %v454, %v326
  %v471 = vsub.f32 0.0, %v263
  %v472 = vsub.f32 0.0, %v264
  %v473 = vsub.f32 0.0, %v265
  %v474 = vsub.f32 0.0, %v266
  %v475 = vsub.f32 0.0, %v267
  %v476 = vsub.f32 0.0, %v268
  %v477 = vsub.f32 0.0, %v269
  %v478 = vsub.f32 0.0, %v270
  %v479 = vsub.f32 0.0, %v271
  %v480 = vsub.f32 0.0, %v272
  %v481 = vsub.f32 0.0, %v273
  %v482 = vsub.f32 0.0, %v274
  %v483 = vsub.f32 0.0, %v275
  %v484 = vsub.f32 0.0, %v276
  %v485 = vsub.f32 0.0, %v277
  %v486 = vsub.f32 0.0, %v278
  %v487 = vmul.f32 %v471, %v263
  %v488 = vmul.f32 %v472, %v264
  %v489 = vmul.f32 %v473, %v265
  %v490 = vmul.f32 %v474, %v266
  %v491 = vmul.f32 %v475, %v267
  %v492 = vmul.f32 %v476, %v268
  %v493 = vmul.f32 %v477, %v269
  %v494 = vmul.f32 %v478, %v270
  %v495 = vmul.f32 %v479, %v271
  %v496 = vmul.f32 %v480, %v272
  %v497 = vmul.f32 %v481, %v273
  %v498 = vmul.f32 %v482, %v274
  %v499 = vmul.f32 %v483, %v275
  %v500 = vmul.f32 %v484, %v276
  %v501 = vmul.f32 %v485, %v277
  %v502 = vmul.f32 %v486, %v278
  %v503 = vmul.f32 %v487, 1.442695
  %v504 = vpow.pop %v503
  %v505 = vmul.f32 %v488, 1.442695
  %v506 = vpow.pop %v505
  %v507 = vmul.f32 %v489, 1.442695
  %v508 = vpow.pop %v507
  %v509 = vmul.f32 %v490, 1.442695
  %v510 = vpow.pop %v509
  %v511 = vmul.f32 %v491, 1.442695
  %v512 = vpow.pop %v511
  %v513 = vmul.f32 %v492, 1.442695
  %v514 = vpow.pop %v513
  %v515 = vmul.f32 %v493, 1.442695
  %v516 = vpow.pop %v515
  %v517 = vmul.f32 %v494, 1.442695
  %v518 = vpow.pop %v517
  %v519 = vmul.f32 %v495, 1.442695
  %v520 = vpow.pop %v519
  %v521 = vmul.f32 %v496, 1.442695
  %v522 = vpow.pop %v521
  %v523 = vmul.f32 %v497, 1.442695
  %v524 = vpow.pop %v523
  %v525 = vmul.f32 %v498, 1.442695
  %v526 = vpow.pop %v525
  %v527 = vmul.f32 %v499, 1.442695
  %v528 = vpow.pop %v527
  %v529 = vmul.f32 %v500, 1.442695
  %v530 = vpow.pop %v529
  %v531 = vmul.f32 %v501, 1.442695
  %v532 = vpow.pop %v531
  %v533 = vmul.f32 %v502, 1.442695
  %v534 = vpow.pop %v533
  %v535 = vmul.f32 %v455, %v504
  %v536 = vmul.f32 %v456, %v506
  %v537 = vmul.f32 %v457, %v508
  %v538 = vmul.f32 %v458, %v510
  %v539 = vmul.f32 %v459, %v512
  %v540 = vmul.f32 %v460, %v514
  %v541 = vmul.f32 %v461, %v516
  %v542 = vmul.f32 %v462, %v518
  %v543 = vmul.f32 %v463, %v520
  %v544 = vmul.f32 %v464, %v522
  %v545 = vmul.f32 %v465, %v524
  %v546 = vmul.f32 %v466, %v526
  %v547 = vmul.f32 %v467, %v528
  %v548 = vmul.f32 %v468, %v530
  %v549 = vmul.f32 %v469, %v532
  %v550 = vmul.f32 %v470, %v534
  %v551 = vsub.f32 1.0, %v535
  %v552 = vsub.f32 1.0, %v536
  %v553 = vsub.f32 1.0, %v537
  %v554 = vsub.f32 1.0, %v538
  %v555 = vsub.f32 1.0, %v539
  %v556 = vsub.f32 1.0, %v540
  %v557 = vsub.f32 1.0, %v541
  %v558 = vsub.f32 1.0, %v542
  %v559 = vsub.f32 1.0, %v543
  %v560 = vsub.f32 1.0, %v544
  %v561 = vsub.f32 1.0, %v545
  %v562 = vsub.f32 1.0, %v546
  %v563 = vsub.f32 1.0, %v547
  %v564 = vsub.f32 1.0, %v548
  %v565 = vsub.f32 1.0, %v549
  %v566 = vsub.f32 1.0, %v550
  %v567 = vmul.f32 %v247, %v551
  %v568 = vmul.f32 %v248, %v552
  %v569 = vmul.f32 %v249, %v553
  %v570 = vmul.f32 %v250, %v554
  %v571 = vmul.f32 %v251, %v555
  %v572 = vmul.f32 %v252, %v556
  %v573 = vmul.f32 %v253, %v557
  %v574 = vmul.f32 %v254, %v558
  %v575 = vmul.f32 %v255, %v559
  %v576 = vmul.f32 %v256, %v560
  %v577 = vmul.f32 %v257, %v561
  %v578 = vmul.f32 %v258, %v562
  %v579 = vmul.f32 %v259, %v563
  %v580 = vmul.f32 %v260, %v564
  %v581 = vmul.f32 %v261, %v565
  %v582 = vmul.f32 %v262, %v566
  %v583 = vmul.f32 %v169, 0.5
  %v584 = vmul.f32 %v171, 0.5
  %v585 = vmul.f32 %v175, 0.5
  %v586 = vmul.f32 %v177, 0.5
  %v587 = vmul.f32 %v181, 0.5
  %v588 = vmul.f32 %v183, 0.5
  %v589 = vmul.f32 %v187, 0.5
  %v590 = vmul.f32 %v189, 0.5
  %v591 = vmul.f32 %v193, 0.5
  %v592 = vmul.f32 %v195, 0.5
  %v593 = vmul.f32 %v199, 0.5
  %v594 = vmul.f32 %v201, 0.5
  %v595 = vmul.f32 %v205, 0.5
  %v596 = vmul.f32 %v207, 0.5
  %v597 = vmul.f32 %v211, 0.5
  %v598 = vmul.f32 %v213, 0.5
  %v599 = vadd.f32 %v567, 1.0
  %v600 = vadd.f32 %v568, 1.0
  %v601 = vadd.f32 %v569, 1.0
  %v602 = vadd.f32 %v570, 1.0
  %v603 = vadd.f32 %v571, 1.0
  %v604 = vadd.f32 %v572, 1.0
  %v605 = vadd.f32 %v573, 1.0
  %v606 = vadd.f32 %v574, 1.0
  %v607 = vadd.f32 %v575, 1.0
  %v608 = vadd.f32 %v576, 1.0
  %v609 = vadd.f32 %v577, 1.0
  %v610 = vadd.f32 %v578, 1.0
  %v611 = vadd.f32 %v579, 1.0
  %v612 = vadd.f32 %v580, 1.0
  %v613 = vadd.f32 %v581, 1.0
  %v614 = vadd.f32 %v582, 1.0
  %v615 = vmul.f32 %v583, %v599
  %v616 = vmul.f32 %v584, %v600
  %v617 = vmul.f32 %v585, %v601
  %v618 = vmul.f32 %v586, %v602
  %v619 = vmul.f32 %v587, %v603
  %v620 = vmul.f32 %v588, %v604
  %v621 = vmul.f32 %v589, %v605
  %v622 = vmul.f32 %v590, %v606
  %v623 = vmul.f32 %v591, %v607
  %v624 = vmul.f32 %v592, %v608
  %v625 = vmul.f32 %v593, %v609
  %v626 = vmul.f32 %v594, %v610
  %v627 = vmul.f32 %v595, %v611
  %v628 = vmul.f32 %v596, %v612
  %v629 = vmul.f32 %v597, %v613
  %v630 = vmul.f32 %v598, %v614
  %s631 = scalar_lea.vmem %s0, 256
  %v632 = vld [vmem:[%s631] sm:$0xff]
  %v633 = vld [vmem:[%s631 + $0x8] sm:$0xff]
  %v634 = vld [vmem:[%s631 + $0x10] sm:$0xff]
  %v635 = vld [vmem:[%s631 + $0x18] sm:$0xff]
  %v636 = vld [vmem:[%s631 + $0x20] sm:$0xff]
  %v637 = vld [vmem:[%s631 + $0x28] sm:$0xff]
  %v638 = vld [vmem:[%s631 + $0x30] sm:$0xff]
  %v639 = vld [vmem:[%s631 + $0x38] sm:$0xff]
  %v640 = vld [vmem:[%s631 + $0x40] sm:$0xff]
  %v641 = vld [vmem:[%s631 + $0x48] sm:$0xff]
  %v642 = vld [vmem:[%s631 + $0x50] sm:$0xff]
  %v643 = vld [vmem:[%s631 + $0x58] sm:$0xff]
  %v644 = vld [vmem:[%s631 + $0x60] sm:$0xff]
  %v645 = vld [vmem:[%s631 + $0x68] sm:$0xff]
  %v646 = vld [vmem:[%s631 + $0x70] sm:$0xff]
  %v647 = vld [vmem:[%s631 + $0x78] sm:$0xff]
  %v648 = vld [vmem:[%s631 + $0x80] sm:$0xff]
  %v649 = vld [vmem:[%s631 + $0x88] sm:$0xff]
  %v650 = vld [vmem:[%s631 + $0x90] sm:$0xff]
  %v651 = vld [vmem:[%s631 + $0x98] sm:$0xff]
  %v652 = vld [vmem:[%s631 + $0xa0] sm:$0xff]
  %v653 = vld [vmem:[%s631 + $0xa8] sm:$0xff]
  %v654 = vld [vmem:[%s631 + $0xb0] sm:$0xff]
  %v655 = vld [vmem:[%s631 + $0xb8] sm:$0xff]
  %v656 = vld [vmem:[%s631 + $0xc0] sm:$0xff]
  %v657 = vld [vmem:[%s631 + $0xc8] sm:$0xff]
  %v658 = vld [vmem:[%s631 + $0xd0] sm:$0xff]
  %v659 = vld [vmem:[%s631 + $0xd8] sm:$0xff]
  %v660 = vld [vmem:[%s631 + $0xe0] sm:$0xff]
  %v661 = vld [vmem:[%s631 + $0xe8] sm:$0xff]
  %v662 = vld [vmem:[%s631 + $0xf0] sm:$0xff]
  %v663 = vld [vmem:[%s631 + $0xf8] sm:$0xff]
  %664 = vmatprep.subr.mxu0 %v663
  %665 = vmatpush1.msra.mxu0 %v662
  %666 = vmatprep.subr.mxu0 %v661
  %667 = vmatpush1.msra.mxu0 %v660
  %668 = vmatprep.subr.mxu0 %v659
  %669 = vmatpush1.msra.mxu0 %v658
  %670 = vmatprep.subr.mxu0 %v657
  %671 = vmatpush1.msra.mxu0 %v656
  %672 = vmatprep.subr.mxu0 %v655
  %673 = vmatpush1.msra.mxu0 %v654
  %674 = vmatprep.subr.mxu0 %v653
  %675 = vmatpush1.msra.mxu0 %v652
  %676 = vmatprep.subr.mxu0 %v651
  %677 = vmatpush1.msra.mxu0 %v650
  %678 = vmatprep.subr.mxu0 %v649
  %679 = vmatpush1.msra.mxu0 %v648
  %680 = vmatprep.subr.mxu0 %v647
  %681 = vmatpush1.msra.mxu0 %v646
  %682 = vmatprep.subr.mxu0 %v645
  %683 = vmatpush1.msra.mxu0 %v644
  %684 = vmatprep.subr.mxu0 %v643
  %685 = vmatpush1.msra.mxu0 %v642
  %686 = vmatprep.subr.mxu0 %v641
  %687 = vmatpush1.msra.mxu0 %v640
  %688 = vmatprep.subr.mxu0 %v639
  %689 = vmatpush1.msra.mxu0 %v638
  %690 = vmatprep.subr.mxu0 %v637
  %691 = vmatpush1.msra.mxu0 %v636
  %692 = vmatprep.subr.mxu0 %v635
  %693 = vmatpush1.msra.mxu0 %v634
  %694 = vmatprep.subr.mxu0 %v633
  %695 = vmatpush1.msra.mxu0 %v632
  %696 = vmatprep.subr.mxu0 0.0
  %697 = vmatpush2.msra.mxu0 0.0
  %698 = vmatprep.subr.mxu0 0.0
  %699 = vmatpush2.msra.mxu0 0.0
  %700 = vmatprep.subr.mxu0 0.0
  %701 = vmatpush2.msra.mxu0 0.0
  %702 = vmatprep.subr.mxu0 0.0
  %703 = vmatpush2.msra.mxu0 0.0
  %704 = vmatprep.subr.mxu0 0.0
  %705 = vmatpush2.msra.mxu0 0.0
  %706 = vmatprep.subr.mxu0 0.0
  %707 = vmatpush2.msra.mxu0 0.0
  %708 = vmatprep.subr.mxu0 0.0
  %709 = vmatpush2.msra.mxu0 0.0
  %710 = vmatprep.subr.mxu0 0.0
  %711 = vmatpush2.msra.mxu0 0.0
  %712 = vmatprep.subr.mxu0 0.0
  %713 = vmatpush2.msra.mxu0 0.0
  %714 = vmatprep.subr.mxu0 0.0
  %715 = vmatpush2.msra.mxu0 0.0
  %716 = vmatprep.subr.mxu0 0.0
  %717 = vmatpush2.msra.mxu0 0.0
  %718 = vmatprep.subr.mxu0 0.0
  %719 = vmatpush2.msra.mxu0 0.0
  %720 = vmatprep.subr.mxu0 0.0
  %721 = vmatpush2.msra.mxu0 0.0
  %722 = vmatprep.subr.mxu0 0.0
  %723 = vmatpush2.msra.mxu0 0.0
  %724 = vmatprep.subr.mxu0 0.0
  %725 = vmatpush2.msra.mxu0 0.0
  %726 = vmatprep.subr.mxu0 0.0
  %727 = vmatpush2.msra.mxu0 0.0
  %728 = vmatprep.mubr.f32.mxu0 0.0
  %729 = vmatmul.mubr.f32.gmra.mxu0 %v14
  %v730 = vpop.f32.mrf.mxu0
  %v731 = vadd.f32 %v65, %v730
  %v732 = vpop.f32.mrf.mxu0
  %v733 = vadd.f32 %v65, %v732
  %734 = vmatprep.mubr.f32.mxu0 0.0
  %735 = vmatmul.mubr.f32.gmra.mxu0 %v15
  %v736 = vpop.f32.mrf.mxu0
  %v737 = vadd.f32 %v70, %v736
  %v738 = vpop.f32.mrf.mxu0
  %v739 = vadd.f32 %v70, %v738
  %740 = vmatprep.mubr.f32.mxu0 0.0
  %741 = vmatmul.mubr.f32.gmra.mxu0 %v16
  %v742 = vpop.f32.mrf.mxu0
  %v743 = vadd.f32 %v75, %v742
  %v744 = vpop.f32.mrf.mxu0
  %v745 = vadd.f32 %v75, %v744
  %746 = vmatprep.mubr.f32.mxu0 0.0
  %747 = vmatmul.mubr.f32.gmra.mxu0 %v17
  %v748 = vpop.f32.mrf.mxu0
  %v749 = vadd.f32 %v80, %v748
  %v750 = vpop.f32.mrf.mxu0
  %v751 = vadd.f32 %v80, %v750
  %752 = vmatprep.mubr.f32.mxu0 0.0
  %753 = vmatmul.mubr.f32.gmra.mxu0 %v18
  %v754 = vpop.f32.mrf.mxu0
  %v755 = vadd.f32 %v85, %v754
  %v756 = vpop.f32.mrf.mxu0
  %v757 = vadd.f32 %v85, %v756
  %758 = vmatprep.mubr.f32.mxu0 0.0
  %759 = vmatmul.mubr.f32.gmra.mxu0 %v19
  %v760 = vpop.f32.mrf.mxu0
  %v761 = vadd.f32 %v90, %v760
  %v762 = vpop.f32.mrf.mxu0
  %v763 = vadd.f32 %v90, %v762
  %764 = vmatprep.mubr.f32.mxu0 0.0
  %765 = vmatmul.mubr.f32.gmra.mxu0 %v20
  %v766 = vpop.f32.mrf.mxu0
  %v767 = vadd.f32 %v95, %v766
  %v768 = vpop.f32.mrf.mxu0
  %v769 = vadd.f32 %v95, %v768
  %770 = vmatprep.mubr.f32.mxu0 0.0
  %771 = vmatmul.mubr.f32.gmra.mxu0 %v21
  %v772 = vpop.f32.mrf.mxu0
  %v773 = vadd.f32 %v100, %v772
  %v774 = vpop.f32.mrf.mxu0
  %v775 = vadd.f32 %v100, %v774
  %776 = vdwg.mxu0
  %v777 = vmul.f32 %v731, 0.70710677
  %v778 = vmul.f32 %v733, 0.70710677
  %v779 = vmul.f32 %v737, 0.70710677
  %v780 = vmul.f32 %v739, 0.70710677
  %v781 = vmul.f32 %v743, 0.70710677
  %v782 = vmul.f32 %v745, 0.70710677
  %v783 = vmul.f32 %v749, 0.70710677
  %v784 = vmul.f32 %v751, 0.70710677
  %v785 = vmul.f32 %v755, 0.70710677
  %v786 = vmul.f32 %v757, 0.70710677
  %v787 = vmul.f32 %v761, 0.70710677
  %v788 = vmul.f32 %v763, 0.70710677
  %v789 = vmul.f32 %v767, 0.70710677
  %v790 = vmul.f32 %v769, 0.70710677
  %v791 = vmul.f32 %v773, 0.70710677
  %v792 = vmul.f32 %v775, 0.70710677
  %vm793 = vcmp.ge.f32.partialorder %v777, 0.0
  %vm794 = vcmp.ge.f32.partialorder %v778, 0.0
  %vm795 = vcmp.ge.f32.partialorder %v779, 0.0
  %vm796 = vcmp.ge.f32.partialorder %v780, 0.0
  %vm797 = vcmp.ge.f32.partialorder %v781, 0.0
  %vm798 = vcmp.ge.f32.partialorder %v782, 0.0
  %vm799 = vcmp.ge.f32.partialorder %v783, 0.0
  %vm800 = vcmp.ge.f32.partialorder %v784, 0.0
  %vm801 = vcmp.ge.f32.partialorder %v785, 0.0
  %vm802 = vcmp.ge.f32.partialorder %v786, 0.0
  %vm803 = vcmp.ge.f32.partialorder %v787, 0.0
  %vm804 = vcmp.ge.f32.partialorder %v788, 0.0
  %vm805 = vcmp.ge.f32.partialorder %v789, 0.0
  %vm806 = vcmp.ge.f32.partialorder %v790, 0.0
  %vm807 = vcmp.ge.f32.partialorder %v791, 0.0
  %vm808 = vcmp.ge.f32.partialorder %v792, 0.0
  %v809 = vsel %vm793, 1.0, -1.0
  %v810 = vsel %vm794, 1.0, -1.0
  %v811 = vsel %vm795, 1.0, -1.0
  %v812 = vsel %vm796, 1.0, -1.0
  %v813 = vsel %vm797, 1.0, -1.0
  %v814 = vsel %vm798, 1.0, -1.0
  %v815 = vsel %vm799, 1.0, -1.0
  %v816 = vsel %vm800, 1.0, -1.0
  %v817 = vsel %vm801, 1.0, -1.0
  %v818 = vsel %vm802, 1.0, -1.0
  %v819 = vsel %vm803, 1.0, -1.0
  %v820 = vsel %vm804, 1.0, -1.0
  %v821 = vsel %vm805, 1.0, -1.0
  %v822 = vsel %vm806, 1.0, -1.0
  %v823 = vsel %vm807, 1.0, -1.0
  %v824 = vsel %vm808, 1.0, -1.0
  %v825 = vand.u32 2147483647, %v777
  %v826 = vand.u32 2147483647, %v778
  %v827 = vand.u32 2147483647, %v779
  %v828 = vand.u32 2147483647, %v780
  %v829 = vand.u32 2147483647, %v781
  %v830 = vand.u32 2147483647, %v782
  %v831 = vand.u32 2147483647, %v783
  %v832 = vand.u32 2147483647, %v784
  %v833 = vand.u32 2147483647, %v785
  %v834 = vand.u32 2147483647, %v786
  %v835 = vand.u32 2147483647, %v787
  %v836 = vand.u32 2147483647, %v788
  %v837 = vand.u32 2147483647, %v789
  %v838 = vand.u32 2147483647, %v790
  %v839 = vand.u32 2147483647, %v791
  %v840 = vand.u32 2147483647, %v792
  %v841 = vmul.f32 %v825, 0.3275911
  %v842 = vmul.f32 %v826, 0.3275911
  %v843 = vmul.f32 %v827, 0.3275911
  %v844 = vmul.f32 %v828, 0.3275911
  %v845 = vmul.f32 %v829, 0.3275911
  %v846 = vmul.f32 %v830, 0.3275911
  %v847 = vmul.f32 %v831, 0.3275911
  %v848 = vmul.f32 %v832, 0.3275911
  %v849 = vmul.f32 %v833, 0.3275911
  %v850 = vmul.f32 %v834, 0.3275911
  %v851 = vmul.f32 %v835, 0.3275911
  %v852 = vmul.f32 %v836, 0.3275911
  %v853 = vmul.f32 %v837, 0.3275911
  %v854 = vmul.f32 %v838, 0.3275911
  %v855 = vmul.f32 %v839, 0.3275911
  %v856 = vmul.f32 %v840, 0.3275911
  %v857 = vadd.f32 %v841, 1.0
  %v858 = vadd.f32 %v842, 1.0
  %v859 = vadd.f32 %v843, 1.0
  %v860 = vadd.f32 %v844, 1.0
  %v861 = vadd.f32 %v845, 1.0
  %v862 = vadd.f32 %v846, 1.0
  %v863 = vadd.f32 %v847, 1.0
  %v864 = vadd.f32 %v848, 1.0
  %v865 = vadd.f32 %v849, 1.0
  %v866 = vadd.f32 %v850, 1.0
  %v867 = vadd.f32 %v851, 1.0
  %v868 = vadd.f32 %v852, 1.0
  %v869 = vadd.f32 %v853, 1.0
  %v870 = vadd.f32 %v854, 1.0
  %v871 = vadd.f32 %v855, 1.0
  %v872 = vadd.f32 %v856, 1.0
  %v873 = vrcp.pop %v857
  %v874 = vrcp.pop %v858
  %v875 = vrcp.pop %v859
  %v876 = vrcp.pop %v860
  %v877 = vrcp.pop %v861
  %v878 = vrcp.pop %v862
  %v879 = vrcp.pop %v863
  %v880 = vrcp.pop %v864
  %v881 = vrcp.pop %v865
  %v882 = vrcp.pop %v866
  %v883 = vrcp.pop %v867
  %v884 = vrcp.pop %v868
  %v885 = vrcp.pop %v869
  %v886 = vrcp.pop %v870
  %v887 = vrcp.pop %v871
  %v888 = vrcp.pop %v872
  %v889 = vmul.f32 %v873, 1.0614054
  %v890 = vmul.f32 %v874, 1.0614054
  %v891 = vmul.f32 %v875, 1.0614054
  %v892 = vmul.f32 %v876, 1.0614054
  %v893 = vmul.f32 %v877, 1.0614054
  %v894 = vmul.f32 %v878, 1.0614054
  %v895 = vmul.f32 %v879, 1.0614054
  %v896 = vmul.f32 %v880, 1.0614054
  %v897 = vmul.f32 %v881, 1.0614054
  %v898 = vmul.f32 %v882, 1.0614054
  %v899 = vmul.f32 %v883, 1.0614054
  %v900 = vmul.f32 %v884, 1.0614054
  %v901 = vmul.f32 %v885, 1.0614054
  %v902 = vmul.f32 %v886, 1.0614054
  %v903 = vmul.f32 %v887, 1.0614054
  %v904 = vmul.f32 %v888, 1.0614054
  %v905 = vadd.f32 %v889, -1.4531521
  %v906 = vadd.f32 %v890, -1.4531521
  %v907 = vadd.f32 %v891, -1.4531521
  %v908 = vadd.f32 %v892, -1.4531521
  %v909 = vadd.f32 %v893, -1.4531521
  %v910 = vadd.f32 %v894, -1.4531521
  %v911 = vadd.f32 %v895, -1.4531521
  %v912 = vadd.f32 %v896, -1.4531521
  %v913 = vadd.f32 %v897, -1.4531521
  %v914 = vadd.f32 %v898, -1.4531521
  %v915 = vadd.f32 %v899, -1.4531521
  %v916 = vadd.f32 %v900, -1.4531521
  %v917 = vadd.f32 %v901, -1.4531521
  %v918 = vadd.f32 %v902, -1.4531521
  %v919 = vadd.f32 %v903, -1.4531521
  %v920 = vadd.f32 %v904, -1.4531521
  %v921 = vmul.f32 %v905, %v873
  %v922 = vmul.f32 %v906, %v874
  %v923 = vmul.f32 %v907, %v875
  %v924 = vmul.f32 %v908, %v876
  %v925 = vmul.f32 %v909, %v877
  %v926 = vmul.f32 %v910, %v878
  %v927 = vmul.f32 %v911, %v879
  %v928 = vmul.f32 %v912, %v880
  %v929 = vmul.f32 %v913, %v881
  %v930 = vmul.f32 %v914, %v882
  %v931 = vmul.f32 %v915, %v883
  %v932 = vmul.f32 %v916, %v884
  %v933 = vmul.f32 %v917, %v885
  %v934 = vmul.f32 %v918, %v886
  %v935 = vmul.f32 %v919, %v887
  %v936 = vmul.f32 %v920, %v888
  %v937 = vadd.f32 %v921, 1.4214138
  %v938 = vadd.f32 %v922, 1.4214138
  %v939 = vadd.f32 %v923, 1.4214138
  %v940 = vadd.f32 %v924, 1.4214138
  %v941 = vadd.f32 %v925, 1.4214138
  %v942 = vadd.f32 %v926, 1.4214138
  %v943 = vadd.f32 %v927, 1.4214138
  %v944 = vadd.f32 %v928, 1.4214138
  %v945 = vadd.f32 %v929, 1.4214138
  %v946 = vadd.f32 %v930, 1.4214138
  %v947 = vadd.f32 %v931, 1.4214138
  %v948 = vadd.f32 %v932, 1.4214138
  %v949 = vadd.f32 %v933, 1.4214138
  %v950 = vadd.f32 %v934, 1.4214138
  %v951 = vadd.f32 %v935, 1.4214138
  %v952 = vadd.f32 %v936, 1.4214138
  %v953 = vmul.f32 %v937, %v873
  %v954 = vmul.f32 %v938, %v874
  %v955 = vmul.f32 %v939, %v875
  %v956 = vmul.f32 %v940, %v876
  %v957 = vmul.f32 %v941, %v877
  %v958 = vmul.f32 %v942, %v878
  %v959 = vmul.f32 %v943, %v879
  %v960 = vmul.f32 %v944, %v880
  %v961 = vmul.f32 %v945, %v881
  %v962 = vmul.f32 %v946, %v882
  %v963 = vmul.f32 %v947, %v883
  %v964 = vmul.f32 %v948, %v884
  %v965 = vmul.f32 %v949, %v885
  %v966 = vmul.f32 %v950, %v886
  %v967 = vmul.f32 %v951, %v887
  %v968 = vmul.f32 %v952, %v888
  %v969 = vadd.f32 %v953, -0.28449672
  %v970 = vadd.f32 %v954, -0.28449672
  %v971 = vadd.f32 %v955, -0.28449672
  %v972 = vadd.f32 %v956, -0.28449672
  %v973 = vadd.f32 %v957, -0.28449672
  %v974 = vadd.f32 %v958, -0.28449672
  %v975 = vadd.f32 %v959, -0.28449672
  %v976 = vadd.f32 %v960, -0.28449672
  %v977 = vadd.f32 %v961, -0.28449672
  %v978 = vadd.f32 %v962, -0.28449672
  %v979 = vadd.f32 %v963, -0.28449672
  %v980 = vadd.f32 %v964, -0.28449672
  %v981 = vadd.f32 %v965, -0.28449672
  %v982 = vadd.f32 %v966, -0.28449672
  %v983 = vadd.f32 %v967, -0.28449672
  %v984 = vadd.f32 %v968, -0.28449672
  %v985 = vmul.f32 %v969, %v873
  %v986 = vmul.f32 %v970, %v874
  %v987 = vmul.f32 %v971, %v875
  %v988 = vmul.f32 %v972, %v876
  %v989 = vmul.f32 %v973, %v877
  %v990 = vmul.f32 %v974, %v878
  %v991 = vmul.f32 %v975, %v879
  %v992 = vmul.f32 %v976, %v880
  %v993 = vmul.f32 %v977, %v881
  %v994 = vmul.f32 %v978, %v882
  %v995 = vmul.f32 %v979, %v883
  %v996 = vmul.f32 %v980, %v884
  %v997 = vmul.f32 %v981, %v885
  %v998 = vmul.f32 %v982, %v886
  %v999 = vmul.f32 %v983, %v887
  %v1000 = vmul.f32 %v984, %v888
  %v1001 = vadd.f32 %v985, 0.2548296
  %v1002 = vadd.f32 %v986, 0.2548296
  %v1003 = vadd.f32 %v987, 0.2548296
  %v1004 = vadd.f32 %v988, 0.2548296
  %v1005 = vadd.f32 %v989, 0.2548296
  %v1006 = vadd.f32 %v990, 0.2548296
  %v1007 = vadd.f32 %v991, 0.2548296
  %v1008 = vadd.f32 %v992, 0.2548296
  %v1009 = vadd.f32 %v993, 0.2548296
  %v1010 = vadd.f32 %v994, 0.2548296
  %v1011 = vadd.f32 %v995, 0.2548296
  %v1012 = vadd.f32 %v996, 0.2548296
  %v1013 = vadd.f32 %v997, 0.2548296
  %v1014 = vadd.f32 %v998, 0.2548296
  %v1015 = vadd.f32 %v999, 0.2548296
  %v1016 = vadd.f32 %v1000, 0.2548296
  %v1017 = vmul.f32 %v1001, %v873
  %v1018 = vmul.f32 %v1002, %v874
  %v1019 = vmul.f32 %v1003, %v875
  %v1020 = vmul.f32 %v1004, %v876
  %v1021 = vmul.f32 %v1005, %v877
  %v1022 = vmul.f32 %v1006, %v878
  %v1023 = vmul.f32 %v1007, %v879
  %v1024 = vmul.f32 %v1008, %v880
  %v1025 = vmul.f32 %v1009, %v881
  %v1026 = vmul.f32 %v1010, %v882
  %v1027 = vmul.f32 %v1011, %v883
  %v1028 = vmul.f32 %v1012, %v884
  %v1029 = vmul.f32 %v1013, %v885
  %v1030 = vmul.f32 %v1014, %v886
  %v1031 = vmul.f32 %v1015, %v887
  %v1032 = vmul.f32 %v1016, %v888
  %v1033 = vsub.f32 0.0, %v825
  %v1034 = vsub.f32 0.0, %v826
  %v1035 = vsub.f32 0.0, %v827
  %v1036 = vsub.f32 0.0, %v828
  %v1037 = vsub.f32 0.0, %v829
  %v1038 = vsub.f32 0.0, %v830
  %v1039 = vsub.f32 0.0, %v831
  %v1040 = vsub.f32 0.0, %v832
  %v1041 = vsub.f32 0.0, %v833
  %v1042 = vsub.f32 0.0, %v834
  %v1043 = vsub.f32 0.0, %v835
  %v1044 = vsub.f32 0.0, %v836
  %v1045 = vsub.f32 0.0, %v837
  %v1046 = vsub.f32 0.0, %v838
  %v1047 = vsub.f32 0.0, %v839
  %v1048 = vsub.f32 0.0, %v840
  %v1049 = vmul.f32 %v1033, %v825
  %v1050 = vmul.f32 %v1034, %v826
  %v1051 = vmul.f32 %v1035, %v827
  %v1052 = vmul.f32 %v1036, %v828
  %v1053 = vmul.f32 %v1037, %v829
  %v1054 = vmul.f32 %v1038, %v830
  %v1055 = vmul.f32 %v1039, %v831
  %v1056 = vmul.f32 %v1040, %v832
  %v1057 = vmul.f32 %v1041, %v833
  %v1058 = vmul.f32 %v1042, %v834
  %v1059 = vmul.f32 %v1043, %v835
  %v1060 = vmul.f32 %v1044, %v836
  %v1061 = vmul.f32 %v1045, %v837
  %v1062 = vmul.f32 %v1046, %v838
  %v1063 = vmul.f32 %v1047, %v839
  %v1064 = vmul.f32 %v1048, %v840
  %v1065 = vmul.f32 %v1049, 1.442695
  %v1066 = vpow.pop %v1065
  %v1067 = vmul.f32 %v1050, 1.442695
  %v1068 = vpow.pop %v1067
  %v1069 = vmul.f32 %v1051, 1.442695
  %v1070 = vpow.pop %v1069
  %v1071 = vmul.f32 %v1052, 1.442695
  %v1072 = vpow.pop %v1071
  %v1073 = vmul.f32 %v1053, 1.442695
  %v1074 = vpow.pop %v1073
  %v1075 = vmul.f32 %v1054, 1.442695
  %v1076 = vpow.pop %v1075
  %v1077 = vmul.f32 %v1055, 1.442695
  %v1078 = vpow.pop %v1077
  %v1079 = vmul.f32 %v1056, 1.442695
  %v1080 = vpow.pop %v1079
  %v1081 = vmul.f32 %v1057, 1.442695
  %v1082 = vpow.pop %v1081
  %v1083 = vmul.f32 %v1058, 1.442695
  %v1084 = vpow.pop %v1083
  %v1085 = vmul.f32 %v1059, 1.442695
  %v1086 = vpow.pop %v1085
  %v1087 = vmul.f32 %v1060, 1.442695
  %v1088 = vpow.pop %v1087
  %v1089 = vmul.f32 %v1061, 1.442695
  %v1090 = vpow.pop %v1089
  %v1091 = vmul.f32 %v1062, 1.442695
  %v1092 = vpow.pop %v1091
  %v1093 = vmul.f32 %v1063, 1.442695
  %v1094 = vpow.pop %v1093
  %v1095 = vmul.f32 %v1064, 1.442695
  %v1096 = vpow.pop %v1095
  %v1097 = vmul.f32 %v1017, %v1066
  %v1098 = vmul.f32 %v1018, %v1068
  %v1099 = vmul.f32 %v1019, %v1070
  %v1100 = vmul.f32 %v1020, %v1072
  %v1101 = vmul.f32 %v1021, %v1074
  %v1102 = vmul.f32 %v1022, %v1076
  %v1103 = vmul.f32 %v1023, %v1078
  %v1104 = vmul.f32 %v1024, %v1080
  %v1105 = vmul.f32 %v1025, %v1082
  %v1106 = vmul.f32 %v1026, %v1084
  %v1107 = vmul.f32 %v1027, %v1086
  %v1108 = vmul.f32 %v1028, %v1088
  %v1109 = vmul.f32 %v1029, %v1090
  %v1110 = vmul.f32 %v1030, %v1092
  %v1111 = vmul.f32 %v1031, %v1094
  %v1112 = vmul.f32 %v1032, %v1096
  %v1113 = vsub.f32 1.0, %v1097
  %v1114 = vsub.f32 1.0, %v1098
  %v1115 = vsub.f32 1.0, %v1099
  %v1116 = vsub.f32 1.0, %v1100
  %v1117 = vsub.f32 1.0, %v1101
  %v1118 = vsub.f32 1.0, %v1102
  %v1119 = vsub.f32 1.0, %v1103
  %v1120 = vsub.f32 1.0, %v1104
  %v1121 = vsub.f32 1.0, %v1105
  %v1122 = vsub.f32 1.0, %v1106
  %v1123 = vsub.f32 1.0, %v1107
  %v1124 = vsub.f32 1.0, %v1108
  %v1125 = vsub.f32 1.0, %v1109
  %v1126 = vsub.f32 1.0, %v1110
  %v1127 = vsub.f32 1.0, %v1111
  %v1128 = vsub.f32 1.0, %v1112
  %v1129 = vmul.f32 %v809, %v1113
  %v1130 = vmul.f32 %v810, %v1114
  %v1131 = vmul.f32 %v811, %v1115
  %v1132 = vmul.f32 %v812, %v1116
  %v1133 = vmul.f32 %v813, %v1117
  %v1134 = vmul.f32 %v814, %v1118
  %v1135 = vmul.f32 %v815, %v1119
  %v1136 = vmul.f32 %v816, %v1120
  %v1137 = vmul.f32 %v817, %v1121
  %v1138 = vmul.f32 %v818, %v1122
  %v1139 = vmul.f32 %v819, %v1123
  %v1140 = vmul.f32 %v820, %v1124
  %v1141 = vmul.f32 %v821, %v1125
  %v1142 = vmul.f32 %v822, %v1126
  %v1143 = vmul.f32 %v823, %v1127
  %v1144 = vmul.f32 %v824, %v1128
  %v1145 = vmul.f32 %v731, 0.5
  %v1146 = vmul.f32 %v733, 0.5
  %v1147 = vmul.f32 %v737, 0.5
  %v1148 = vmul.f32 %v739, 0.5
  %v1149 = vmul.f32 %v743, 0.5
  %v1150 = vmul.f32 %v745, 0.5
  %v1151 = vmul.f32 %v749, 0.5
  %v1152 = vmul.f32 %v751, 0.5
  %v1153 = vmul.f32 %v755, 0.5
  %v1154 = vmul.f32 %v757, 0.5
  %v1155 = vmul.f32 %v761, 0.5
  %v1156 = vmul.f32 %v763, 0.5
  %v1157 = vmul.f32 %v767, 0.5
  %v1158 = vmul.f32 %v769, 0.5
  %v1159 = vmul.f32 %v773, 0.5
  %v1160 = vmul.f32 %v775, 0.5
  %v1161 = vadd.f32 %v1129, 1.0
  %v1162 = vadd.f32 %v1130, 1.0
  %v1163 = vadd.f32 %v1131, 1.0
  %v1164 = vadd.f32 %v1132, 1.0
  %v1165 = vadd.f32 %v1133, 1.0
  %v1166 = vadd.f32 %v1134, 1.0
  %v1167 = vadd.f32 %v1135, 1.0
  %v1168 = vadd.f32 %v1136, 1.0
  %v1169 = vadd.f32 %v1137, 1.0
  %v1170 = vadd.f32 %v1138, 1.0
  %v1171 = vadd.f32 %v1139, 1.0
  %v1172 = vadd.f32 %v1140, 1.0
  %v1173 = vadd.f32 %v1141, 1.0
  %v1174 = vadd.f32 %v1142, 1.0
  %v1175 = vadd.f32 %v1143, 1.0
  %v1176 = vadd.f32 %v1144, 1.0
  %v1177 = vmul.f32 %v1145, %v1161
  %v1178 = vmul.f32 %v1146, %v1162
  %v1179 = vmul.f32 %v1147, %v1163
  %v1180 = vmul.f32 %v1148, %v1164
  %v1181 = vmul.f32 %v1149, %v1165
  %v1182 = vmul.f32 %v1150, %v1166
  %v1183 = vmul.f32 %v1151, %v1167
  %v1184 = vmul.f32 %v1152, %v1168
  %v1185 = vmul.f32 %v1153, %v1169
  %v1186 = vmul.f32 %v1154, %v1170
  %v1187 = vmul.f32 %v1155, %v1171
  %v1188 = vmul.f32 %v1156, %v1172
  %v1189 = vmul.f32 %v1157, %v1173
  %v1190 = vmul.f32 %v1158, %v1174
  %v1191 = vmul.f32 %v1159, %v1175
  %v1192 = vmul.f32 %v1160, %v1176
  %v1193 = vmax.f32 %v615, %v1177
  %v1194 = vmax.f32 %v616, %v1178
  %v1195 = vmax.f32 %v617, %v1179
  %v1196 = vmax.f32 %v618, %v1180
  %v1197 = vmax.f32 %v619, %v1181
  %v1198 = vmax.f32 %v620, %v1182
  %v1199 = vmax.f32 %v621, %v1183
  %v1200 = vmax.f32 %v622, %v1184
  %v1201 = vmax.f32 %v623, %v1185
  %v1202 = vmax.f32 %v624, %v1186
  %v1203 = vmax.f32 %v625, %v1187
  %v1204 = vmax.f32 %v626, %v1188
  %v1205 = vmax.f32 %v627, %v1189
  %v1206 = vmax.f32 %v628, %v1190
  %v1207 = vmax.f32 %v629, %v1191
  %v1208 = vmax.f32 %v630, %v1192
  %s1209 = scalar_lea.vmem %s0, 512
  %v1210 = vld [vmem:[%s1209] sm:$0xff]
  %v1211 = vld [vmem:[%s1209 + $0x8] sm:$0xff]
  %v1212 = vld [vmem:[%s1209 + $0x10] sm:$0xff]
  %v1213 = vld [vmem:[%s1209 + $0x18] sm:$0xff]
  %v1214 = vld [vmem:[%s1209 + $0x20] sm:$0xff]
  %v1215 = vld [vmem:[%s1209 + $0x28] sm:$0xff]
  %v1216 = vld [vmem:[%s1209 + $0x30] sm:$0xff]
  %v1217 = vld [vmem:[%s1209 + $0x38] sm:$0xff]
  %v1218 = vld [vmem:[%s1209 + $0x40] sm:$0xff]
  %v1219 = vld [vmem:[%s1209 + $0x48] sm:$0xff]
  %v1220 = vld [vmem:[%s1209 + $0x50] sm:$0xff]
  %v1221 = vld [vmem:[%s1209 + $0x58] sm:$0xff]
  %v1222 = vld [vmem:[%s1209 + $0x60] sm:$0xff]
  %v1223 = vld [vmem:[%s1209 + $0x68] sm:$0xff]
  %v1224 = vld [vmem:[%s1209 + $0x70] sm:$0xff]
  %v1225 = vld [vmem:[%s1209 + $0x78] sm:$0xff]
  %v1226 = vld [vmem:[%s1209 + $0x80] sm:$0xff]
  %v1227 = vld [vmem:[%s1209 + $0x88] sm:$0xff]
  %v1228 = vld [vmem:[%s1209 + $0x90] sm:$0xff]
  %v1229 = vld [vmem:[%s1209 + $0x98] sm:$0xff]
  %v1230 = vld [vmem:[%s1209 + $0xa0] sm:$0xff]
  %v1231 = vld [vmem:[%s1209 + $0xa8] sm:$0xff]
  %v1232 = vld [vmem:[%s1209 + $0xb0] sm:$0xff]
  %v1233 = vld [vmem:[%s1209 + $0xb8] sm:$0xff]
  %v1234 = vld [vmem:[%s1209 + $0xc0] sm:$0xff]
  %v1235 = vld [vmem:[%s1209 + $0xc8] sm:$0xff]
  %v1236 = vld [vmem:[%s1209 + $0xd0] sm:$0xff]
  %v1237 = vld [vmem:[%s1209 + $0xd8] sm:$0xff]
  %v1238 = vld [vmem:[%s1209 + $0xe0] sm:$0xff]
  %v1239 = vld [vmem:[%s1209 + $0xe8] sm:$0xff]
  %v1240 = vld [vmem:[%s1209 + $0xf0] sm:$0xff]
  %v1241 = vld [vmem:[%s1209 + $0xf8] sm:$0xff]
  %1242 = vmatprep.subr.mxu0 %v1241
  %1243 = vmatpush1.msra.mxu0 %v1240
  %1244 = vmatprep.subr.mxu0 %v1239
  %1245 = vmatpush1.msra.mxu0 %v1238
  %1246 = vmatprep.subr.mxu0 %v1237
  %1247 = vmatpush1.msra.mxu0 %v1236
  %1248 = vmatprep.subr.mxu0 %v1235
  %1249 = vmatpush1.msra.mxu0 %v1234
  %1250 = vmatprep.subr.mxu0 %v1233
  %1251 = vmatpush1.msra.mxu0 %v1232
  %1252 = vmatprep.subr.mxu0 %v1231
  %1253 = vmatpush1.msra.mxu0 %v1230
  %1254 = vmatprep.subr.mxu0 %v1229
  %1255 = vmatpush1.msra.mxu0 %v1228
  %1256 = vmatprep.subr.mxu0 %v1227
  %1257 = vmatpush1.msra.mxu0 %v1226
  %1258 = vmatprep.subr.mxu0 %v1225
  %1259 = vmatpush1.msra.mxu0 %v1224
  %1260 = vmatprep.subr.mxu0 %v1223
  %1261 = vmatpush1.msra.mxu0 %v1222
  %1262 = vmatprep.subr.mxu0 %v1221
  %1263 = vmatpush1.msra.mxu0 %v1220
  %1264 = vmatprep.subr.mxu0 %v1219
  %1265 = vmatpush1.msra.mxu0 %v1218
  %1266 = vmatprep.subr.mxu0 %v1217
  %1267 = vmatpush1.msra.mxu0 %v1216
  %1268 = vmatprep.subr.mxu0 %v1215
  %1269 = vmatpush1.msra.mxu0 %v1214
  %1270 = vmatprep.subr.mxu0 %v1213
  %1271 = vmatpush1.msra.mxu0 %v1212
  %1272 = vmatprep.subr.mxu0 %v1211
  %1273 = vmatpush1.msra.mxu0 %v1210
  %1274 = vmatprep.subr.mxu0 0.0
  %1275 = vmatpush2.msra.mxu0 0.0
  %1276 = vmatprep.subr.mxu0 0.0
  %1277 = vmatpush2.msra.mxu0 0.0
  %1278 = vmatprep.subr.mxu0 0.0
  %1279 = vmatpush2.msra.mxu0 0.0
  %1280 = vmatprep.subr.mxu0 0.0
  %1281 = vmatpush2.msra.mxu0 0.0
  %1282 = vmatprep.subr.mxu0 0.0
  %1283 = vmatpush2.msra.mxu0 0.0
  %1284 = vmatprep.subr.mxu0 0.0
  %1285 = vmatpush2.msra.mxu0 0.0
  %1286 = vmatprep.subr.mxu0 0.0
  %1287 = vmatpush2.msra.mxu0 0.0
  %1288 = vmatprep.subr.mxu0 0.0
  %1289 = vmatpush2.msra.mxu0 0.0
  %1290 = vmatprep.subr.mxu0 0.0
  %1291 = vmatpush2.msra.mxu0 0.0
  %1292 = vmatprep.subr.mxu0 0.0
  %1293 = vmatpush2.msra.mxu0 0.0
  %1294 = vmatprep.subr.mxu0 0.0
  %1295 = vmatpush2.msra.mxu0 0.0
  %1296 = vmatprep.subr.mxu0 0.0
  %1297 = vmatpush2.msra.mxu0 0.0
  %1298 = vmatprep.subr.mxu0 0.0
  %1299 = vmatpush2.msra.mxu0 0.0
  %1300 = vmatprep.subr.mxu0 0.0
  %1301 = vmatpush2.msra.mxu0 0.0
  %1302 = vmatprep.subr.mxu0 0.0
  %1303 = vmatpush2.msra.mxu0 0.0
  %1304 = vmatprep.subr.mxu0 0.0
  %1305 = vmatpush2.msra.mxu0 0.0
  %1306 = vmatprep.mubr.f32.mxu0 0.0
  %1307 = vmatmul.mubr.f32.gmra.mxu0 %v14
  %v1308 = vpop.f32.mrf.mxu0
  %v1309 = vadd.f32 %v65, %v1308
  %v1310 = vpop.f32.mrf.mxu0
  %v1311 = vadd.f32 %v65, %v1310
  %1312 = vmatprep.mubr.f32.mxu0 0.0
  %1313 = vmatmul.mubr.f32.gmra.mxu0 %v15
  %v1314 = vpop.f32.mrf.mxu0
  %v1315 = vadd.f32 %v70, %v1314
  %v1316 = vpop.f32.mrf.mxu0
  %v1317 = vadd.f32 %v70, %v1316
  %1318 = vmatprep.mubr.f32.mxu0 0.0
  %1319 = vmatmul.mubr.f32.gmra.mxu0 %v16
  %v1320 = vpop.f32.mrf.mxu0
  %v1321 = vadd.f32 %v75, %v1320
  %v1322 = vpop.f32.mrf.mxu0
  %v1323 = vadd.f32 %v75, %v1322
  %1324 = vmatprep.mubr.f32.mxu0 0.0
  %1325 = vmatmul.mubr.f32.gmra.mxu0 %v17
  %v1326 = vpop.f32.mrf.mxu0
  %v1327 = vadd.f32 %v80, %v1326
  %v1328 = vpop.f32.mrf.mxu0
  %v1329 = vadd.f32 %v80, %v1328
  %1330 = vmatprep.mubr.f32.mxu0 0.0
  %1331 = vmatmul.mubr.f32.gmra.mxu0 %v18
  %v1332 = vpop.f32.mrf.mxu0
  %v1333 = vadd.f32 %v85, %v1332
  %v1334 = vpop.f32.mrf.mxu0
  %v1335 = vadd.f32 %v85, %v1334
  %1336 = vmatprep.mubr.f32.mxu0 0.0
  %1337 = vmatmul.mubr.f32.gmra.mxu0 %v19
  %v1338 = vpop.f32.mrf.mxu0
  %v1339 = vadd.f32 %v90, %v1338
  %v1340 = vpop.f32.mrf.mxu0
  %v1341 = vadd.f32 %v90, %v1340
  %1342 = vmatprep.mubr.f32.mxu0 0.0
  %1343 = vmatmul.mubr.f32.gmra.mxu0 %v20
  %v1344 = vpop.f32.mrf.mxu0
  %v1345 = vadd.f32 %v95, %v1344
  %v1346 = vpop.f32.mrf.mxu0
  %v1347 = vadd.f32 %v95, %v1346
  %1348 = vmatprep.mubr.f32.mxu0 0.0
  %1349 = vmatmul.mubr.f32.gmra.mxu0 %v21
  %v1350 = vpop.f32.mrf.mxu0
  %v1351 = vadd.f32 %v100, %v1350
  %v1352 = vpop.f32.mrf.mxu0
  %v1353 = vadd.f32 %v100, %v1352
  %1354 = vdwg.mxu0
  %v1355 = vmul.f32 %v1309, 0.70710677
  %v1356 = vmul.f32 %v1311, 0.70710677
  %v1357 = vmul.f32 %v1315, 0.70710677
  %v1358 = vmul.f32 %v1317, 0.70710677
  %v1359 = vmul.f32 %v1321, 0.70710677
  %v1360 = vmul.f32 %v1323, 0.70710677
  %v1361 = vmul.f32 %v1327, 0.70710677
  %v1362 = vmul.f32 %v1329, 0.70710677
  %v1363 = vmul.f32 %v1333, 0.70710677
  %v1364 = vmul.f32 %v1335, 0.70710677
  %v1365 = vmul.f32 %v1339, 0.70710677
  %v1366 = vmul.f32 %v1341, 0.70710677
  %v1367 = vmul.f32 %v1345, 0.70710677
  %v1368 = vmul.f32 %v1347, 0.70710677
  %v1369 = vmul.f32 %v1351, 0.70710677
  %v1370 = vmul.f32 %v1353, 0.70710677
  %vm1371 = vcmp.ge.f32.partialorder %v1355, 0.0
  %vm1372 = vcmp.ge.f32.partialorder %v1356, 0.0
  %vm1373 = vcmp.ge.f32.partialorder %v1357, 0.0
  %vm1374 = vcmp.ge.f32.partialorder %v1358, 0.0
  %vm1375 = vcmp.ge.f32.partialorder %v1359, 0.0
  %vm1376 = vcmp.ge.f32.partialorder %v1360, 0.0
  %vm1377 = vcmp.ge.f32.partialorder %v1361, 0.0
  %vm1378 = vcmp.ge.f32.partialorder %v1362, 0.0
  %vm1379 = vcmp.ge.f32.partialorder %v1363, 0.0
  %vm1380 = vcmp.ge.f32.partialorder %v1364, 0.0
  %vm1381 = vcmp.ge.f32.partialorder %v1365, 0.0
  %vm1382 = vcmp.ge.f32.partialorder %v1366, 0.0
  %vm1383 = vcmp.ge.f32.partialorder %v1367, 0.0
  %vm1384 = vcmp.ge.f32.partialorder %v1368, 0.0
  %vm1385 = vcmp.ge.f32.partialorder %v1369, 0.0
  %vm1386 = vcmp.ge.f32.partialorder %v1370, 0.0
  %v1387 = vsel %vm1371, 1.0, -1.0
  %v1388 = vsel %vm1372, 1.0, -1.0
  %v1389 = vsel %vm1373, 1.0, -1.0
  %v1390 = vsel %vm1374, 1.0, -1.0
  %v1391 = vsel %vm1375, 1.0, -1.0
  %v1392 = vsel %vm1376, 1.0, -1.0
  %v1393 = vsel %vm1377, 1.0, -1.0
  %v1394 = vsel %vm1378, 1.0, -1.0
  %v1395 = vsel %vm1379, 1.0, -1.0
  %v1396 = vsel %vm1380, 1.0, -1.0
  %v1397 = vsel %vm1381, 1.0, -1.0
  %v1398 = vsel %vm1382, 1.0, -1.0
  %v1399 = vsel %vm1383, 1.0, -1.0
  %v1400 = vsel %vm1384, 1.0, -1.0
  %v1401 = vsel %vm1385, 1.0, -1.0
  %v1402 = vsel %vm1386, 1.0, -1.0
  %v1403 = vand.u32 2147483647, %v1355
  %v1404 = vand.u32 2147483647, %v1356
  %v1405 = vand.u32 2147483647, %v1357
  %v1406 = vand.u32 2147483647, %v1358
  %v1407 = vand.u32 2147483647, %v1359
  %v1408 = vand.u32 2147483647, %v1360
  %v1409 = vand.u32 2147483647, %v1361
  %v1410 = vand.u32 2147483647, %v1362
  %v1411 = vand.u32 2147483647, %v1363
  %v1412 = vand.u32 2147483647, %v1364
  %v1413 = vand.u32 2147483647, %v1365
  %v1414 = vand.u32 2147483647, %v1366
  %v1415 = vand.u32 2147483647, %v1367
  %v1416 = vand.u32 2147483647, %v1368
  %v1417 = vand.u32 2147483647, %v1369
  %v1418 = vand.u32 2147483647, %v1370
  %v1419 = vmul.f32 %v1403, 0.3275911
  %v1420 = vmul.f32 %v1404, 0.3275911
  %v1421 = vmul.f32 %v1405, 0.3275911
  %v1422 = vmul.f32 %v1406, 0.3275911
  %v1423 = vmul.f32 %v1407, 0.3275911
  %v1424 = vmul.f32 %v1408, 0.3275911
  %v1425 = vmul.f32 %v1409, 0.3275911
  %v1426 = vmul.f32 %v1410, 0.3275911
  %v1427 = vmul.f32 %v1411, 0.3275911
  %v1428 = vmul.f32 %v1412, 0.3275911
  %v1429 = vmul.f32 %v1413, 0.3275911
  %v1430 = vmul.f32 %v1414, 0.3275911
  %v1431 = vmul.f32 %v1415, 0.3275911
  %v1432 = vmul.f32 %v1416, 0.3275911
  %v1433 = vmul.f32 %v1417, 0.3275911
  %v1434 = vmul.f32 %v1418, 0.3275911
  %v1435 = vadd.f32 %v1419, 1.0
  %v1436 = vadd.f32 %v1420, 1.0
  %v1437 = vadd.f32 %v1421, 1.0
  %v1438 = vadd.f32 %v1422, 1.0
  %v1439 = vadd.f32 %v1423, 1.0
  %v1440 = vadd.f32 %v1424, 1.0
  %v1441 = vadd.f32 %v1425, 1.0
  %v1442 = vadd.f32 %v1426, 1.0
  %v1443 = vadd.f32 %v1427, 1.0
  %v1444 = vadd.f32 %v1428, 1.0
  %v1445 = vadd.f32 %v1429, 1.0
  %v1446 = vadd.f32 %v1430, 1.0
  %v1447 = vadd.f32 %v1431, 1.0
  %v1448 = vadd.f32 %v1432, 1.0
  %v1449 = vadd.f32 %v1433, 1.0
  %v1450 = vadd.f32 %v1434, 1.0
  %v1451 = vrcp.pop %v1435
  %v1452 = vrcp.pop %v1436
  %v1453 = vrcp.pop %v1437
  %v1454 = vrcp.pop %v1438
  %v1455 = vrcp.pop %v1439
  %v1456 = vrcp.pop %v1440
  %v1457 = vrcp.pop %v1441
  %v1458 = vrcp.pop %v1442
  %v1459 = vrcp.pop %v1443
  %v1460 = vrcp.pop %v1444
  %v1461 = vrcp.pop %v1445
  %v1462 = vrcp.pop %v1446
  %v1463 = vrcp.pop %v1447
  %v1464 = vrcp.pop %v1448
  %v1465 = vrcp.pop %v1449
  %v1466 = vrcp.pop %v1450
  %v1467 = vmul.f32 %v1451, 1.0614054
  %v1468 = vmul.f32 %v1452, 1.0614054
  %v1469 = vmul.f32 %v1453, 1.0614054
  %v1470 = vmul.f32 %v1454, 1.0614054
  %v1471 = vmul.f32 %v1455, 1.0614054
  %v1472 = vmul.f32 %v1456, 1.0614054
  %v1473 = vmul.f32 %v1457, 1.0614054
  %v1474 = vmul.f32 %v1458, 1.0614054
  %v1475 = vmul.f32 %v1459, 1.0614054
  %v1476 = vmul.f32 %v1460, 1.0614054
  %v1477 = vmul.f32 %v1461, 1.0614054
  %v1478 = vmul.f32 %v1462, 1.0614054
  %v1479 = vmul.f32 %v1463, 1.0614054
  %v1480 = vmul.f32 %v1464, 1.0614054
  %v1481 = vmul.f32 %v1465, 1.0614054
  %v1482 = vmul.f32 %v1466, 1.0614054
  %v1483 = vadd.f32 %v1467, -1.4531521
  %v1484 = vadd.f32 %v1468, -1.4531521
  %v1485 = vadd.f32 %v1469, -1.4531521
  %v1486 = vadd.f32 %v1470, -1.4531521
  %v1487 = vadd.f32 %v1471, -1.4531521
  %v1488 = vadd.f32 %v1472, -1.4531521
  %v1489 = vadd.f32 %v1473, -1.4531521
  %v1490 = vadd.f32 %v1474, -1.4531521
  %v1491 = vadd.f32 %v1475, -1.4531521
  %v1492 = vadd.f32 %v1476, -1.4531521
  %v1493 = vadd.f32 %v1477, -1.4531521
  %v1494 = vadd.f32 %v1478, -1.4531521
  %v1495 = vadd.f32 %v1479, -1.4531521
  %v1496 = vadd.f32 %v1480, -1.4531521
  %v1497 = vadd.f32 %v1481, -1.4531521
  %v1498 = vadd.f32 %v1482, -1.4531521
  %v1499 = vmul.f32 %v1483, %v1451
  %v1500 = vmul.f32 %v1484, %v1452
  %v1501 = vmul.f32 %v1485, %v1453
  %v1502 = vmul.f32 %v1486, %v1454
  %v1503 = vmul.f32 %v1487, %v1455
  %v1504 = vmul.f32 %v1488, %v1456
  %v1505 = vmul.f32 %v1489, %v1457
  %v1506 = vmul.f32 %v1490, %v1458
  %v1507 = vmul.f32 %v1491, %v1459
  %v1508 = vmul.f32 %v1492, %v1460
  %v1509 = vmul.f32 %v1493, %v1461
  %v1510 = vmul.f32 %v1494, %v1462
  %v1511 = vmul.f32 %v1495, %v1463
  %v1512 = vmul.f32 %v1496, %v1464
  %v1513 = vmul.f32 %v1497, %v1465
  %v1514 = vmul.f32 %v1498, %v1466
  %v1515 = vadd.f32 %v1499, 1.4214138
  %v1516 = vadd.f32 %v1500, 1.4214138
  %v1517 = vadd.f32 %v1501, 1.4214138
  %v1518 = vadd.f32 %v1502, 1.4214138
  %v1519 = vadd.f32 %v1503, 1.4214138
  %v1520 = vadd.f32 %v1504, 1.4214138
  %v1521 = vadd.f32 %v1505, 1.4214138
  %v1522 = vadd.f32 %v1506, 1.4214138
  %v1523 = vadd.f32 %v1507, 1.4214138
  %v1524 = vadd.f32 %v1508, 1.4214138
  %v1525 = vadd.f32 %v1509, 1.4214138
  %v1526 = vadd.f32 %v1510, 1.4214138
  %v1527 = vadd.f32 %v1511, 1.4214138
  %v1528 = vadd.f32 %v1512, 1.4214138
  %v1529 = vadd.f32 %v1513, 1.4214138
  %v1530 = vadd.f32 %v1514, 1.4214138
  %v1531 = vmul.f32 %v1515, %v1451
  %v1532 = vmul.f32 %v1516, %v1452
  %v1533 = vmul.f32 %v1517, %v1453
  %v1534 = vmul.f32 %v1518, %v1454
  %v1535 = vmul.f32 %v1519, %v1455
  %v1536 = vmul.f32 %v1520, %v1456
  %v1537 = vmul.f32 %v1521, %v1457
  %v1538 = vmul.f32 %v1522, %v1458
  %v1539 = vmul.f32 %v1523, %v1459
  %v1540 = vmul.f32 %v1524, %v1460
  %v1541 = vmul.f32 %v1525, %v1461
  %v1542 = vmul.f32 %v1526, %v1462
  %v1543 = vmul.f32 %v1527, %v1463
  %v1544 = vmul.f32 %v1528, %v1464
  %v1545 = vmul.f32 %v1529, %v1465
  %v1546 = vmul.f32 %v1530, %v1466
  %v1547 = vadd.f32 %v1531, -0.28449672
  %v1548 = vadd.f32 %v1532, -0.28449672
  %v1549 = vadd.f32 %v1533, -0.28449672
  %v1550 = vadd.f32 %v1534, -0.28449672
  %v1551 = vadd.f32 %v1535, -0.28449672
  %v1552 = vadd.f32 %v1536, -0.28449672
  %v1553 = vadd.f32 %v1537, -0.28449672
  %v1554 = vadd.f32 %v1538, -0.28449672
  %v1555 = vadd.f32 %v1539, -0.28449672
  %v1556 = vadd.f32 %v1540, -0.28449672
  %v1557 = vadd.f32 %v1541, -0.28449672
  %v1558 = vadd.f32 %v1542, -0.28449672
  %v1559 = vadd.f32 %v1543, -0.28449672
  %v1560 = vadd.f32 %v1544, -0.28449672
  %v1561 = vadd.f32 %v1545, -0.28449672
  %v1562 = vadd.f32 %v1546, -0.28449672
  %v1563 = vmul.f32 %v1547, %v1451
  %v1564 = vmul.f32 %v1548, %v1452
  %v1565 = vmul.f32 %v1549, %v1453
  %v1566 = vmul.f32 %v1550, %v1454
  %v1567 = vmul.f32 %v1551, %v1455
  %v1568 = vmul.f32 %v1552, %v1456
  %v1569 = vmul.f32 %v1553, %v1457
  %v1570 = vmul.f32 %v1554, %v1458
  %v1571 = vmul.f32 %v1555, %v1459
  %v1572 = vmul.f32 %v1556, %v1460
  %v1573 = vmul.f32 %v1557, %v1461
  %v1574 = vmul.f32 %v1558, %v1462
  %v1575 = vmul.f32 %v1559, %v1463
  %v1576 = vmul.f32 %v1560, %v1464
  %v1577 = vmul.f32 %v1561, %v1465
  %v1578 = vmul.f32 %v1562, %v1466
  %v1579 = vadd.f32 %v1563, 0.2548296
  %v1580 = vadd.f32 %v1564, 0.2548296
  %v1581 = vadd.f32 %v1565, 0.2548296
  %v1582 = vadd.f32 %v1566, 0.2548296
  %v1583 = vadd.f32 %v1567, 0.2548296
  %v1584 = vadd.f32 %v1568, 0.2548296
  %v1585 = vadd.f32 %v1569, 0.2548296
  %v1586 = vadd.f32 %v1570, 0.2548296
  %v1587 = vadd.f32 %v1571, 0.2548296
  %v1588 = vadd.f32 %v1572, 0.2548296
  %v1589 = vadd.f32 %v1573, 0.2548296
  %v1590 = vadd.f32 %v1574, 0.2548296
  %v1591 = vadd.f32 %v1575, 0.2548296
  %v1592 = vadd.f32 %v1576, 0.2548296
  %v1593 = vadd.f32 %v1577, 0.2548296
  %v1594 = vadd.f32 %v1578, 0.2548296
  %v1595 = vmul.f32 %v1579, %v1451
  %v1596 = vmul.f32 %v1580, %v1452
  %v1597 = vmul.f32 %v1581, %v1453
  %v1598 = vmul.f32 %v1582, %v1454
  %v1599 = vmul.f32 %v1583, %v1455
  %v1600 = vmul.f32 %v1584, %v1456
  %v1601 = vmul.f32 %v1585, %v1457
  %v1602 = vmul.f32 %v1586, %v1458
  %v1603 = vmul.f32 %v1587, %v1459
  %v1604 = vmul.f32 %v1588, %v1460
  %v1605 = vmul.f32 %v1589, %v1461
  %v1606 = vmul.f32 %v1590, %v1462
  %v1607 = vmul.f32 %v1591, %v1463
  %v1608 = vmul.f32 %v1592, %v1464
  %v1609 = vmul.f32 %v1593, %v1465
  %v1610 = vmul.f32 %v1594, %v1466
  %v1611 = vsub.f32 0.0, %v1403
  %v1612 = vsub.f32 0.0, %v1404
  %v1613 = vsub.f32 0.0, %v1405
  %v1614 = vsub.f32 0.0, %v1406
  %v1615 = vsub.f32 0.0, %v1407
  %v1616 = vsub.f32 0.0, %v1408
  %v1617 = vsub.f32 0.0, %v1409
  %v1618 = vsub.f32 0.0, %v1410
  %v1619 = vsub.f32 0.0, %v1411
  %v1620 = vsub.f32 0.0, %v1412
  %v1621 = vsub.f32 0.0, %v1413
  %v1622 = vsub.f32 0.0, %v1414
  %v1623 = vsub.f32 0.0, %v1415
  %v1624 = vsub.f32 0.0, %v1416
  %v1625 = vsub.f32 0.0, %v1417
  %v1626 = vsub.f32 0.0, %v1418
  %v1627 = vmul.f32 %v1611, %v1403
  %v1628 = vmul.f32 %v1612, %v1404
  %v1629 = vmul.f32 %v1613, %v1405
  %v1630 = vmul.f32 %v1614, %v1406
  %v1631 = vmul.f32 %v1615, %v1407
  %v1632 = vmul.f32 %v1616, %v1408
  %v1633 = vmul.f32 %v1617, %v1409
  %v1634 = vmul.f32 %v1618, %v1410
  %v1635 = vmul.f32 %v1619, %v1411
  %v1636 = vmul.f32 %v1620, %v1412
  %v1637 = vmul.f32 %v1621, %v1413
  %v1638 = vmul.f32 %v1622, %v1414
  %v1639 = vmul.f32 %v1623, %v1415
  %v1640 = vmul.f32 %v1624, %v1416
  %v1641 = vmul.f32 %v1625, %v1417
  %v1642 = vmul.f32 %v1626, %v1418
  %v1643 = vmul.f32 %v1627, 1.442695
  %v1644 = vpow.pop %v1643
  %v1645 = vmul.f32 %v1628, 1.442695
  %v1646 = vpow.pop %v1645
  %v1647 = vmul.f32 %v1629, 1.442695
  %v1648 = vpow.pop %v1647
  %v1649 = vmul.f32 %v1630, 1.442695
  %v1650 = vpow.pop %v1649
  %v1651 = vmul.f32 %v1631, 1.442695
  %v1652 = vpow.pop %v1651
  %v1653 = vmul.f32 %v1632, 1.442695
  %v1654 = vpow.pop %v1653
  %v1655 = vmul.f32 %v1633, 1.442695
  %v1656 = vpow.pop %v1655
  %v1657 = vmul.f32 %v1634, 1.442695
  %v1658 = vpow.pop %v1657
  %v1659 = vmul.f32 %v1635, 1.442695
  %v1660 = vpow.pop %v1659
  %v1661 = vmul.f32 %v1636, 1.442695
  %v1662 = vpow.pop %v1661
  %v1663 = vmul.f32 %v1637, 1.442695
  %v1664 = vpow.pop %v1663
  %v1665 = vmul.f32 %v1638, 1.442695
  %v1666 = vpow.pop %v1665
  %v1667 = vmul.f32 %v1639, 1.442695
  %v1668 = vpow.pop %v1667
  %v1669 = vmul.f32 %v1640, 1.442695
  %v1670 = vpow.pop %v1669
  %v1671 = vmul.f32 %v1641, 1.442695
  %v1672 = vpow.pop %v1671
  %v1673 = vmul.f32 %v1642, 1.442695
  %v1674 = vpow.pop %v1673
  %v1675 = vmul.f32 %v1595, %v1644
  %v1676 = vmul.f32 %v1596, %v1646
  %v1677 = vmul.f32 %v1597, %v1648
  %v1678 = vmul.f32 %v1598, %v1650
  %v1679 = vmul.f32 %v1599, %v1652
  %v1680 = vmul.f32 %v1600, %v1654
  %v1681 = vmul.f32 %v1601, %v1656
  %v1682 = vmul.f32 %v1602, %v1658
  %v1683 = vmul.f32 %v1603, %v1660
  %v1684 = vmul.f32 %v1604, %v1662
  %v1685 = vmul.f32 %v1605, %v1664
  %v1686 = vmul.f32 %v1606, %v1666
  %v1687 = vmul.f32 %v1607, %v1668
  %v1688 = vmul.f32 %v1608, %v1670
  %v1689 = vmul.f32 %v1609, %v1672
  %v1690 = vmul.f32 %v1610, %v1674
  %v1691 = vsub.f32 1.0, %v1675
  %v1692 = vsub.f32 1.0, %v1676
  %v1693 = vsub.f32 1.0, %v1677
  %v1694 = vsub.f32 1.0, %v1678
  %v1695 = vsub.f32 1.0, %v1679
  %v1696 = vsub.f32 1.0, %v1680
  %v1697 = vsub.f32 1.0, %v1681
  %v1698 = vsub.f32 1.0, %v1682
  %v1699 = vsub.f32 1.0, %v1683
  %v1700 = vsub.f32 1.0, %v1684
  %v1701 = vsub.f32 1.0, %v1685
  %v1702 = vsub.f32 1.0, %v1686
  %v1703 = vsub.f32 1.0, %v1687
  %v1704 = vsub.f32 1.0, %v1688
  %v1705 = vsub.f32 1.0, %v1689
  %v1706 = vsub.f32 1.0, %v1690
  %v1707 = vmul.f32 %v1387, %v1691
  %v1708 = vmul.f32 %v1388, %v1692
  %v1709 = vmul.f32 %v1389, %v1693
  %v1710 = vmul.f32 %v1390, %v1694
  %v1711 = vmul.f32 %v1391, %v1695
  %v1712 = vmul.f32 %v1392, %v1696
  %v1713 = vmul.f32 %v1393, %v1697
  %v1714 = vmul.f32 %v1394, %v1698
  %v1715 = vmul.f32 %v1395, %v1699
  %v1716 = vmul.f32 %v1396, %v1700
  %v1717 = vmul.f32 %v1397, %v1701
  %v1718 = vmul.f32 %v1398, %v1702
  %v1719 = vmul.f32 %v1399, %v1703
  %v1720 = vmul.f32 %v1400, %v1704
  %v1721 = vmul.f32 %v1401, %v1705
  %v1722 = vmul.f32 %v1402, %v1706
  %v1723 = vmul.f32 %v1309, 0.5
  %v1724 = vmul.f32 %v1311, 0.5
  %v1725 = vmul.f32 %v1315, 0.5
  %v1726 = vmul.f32 %v1317, 0.5
  %v1727 = vmul.f32 %v1321, 0.5
  %v1728 = vmul.f32 %v1323, 0.5
  %v1729 = vmul.f32 %v1327, 0.5
  %v1730 = vmul.f32 %v1329, 0.5
  %v1731 = vmul.f32 %v1333, 0.5
  %v1732 = vmul.f32 %v1335, 0.5
  %v1733 = vmul.f32 %v1339, 0.5
  %v1734 = vmul.f32 %v1341, 0.5
  %v1735 = vmul.f32 %v1345, 0.5
  %v1736 = vmul.f32 %v1347, 0.5
  %v1737 = vmul.f32 %v1351, 0.5
  %v1738 = vmul.f32 %v1353, 0.5
  %v1739 = vadd.f32 %v1707, 1.0
  %v1740 = vadd.f32 %v1708, 1.0
  %v1741 = vadd.f32 %v1709, 1.0
  %v1742 = vadd.f32 %v1710, 1.0
  %v1743 = vadd.f32 %v1711, 1.0
  %v1744 = vadd.f32 %v1712, 1.0
  %v1745 = vadd.f32 %v1713, 1.0
  %v1746 = vadd.f32 %v1714, 1.0
  %v1747 = vadd.f32 %v1715, 1.0
  %v1748 = vadd.f32 %v1716, 1.0
  %v1749 = vadd.f32 %v1717, 1.0
  %v1750 = vadd.f32 %v1718, 1.0
  %v1751 = vadd.f32 %v1719, 1.0
  %v1752 = vadd.f32 %v1720, 1.0
  %v1753 = vadd.f32 %v1721, 1.0
  %v1754 = vadd.f32 %v1722, 1.0
  %v1755 = vmul.f32 %v1723, %v1739
  %v1756 = vmul.f32 %v1724, %v1740
  %v1757 = vmul.f32 %v1725, %v1741
  %v1758 = vmul.f32 %v1726, %v1742
  %v1759 = vmul.f32 %v1727, %v1743
  %v1760 = vmul.f32 %v1728, %v1744
  %v1761 = vmul.f32 %v1729, %v1745
  %v1762 = vmul.f32 %v1730, %v1746
  %v1763 = vmul.f32 %v1731, %v1747
  %v1764 = vmul.f32 %v1732, %v1748
  %v1765 = vmul.f32 %v1733, %v1749
  %v1766 = vmul.f32 %v1734, %v1750
  %v1767 = vmul.f32 %v1735, %v1751
  %v1768 = vmul.f32 %v1736, %v1752
  %v1769 = vmul.f32 %v1737, %v1753
  %v1770 = vmul.f32 %v1738, %v1754
  %v1771 = vmax.f32 %v1193, %v1755
  %v1772 = vmax.f32 %v1194, %v1756
  %v1773 = vmax.f32 %v1195, %v1757
  %v1774 = vmax.f32 %v1196, %v1758
  %v1775 = vmax.f32 %v1197, %v1759
  %v1776 = vmax.f32 %v1198, %v1760
  %v1777 = vmax.f32 %v1199, %v1761
  %v1778 = vmax.f32 %v1200, %v1762
  %v1779 = vmax.f32 %v1201, %v1763
  %v1780 = vmax.f32 %v1202, %v1764
  %v1781 = vmax.f32 %v1203, %v1765
  %v1782 = vmax.f32 %v1204, %v1766
  %v1783 = vmax.f32 %v1205, %v1767
  %v1784 = vmax.f32 %v1206, %v1768
  %v1785 = vmax.f32 %v1207, %v1769
  %v1786 = vmax.f32 %v1208, %v1770
  %s1787 = scalar_lea.vmem %s0, 768
  %v1788 = vld [vmem:[%s1787] sm:$0xff]
  %v1789 = vld [vmem:[%s1787 + $0x8] sm:$0xff]
  %v1790 = vld [vmem:[%s1787 + $0x10] sm:$0xff]
  %v1791 = vld [vmem:[%s1787 + $0x18] sm:$0xff]
  %v1792 = vld [vmem:[%s1787 + $0x20] sm:$0xff]
  %v1793 = vld [vmem:[%s1787 + $0x28] sm:$0xff]
  %v1794 = vld [vmem:[%s1787 + $0x30] sm:$0xff]
  %v1795 = vld [vmem:[%s1787 + $0x38] sm:$0xff]
  %v1796 = vld [vmem:[%s1787 + $0x40] sm:$0xff]
  %v1797 = vld [vmem:[%s1787 + $0x48] sm:$0xff]
  %v1798 = vld [vmem:[%s1787 + $0x50] sm:$0xff]
  %v1799 = vld [vmem:[%s1787 + $0x58] sm:$0xff]
  %v1800 = vld [vmem:[%s1787 + $0x60] sm:$0xff]
  %v1801 = vld [vmem:[%s1787 + $0x68] sm:$0xff]
  %v1802 = vld [vmem:[%s1787 + $0x70] sm:$0xff]
  %v1803 = vld [vmem:[%s1787 + $0x78] sm:$0xff]
  %v1804 = vld [vmem:[%s1787 + $0x80] sm:$0xff]
  %v1805 = vld [vmem:[%s1787 + $0x88] sm:$0xff]
  %v1806 = vld [vmem:[%s1787 + $0x90] sm:$0xff]
  %v1807 = vld [vmem:[%s1787 + $0x98] sm:$0xff]
  %v1808 = vld [vmem:[%s1787 + $0xa0] sm:$0xff]
  %v1809 = vld [vmem:[%s1787 + $0xa8] sm:$0xff]
  %v1810 = vld [vmem:[%s1787 + $0xb0] sm:$0xff]
  %v1811 = vld [vmem:[%s1787 + $0xb8] sm:$0xff]
  %v1812 = vld [vmem:[%s1787 + $0xc0] sm:$0xff]
  %v1813 = vld [vmem:[%s1787 + $0xc8] sm:$0xff]
  %v1814 = vld [vmem:[%s1787 + $0xd0] sm:$0xff]
  %v1815 = vld [vmem:[%s1787 + $0xd8] sm:$0xff]
  %v1816 = vld [vmem:[%s1787 + $0xe0] sm:$0xff]
  %v1817 = vld [vmem:[%s1787 + $0xe8] sm:$0xff]
  %v1818 = vld [vmem:[%s1787 + $0xf0] sm:$0xff]
  %v1819 = vld [vmem:[%s1787 + $0xf8] sm:$0xff]
  %1820 = vmatprep.subr.mxu0 %v1819
  %1821 = vmatpush1.msra.mxu0 %v1818
  %1822 = vmatprep.subr.mxu0 %v1817
  %1823 = vmatpush1.msra.mxu0 %v1816
  %1824 = vmatprep.subr.mxu0 %v1815
  %1825 = vmatpush1.msra.mxu0 %v1814
  %1826 = vmatprep.subr.mxu0 %v1813
  %1827 = vmatpush1.msra.mxu0 %v1812
  %1828 = vmatprep.subr.mxu0 %v1811
  %1829 = vmatpush1.msra.mxu0 %v1810
  %1830 = vmatprep.subr.mxu0 %v1809
  %1831 = vmatpush1.msra.mxu0 %v1808
  %1832 = vmatprep.subr.mxu0 %v1807
  %1833 = vmatpush1.msra.mxu0 %v1806
  %1834 = vmatprep.subr.mxu0 %v1805
  %1835 = vmatpush1.msra.mxu0 %v1804
  %1836 = vmatprep.subr.mxu0 %v1803
  %1837 = vmatpush1.msra.mxu0 %v1802
  %1838 = vmatprep.subr.mxu0 %v1801
  %1839 = vmatpush1.msra.mxu0 %v1800
  %1840 = vmatprep.subr.mxu0 %v1799
  %1841 = vmatpush1.msra.mxu0 %v1798
  %1842 = vmatprep.subr.mxu0 %v1797
  %1843 = vmatpush1.msra.mxu0 %v1796
  %1844 = vmatprep.subr.mxu0 %v1795
  %1845 = vmatpush1.msra.mxu0 %v1794
  %1846 = vmatprep.subr.mxu0 %v1793
  %1847 = vmatpush1.msra.mxu0 %v1792
  %1848 = vmatprep.subr.mxu0 %v1791
  %1849 = vmatpush1.msra.mxu0 %v1790
  %1850 = vmatprep.subr.mxu0 %v1789
  %1851 = vmatpush1.msra.mxu0 %v1788
  %1852 = vmatprep.subr.mxu0 0.0
  %1853 = vmatpush2.msra.mxu0 0.0
  %1854 = vmatprep.subr.mxu0 0.0
  %1855 = vmatpush2.msra.mxu0 0.0
  %1856 = vmatprep.subr.mxu0 0.0
  %1857 = vmatpush2.msra.mxu0 0.0
  %1858 = vmatprep.subr.mxu0 0.0
  %1859 = vmatpush2.msra.mxu0 0.0
  %1860 = vmatprep.subr.mxu0 0.0
  %1861 = vmatpush2.msra.mxu0 0.0
  %1862 = vmatprep.subr.mxu0 0.0
  %1863 = vmatpush2.msra.mxu0 0.0
  %1864 = vmatprep.subr.mxu0 0.0
  %1865 = vmatpush2.msra.mxu0 0.0
  %1866 = vmatprep.subr.mxu0 0.0
  %1867 = vmatpush2.msra.mxu0 0.0
  %1868 = vmatprep.subr.mxu0 0.0
  %1869 = vmatpush2.msra.mxu0 0.0
  %1870 = vmatprep.subr.mxu0 0.0
  %1871 = vmatpush2.msra.mxu0 0.0
  %1872 = vmatprep.subr.mxu0 0.0
  %1873 = vmatpush2.msra.mxu0 0.0
  %1874 = vmatprep.subr.mxu0 0.0
  %1875 = vmatpush2.msra.mxu0 0.0
  %1876 = vmatprep.subr.mxu0 0.0
  %1877 = vmatpush2.msra.mxu0 0.0
  %1878 = vmatprep.subr.mxu0 0.0
  %1879 = vmatpush2.msra.mxu0 0.0
  %1880 = vmatprep.subr.mxu0 0.0
  %1881 = vmatpush2.msra.mxu0 0.0
  %1882 = vmatprep.subr.mxu0 0.0
  %1883 = vmatpush2.msra.mxu0 0.0
  %1884 = vmatprep.mubr.f32.mxu0 0.0
  %1885 = vmatmul.mubr.f32.gmra.mxu0 %v14
  %v1886 = vpop.f32.mrf.mxu0
  %v1887 = vadd.f32 %v65, %v1886
  %v1888 = vpop.f32.mrf.mxu0
  %v1889 = vadd.f32 %v65, %v1888
  %1890 = vmatprep.mubr.f32.mxu0 0.0
  %1891 = vmatmul.mubr.f32.gmra.mxu0 %v15
  %v1892 = vpop.f32.mrf.mxu0
  %v1893 = vadd.f32 %v70, %v1892
  %v1894 = vpop.f32.mrf.mxu0
  %v1895 = vadd.f32 %v70, %v1894
  %1896 = vmatprep.mubr.f32.mxu0 0.0
  %1897 = vmatmul.mubr.f32.gmra.mxu0 %v16
  %v1898 = vpop.f32.mrf.mxu0
  %v1899 = vadd.f32 %v75, %v1898
  %v1900 = vpop.f32.mrf.mxu0
  %v1901 = vadd.f32 %v75, %v1900
  %1902 = vmatprep.mubr.f32.mxu0 0.0
  %1903 = vmatmul.mubr.f32.gmra.mxu0 %v17
  %v1904 = vpop.f32.mrf.mxu0
  %v1905 = vadd.f32 %v80, %v1904
  %v1906 = vpop.f32.mrf.mxu0
  %v1907 = vadd.f32 %v80, %v1906
  %1908 = vmatprep.mubr.f32.mxu0 0.0
  %1909 = vmatmul.mubr.f32.gmra.mxu0 %v18
  %v1910 = vpop.f32.mrf.mxu0
  %v1911 = vadd.f32 %v85, %v1910
  %v1912 = vpop.f32.mrf.mxu0
  %v1913 = vadd.f32 %v85, %v1912
  %1914 = vmatprep.mubr.f32.mxu0 0.0
  %1915 = vmatmul.mubr.f32.gmra.mxu0 %v19
  %v1916 = vpop.f32.mrf.mxu0
  %v1917 = vadd.f32 %v90, %v1916
  %v1918 = vpop.f32.mrf.mxu0
  %v1919 = vadd.f32 %v90, %v1918
  %1920 = vmatprep.mubr.f32.mxu0 0.0
  %1921 = vmatmul.mubr.f32.gmra.mxu0 %v20
  %v1922 = vpop.f32.mrf.mxu0
  %v1923 = vadd.f32 %v95, %v1922
  %v1924 = vpop.f32.mrf.mxu0
  %v1925 = vadd.f32 %v95, %v1924
  %1926 = vmatprep.mubr.f32.mxu0 0.0
  %1927 = vmatmul.mubr.f32.gmra.mxu0 %v21
  %v1928 = vpop.f32.mrf.mxu0
  %v1929 = vadd.f32 %v100, %v1928
  %v1930 = vpop.f32.mrf.mxu0
  %v1931 = vadd.f32 %v100, %v1930
  %1932 = vdwg.mxu0
  %v1933 = vmul.f32 %v1887, 0.70710677
  %v1934 = vmul.f32 %v1889, 0.70710677
  %v1935 = vmul.f32 %v1893, 0.70710677
  %v1936 = vmul.f32 %v1895, 0.70710677
  %v1937 = vmul.f32 %v1899, 0.70710677
  %v1938 = vmul.f32 %v1901, 0.70710677
  %v1939 = vmul.f32 %v1905, 0.70710677
  %v1940 = vmul.f32 %v1907, 0.70710677
  %v1941 = vmul.f32 %v1911, 0.70710677
  %v1942 = vmul.f32 %v1913, 0.70710677
  %v1943 = vmul.f32 %v1917, 0.70710677
  %v1944 = vmul.f32 %v1919, 0.70710677
  %v1945 = vmul.f32 %v1923, 0.70710677
  %v1946 = vmul.f32 %v1925, 0.70710677
  %v1947 = vmul.f32 %v1929, 0.70710677
  %v1948 = vmul.f32 %v1931, 0.70710677
  %vm1949 = vcmp.ge.f32.partialorder %v1933, 0.0
  %vm1950 = vcmp.ge.f32.partialorder %v1934, 0.0
  %vm1951 = vcmp.ge.f32.partialorder %v1935, 0.0
  %vm1952 = vcmp.ge.f32.partialorder %v1936, 0.0
  %vm1953 = vcmp.ge.f32.partialorder %v1937, 0.0
  %vm1954 = vcmp.ge.f32.partialorder %v1938, 0.0
  %vm1955 = vcmp.ge.f32.partialorder %v1939, 0.0
  %vm1956 = vcmp.ge.f32.partialorder %v1940, 0.0
  %vm1957 = vcmp.ge.f32.partialorder %v1941, 0.0
  %vm1958 = vcmp.ge.f32.partialorder %v1942, 0.0
  %vm1959 = vcmp.ge.f32.partialorder %v1943, 0.0
  %vm1960 = vcmp.ge.f32.partialorder %v1944, 0.0
  %vm1961 = vcmp.ge.f32.partialorder %v1945, 0.0
  %vm1962 = vcmp.ge.f32.partialorder %v1946, 0.0
  %vm1963 = vcmp.ge.f32.partialorder %v1947, 0.0
  %vm1964 = vcmp.ge.f32.partialorder %v1948, 0.0
  %v1965 = vsel %vm1949, 1.0, -1.0
  %v1966 = vsel %vm1950, 1.0, -1.0
  %v1967 = vsel %vm1951, 1.0, -1.0
  %v1968 = vsel %vm1952, 1.0, -1.0
  %v1969 = vsel %vm1953, 1.0, -1.0
  %v1970 = vsel %vm1954, 1.0, -1.0
  %v1971 = vsel %vm1955, 1.0, -1.0
  %v1972 = vsel %vm1956, 1.0, -1.0
  %v1973 = vsel %vm1957, 1.0, -1.0
  %v1974 = vsel %vm1958, 1.0, -1.0
  %v1975 = vsel %vm1959, 1.0, -1.0
  %v1976 = vsel %vm1960, 1.0, -1.0
  %v1977 = vsel %vm1961, 1.0, -1.0
  %v1978 = vsel %vm1962, 1.0, -1.0
  %v1979 = vsel %vm1963, 1.0, -1.0
  %v1980 = vsel %vm1964, 1.0, -1.0
  %v1981 = vand.u32 2147483647, %v1933
  %v1982 = vand.u32 2147483647, %v1934
  %v1983 = vand.u32 2147483647, %v1935
  %v1984 = vand.u32 2147483647, %v1936
  %v1985 = vand.u32 2147483647, %v1937
  %v1986 = vand.u32 2147483647, %v1938
  %v1987 = vand.u32 2147483647, %v1939
  %v1988 = vand.u32 2147483647, %v1940
  %v1989 = vand.u32 2147483647, %v1941
  %v1990 = vand.u32 2147483647, %v1942
  %v1991 = vand.u32 2147483647, %v1943
  %v1992 = vand.u32 2147483647, %v1944
  %v1993 = vand.u32 2147483647, %v1945
  %v1994 = vand.u32 2147483647, %v1946
  %v1995 = vand.u32 2147483647, %v1947
  %v1996 = vand.u32 2147483647, %v1948
  %v1997 = vmul.f32 %v1981, 0.3275911
  %v1998 = vmul.f32 %v1982, 0.3275911
  %v1999 = vmul.f32 %v1983, 0.3275911
  %v2000 = vmul.f32 %v1984, 0.3275911
  %v2001 = vmul.f32 %v1985, 0.3275911
  %v2002 = vmul.f32 %v1986, 0.3275911
  %v2003 = vmul.f32 %v1987, 0.3275911
  %v2004 = vmul.f32 %v1988, 0.3275911
  %v2005 = vmul.f32 %v1989, 0.3275911
  %v2006 = vmul.f32 %v1990, 0.3275911
  %v2007 = vmul.f32 %v1991, 0.3275911
  %v2008 = vmul.f32 %v1992, 0.3275911
  %v2009 = vmul.f32 %v1993, 0.3275911
  %v2010 = vmul.f32 %v1994, 0.3275911
  %v2011 = vmul.f32 %v1995, 0.3275911
  %v2012 = vmul.f32 %v1996, 0.3275911
  %v2013 = vadd.f32 %v1997, 1.0
  %v2014 = vadd.f32 %v1998, 1.0
  %v2015 = vadd.f32 %v1999, 1.0
  %v2016 = vadd.f32 %v2000, 1.0
  %v2017 = vadd.f32 %v2001, 1.0
  %v2018 = vadd.f32 %v2002, 1.0
  %v2019 = vadd.f32 %v2003, 1.0
  %v2020 = vadd.f32 %v2004, 1.0
  %v2021 = vadd.f32 %v2005, 1.0
  %v2022 = vadd.f32 %v2006, 1.0
  %v2023 = vadd.f32 %v2007, 1.0
  %v2024 = vadd.f32 %v2008, 1.0
  %v2025 = vadd.f32 %v2009, 1.0
  %v2026 = vadd.f32 %v2010, 1.0
  %v2027 = vadd.f32 %v2011, 1.0
  %v2028 = vadd.f32 %v2012, 1.0
  %v2029 = vrcp.pop %v2013
  %v2030 = vrcp.pop %v2014
  %v2031 = vrcp.pop %v2015
  %v2032 = vrcp.pop %v2016
  %v2033 = vrcp.pop %v2017
  %v2034 = vrcp.pop %v2018
  %v2035 = vrcp.pop %v2019
  %v2036 = vrcp.pop %v2020
  %v2037 = vrcp.pop %v2021
  %v2038 = vrcp.pop %v2022
  %v2039 = vrcp.pop %v2023
  %v2040 = vrcp.pop %v2024
  %v2041 = vrcp.pop %v2025
  %v2042 = vrcp.pop %v2026
  %v2043 = vrcp.pop %v2027
  %v2044 = vrcp.pop %v2028
  %v2045 = vmul.f32 %v2029, 1.0614054
  %v2046 = vmul.f32 %v2030, 1.0614054
  %v2047 = vmul.f32 %v2031, 1.0614054
  %v2048 = vmul.f32 %v2032, 1.0614054
  %v2049 = vmul.f32 %v2033, 1.0614054
  %v2050 = vmul.f32 %v2034, 1.0614054
  %v2051 = vmul.f32 %v2035, 1.0614054
  %v2052 = vmul.f32 %v2036, 1.0614054
  %v2053 = vmul.f32 %v2037, 1.0614054
  %v2054 = vmul.f32 %v2038, 1.0614054
  %v2055 = vmul.f32 %v2039, 1.0614054
  %v2056 = vmul.f32 %v2040, 1.0614054
  %v2057 = vmul.f32 %v2041, 1.0614054
  %v2058 = vmul.f32 %v2042, 1.0614054
  %v2059 = vmul.f32 %v2043, 1.0614054
  %v2060 = vmul.f32 %v2044, 1.0614054
  %v2061 = vadd.f32 %v2045, -1.4531521
  %v2062 = vadd.f32 %v2046, -1.4531521
  %v2063 = vadd.f32 %v2047, -1.4531521
  %v2064 = vadd.f32 %v2048, -1.4531521
  %v2065 = vadd.f32 %v2049, -1.4531521
  %v2066 = vadd.f32 %v2050, -1.4531521
  %v2067 = vadd.f32 %v2051, -1.4531521
  %v2068 = vadd.f32 %v2052, -1.4531521
  %v2069 = vadd.f32 %v2053, -1.4531521
  %v2070 = vadd.f32 %v2054, -1.4531521
  %v2071 = vadd.f32 %v2055, -1.4531521
  %v2072 = vadd.f32 %v2056, -1.4531521
  %v2073 = vadd.f32 %v2057, -1.4531521
  %v2074 = vadd.f32 %v2058, -1.4531521
  %v2075 = vadd.f32 %v2059, -1.4531521
  %v2076 = vadd.f32 %v2060, -1.4531521
  %v2077 = vmul.f32 %v2061, %v2029
  %v2078 = vmul.f32 %v2062, %v2030
  %v2079 = vmul.f32 %v2063, %v2031
  %v2080 = vmul.f32 %v2064, %v2032
  %v2081 = vmul.f32 %v2065, %v2033
  %v2082 = vmul.f32 %v2066, %v2034
  %v2083 = vmul.f32 %v2067, %v2035
  %v2084 = vmul.f32 %v2068, %v2036
  %v2085 = vmul.f32 %v2069, %v2037
  %v2086 = vmul.f32 %v2070, %v2038
  %v2087 = vmul.f32 %v2071, %v2039
  %v2088 = vmul.f32 %v2072, %v2040
  %v2089 = vmul.f32 %v2073, %v2041
  %v2090 = vmul.f32 %v2074, %v2042
  %v2091 = vmul.f32 %v2075, %v2043
  %v2092 = vmul.f32 %v2076, %v2044
  %v2093 = vadd.f32 %v2077, 1.4214138
  %v2094 = vadd.f32 %v2078, 1.4214138
  %v2095 = vadd.f32 %v2079, 1.4214138
  %v2096 = vadd.f32 %v2080, 1.4214138
  %v2097 = vadd.f32 %v2081, 1.4214138
  %v2098 = vadd.f32 %v2082, 1.4214138
  %v2099 = vadd.f32 %v2083, 1.4214138
  %v2100 = vadd.f32 %v2084, 1.4214138
  %v2101 = vadd.f32 %v2085, 1.4214138
  %v2102 = vadd.f32 %v2086, 1.4214138
  %v2103 = vadd.f32 %v2087, 1.4214138
  %v2104 = vadd.f32 %v2088, 1.4214138
  %v2105 = vadd.f32 %v2089, 1.4214138
  %v2106 = vadd.f32 %v2090, 1.4214138
  %v2107 = vadd.f32 %v2091, 1.4214138
  %v2108 = vadd.f32 %v2092, 1.4214138
  %v2109 = vmul.f32 %v2093, %v2029
  %v2110 = vmul.f32 %v2094, %v2030
  %v2111 = vmul.f32 %v2095, %v2031
  %v2112 = vmul.f32 %v2096, %v2032
  %v2113 = vmul.f32 %v2097, %v2033
  %v2114 = vmul.f32 %v2098, %v2034
  %v2115 = vmul.f32 %v2099, %v2035
  %v2116 = vmul.f32 %v2100, %v2036
  %v2117 = vmul.f32 %v2101, %v2037
  %v2118 = vmul.f32 %v2102, %v2038
  %v2119 = vmul.f32 %v2103, %v2039
  %v2120 = vmul.f32 %v2104, %v2040
  %v2121 = vmul.f32 %v2105, %v2041
  %v2122 = vmul.f32 %v2106, %v2042
  %v2123 = vmul.f32 %v2107, %v2043
  %v2124 = vmul.f32 %v2108, %v2044
  %v2125 = vadd.f32 %v2109, -0.28449672
  %v2126 = vadd.f32 %v2110, -0.28449672
  %v2127 = vadd.f32 %v2111, -0.28449672
  %v2128 = vadd.f32 %v2112, -0.28449672
  %v2129 = vadd.f32 %v2113, -0.28449672
  %v2130 = vadd.f32 %v2114, -0.28449672
  %v2131 = vadd.f32 %v2115, -0.28449672
  %v2132 = vadd.f32 %v2116, -0.28449672
  %v2133 = vadd.f32 %v2117, -0.28449672
  %v2134 = vadd.f32 %v2118, -0.28449672
  %v2135 = vadd.f32 %v2119, -0.28449672
  %v2136 = vadd.f32 %v2120, -0.28449672
  %v2137 = vadd.f32 %v2121, -0.28449672
  %v2138 = vadd.f32 %v2122, -0.28449672
  %v2139 = vadd.f32 %v2123, -0.28449672
  %v2140 = vadd.f32 %v2124, -0.28449672
  %v2141 = vmul.f32 %v2125, %v2029
  %v2142 = vmul.f32 %v2126, %v2030
  %v2143 = vmul.f32 %v2127, %v2031
  %v2144 = vmul.f32 %v2128, %v2032
  %v2145 = vmul.f32 %v2129, %v2033
  %v2146 = vmul.f32 %v2130, %v2034
  %v2147 = vmul.f32 %v2131, %v2035
  %v2148 = vmul.f32 %v2132, %v2036
  %v2149 = vmul.f32 %v2133, %v2037
  %v2150 = vmul.f32 %v2134, %v2038
  %v2151 = vmul.f32 %v2135, %v2039
  %v2152 = vmul.f32 %v2136, %v2040
  %v2153 = vmul.f32 %v2137, %v2041
  %v2154 = vmul.f32 %v2138, %v2042
  %v2155 = vmul.f32 %v2139, %v2043
  %v2156 = vmul.f32 %v2140, %v2044
  %v2157 = vadd.f32 %v2141, 0.2548296
  %v2158 = vadd.f32 %v2142, 0.2548296
  %v2159 = vadd.f32 %v2143, 0.2548296
  %v2160 = vadd.f32 %v2144, 0.2548296
  %v2161 = vadd.f32 %v2145, 0.2548296
  %v2162 = vadd.f32 %v2146, 0.2548296
  %v2163 = vadd.f32 %v2147, 0.2548296
  %v2164 = vadd.f32 %v2148, 0.2548296
  %v2165 = vadd.f32 %v2149, 0.2548296
  %v2166 = vadd.f32 %v2150, 0.2548296
  %v2167 = vadd.f32 %v2151, 0.2548296
  %v2168 = vadd.f32 %v2152, 0.2548296
  %v2169 = vadd.f32 %v2153, 0.2548296
  %v2170 = vadd.f32 %v2154, 0.2548296
  %v2171 = vadd.f32 %v2155, 0.2548296
  %v2172 = vadd.f32 %v2156, 0.2548296
  %v2173 = vmul.f32 %v2157, %v2029
  %v2174 = vmul.f32 %v2158, %v2030
  %v2175 = vmul.f32 %v2159, %v2031
  %v2176 = vmul.f32 %v2160, %v2032
  %v2177 = vmul.f32 %v2161, %v2033
  %v2178 = vmul.f32 %v2162, %v2034
  %v2179 = vmul.f32 %v2163, %v2035
  %v2180 = vmul.f32 %v2164, %v2036
  %v2181 = vmul.f32 %v2165, %v2037
  %v2182 = vmul.f32 %v2166, %v2038
  %v2183 = vmul.f32 %v2167, %v2039
  %v2184 = vmul.f32 %v2168, %v2040
  %v2185 = vmul.f32 %v2169, %v2041
  %v2186 = vmul.f32 %v2170, %v2042
  %v2187 = vmul.f32 %v2171, %v2043
  %v2188 = vmul.f32 %v2172, %v2044
  %v2189 = vsub.f32 0.0, %v1981
  %v2190 = vsub.f32 0.0, %v1982
  %v2191 = vsub.f32 0.0, %v1983
  %v2192 = vsub.f32 0.0, %v1984
  %v2193 = vsub.f32 0.0, %v1985
  %v2194 = vsub.f32 0.0, %v1986
  %v2195 = vsub.f32 0.0, %v1987
  %v2196 = vsub.f32 0.0, %v1988
  %v2197 = vsub.f32 0.0, %v1989
  %v2198 = vsub.f32 0.0, %v1990
  %v2199 = vsub.f32 0.0, %v1991
  %v2200 = vsub.f32 0.0, %v1992
  %v2201 = vsub.f32 0.0, %v1993
  %v2202 = vsub.f32 0.0, %v1994
  %v2203 = vsub.f32 0.0, %v1995
  %v2204 = vsub.f32 0.0, %v1996
  %v2205 = vmul.f32 %v2189, %v1981
  %v2206 = vmul.f32 %v2190, %v1982
  %v2207 = vmul.f32 %v2191, %v1983
  %v2208 = vmul.f32 %v2192, %v1984
  %v2209 = vmul.f32 %v2193, %v1985
  %v2210 = vmul.f32 %v2194, %v1986
  %v2211 = vmul.f32 %v2195, %v1987
  %v2212 = vmul.f32 %v2196, %v1988
  %v2213 = vmul.f32 %v2197, %v1989
  %v2214 = vmul.f32 %v2198, %v1990
  %v2215 = vmul.f32 %v2199, %v1991
  %v2216 = vmul.f32 %v2200, %v1992
  %v2217 = vmul.f32 %v2201, %v1993
  %v2218 = vmul.f32 %v2202, %v1994
  %v2219 = vmul.f32 %v2203, %v1995
  %v2220 = vmul.f32 %v2204, %v1996
  %v2221 = vmul.f32 %v2205, 1.442695
  %v2222 = vpow.pop %v2221
  %v2223 = vmul.f32 %v2206, 1.442695
  %v2224 = vpow.pop %v2223
  %v2225 = vmul.f32 %v2207, 1.442695
  %v2226 = vpow.pop %v2225
  %v2227 = vmul.f32 %v2208, 1.442695
  %v2228 = vpow.pop %v2227
  %v2229 = vmul.f32 %v2209, 1.442695
  %v2230 = vpow.pop %v2229
  %v2231 = vmul.f32 %v2210, 1.442695
  %v2232 = vpow.pop %v2231
  %v2233 = vmul.f32 %v2211, 1.442695
  %v2234 = vpow.pop %v2233
  %v2235 = vmul.f32 %v2212, 1.442695
  %v2236 = vpow.pop %v2235
  %v2237 = vmul.f32 %v2213, 1.442695
  %v2238 = vpow.pop %v2237
  %v2239 = vmul.f32 %v2214, 1.442695
  %v2240 = vpow.pop %v2239
  %v2241 = vmul.f32 %v2215, 1.442695
  %v2242 = vpow.pop %v2241
  %v2243 = vmul.f32 %v2216, 1.442695
  %v2244 = vpow.pop %v2243
  %v2245 = vmul.f32 %v2217, 1.442695
  %v2246 = vpow.pop %v2245
  %v2247 = vmul.f32 %v2218, 1.442695
  %v2248 = vpow.pop %v2247
  %v2249 = vmul.f32 %v2219, 1.442695
  %v2250 = vpow.pop %v2249
  %v2251 = vmul.f32 %v2220, 1.442695
  %v2252 = vpow.pop %v2251
  %v2253 = vmul.f32 %v2173, %v2222
  %v2254 = vmul.f32 %v2174, %v2224
  %v2255 = vmul.f32 %v2175, %v2226
  %v2256 = vmul.f32 %v2176, %v2228
  %v2257 = vmul.f32 %v2177, %v2230
  %v2258 = vmul.f32 %v2178, %v2232
  %v2259 = vmul.f32 %v2179, %v2234
  %v2260 = vmul.f32 %v2180, %v2236
  %v2261 = vmul.f32 %v2181, %v2238
  %v2262 = vmul.f32 %v2182, %v2240
  %v2263 = vmul.f32 %v2183, %v2242
  %v2264 = vmul.f32 %v2184, %v2244
  %v2265 = vmul.f32 %v2185, %v2246
  %v2266 = vmul.f32 %v2186, %v2248
  %v2267 = vmul.f32 %v2187, %v2250
  %v2268 = vmul.f32 %v2188, %v2252
  %v2269 = vsub.f32 1.0, %v2253
  %v2270 = vsub.f32 1.0, %v2254
  %v2271 = vsub.f32 1.0, %v2255
  %v2272 = vsub.f32 1.0, %v2256
  %v2273 = vsub.f32 1.0, %v2257
  %v2274 = vsub.f32 1.0, %v2258
  %v2275 = vsub.f32 1.0, %v2259
  %v2276 = vsub.f32 1.0, %v2260
  %v2277 = vsub.f32 1.0, %v2261
  %v2278 = vsub.f32 1.0, %v2262
  %v2279 = vsub.f32 1.0, %v2263
  %v2280 = vsub.f32 1.0, %v2264
  %v2281 = vsub.f32 1.0, %v2265
  %v2282 = vsub.f32 1.0, %v2266
  %v2283 = vsub.f32 1.0, %v2267
  %v2284 = vsub.f32 1.0, %v2268
  %v2285 = vmul.f32 %v1965, %v2269
  %v2286 = vmul.f32 %v1966, %v2270
  %v2287 = vmul.f32 %v1967, %v2271
  %v2288 = vmul.f32 %v1968, %v2272
  %v2289 = vmul.f32 %v1969, %v2273
  %v2290 = vmul.f32 %v1970, %v2274
  %v2291 = vmul.f32 %v1971, %v2275
  %v2292 = vmul.f32 %v1972, %v2276
  %v2293 = vmul.f32 %v1973, %v2277
  %v2294 = vmul.f32 %v1974, %v2278
  %v2295 = vmul.f32 %v1975, %v2279
  %v2296 = vmul.f32 %v1976, %v2280
  %v2297 = vmul.f32 %v1977, %v2281
  %v2298 = vmul.f32 %v1978, %v2282
  %v2299 = vmul.f32 %v1979, %v2283
  %v2300 = vmul.f32 %v1980, %v2284
  %v2301 = vmul.f32 %v1887, 0.5
  %v2302 = vmul.f32 %v1889, 0.5
  %v2303 = vmul.f32 %v1893, 0.5
  %v2304 = vmul.f32 %v1895, 0.5
  %v2305 = vmul.f32 %v1899, 0.5
  %v2306 = vmul.f32 %v1901, 0.5
  %v2307 = vmul.f32 %v1905, 0.5
  %v2308 = vmul.f32 %v1907, 0.5
  %v2309 = vmul.f32 %v1911, 0.5
  %v2310 = vmul.f32 %v1913, 0.5
  %v2311 = vmul.f32 %v1917, 0.5
  %v2312 = vmul.f32 %v1919, 0.5
  %v2313 = vmul.f32 %v1923, 0.5
  %v2314 = vmul.f32 %v1925, 0.5
  %v2315 = vmul.f32 %v1929, 0.5
  %v2316 = vmul.f32 %v1931, 0.5
  %v2317 = vadd.f32 %v2285, 1.0
  %v2318 = vadd.f32 %v2286, 1.0
  %v2319 = vadd.f32 %v2287, 1.0
  %v2320 = vadd.f32 %v2288, 1.0
  %v2321 = vadd.f32 %v2289, 1.0
  %v2322 = vadd.f32 %v2290, 1.0
  %v2323 = vadd.f32 %v2291, 1.0
  %v2324 = vadd.f32 %v2292, 1.0
  %v2325 = vadd.f32 %v2293, 1.0
  %v2326 = vadd.f32 %v2294, 1.0
  %v2327 = vadd.f32 %v2295, 1.0
  %v2328 = vadd.f32 %v2296, 1.0
  %v2329 = vadd.f32 %v2297, 1.0
  %v2330 = vadd.f32 %v2298, 1.0
  %v2331 = vadd.f32 %v2299, 1.0
  %v2332 = vadd.f32 %v2300, 1.0
  %v2333 = vmul.f32 %v2301, %v2317
  %v2334 = vmul.f32 %v2302, %v2318
  %v2335 = vmul.f32 %v2303, %v2319
  %v2336 = vmul.f32 %v2304, %v2320
  %v2337 = vmul.f32 %v2305, %v2321
  %v2338 = vmul.f32 %v2306, %v2322
  %v2339 = vmul.f32 %v2307, %v2323
  %v2340 = vmul.f32 %v2308, %v2324
  %v2341 = vmul.f32 %v2309, %v2325
  %v2342 = vmul.f32 %v2310, %v2326
  %v2343 = vmul.f32 %v2311, %v2327
  %v2344 = vmul.f32 %v2312, %v2328
  %v2345 = vmul.f32 %v2313, %v2329
  %v2346 = vmul.f32 %v2314, %v2330
  %v2347 = vmul.f32 %v2315, %v2331
  %v2348 = vmul.f32 %v2316, %v2332
  %v2349 = vmax.f32 %v1771, %v2333
  %v2350 = vmax.f32 %v1772, %v2334
  %v2351 = vmax.f32 %v1773, %v2335
  %v2352 = vmax.f32 %v1774, %v2336
  %v2353 = vmax.f32 %v1775, %v2337
  %v2354 = vmax.f32 %v1776, %v2338
  %v2355 = vmax.f32 %v1777, %v2339
  %v2356 = vmax.f32 %v1778, %v2340
  %v2357 = vmax.f32 %v1779, %v2341
  %v2358 = vmax.f32 %v1780, %v2342
  %v2359 = vmax.f32 %v1781, %v2343
  %v2360 = vmax.f32 %v1782, %v2344
  %v2361 = vmax.f32 %v1783, %v2345
  %v2362 = vmax.f32 %v1784, %v2346
  %v2363 = vmax.f32 %v1785, %v2347
  %v2364 = vmax.f32 %v1786, %v2348
  %2365 = vst [vmem:[%s3] sm:$0xff] %v2349
  %2366 = vst [vmem:[%s3 + $0x8] sm:$0xff] %v2350
  %2367 = vst [vmem:[%s3 + $0x10] sm:$0xff] %v2351
  %2368 = vst [vmem:[%s3 + $0x18] sm:$0xff] %v2352
  %2369 = vst [vmem:[%s3 + $0x20] sm:$0xff] %v2353
  %2370 = vst [vmem:[%s3 + $0x28] sm:$0xff] %v2354
  %2371 = vst [vmem:[%s3 + $0x30] sm:$0xff] %v2355
  %2372 = vst [vmem:[%s3 + $0x38] sm:$0xff] %v2356
  %2373 = vst [vmem:[%s3 + $0x40] sm:$0xff] %v2357
  %2374 = vst [vmem:[%s3 + $0x48] sm:$0xff] %v2358
  %2375 = vst [vmem:[%s3 + $0x50] sm:$0xff] %v2359
  %2376 = vst [vmem:[%s3 + $0x58] sm:$0xff] %v2360
  %2377 = vst [vmem:[%s3 + $0x60] sm:$0xff] %v2361
  %2378 = vst [vmem:[%s3 + $0x68] sm:$0xff] %v2362
  %2379 = vst [vmem:[%s3 + $0x70] sm:$0xff] %v2363
  %2380 = vst [vmem:[%s3 + $0x78] sm:$0xff] %v2364
  // Predicated region
  $region14: #{encoder_forward.8} parent=0 // pred_check
    _
  $region15: #{encoder_forward.8} parent=0 // pred_check_branch
    %2382 = sbr.rel (0) target = $region17
  $region16: #{encoder_forward.8} parent=0 // pred_region
    _
  $region17: #{encoder_forward.8} parent=0 // pred_fallthru
    _
  // Predicated region
  $region18: #{encoder_forward.8} parent=0 // pred_check
    _
  $region19: #{encoder_forward.8} parent=0 // pred_check_branch
    %2384 = sbr.rel (0) target = $region21
  $region20: #{encoder_forward.8} parent=0 // pred_region
    _
  $region21: #{encoder_forward.8} parent=0 // pred_fallthru
    _

// kernel: encoder_forward.9
$region0: #{encoder_forward.9}
  #allocation0 [shape = 'u32[]', space=smem, size = 0x4, offset = 0x4, fixed_abs, tag = 'smem constant byte address 0x4 - core index']
  #allocation1 [shape = 'u32[144,128]{1,0:T(1,128)}', space=vmem, size = 0x12000, scoped, tag = 'internal scratch']
  #allocation2 [shape = 'f32[2,256]{1,0:T(2,128)}', space=vmem, size = 0x800, scoped, tag = 'scratch operand']
  %s0 = inlined_call_operand.vmem [shape: f32[2,6400], index: 0, kind: input, shape index: {}]
  %s1 = inlined_call_operand.vmem [shape: f32[256,6400], index: 1, kind: input, shape index: {}]
  %s2 = inlined_call_operand.vmem [shape: f32[1,256], index: 2, kind: input, shape index: {}]
  %s3 = inlined_call_operand.vmem [shape: f32[128,256], index: 3, kind: input, shape index: {}]
  %s4 = inlined_call_operand.vmem [shape: f32[1,128], index: 4, kind: input, shape index: {}]
  %s5 = inlined_call_operand.vmem [shape: f32[64,128], index: 5, kind: input, shape index: {}]
  %s6 = inlined_call_operand.vmem [shape: f32[1,64], index: 6, kind: input, shape index: {}]
  %s7 = inlined_call_operand.vmem [shape: f32[2,64], index: 7, kind: output, shape index: {}]
  %s8 = sld [smem:[#allocation0]]
  $region92: #{encoder_forward.9} parent=0
    _
  %s10 = ssub.s32 1, %s8
  %s11 = scalar_select 0, %s10, %s8
  $region1: #{encoder_forward.9} parent=0
    #allocation3 [shape = 'u8[2621440]{0}', space=vmem, size = 0x280000, scoped, tag = 'input window, operand 1']
    loop: start=0, step=1, limit=7
    $region2: #{encoder_forward.9} parent=1 // loop_pre_header
      _
    $region3: #{encoder_forward.9} parent=1 // loop_header
      %s13 = sphi 0, %s17
      %p14 = scmp.ge.s32.totalorder %s13, 7
      %s23 = sphi 0, %s25
      %s26 = sphi 0, %s23
      %s27 = sphi 0, %s26
      %s43 = sphi 0, %s27
      %s49 = sphi 0, %s51
      %s52 = sphi 0, %s49
      %s53 = sphi 0, %s52
      %s69 = sphi 0, %s53
      %s73 = sphi 0, %s73
      %s75 = sphi 0, %s73
      %s76 = sphi 0, %s75
      %s90 = sphi 0, %s76
      %s94 = sphi 0, %s94
      %s96 = sphi 0, %s94
      %s97 = sphi 0, %s96
      %s111 = sphi 0, %s97
      %s115 = sphi 0, %s115
      %s117 = sphi 0, %s115
      %s118 = sphi 0, %s117
      %s132 = sphi 0, %s118
      %s136 = sphi 0, %s136
      %s138 = sphi 0, %s136
      %s139 = sphi 0, %s138
      %s153 = sphi 0, %s139
      %s157 = sphi 0, %s157
      %s159 = sphi 0, %s157
      %s160 = sphi 0, %s159
      %s174 = sphi 0, %s160
      %s178 = sphi 0, %s178
      %s180 = sphi 0, %s178
      %s181 = sphi 0, %s180
      %s195 = sphi 0, %s181
    $region4: #{encoder_forward.9} parent=1 // loop_header_branch
      %16 = sbr.rel (%p14) target = $region8
    $region5: #{encoder_forward.9} parent=1 // loop_body
      %s18 = ssub.s32 %s13, 1
      %s19 = ssub.s32 %s13, 2
      %s20 = sadd.s32 %s13, 1
      %s21 = ssub.s32 %s13, %s20
      %p22 = scmp.eq.s32.totalorder %s21, 0
      %s24 = sadd.s32 %s23, 1
      %s25 = scalar_select %p22, %s23, %s24
      %p28 = pneg %p22
      %p29 = scmp.eq.s32.totalorder %s13, 4
      %p30 = por %p28, %p29
      %p31 = scmp.ne.s32.totalorder %s23, %s26
      %p32 = scmp.eq.s32.totalorder %s13, 0
      %p33 = por %p31, %p32
      %p34 = scmp.ne.s32.totalorder %s23, %s26
      %p35 = scmp.eq.s32.totalorder %s18, 4
      %p36 = por %p34, %p35
      %p37 = scmp.ne.s32.totalorder %s26, %s27
      %p38 = scmp.eq.s32.totalorder %s18, 0
      %p39 = por %p37, %p38
      %p40 = scmp.ne.s32.totalorder %s26, %s27
      %p41 = scmp.eq.s32.totalorder %s19, 4
      %p42 = por %p40, %p41
      %p44 = scmp.ne.s32.totalorder %s27, %s43
      %p45 = scmp.eq.s32.totalorder %s19, 0
      %p46 = por %p44, %p45
      %s47 = ssub.s32 %s13, %s20
      %p48 = scmp.eq.s32.totalorder %s47, 0
      %s50 = sadd.s32 %s49, 1
      %s51 = scalar_select %p48, %s49, %s50
      %p54 = pneg %p48
      %p55 = scmp.eq.s32.totalorder %s13, 4
      %p56 = por %p54, %p55
      %p57 = scmp.ne.s32.totalorder %s49, %s52
      %p58 = scmp.eq.s32.totalorder %s13, 0
      %p59 = por %p57, %p58
      %p60 = scmp.ne.s32.totalorder %s49, %s52
      %p61 = scmp.eq.s32.totalorder %s18, 4
      %p62 = por %p60, %p61
      %p63 = scmp.ne.s32.totalorder %s52, %s53
      %p64 = scmp.eq.s32.totalorder %s18, 0
      %p65 = por %p63, %p64
      %p66 = scmp.ne.s32.totalorder %s52, %s53
      %p67 = scmp.eq.s32.totalorder %s19, 4
      %p68 = por %p66, %p67
      %p70 = scmp.ne.s32.totalorder %s53, %s69
      %p71 = scmp.eq.s32.totalorder %s19, 0
      %p72 = por %p70, %p71
      %s74 = sadd.s32 %s73, 1
      %p77 = scmp.eq.s32.totalorder %s13, 4
      %p78 = scmp.ne.s32.totalorder %s73, %s75
      %p79 = scmp.eq.s32.totalorder %s13, 0
      %p80 = por %p78, %p79
      %p81 = scmp.ne.s32.totalorder %s73, %s75
      %p82 = scmp.eq.s32.totalorder %s18, 4
      %p83 = por %p81, %p82
      %p84 = scmp.ne.s32.totalorder %s75, %s76
      %p85 = scmp.eq.s32.totalorder %s18, 0
      %p86 = por %p84, %p85
      %p87 = scmp.ne.s32.totalorder %s75, %s76
      %p88 = scmp.eq.s32.totalorder %s19, 4
      %p89 = por %p87, %p88
      %p91 = scmp.ne.s32.totalorder %s76, %s90
      %p92 = scmp.eq.s32.totalorder %s19, 0
      %p93 = por %p91, %p92
      %s95 = sadd.s32 %s94, 1
      %p98 = scmp.eq.s32.totalorder %s13, 4
      %p99 = scmp.ne.s32.totalorder %s94, %s96
      %p100 = scmp.eq.s32.totalorder %s13, 0
      %p101 = por %p99, %p100
      %p102 = scmp.ne.s32.totalorder %s94, %s96
      %p103 = scmp.eq.s32.totalorder %s18, 4
      %p104 = por %p102, %p103
      %p105 = scmp.ne.s32.totalorder %s96, %s97
      %p106 = scmp.eq.s32.totalorder %s18, 0
      %p107 = por %p105, %p106
      %p108 = scmp.ne.s32.totalorder %s96, %s97
      %p109 = scmp.eq.s32.totalorder %s19, 4
      %p110 = por %p108, %p109
      %p112 = scmp.ne.s32.totalorder %s97, %s111
      %p113 = scmp.eq.s32.totalorder %s19, 0
      %p114 = por %p112, %p113
      %s116 = sadd.s32 %s115, 1
      %p119 = scmp.eq.s32.totalorder %s13, 4
      %p120 = scmp.ne.s32.totalorder %s115, %s117
      %p121 = scmp.eq.s32.totalorder %s13, 0
      %p122 = por %p120, %p121
      %p123 = scmp.ne.s32.totalorder %s115, %s117
      %p124 = scmp.eq.s32.totalorder %s18, 4
      %p125 = por %p123, %p124
      %p126 = scmp.ne.s32.totalorder %s117, %s118
      %p127 = scmp.eq.s32.totalorder %s18, 0
      %p128 = por %p126, %p127
      %p129 = scmp.ne.s32.totalorder %s117, %s118
      %p130 = scmp.eq.s32.totalorder %s19, 4
      %p131 = por %p129, %p130
      %p133 = scmp.ne.s32.totalorder %s118, %s132
      %p134 = scmp.eq.s32.totalorder %s19, 0
      %p135 = por %p133, %p134
      %s137 = sadd.s32 %s136, 1
      %p140 = scmp.eq.s32.totalorder %s13, 4
      %p141 = scmp.ne.s32.totalorder %s136, %s138
      %p142 = scmp.eq.s32.totalorder %s13, 0
      %p143 = por %p141, %p142
      %p144 = scmp.ne.s32.totalorder %s136, %s138
      %p145 = scmp.eq.s32.totalorder %s18, 4
      %p146 = por %p144, %p145
      %p147 = scmp.ne.s32.totalorder %s138, %s139
      %p148 = scmp.eq.s32.totalorder %s18, 0
      %p149 = por %p147, %p148
      %p150 = scmp.ne.s32.totalorder %s138, %s139
      %p151 = scmp.eq.s32.totalorder %s19, 4
      %p152 = por %p150, %p151
      %p154 = scmp.ne.s32.totalorder %s139, %s153
      %p155 = scmp.eq.s32.totalorder %s19, 0
      %p156 = por %p154, %p155
      %s158 = sadd.s32 %s157, 1
      %p161 = scmp.eq.s32.totalorder %s13, 4
      %p162 = scmp.ne.s32.totalorder %s157, %s159
      %p163 = scmp.eq.s32.totalorder %s13, 0
      %p164 = por %p162, %p163
      %p165 = scmp.ne.s32.totalorder %s157, %s159
      %p166 = scmp.eq.s32.totalorder %s18, 4
      %p167 = por %p165, %p166
      %p168 = scmp.ne.s32.totalorder %s159, %s160
      %p169 = scmp.eq.s32.totalorder %s18, 0
      %p170 = por %p168, %p169
      %p171 = scmp.ne.s32.totalorder %s159, %s160
      %p172 = scmp.eq.s32.totalorder %s19, 4
      %p173 = por %p171, %p172
      %p175 = scmp.ne.s32.totalorder %s160, %s174
      %p176 = scmp.eq.s32.totalorder %s19, 0
      %p177 = por %p175, %p176
      %s179 = sadd.s32 %s178, 1
      %p182 = scmp.eq.s32.totalorder %s13, 4
      %p183 = scmp.ne.s32.totalorder %s178, %s180
      %p184 = scmp.eq.s32.totalorder %s13, 0
      %p185 = por %p183, %p184
      %p186 = scmp.ne.s32.totalorder %s178, %s180
      %p187 = scmp.eq.s32.totalorder %s18, 4
      %p188 = por %p186, %p187
      %p189 = scmp.ne.s32.totalorder %s180, %s181
      %p190 = scmp.eq.s32.totalorder %s18, 0
      %p191 = por %p189, %p190
      %p192 = scmp.ne.s32.totalorder %s180, %s181
      %p193 = scmp.eq.s32.totalorder %s19, 4
      %p194 = por %p192, %p193
      %p196 = scmp.ne.s32.totalorder %s181, %s195
      %p197 = scmp.eq.s32.totalorder %s19, 0
      %p198 = por %p196, %p197
      %p199 = scmp.le.s32.totalorder 1, %s13
      %p200 = scmp.lt.s32.totalorder %s13, 6
      %p201 = pnand %p199, %p200
      %p202 = pneg %p201
      // Predicated region
      $region9: #{encoder_forward.9} parent=5 // pred_check
        _
      $region10: #{encoder_forward.9} parent=5 // pred_check_branch
        %204 = sbr.rel (%p201) target = $region12
      $region11: #{encoder_forward.9} parent=5 // pred_region
        %s205 = ssub.s32 %s13, 1
        // Predicated region
        $region13: #{encoder_forward.9} parent=11 // pred_check
          %p206 = pneg %p86
        $region14: #{encoder_forward.9} parent=11 // pred_check_branch
          %208 = sbr.rel (%p206) target = $region16
        $region15: #{encoder_forward.9} parent=11 // pred_region
          _
        $region16: #{encoder_forward.9} parent=11 // pred_fallthru
          _
        // Predicated region
        $region17: #{encoder_forward.9} parent=11 // pred_check
          %p209 = pneg %p107
        $region18: #{encoder_forward.9} parent=11 // pred_check_branch
          %211 = sbr.rel (%p209) target = $region20
        $region19: #{encoder_forward.9} parent=11 // pred_region
          _
        $region20: #{encoder_forward.9} parent=11 // pred_fallthru
          _
        // Predicated region
        $region21: #{encoder_forward.9} parent=11 // pred_check
          %p212 = pneg %p128
        $region22: #{encoder_forward.9} parent=11 // pred_check_branch
          %214 = sbr.rel (%p212) target = $region24
        $region23: #{encoder_forward.9} parent=11 // pred_region
          _
        $region24: #{encoder_forward.9} parent=11 // pred_fallthru
          _
        // Predicated region
        $region25: #{encoder_forward.9} parent=11 // pred_check
          %p215 = pneg %p149
        $region26: #{encoder_forward.9} parent=11 // pred_check_branch
          %217 = sbr.rel (%p215) target = $region28
        $region27: #{encoder_forward.9} parent=11 // pred_region
          _
        $region28: #{encoder_forward.9} parent=11 // pred_fallthru
          _
        // Predicated region
        $region29: #{encoder_forward.9} parent=11 // pred_check
          %p218 = pneg %p170
        $region30: #{encoder_forward.9} parent=11 // pred_check_branch
          %220 = sbr.rel (%p218) target = $region32
        $region31: #{encoder_forward.9} parent=11 // pred_region
          _
        $region32: #{encoder_forward.9} parent=11 // pred_fallthru
          _
      $region12: #{encoder_forward.9} parent=5 // pred_fallthru
        _
      %p221 = scmp.lt.s32.totalorder %s13, 5
      // Predicated region
      $region33: #{encoder_forward.9} parent=5 // pred_check
        %p222 = pneg %p221
      $region34: #{encoder_forward.9} parent=5 // pred_check_branch
        %224 = sbr.rel (%p222) target = $region36
      $region35: #{encoder_forward.9} parent=5 // pred_region
        // Predicated region
        $region37: #{encoder_forward.9} parent=35 // pred_check
          %p225 = pneg %p33
        $region38: #{encoder_forward.9} parent=35 // pred_check_branch
          %227 = sbr.rel (%p225) target = $region40
        $region39: #{encoder_forward.9} parent=35 // pred_region
          %s228 = smul.u32 10, %s13
          %p229 = scmp.lt.s32.totalorder %s228, 49
          %s230 = scalar_select %p229, %s228, 49
          %s231 = smul.addr %s230, 2
          %s232 = scalar_lea.vmem %s0, %s231
          %s233 = smul.u32 10, %s13
        $region40: #{encoder_forward.9} parent=35 // pred_fallthru
          _
        // Predicated region
        $region41: #{encoder_forward.9} parent=35 // pred_check
          %p234 = pneg %p59
        $region42: #{encoder_forward.9} parent=35 // pred_check_branch
          %236 = sbr.rel (%p234) target = $region44
        $region43: #{encoder_forward.9} parent=35 // pred_region
          %s237 = sand.u32 %s49, 1
          %s238 = sand.u32 %s49, 1
          %s239 = smul.addr %s238, 2560
          %s240 = scalar_lea.vmem [#allocation3], %s239
          %s241 = smul.u32 10, %s13
          %s242 = smul.addr %s241, 8
          %s243 = scalar_lea.vmem %s1, %s242
          // Predicated region
          $region45: #{encoder_forward.9} parent=43 // pred_check
            _
          $region46: #{encoder_forward.9} parent=43 // pred_check_branch
            %245 = sbr.rel (0) target = $region48
          $region47: #{encoder_forward.9} parent=43 // pred_region
            // Predicated region
            $region49: #{encoder_forward.9} parent=47 // pred_check
              _
            $region50: #{encoder_forward.9} parent=47 // pred_check_branch
              %247 = sbr.rel (0) target = $region52
            $region51: #{encoder_forward.9} parent=47 // pred_region
              loop: start=0, step=1, limit=1
              $region53: #{encoder_forward.9} parent=51 // loop_pre_header
                _
              $region54: #{encoder_forward.9} parent=51 // loop_header
                %s249 = sphi 0, %s253
                %p250 = scmp.ge.s32.totalorder %s249, 1
                %s254 = sphi %s243, %s243
                %s255 = sphi %s240, %s240
              $region55: #{encoder_forward.9} parent=51 // loop_header_branch
                %252 = sbr.rel (%p250) target = $region59
              $region56: #{encoder_forward.9} parent=51 // loop_body
                %v256 = vld [vmem:[%s254] sm:$0xff]
                %257 = vst [vmem:[%s255] sm:$0xff] %v256
                %v258 = vld [vmem:[%s254 + $0x8] sm:$0xff]
                %259 = vst [vmem:[%s255 + $0x8] sm:$0xff] %v258
                %v260 = vld [vmem:[%s254 + $0x10] sm:$0xff]
                %261 = vst [vmem:[%s255 + $0x10] sm:$0xff] %v260
                %v262 = vld [vmem:[%s254 + $0x18] sm:$0xff]
                %263 = vst [vmem:[%s255 + $0x18] sm:$0xff] %v262
                %v264 = vld [vmem:[%s254 + $0x20] sm:$0xff]
                %265 = vst [vmem:[%s255 + $0x20] sm:$0xff] %v264
                %v266 = vld [vmem:[%s254 + $0x28] sm:$0xff]
                %267 = vst [vmem:[%s255 + $0x28] sm:$0xff] %v266
                %v268 = vld [vmem:[%s254 + $0x30] sm:$0xff]
                %269 = vst [vmem:[%s255 + $0x30] sm:$0xff] %v268
                %v270 = vld [vmem:[%s254 + $0x38] sm:$0xff]
                %271 = vst [vmem:[%s255 + $0x38] sm:$0xff] %v270
                %v272 = vld [vmem:[%s254 + $0x40] sm:$0xff]
                %273 = vst [vmem:[%s255 + $0x40] sm:$0xff] %v272
                %v274 = vld [vmem:[%s254 + $0x48] sm:$0xff]
                %275 = vst [vmem:[%s255 + $0x48] sm:$0xff] %v274
                %v276 = vld [vmem:[%s254 + $0x190] sm:$0xff]
                %277 = vst [vmem:[%s255 + $0x50] sm:$0xff] %v276
                %v278 = vld [vmem:[%s254 + $0x198] sm:$0xff]
                %279 = vst [vmem:[%s255 + $0x58] sm:$0xff] %v278
                %v280 = vld [vmem:[%s254 + $0x1a0] sm:$0xff]
                %281 = vst [vmem:[%s255 + $0x60] sm:$0xff] %v280
                %v282 = vld [vmem:[%s254 + $0x1a8] sm:$0xff]
                %283 = vst [vmem:[%s255 + $0x68] sm:$0xff] %v282
                %v284 = vld [vmem:[%s254 + $0x1b0] sm:$0xff]
                %285 = vst [vmem:[%s255 + $0x70] sm:$0xff] %v284
                %v286 = vld [vmem:[%s254 + $0x1b8] sm:$0xff]
                %287 = vst [vmem:[%s255 + $0x78] sm:$0xff] %v286
                %v288 = vld [vmem:[%s254 + $0x1c0] sm:$0xff]
                %289 = vst [vmem:[%s255 + $0x80] sm:$0xff] %v288
                %v290 = vld [vmem:[%s254 + $0x1c8] sm:$0xff]
                %291 = vst [vmem:[%s255 + $0x88] sm:$0xff] %v290
                %v292 = vld [vmem:[%s254 + $0x1d0] sm:$0xff]
                %293 = vst [vmem:[%s255 + $0x90] sm:$0xff] %v292
                %v294 = vld [vmem:[%s254 + $0x1d8] sm:$0xff]
                %295 = vst [vmem:[%s255 + $0x98] sm:$0xff] %v294
                %v296 = vld [vmem:[%s254 + $0x320] sm:$0xff]
                %297 = vst [vmem:[%s255 + $0xa0] sm:$0xff] %v296
                %v298 = vld [vmem:[%s254 + $0x328] sm:$0xff]
                %299 = vst [vmem:[%s255 + $0xa8] sm:$0xff] %v298
                %v300 = vld [vmem:[%s254 + $0x330] sm:$0xff]
                %301 = vst [vmem:[%s255 + $0xb0] sm:$0xff] %v300
                %v302 = vld [vmem:[%s254 + $0x338] sm:$0xff]
                %303 = vst [vmem:[%s255 + $0xb8] sm:$0xff] %v302
                %v304 = vld [vmem:[%s254 + $0x340] sm:$0xff]
                %305 = vst [vmem:[%s255 + $0xc0] sm:$0xff] %v304
                %v306 = vld [vmem:[%s254 + $0x348] sm:$0xff]
                %307 = vst [vmem:[%s255 + $0xc8] sm:$0xff] %v306
                %v308 = vld [vmem:[%s254 + $0x350] sm:$0xff]
                %309 = vst [vmem:[%s255 + $0xd0] sm:$0xff] %v308
                %v310 = vld [vmem:[%s254 + $0x358] sm:$0xff]
                %311 = vst [vmem:[%s255 + $0xd8] sm:$0xff] %v310
                %v312 = vld [vmem:[%s254 + $0x360] sm:$0xff]
                %313 = vst [vmem:[%s255 + $0xe0] sm:$0xff] %v312
                %v314 = vld [vmem:[%s254 + $0x368] sm:$0xff]
                %315 = vst [vmem:[%s255 + $0xe8] sm:$0xff] %v314
                %v316 = vld [vmem:[%s254 + $0x4b0] sm:$0xff]
                %317 = vst [vmem:[%s255 + $0xf0] sm:$0xff] %v316
                %v318 = vld [vmem:[%s254 + $0x4b8] sm:$0xff]
                %319 = vst [vmem:[%s255 + $0xf8] sm:$0xff] %v318
                %v320 = vld [vmem:[%s254 + $0x4c0] sm:$0xff]
                %321 = vst [vmem:[%s255 + $0x100] sm:$0xff] %v320
                %v322 = vld [vmem:[%s254 + $0x4c8] sm:$0xff]
                %323 = vst [vmem:[%s255 + $0x108] sm:$0xff] %v322
                %v324 = vld [vmem:[%s254 + $0x4d0] sm:$0xff]
                %325 = vst [vmem:[%s255 + $0x110] sm:$0xff] %v324
                %v326 = vld [vmem:[%s254 + $0x4d8] sm:$0xff]
                %327 = vst [vmem:[%s255 + $0x118] sm:$0xff] %v326
                %v328 = vld [vmem:[%s254 + $0x4e0] sm:$0xff]
                %329 = vst [vmem:[%s255 + $0x120] sm:$0xff] %v328
                %v330 = vld [vmem:[%s254 + $0x4e8] sm:$0xff]
                %331 = vst [vmem:[%s255 + $0x128] sm:$0xff] %v330
                %v332 = vld [vmem:[%s254 + $0x4f0] sm:$0xff]
                %333 = vst [vmem:[%s255 + $0x130] sm:$0xff] %v332
                %v334 = vld [vmem:[%s254 + $0x4f8] sm:$0xff]
                %335 = vst [vmem:[%s255 + $0x138] sm:$0xff] %v334
                %v336 = vld [vmem:[%s254 + $0x640] sm:$0xff]
                %337 = vst [vmem:[%s255 + $0x140] sm:$0xff] %v336
                %v338 = vld [vmem:[%s254 + $0x648] sm:$0xff]
                %339 = vst [vmem:[%s255 + $0x148] sm:$0xff] %v338
                %v340 = vld [vmem:[%s254 + $0x650] sm:$0xff]
                %341 = vst [vmem:[%s255 + $0x150] sm:$0xff] %v340
                %v342 = vld [vmem:[%s254 + $0x658] sm:$0xff]
                %343 = vst [vmem:[%s255 + $0x158] sm:$0xff] %v342
                %v344 = vld [vmem:[%s254 + $0x660] sm:$0xff]
                %345 = vst [vmem:[%s255 + $0x160] sm:$0xff] %v344
                %v346 = vld [vmem:[%s254 + $0x668] sm:$0xff]
                %347 = vst [vmem:[%s255 + $0x168] sm:$0xff] %v346
                %v348 = vld [vmem:[%s254 + $0x670] sm:$0xff]
                %349 = vst [vmem:[%s255 + $0x170] sm:$0xff] %v348
                %v350 = vld [vmem:[%s254 + $0x678] sm:$0xff]
                %351 = vst [vmem:[%s255 + $0x178] sm:$0xff] %v350
                %v352 = vld [vmem:[%s254 + $0x680] sm:$0xff]
                %353 = vst [vmem:[%s255 + $0x180] sm:$0xff] %v352
                %v354 = vld [vmem:[%s254 + $0x688] sm:$0xff]
                %355 = vst [vmem:[%s255 + $0x188] sm:$0xff] %v354
                %v356 = vld [vmem:[%s254 + $0x7d0] sm:$0xff]
                %357 = vst [vmem:[%s255 + $0x190] sm:$0xff] %v356
                %v358 = vld [vmem:[%s254 + $0x7d8] sm:$0xff]
                %359 = vst [vmem:[%s255 + $0x198] sm:$0xff] %v358
                %v360 = vld [vmem:[%s254 + $0x7e0] sm:$0xff]
                %361 = vst [vmem:[%s255 + $0x1a0] sm:$0xff] %v360
                %v362 = vld [vmem:[%s254 + $0x7e8] sm:$0xff]
                %363 = vst [vmem:[%s255 + $0x1a8] sm:$0xff] %v362
                %v364 = vld [vmem:[%s254 + $0x7f0] sm:$0xff]
                %365 = vst [vmem:[%s255 + $0x1b0] sm:$0xff] %v364
                %v366 = vld [vmem:[%s254 + $0x7f8] sm:$0xff]
                %367 = vst [vmem:[%s255 + $0x1b8] sm:$0xff] %v366
                %v368 = vld [vmem:[%s254 + $0x800] sm:$0xff]
                %369 = vst [vmem:[%s255 + $0x1c0] sm:$0xff] %v368
                %v370 = vld [vmem:[%s254 + $0x808] sm:$0xff]
                %371 = vst [vmem:[%s255 + $0x1c8] sm:$0xff] %v370
                %v372 = vld [vmem:[%s254 + $0x810] sm:$0xff]
                %373 = vst [vmem:[%s255 + $0x1d0] sm:$0xff] %v372
                %v374 = vld [vmem:[%s254 + $0x818] sm:$0xff]
                %375 = vst [vmem:[%s255 + $0x1d8] sm:$0xff] %v374
                %v376 = vld [vmem:[%s254 + $0x960] sm:$0xff]
                %377 = vst [vmem:[%s255 + $0x1e0] sm:$0xff] %v376
                %v378 = vld [vmem:[%s254 + $0x968] sm:$0xff]
                %379 = vst [vmem:[%s255 + $0x1e8] sm:$0xff] %v378
                %v380 = vld [vmem:[%s254 + $0x970] sm:$0xff]
                %381 = vst [vmem:[%s255 + $0x1f0] sm:$0xff] %v380
                %v382 = vld [vmem:[%s254 + $0x978] sm:$0xff]
                %383 = vst [vmem:[%s255 + $0x1f8] sm:$0xff] %v382
                %v384 = vld [vmem:[%s254 + $0x980] sm:$0xff]
                %385 = vst [vmem:[%s255 + $0x200] sm:$0xff] %v384
                %v386 = vld [vmem:[%s254 + $0x988] sm:$0xff]
                %387 = vst [vmem:[%s255 + $0x208] sm:$0xff] %v386
                %v388 = vld [vmem:[%s254 + $0x990] sm:$0xff]
                %389 = vst [vmem:[%s255 + $0x210] sm:$0xff] %v388
                %v390 = vld [vmem:[%s254 + $0x998] sm:$0xff]
                %391 = vst [vmem:[%s255 + $0x218] sm:$0xff] %v390
                %v392 = vld [vmem:[%s254 + $0x9a0] sm:$0xff]
                %393 = vst [vmem:[%s255 + $0x220] sm:$0xff] %v392
                %v394 = vld [vmem:[%s254 + $0x9a8] sm:$0xff]
                %395 = vst [vmem:[%s255 + $0x228] sm:$0xff] %v394
                %v396 = vld [vmem:[%s254 + $0xaf0] sm:$0xff]
                %397 = vst [vmem:[%s255 + $0x230] sm:$0xff] %v396
                %v398 = vld [vmem:[%s254 + $0xaf8] sm:$0xff]
                %399 = vst [vmem:[%s255 + $0x238] sm:$0xff] %v398
                %v400 = vld [vmem:[%s254 + $0xb00] sm:$0xff]
                %401 = vst [vmem:[%s255 + $0x240] sm:$0xff] %v400
                %v402 = vld [vmem:[%s254 + $0xb08] sm:$0xff]
                %403 = vst [vmem:[%s255 + $0x248] sm:$0xff] %v402
                %v404 = vld [vmem:[%s254 + $0xb10] sm:$0xff]
                %405 = vst [vmem:[%s255 + $0x250] sm:$0xff] %v404
                %v406 = vld [vmem:[%s254 + $0xb18] sm:$0xff]
                %407 = vst [vmem:[%s255 + $0x258] sm:$0xff] %v406
                %v408 = vld [vmem:[%s254 + $0xb20] sm:$0xff]
                %409 = vst [vmem:[%s255 + $0x260] sm:$0xff] %v408
                %v410 = vld [vmem:[%s254 + $0xb28] sm:$0xff]
                %411 = vst [vmem:[%s255 + $0x268] sm:$0xff] %v410
                %v412 = vld [vmem:[%s254 + $0xb30] sm:$0xff]
                %413 = vst [vmem:[%s255 + $0x270] sm:$0xff] %v412
                %v414 = vld [vmem:[%s254 + $0xb38] sm:$0xff]
                %415 = vst [vmem:[%s255 + $0x278] sm:$0xff] %v414
                %v416 = vld [vmem:[%s254 + $0xc80] sm:$0xff]
                %417 = vst [vmem:[%s255 + $0x280] sm:$0xff] %v416
                %v418 = vld [vmem:[%s254 + $0xc88] sm:$0xff]
                %419 = vst [vmem:[%s255 + $0x288] sm:$0xff] %v418
                %v420 = vld [vmem:[%s254 + $0xc90] sm:$0xff]
                %421 = vst [vmem:[%s255 + $0x290] sm:$0xff] %v420
                %v422 = vld [vmem:[%s254 + $0xc98] sm:$0xff]
                %423 = vst [vmem:[%s255 + $0x298] sm:$0xff] %v422
                %v424 = vld [vmem:[%s254 + $0xca0] sm:$0xff]
                %425 = vst [vmem:[%s255 + $0x2a0] sm:$0xff] %v424
                %v426 = vld [vmem:[%s254 + $0xca8] sm:$0xff]
                %427 = vst [vmem:[%s255 + $0x2a8] sm:$0xff] %v426
                %v428 = vld [vmem:[%s254 + $0xcb0] sm:$0xff]
                %429 = vst [vmem:[%s255 + $0x2b0] sm:$0xff] %v428
                %v430 = vld [vmem:[%s254 + $0xcb8] sm:$0xff]
                %431 = vst [vmem:[%s255 + $0x2b8] sm:$0xff] %v430
                %v432 = vld [vmem:[%s254 + $0xcc0] sm:$0xff]
                %433 = vst [vmem:[%s255 + $0x2c0] sm:$0xff] %v432
                %v434 = vld [vmem:[%s254 + $0xcc8] sm:$0xff]
                %435 = vst [vmem:[%s255 + $0x2c8] sm:$0xff] %v434
                %v436 = vld [vmem:[%s254 + $0xe10] sm:$0xff]
                %437 = vst [vmem:[%s255 + $0x2d0] sm:$0xff] %v436
                %v438 = vld [vmem:[%s254 + $0xe18] sm:$0xff]
                %439 = vst [vmem:[%s255 + $0x2d8] sm:$0xff] %v438
                %v440 = vld [vmem:[%s254 + $0xe20] sm:$0xff]
                %441 = vst [vmem:[%s255 + $0x2e0] sm:$0xff] %v440
                %v442 = vld [vmem:[%s254 + $0xe28] sm:$0xff]
                %443 = vst [vmem:[%s255 + $0x2e8] sm:$0xff] %v442
                %v444 = vld [vmem:[%s254 + $0xe30] sm:$0xff]
                %445 = vst [vmem:[%s255 + $0x2f0] sm:$0xff] %v444
                %v446 = vld [vmem:[%s254 + $0xe38] sm:$0xff]
                %447 = vst [vmem:[%s255 + $0x2f8] sm:$0xff] %v446
                %v448 = vld [vmem:[%s254 + $0xe40] sm:$0xff]
                %449 = vst [vmem:[%s255 + $0x300] sm:$0xff] %v448
                %v450 = vld [vmem:[%s254 + $0xe48] sm:$0xff]
                %451 = vst [vmem:[%s255 + $0x308] sm:$0xff] %v450
                %v452 = vld [vmem:[%s254 + $0xe50] sm:$0xff]
                %453 = vst [vmem:[%s255 + $0x310] sm:$0xff] %v452
                %v454 = vld [vmem:[%s254 + $0xe58] sm:$0xff]
                %455 = vst [vmem:[%s255 + $0x318] sm:$0xff] %v454
                %v456 = vld [vmem:[%s254 + $0xfa0] sm:$0xff]
                %457 = vst [vmem:[%s255 + $0x320] sm:$0xff] %v456
                %v458 = vld [vmem:[%s254 + $0xfa8] sm:$0xff]
                %459 = vst [vmem:[%s255 + $0x328] sm:$0xff] %v458
                %v460 = vld [vmem:[%s254 + $0xfb0] sm:$0xff]
                %461 = vst [vmem:[%s255 + $0x330] sm:$0xff] %v460
                %v462 = vld [vmem:[%s254 + $0xfb8] sm:$0xff]
                %463 = vst [vmem:[%s255 + $0x338] sm:$0xff] %v462
                %v464 = vld [vmem:[%s254 + $0xfc0] sm:$0xff]
                %465 = vst [vmem:[%s255 + $0x340] sm:$0xff] %v464
                %v466 = vld [vmem:[%s254 + $0xfc8] sm:$0xff]
                %467 = vst [vmem:[%s255 + $0x348] sm:$0xff] %v466
                %v468 = vld [vmem:[%s254 + $0xfd0] sm:$0xff]
                %469 = vst [vmem:[%s255 + $0x350] sm:$0xff] %v468
                %v470 = vld [vmem:[%s254 + $0xfd8] sm:$0xff]
                %471 = vst [vmem:[%s255 + $0x358] sm:$0xff] %v470
                %v472 = vld [vmem:[%s254 + $0xfe0] sm:$0xff]
                %473 = vst [vmem:[%s255 + $0x360] sm:$0xff] %v472
                %v474 = vld [vmem:[%s254 + $0xfe8] sm:$0xff]
                %475 = vst [vmem:[%s255 + $0x368] sm:$0xff] %v474
                %v476 = vld [vmem:[%s254 + $0x1130] sm:$0xff]
                %477 = vst [vmem:[%s255 + $0x370] sm:$0xff] %v476
                %v478 = vld [vmem:[%s254 + $0x1138] sm:$0xff]
                %479 = vst [vmem:[%s255 + $0x378] sm:$0xff] %v478
                %v480 = vld [vmem:[%s254 + $0x1140] sm:$0xff]
                %481 = vst [vmem:[%s255 + $0x380] sm:$0xff] %v480
                %v482 = vld [vmem:[%s254 + $0x1148] sm:$0xff]
                %483 = vst [vmem:[%s255 + $0x388] sm:$0xff] %v482
                %v484 = vld [vmem:[%s254 + $0x1150] sm:$0xff]
                %485 = vst [vmem:[%s255 + $0x390] sm:$0xff] %v484
                %v486 = vld [vmem:[%s254 + $0x1158] sm:$0xff]
                %487 = vst [vmem:[%s255 + $0x398] sm:$0xff] %v486
                %v488 = vld [vmem:[%s254 + $0x1160] sm:$0xff]
                %489 = vst [vmem:[%s255 + $0x3a0] sm:$0xff] %v488
                %v490 = vld [vmem:[%s254 + $0x1168] sm:$0xff]
                %491 = vst [vmem:[%s255 + $0x3a8] sm:$0xff] %v490
                %v492 = vld [vmem:[%s254 + $0x1170] sm:$0xff]
                %493 = vst [vmem:[%s255 + $0x3b0] sm:$0xff] %v492
                %v494 = vld [vmem:[%s254 + $0x1178] sm:$0xff]
                %495 = vst [vmem:[%s255 + $0x3b8] sm:$0xff] %v494
                %v496 = vld [vmem:[%s254 + $0x12c0] sm:$0xff]
                %497 = vst [vmem:[%s255 + $0x3c0] sm:$0xff] %v496
                %v498 = vld [vmem:[%s254 + $0x12c8] sm:$0xff]
                %499 = vst [vmem:[%s255 + $0x3c8] sm:$0xff] %v498
                %v500 = vld [vmem:[%s254 + $0x12d0] sm:$0xff]
                %501 = vst [vmem:[%s255 + $0x3d0] sm:$0xff] %v500
                %v502 = vld [vmem:[%s254 + $0x12d8] sm:$0xff]
                %503 = vst [vmem:[%s255 + $0x3d8] sm:$0xff] %v502
                %v504 = vld [vmem:[%s254 + $0x12e0] sm:$0xff]
                %505 = vst [vmem:[%s255 + $0x3e0] sm:$0xff] %v504
                %v506 = vld [vmem:[%s254 + $0x12e8] sm:$0xff]
                %507 = vst [vmem:[%s255 + $0x3e8] sm:$0xff] %v506
                %v508 = vld [vmem:[%s254 + $0x12f0] sm:$0xff]
                %509 = vst [vmem:[%s255 + $0x3f0] sm:$0xff] %v508
                %v510 = vld [vmem:[%s254 + $0x12f8] sm:$0xff]
                %511 = vst [vmem:[%s255 + $0x3f8] sm:$0xff] %v510
                %v512 = vld [vmem:[%s254 + $0x1300] sm:$0xff]
                %513 = vst [vmem:[%s255 + $0x400] sm:$0xff] %v512
                %v514 = vld [vmem:[%s254 + $0x1308] sm:$0xff]
                %515 = vst [vmem:[%s255 + $0x408] sm:$0xff] %v514
                %v516 = vld [vmem:[%s254 + $0x1450] sm:$0xff]
                %517 = vst [vmem:[%s255 + $0x410] sm:$0xff] %v516
                %v518 = vld [vmem:[%s254 + $0x1458] sm:$0xff]
                %519 = vst [vmem:[%s255 + $0x418] sm:$0xff] %v518
                %v520 = vld [vmem:[%s254 + $0x1460] sm:$0xff]
                %521 = vst [vmem:[%s255 + $0x420] sm:$0xff] %v520
                %v522 = vld [vmem:[%s254 + $0x1468] sm:$0xff]
                %523 = vst [vmem:[%s255 + $0x428] sm:$0xff] %v522
                %v524 = vld [vmem:[%s254 + $0x1470] sm:$0xff]
                %525 = vst [vmem:[%s255 + $0x430] sm:$0xff] %v524
                %v526 = vld [vmem:[%s254 + $0x1478] sm:$0xff]
                %527 = vst [vmem:[%s255 + $0x438] sm:$0xff] %v526
                %v528 = vld [vmem:[%s254 + $0x1480] sm:$0xff]
                %529 = vst [vmem:[%s255 + $0x440] sm:$0xff] %v528
                %v530 = vld [vmem:[%s254 + $0x1488] sm:$0xff]
                %531 = vst [vmem:[%s255 + $0x448] sm:$0xff] %v530
                %v532 = vld [vmem:[%s254 + $0x1490] sm:$0xff]
                %533 = vst [vmem:[%s255 + $0x450] sm:$0xff] %v532
                %v534 = vld [vmem:[%s254 + $0x1498] sm:$0xff]
                %535 = vst [vmem:[%s255 + $0x458] sm:$0xff] %v534
                %v536 = vld [vmem:[%s254 + $0x15e0] sm:$0xff]
                %537 = vst [vmem:[%s255 + $0x460] sm:$0xff] %v536
                %v538 = vld [vmem:[%s254 + $0x15e8] sm:$0xff]
                %539 = vst [vmem:[%s255 + $0x468] sm:$0xff] %v538
                %v540 = vld [vmem:[%s254 + $0x15f0] sm:$0xff]
                %541 = vst [vmem:[%s255 + $0x470] sm:$0xff] %v540
                %v542 = vld [vmem:[%s254 + $0x15f8] sm:$0xff]
                %543 = vst [vmem:[%s255 + $0x478] sm:$0xff] %v542
                %v544 = vld [vmem:[%s254 + $0x1600] sm:$0xff]
                %545 = vst [vmem:[%s255 + $0x480] sm:$0xff] %v544
                %v546 = vld [vmem:[%s254 + $0x1608] sm:$0xff]
                %547 = vst [vmem:[%s255 + $0x488] sm:$0xff] %v546
                %v548 = vld [vmem:[%s254 + $0x1610] sm:$0xff]
                %549 = vst [vmem:[%s255 + $0x490] sm:$0xff] %v548
                %v550 = vld [vmem:[%s254 + $0x1618] sm:$0xff]
                %551 = vst [vmem:[%s255 + $0x498] sm:$0xff] %v550
                %v552 = vld [vmem:[%s254 + $0x1620] sm:$0xff]
                %553 = vst [vmem:[%s255 + $0x4a0] sm:$0xff] %v552
                %v554 = vld [vmem:[%s254 + $0x1628] sm:$0xff]
                %555 = vst [vmem:[%s255 + $0x4a8] sm:$0xff] %v554
                %v556 = vld [vmem:[%s254 + $0x1770] sm:$0xff]
                %557 = vst [vmem:[%s255 + $0x4b0] sm:$0xff] %v556
                %v558 = vld [vmem:[%s254 + $0x1778] sm:$0xff]
                %559 = vst [vmem:[%s255 + $0x4b8] sm:$0xff] %v558
                %v560 = vld [vmem:[%s254 + $0x1780] sm:$0xff]
                %561 = vst [vmem:[%s255 + $0x4c0] sm:$0xff] %v560
                %v562 = vld [vmem:[%s254 + $0x1788] sm:$0xff]
                %563 = vst [vmem:[%s255 + $0x4c8] sm:$0xff] %v562
                %v564 = vld [vmem:[%s254 + $0x1790] sm:$0xff]
                %565 = vst [vmem:[%s255 + $0x4d0] sm:$0xff] %v564
                %v566 = vld [vmem:[%s254 + $0x1798] sm:$0xff]
                %567 = vst [vmem:[%s255 + $0x4d8] sm:$0xff] %v566
                %v568 = vld [vmem:[%s254 + $0x17a0] sm:$0xff]
                %569 = vst [vmem:[%s255 + $0x4e0] sm:$0xff] %v568
                %v570 = vld [vmem:[%s254 + $0x17a8] sm:$0xff]
                %571 = vst [vmem:[%s255 + $0x4e8] sm:$0xff] %v570
                %v572 = vld [vmem:[%s254 + $0x17b0] sm:$0xff]
                %573 = vst [vmem:[%s255 + $0x4f0] sm:$0xff] %v572
                %v574 = vld [vmem:[%s254 + $0x17b8] sm:$0xff]
                %575 = vst [vmem:[%s255 + $0x4f8] sm:$0xff] %v574
                %v576 = vld [vmem:[%s254 + $0x1900] sm:$0xff]
                %577 = vst [vmem:[%s255 + $0x500] sm:$0xff] %v576
                %v578 = vld [vmem:[%s254 + $0x1908] sm:$0xff]
                %579 = vst [vmem:[%s255 + $0x508] sm:$0xff] %v578
                %v580 = vld [vmem:[%s254 + $0x1910] sm:$0xff]
                %581 = vst [vmem:[%s255 + $0x510] sm:$0xff] %v580
                %v582 = vld [vmem:[%s254 + $0x1918] sm:$0xff]
                %583 = vst [vmem:[%s255 + $0x518] sm:$0xff] %v582
                %v584 = vld [vmem:[%s254 + $0x1920] sm:$0xff]
                %585 = vst [vmem:[%s255 + $0x520] sm:$0xff] %v584
                %v586 = vld [vmem:[%s254 + $0x1928] sm:$0xff]
                %587 = vst [vmem:[%s255 + $0x528] sm:$0xff] %v586
                %v588 = vld [vmem:[%s254 + $0x1930] sm:$0xff]
                %589 = vst [vmem:[%s255 + $0x530] sm:$0xff] %v588
                %v590 = vld [vmem:[%s254 + $0x1938] sm:$0xff]
                %591 = vst [vmem:[%s255 + $0x538] sm:$0xff] %v590
                %v592 = vld [vmem:[%s254 + $0x1940] sm:$0xff]
                %593 = vst [vmem:[%s255 + $0x540] sm:$0xff] %v592
                %v594 = vld [vmem:[%s254 + $0x1948] sm:$0xff]
                %595 = vst [vmem:[%s255 + $0x548] sm:$0xff] %v594
                %v596 = vld [vmem:[%s254 + $0x1a90] sm:$0xff]
                %597 = vst [vmem:[%s255 + $0x550] sm:$0xff] %v596
                %v598 = vld [vmem:[%s254 + $0x1a98] sm:$0xff]
                %599 = vst [vmem:[%s255 + $0x558] sm:$0xff] %v598
                %v600 = vld [vmem:[%s254 + $0x1aa0] sm:$0xff]
                %601 = vst [vmem:[%s255 + $0x560] sm:$0xff] %v600
                %v602 = vld [vmem:[%s254 + $0x1aa8] sm:$0xff]
                %603 = vst [vmem:[%s255 + $0x568] sm:$0xff] %v602
                %v604 = vld [vmem:[%s254 + $0x1ab0] sm:$0xff]
                %605 = vst [vmem:[%s255 + $0x570] sm:$0xff] %v604
                %v606 = vld [vmem:[%s254 + $0x1ab8] sm:$0xff]
                %607 = vst [vmem:[%s255 + $0x578] sm:$0xff] %v606
                %v608 = vld [vmem:[%s254 + $0x1ac0] sm:$0xff]
                %609 = vst [vmem:[%s255 + $0x580] sm:$0xff] %v608
                %v610 = vld [vmem:[%s254 + $0x1ac8] sm:$0xff]
                %611 = vst [vmem:[%s255 + $0x588] sm:$0xff] %v610
                %v612 = vld [vmem:[%s254 + $0x1ad0] sm:$0xff]
                %613 = vst [vmem:[%s255 + $0x590] sm:$0xff] %v612
                %v614 = vld [vmem:[%s254 + $0x1ad8] sm:$0xff]
                %615 = vst [vmem:[%s255 + $0x598] sm:$0xff] %v614
                %v616 = vld [vmem:[%s254 + $0x1c20] sm:$0xff]
                %617 = vst [vmem:[%s255 + $0x5a0] sm:$0xff] %v616
                %v618 = vld [vmem:[%s254 + $0x1c28] sm:$0xff]
                %619 = vst [vmem:[%s255 + $0x5a8] sm:$0xff] %v618
                %v620 = vld [vmem:[%s254 + $0x1c30] sm:$0xff]
                %621 = vst [vmem:[%s255 + $0x5b0] sm:$0xff] %v620
                %v622 = vld [vmem:[%s254 + $0x1c38] sm:$0xff]
                %623 = vst [vmem:[%s255 + $0x5b8] sm:$0xff] %v622
                %v624 = vld [vmem:[%s254 + $0x1c40] sm:$0xff]
                %625 = vst [vmem:[%s255 + $0x5c0] sm:$0xff] %v624
                %v626 = vld [vmem:[%s254 + $0x1c48] sm:$0xff]
                %627 = vst [vmem:[%s255 + $0x5c8] sm:$0xff] %v626
                %v628 = vld [vmem:[%s254 + $0x1c50] sm:$0xff]
                %629 = vst [vmem:[%s255 + $0x5d0] sm:$0xff] %v628
                %v630 = vld [vmem:[%s254 + $0x1c58] sm:$0xff]
                %631 = vst [vmem:[%s255 + $0x5d8] sm:$0xff] %v630
                %v632 = vld [vmem:[%s254 + $0x1c60] sm:$0xff]
                %633 = vst [vmem:[%s255 + $0x5e0] sm:$0xff] %v632
                %v634 = vld [vmem:[%s254 + $0x1c68] sm:$0xff]
                %635 = vst [vmem:[%s255 + $0x5e8] sm:$0xff] %v634
                %v636 = vld [vmem:[%s254 + $0x1db0] sm:$0xff]
                %637 = vst [vmem:[%s255 + $0x5f0] sm:$0xff] %v636
                %v638 = vld [vmem:[%s254 + $0x1db8] sm:$0xff]
                %639 = vst [vmem:[%s255 + $0x5f8] sm:$0xff] %v638
                %v640 = vld [vmem:[%s254 + $0x1dc0] sm:$0xff]
                %641 = vst [vmem:[%s255 + $0x600] sm:$0xff] %v640
                %v642 = vld [vmem:[%s254 + $0x1dc8] sm:$0xff]
                %643 = vst [vmem:[%s255 + $0x608] sm:$0xff] %v642
                %v644 = vld [vmem:[%s254 + $0x1dd0] sm:$0xff]
                %645 = vst [vmem:[%s255 + $0x610] sm:$0xff] %v644
                %v646 = vld [vmem:[%s254 + $0x1dd8] sm:$0xff]
                %647 = vst [vmem:[%s255 + $0x618] sm:$0xff] %v646
                %v648 = vld [vmem:[%s254 + $0x1de0] sm:$0xff]
                %649 = vst [vmem:[%s255 + $0x620] sm:$0xff] %v648
                %v650 = vld [vmem:[%s254 + $0x1de8] sm:$0xff]
                %651 = vst [vmem:[%s255 + $0x628] sm:$0xff] %v650
                %v652 = vld [vmem:[%s254 + $0x1df0] sm:$0xff]
                %653 = vst [vmem:[%s255 + $0x630] sm:$0xff] %v652
                %v654 = vld [vmem:[%s254 + $0x1df8] sm:$0xff]
                %655 = vst [vmem:[%s255 + $0x638] sm:$0xff] %v654
                %v656 = vld [vmem:[%s254 + $0x1f40] sm:$0xff]
                %657 = vst [vmem:[%s255 + $0x640] sm:$0xff] %v656
                %v658 = vld [vmem:[%s254 + $0x1f48] sm:$0xff]
                %659 = vst [vmem:[%s255 + $0x648] sm:$0xff] %v658
                %v660 = vld [vmem:[%s254 + $0x1f50] sm:$0xff]
                %661 = vst [vmem:[%s255 + $0x650] sm:$0xff] %v660
                %v662 = vld [vmem:[%s254 + $0x1f58] sm:$0xff]
                %663 = vst [vmem:[%s255 + $0x658] sm:$0xff] %v662
                %v664 = vld [vmem:[%s254 + $0x1f60] sm:$0xff]
                %665 = vst [vmem:[%s255 + $0x660] sm:$0xff] %v664
                %v666 = vld [vmem:[%s254 + $0x1f68] sm:$0xff]
                %667 = vst [vmem:[%s255 + $0x668] sm:$0xff] %v666
                %v668 = vld [vmem:[%s254 + $0x1f70] sm:$0xff]
                %669 = vst [vmem:[%s255 + $0x670] sm:$0xff] %v668
                %v670 = vld [vmem:[%s254 + $0x1f78] sm:$0xff]
                %671 = vst [vmem:[%s255 + $0x678] sm:$0xff] %v670
                %v672 = vld [vmem:[%s254 + $0x1f80] sm:$0xff]
                %673 = vst [vmem:[%s255 + $0x680] sm:$0xff] %v672
                %v674 = vld [vmem:[%s254 + $0x1f88] sm:$0xff]
                %675 = vst [vmem:[%s255 + $0x688] sm:$0xff] %v674
                %v676 = vld [vmem:[%s254 + $0x20d0] sm:$0xff]
                %677 = vst [vmem:[%s255 + $0x690] sm:$0xff] %v676
                %v678 = vld [vmem:[%s254 + $0x20d8] sm:$0xff]
                %679 = vst [vmem:[%s255 + $0x698] sm:$0xff] %v678
                %v680 = vld [vmem:[%s254 + $0x20e0] sm:$0xff]
                %681 = vst [vmem:[%s255 + $0x6a0] sm:$0xff] %v680
                %v682 = vld [vmem:[%s254 + $0x20e8] sm:$0xff]
                %683 = vst [vmem:[%s255 + $0x6a8] sm:$0xff] %v682
                %v684 = vld [vmem:[%s254 + $0x20f0] sm:$0xff]
                %685 = vst [vmem:[%s255 + $0x6b0] sm:$0xff] %v684
                %v686 = vld [vmem:[%s254 + $0x20f8] sm:$0xff]
                %687 = vst [vmem:[%s255 + $0x6b8] sm:$0xff] %v686
                %v688 = vld [vmem:[%s254 + $0x2100] sm:$0xff]
                %689 = vst [vmem:[%s255 + $0x6c0] sm:$0xff] %v688
                %v690 = vld [vmem:[%s254 + $0x2108] sm:$0xff]
                %691 = vst [vmem:[%s255 + $0x6c8] sm:$0xff] %v690
                %v692 = vld [vmem:[%s254 + $0x2110] sm:$0xff]
                %693 = vst [vmem:[%s255 + $0x6d0] sm:$0xff] %v692
                %v694 = vld [vmem:[%s254 + $0x2118] sm:$0xff]
                %695 = vst [vmem:[%s255 + $0x6d8] sm:$0xff] %v694
                %v696 = vld [vmem:[%s254 + $0x2260] sm:$0xff]
                %697 = vst [vmem:[%s255 + $0x6e0] sm:$0xff] %v696
                %v698 = vld [vmem:[%s254 + $0x2268] sm:$0xff]
                %699 = vst [vmem:[%s255 + $0x6e8] sm:$0xff] %v698
                %v700 = vld [vmem:[%s254 + $0x2270] sm:$0xff]
                %701 = vst [vmem:[%s255 + $0x6f0] sm:$0xff] %v700
                %v702 = vld [vmem:[%s254 + $0x2278] sm:$0xff]
                %703 = vst [vmem:[%s255 + $0x6f8] sm:$0xff] %v702
                %v704 = vld [vmem:[%s254 + $0x2280] sm:$0xff]
                %705 = vst [vmem:[%s255 + $0x700] sm:$0xff] %v704
                %v706 = vld [vmem:[%s254 + $0x2288] sm:$0xff]
                %707 = vst [vmem:[%s255 + $0x708] sm:$0xff] %v706
                %v708 = vld [vmem:[%s254 + $0x2290] sm:$0xff]
                %709 = vst [vmem:[%s255 + $0x710] sm:$0xff] %v708
                %v710 = vld [vmem:[%s254 + $0x2298] sm:$0xff]
                %711 = vst [vmem:[%s255 + $0x718] sm:$0xff] %v710
                %v712 = vld [vmem:[%s254 + $0x22a0] sm:$0xff]
                %713 = vst [vmem:[%s255 + $0x720] sm:$0xff] %v712
                %v714 = vld [vmem:[%s254 + $0x22a8] sm:$0xff]
                %715 = vst [vmem:[%s255 + $0x728] sm:$0xff] %v714
                %v716 = vld [vmem:[%s254 + $0x23f0] sm:$0xff]
                %717 = vst [vmem:[%s255 + $0x730] sm:$0xff] %v716
                %v718 = vld [vmem:[%s254 + $0x23f8] sm:$0xff]
                %719 = vst [vmem:[%s255 + $0x738] sm:$0xff] %v718
                %v720 = vld [vmem:[%s254 + $0x2400] sm:$0xff]
                %721 = vst [vmem:[%s255 + $0x740] sm:$0xff] %v720
                %v722 = vld [vmem:[%s254 + $0x2408] sm:$0xff]
                %723 = vst [vmem:[%s255 + $0x748] sm:$0xff] %v722
                %v724 = vld [vmem:[%s254 + $0x2410] sm:$0xff]
                %725 = vst [vmem:[%s255 + $0x750] sm:$0xff] %v724
                %v726 = vld [vmem:[%s254 + $0x2418] sm:$0xff]
                %727 = vst [vmem:[%s255 + $0x758] sm:$0xff] %v726
                %v728 = vld [vmem:[%s254 + $0x2420] sm:$0xff]
                %729 = vst [vmem:[%s255 + $0x760] sm:$0xff] %v728
                %v730 = vld [vmem:[%s254 + $0x2428] sm:$0xff]
                %731 = vst [vmem:[%s255 + $0x768] sm:$0xff] %v730
                %v732 = vld [vmem:[%s254 + $0x2430] sm:$0xff]
                %733 = vst [vmem:[%s255 + $0x770] sm:$0xff] %v732
                %v734 = vld [vmem:[%s254 + $0x2438] sm:$0xff]
                %735 = vst [vmem:[%s255 + $0x778] sm:$0xff] %v734
                %v736 = vld [vmem:[%s254 + $0x2580] sm:$0xff]
                %737 = vst [vmem:[%s255 + $0x780] sm:$0xff] %v736
                %v738 = vld [vmem:[%s254 + $0x2588] sm:$0xff]
                %739 = vst [vmem:[%s255 + $0x788] sm:$0xff] %v738
                %v740 = vld [vmem:[%s254 + $0x2590] sm:$0xff]
                %741 = vst [vmem:[%s255 + $0x790] sm:$0xff] %v740
                %v742 = vld [vmem:[%s254 + $0x2598] sm:$0xff]
                %743 = vst [vmem:[%s255 + $0x798] sm:$0xff] %v742
                %v744 = vld [vmem:[%s254 + $0x25a0] sm:$0xff]
                %745 = vst [vmem:[%s255 + $0x7a0] sm:$0xff] %v744
                %v746 = vld [vmem:[%s254 + $0x25a8] sm:$0xff]
                %747 = vst [vmem:[%s255 + $0x7a8] sm:$0xff] %v746
                %v748 = vld [vmem:[%s254 + $0x25b0] sm:$0xff]
                %749 = vst [vmem:[%s255 + $0x7b0] sm:$0xff] %v748
                %v750 = vld [vmem:[%s254 + $0x25b8] sm:$0xff]
                %751 = vst [vmem:[%s255 + $0x7b8] sm:$0xff] %v750
                %v752 = vld [vmem:[%s254 + $0x25c0] sm:$0xff]
                %753 = vst [vmem:[%s255 + $0x7c0] sm:$0xff] %v752
                %v754 = vld [vmem:[%s254 + $0x25c8] sm:$0xff]
                %755 = vst [vmem:[%s255 + $0x7c8] sm:$0xff] %v754
                %v756 = vld [vmem:[%s254 + $0x2710] sm:$0xff]
                %757 = vst [vmem:[%s255 + $0x7d0] sm:$0xff] %v756
                %v758 = vld [vmem:[%s254 + $0x2718] sm:$0xff]
                %759 = vst [vmem:[%s255 + $0x7d8] sm:$0xff] %v758
                %v760 = vld [vmem:[%s254 + $0x2720] sm:$0xff]
                %761 = vst [vmem:[%s255 + $0x7e0] sm:$0xff] %v760
                %v762 = vld [vmem:[%s254 + $0x2728] sm:$0xff]
                %763 = vst [vmem:[%s255 + $0x7e8] sm:$0xff] %v762
                %v764 = vld [vmem:[%s254 + $0x2730] sm:$0xff]
                %765 = vst [vmem:[%s255 + $0x7f0] sm:$0xff] %v764
                %v766 = vld [vmem:[%s254 + $0x2738] sm:$0xff]
                %767 = vst [vmem:[%s255 + $0x7f8] sm:$0xff] %v766
                %v768 = vld [vmem:[%s254 + $0x2740] sm:$0xff]
                %769 = vst [vmem:[%s255 + $0x800] sm:$0xff] %v768
                %v770 = vld [vmem:[%s254 + $0x2748] sm:$0xff]
                %771 = vst [vmem:[%s255 + $0x808] sm:$0xff] %v770
                %v772 = vld [vmem:[%s254 + $0x2750] sm:$0xff]
                %773 = vst [vmem:[%s255 + $0x810] sm:$0xff] %v772
                %v774 = vld [vmem:[%s254 + $0x2758] sm:$0xff]
                %775 = vst [vmem:[%s255 + $0x818] sm:$0xff] %v774
                %v776 = vld [vmem:[%s254 + $0x28a0] sm:$0xff]
                %777 = vst [vmem:[%s255 + $0x820] sm:$0xff] %v776
                %v778 = vld [vmem:[%s254 + $0x28a8] sm:$0xff]
                %779 = vst [vmem:[%s255 + $0x828] sm:$0xff] %v778
                %v780 = vld [vmem:[%s254 + $0x28b0] sm:$0xff]
                %781 = vst [vmem:[%s255 + $0x830] sm:$0xff] %v780
                %v782 = vld [vmem:[%s254 + $0x28b8] sm:$0xff]
                %783 = vst [vmem:[%s255 + $0x838] sm:$0xff] %v782
                %v784 = vld [vmem:[%s254 + $0x28c0] sm:$0xff]
                %785 = vst [vmem:[%s255 + $0x840] sm:$0xff] %v784
                %v786 = vld [vmem:[%s254 + $0x28c8] sm:$0xff]
                %787 = vst [vmem:[%s255 + $0x848] sm:$0xff] %v786
                %v788 = vld [vmem:[%s254 + $0x28d0] sm:$0xff]
                %789 = vst [vmem:[%s255 + $0x850] sm:$0xff] %v788
                %v790 = vld [vmem:[%s254 + $0x28d8] sm:$0xff]
                %791 = vst [vmem:[%s255 + $0x858] sm:$0xff] %v790
                %v792 = vld [vmem:[%s254 + $0x28e0] sm:$0xff]
                %793 = vst [vmem:[%s255 + $0x860] sm:$0xff] %v792
                %v794 = vld [vmem:[%s254 + $0x28e8] sm:$0xff]
                %795 = vst [vmem:[%s255 + $0x868] sm:$0xff] %v794
                %v796 = vld [vmem:[%s254 + $0x2a30] sm:$0xff]
                %797 = vst [vmem:[%s255 + $0x870] sm:$0xff] %v796
                %v798 = vld [vmem:[%s254 + $0x2a38] sm:$0xff]
                %799 = vst [vmem:[%s255 + $0x878] sm:$0xff] %v798
                %v800 = vld [vmem:[%s254 + $0x2a40] sm:$0xff]
                %801 = vst [vmem:[%s255 + $0x880] sm:$0xff] %v800
                %v802 = vld [vmem:[%s254 + $0x2a48] sm:$0xff]
                %803 = vst [vmem:[%s255 + $0x888] sm:$0xff] %v802
                %v804 = vld [vmem:[%s254 + $0x2a50] sm:$0xff]
                %805 = vst [vmem:[%s255 + $0x890] sm:$0xff] %v804
                %v806 = vld [vmem:[%s254 + $0x2a58] sm:$0xff]
                %807 = vst [vmem:[%s255 + $0x898] sm:$0xff] %v806
                %v808 = vld [vmem:[%s254 + $0x2a60] sm:$0xff]
                %809 = vst [vmem:[%s255 + $0x8a0] sm:$0xff] %v808
                %v810 = vld [vmem:[%s254 + $0x2a68] sm:$0xff]
                %811 = vst [vmem:[%s255 + $0x8a8] sm:$0xff] %v810
                %v812 = vld [vmem:[%s254 + $0x2a70] sm:$0xff]
                %813 = vst [vmem:[%s255 + $0x8b0] sm:$0xff] %v812
                %v814 = vld [vmem:[%s254 + $0x2a78] sm:$0xff]
                %815 = vst [vmem:[%s255 + $0x8b8] sm:$0xff] %v814
                %v816 = vld [vmem:[%s254 + $0x2bc0] sm:$0xff]
                %817 = vst [vmem:[%s255 + $0x8c0] sm:$0xff] %v816
                %v818 = vld [vmem:[%s254 + $0x2bc8] sm:$0xff]
                %819 = vst [vmem:[%s255 + $0x8c8] sm:$0xff] %v818
                %v820 = vld [vmem:[%s254 + $0x2bd0] sm:$0xff]
                %821 = vst [vmem:[%s255 + $0x8d0] sm:$0xff] %v820
                %v822 = vld [vmem:[%s254 + $0x2bd8] sm:$0xff]
                %823 = vst [vmem:[%s255 + $0x8d8] sm:$0xff] %v822
                %v824 = vld [vmem:[%s254 + $0x2be0] sm:$0xff]
                %825 = vst [vmem:[%s255 + $0x8e0] sm:$0xff] %v824
                %v826 = vld [vmem:[%s254 + $0x2be8] sm:$0xff]
                %827 = vst [vmem:[%s255 + $0x8e8] sm:$0xff] %v826
                %v828 = vld [vmem:[%s254 + $0x2bf0] sm:$0xff]
                %829 = vst [vmem:[%s255 + $0x8f0] sm:$0xff] %v828
                %v830 = vld [vmem:[%s254 + $0x2bf8] sm:$0xff]
                %831 = vst [vmem:[%s255 + $0x8f8] sm:$0xff] %v830
                %v832 = vld [vmem:[%s254 + $0x2c00] sm:$0xff]
                %833 = vst [vmem:[%s255 + $0x900] sm:$0xff] %v832
                %v834 = vld [vmem:[%s254 + $0x2c08] sm:$0xff]
                %835 = vst [vmem:[%s255 + $0x908] sm:$0xff] %v834
                %v836 = vld [vmem:[%s254 + $0x2d50] sm:$0xff]
                %837 = vst [vmem:[%s255 + $0x910] sm:$0xff] %v836
                %v838 = vld [vmem:[%s254 + $0x2d58] sm:$0xff]
                %839 = vst [vmem:[%s255 + $0x918] sm:$0xff] %v838
                %v840 = vld [vmem:[%s254 + $0x2d60] sm:$0xff]
                %841 = vst [vmem:[%s255 + $0x920] sm:$0xff] %v840
                %v842 = vld [vmem:[%s254 + $0x2d68] sm:$0xff]
                %843 = vst [vmem:[%s255 + $0x928] sm:$0xff] %v842
                %v844 = vld [vmem:[%s254 + $0x2d70] sm:$0xff]
                %845 = vst [vmem:[%s255 + $0x930] sm:$0xff] %v844
                %v846 = vld [vmem:[%s254 + $0x2d78] sm:$0xff]
                %847 = vst [vmem:[%s255 + $0x938] sm:$0xff] %v846
                %v848 = vld [vmem:[%s254 + $0x2d80] sm:$0xff]
                %849 = vst [vmem:[%s255 + $0x940] sm:$0xff] %v848
                %v850 = vld [vmem:[%s254 + $0x2d88] sm:$0xff]
                %851 = vst [vmem:[%s255 + $0x948] sm:$0xff] %v850
                %v852 = vld [vmem:[%s254 + $0x2d90] sm:$0xff]
                %853 = vst [vmem:[%s255 + $0x950] sm:$0xff] %v852
                %v854 = vld [vmem:[%s254 + $0x2d98] sm:$0xff]
                %855 = vst [vmem:[%s255 + $0x958] sm:$0xff] %v854
                %v856 = vld [vmem:[%s254 + $0x2ee0] sm:$0xff]
                %857 = vst [vmem:[%s255 + $0x960] sm:$0xff] %v856
                %v858 = vld [vmem:[%s254 + $0x2ee8] sm:$0xff]
                %859 = vst [vmem:[%s255 + $0x968] sm:$0xff] %v858
                %v860 = vld [vmem:[%s254 + $0x2ef0] sm:$0xff]
                %861 = vst [vmem:[%s255 + $0x970] sm:$0xff] %v860
                %v862 = vld [vmem:[%s254 + $0x2ef8] sm:$0xff]
                %863 = vst [vmem:[%s255 + $0x978] sm:$0xff] %v862
                %v864 = vld [vmem:[%s254 + $0x2f00] sm:$0xff]
                %865 = vst [vmem:[%s255 + $0x980] sm:$0xff] %v864
                %v866 = vld [vmem:[%s254 + $0x2f08] sm:$0xff]
                %867 = vst [vmem:[%s255 + $0x988] sm:$0xff] %v866
                %v868 = vld [vmem:[%s254 + $0x2f10] sm:$0xff]
                %869 = vst [vmem:[%s255 + $0x990] sm:$0xff] %v868
                %v870 = vld [vmem:[%s254 + $0x2f18] sm:$0xff]
                %871 = vst [vmem:[%s255 + $0x998] sm:$0xff] %v870
                %v872 = vld [vmem:[%s254 + $0x2f20] sm:$0xff]
                %873 = vst [vmem:[%s255 + $0x9a0] sm:$0xff] %v872
                %v874 = vld [vmem:[%s254 + $0x2f28] sm:$0xff]
                %875 = vst [vmem:[%s255 + $0x9a8] sm:$0xff] %v874
                %v876 = vld [vmem:[%s254 + $0x3070] sm:$0xff]
                %877 = vst [vmem:[%s255 + $0x9b0] sm:$0xff] %v876
                %v878 = vld [vmem:[%s254 + $0x3078] sm:$0xff]
                %879 = vst [vmem:[%s255 + $0x9b8] sm:$0xff] %v878
                %v880 = vld [vmem:[%s254 + $0x3080] sm:$0xff]
                %881 = vst [vmem:[%s255 + $0x9c0] sm:$0xff] %v880
                %v882 = vld [vmem:[%s254 + $0x3088] sm:$0xff]
                %883 = vst [vmem:[%s255 + $0x9c8] sm:$0xff] %v882
                %v884 = vld [vmem:[%s254 + $0x3090] sm:$0xff]
                %885 = vst [vmem:[%s255 + $0x9d0] sm:$0xff] %v884
                %v886 = vld [vmem:[%s254 + $0x3098] sm:$0xff]
                %887 = vst [vmem:[%s255 + $0x9d8] sm:$0xff] %v886
                %v888 = vld [vmem:[%s254 + $0x30a0] sm:$0xff]
                %889 = vst [vmem:[%s255 + $0x9e0] sm:$0xff] %v888
                %v890 = vld [vmem:[%s254 + $0x30a8] sm:$0xff]
                %891 = vst [vmem:[%s255 + $0x9e8] sm:$0xff] %v890
                %v892 = vld [vmem:[%s254 + $0x30b0] sm:$0xff]
                %893 = vst [vmem:[%s255 + $0x9f0] sm:$0xff] %v892
                %v894 = vld [vmem:[%s254 + $0x30b8] sm:$0xff]
                %895 = vst [vmem:[%s255 + $0x9f8] sm:$0xff] %v894
              $region57: #{encoder_forward.9} parent=51 // loop_footer
                %s253 = sadd.s32 1, %s249
              $region58: #{encoder_forward.9} parent=51 // loop_footer_branch
                %248 = sbr.rel target = $region54
              $region59: #{encoder_forward.9} parent=51 // loop_exit
                _
            $region52: #{encoder_forward.9} parent=47 // pred_fallthru
              _
            // Predicated region
            $region60: #{encoder_forward.9} parent=47 // pred_check
              _
            $region61: #{encoder_forward.9} parent=47 // pred_check_branch
              %897 = sbr.rel target = $region63
            $region62: #{encoder_forward.9} parent=47 // pred_region
              _
            $region63: #{encoder_forward.9} parent=47 // pred_fallthru
              _
          $region48: #{encoder_forward.9} parent=43 // pred_fallthru
            _
          %898 = vnop
        $region44: #{encoder_forward.9} parent=35 // pred_fallthru
          _
      $region36: #{encoder_forward.9} parent=5 // pred_fallthru
        _
      %p899 = scmp.le.s32.totalorder 1, %s13
      %p900 = scmp.lt.s32.totalorder %s13, 6
      %p901 = pnand %p899, %p900
      %p902 = pneg %p901
      // Predicated region
      $region64: #{encoder_forward.9} parent=5 // pred_check
        _
      $region65: #{encoder_forward.9} parent=5 // pred_check_branch
        %904 = sbr.rel (%p901) target = $region67
      $region66: #{encoder_forward.9} parent=5 // pred_region
        %s905 = ssub.s32 %s13, 1
        %s906 = sand.u32 %s52, 1
        %s907 = sand.u32 %s52, 1
        %s908 = smul.addr %s907, 2560
        %s909 = scalar_lea.vmem [#allocation3], %s908
        // Predicated region
        $region68: #{encoder_forward.9} parent=66 // pred_check
          %p910 = pneg %p65
        $region69: #{encoder_forward.9} parent=66 // pred_check_branch
          %912 = sbr.rel (%p910) target = $region71
        $region70: #{encoder_forward.9} parent=66 // pred_region
          _
        $region71: #{encoder_forward.9} parent=66 // pred_fallthru
          _
        %s913 = smul.u32 10, %s18
        %p914 = scmp.lt.s32.totalorder %s913, 49
        %s915 = scalar_select %p914, %s913, 49
        %s916 = smul.addr %s915, 2
        %s917 = scalar_lea.vmem %s0, %s916
        %p918 = pneg %p39
        %p919 = pneg %p36
        %s920 = sand.u32 %s52, 1
        %s921 = sand.u32 %s52, 1
        %s922 = smul.addr %s921, 2560
        %s923 = scalar_lea.vmem [#allocation3], %s922
        %p924 = pneg %p65
        %p925 = pneg %p62
        %p926 = pneg %p86
        %p927 = pneg %p83
        %p928 = pneg %p107
        %p929 = pneg %p104
        %p930 = pneg %p128
        %p931 = pneg %p125
        %p932 = pneg %p149
        %p933 = pneg %p146
        %p934 = pneg %p170
        %p935 = pneg %p167
        %p936 = pneg %p191
        %p937 = pneg %p188
        %s938 = smul.u32 10, %s18
        %p939 = scmp.lt.s32.totalorder %s938, 49
        %s940 = scalar_select %p939, %s938, 49
        %s941 = smul.addr %s940, 2
        %s942 = scalar_lea.vmem %s0, %s941
        %s943 = smul.u32 10, %s18
        %s944 = smul.u32 10, %s18
        %p945 = scmp.eq.s32.totalorder %s18, 0
        // Predicated region
        $region72: #{encoder_forward.9} parent=66 // pred_check
          %p946 = pneg %p945
        $region73: #{encoder_forward.9} parent=66 // pred_check_branch
          %948 = sbr.rel (%p946) target = $region75
        $region74: #{encoder_forward.9} parent=66 // pred_region
          %949 = vst [vmem:[#allocation2] sm:$0xf] 0.0
        $region75: #{encoder_forward.9} parent=66 // pred_fallthru
          _
        %v950 = vld [vmem:[#allocation2] sm:$0xf]
        %v951 = vld [vmem:[%s942] sm:$0xff]
        %v952 = vld [vmem:[%s942 + $0x8] sm:$0xff]
        %v953 = vld [vmem:[%s942 + $0x10] sm:$0xf]
        %v954 = vld [vmem:[%s909] sm:$0xff]
        %v955 = vld [vmem:[%s909 + $0x8] sm:$0xff]
        %v956 = vld [vmem:[%s909 + $0x10] sm:$0xff]
        %v957 = vld [vmem:[%s909 + $0x18] sm:$0xff]
        %v958 = vld [vmem:[%s909 + $0x20] sm:$0xff]
        %v959 = vld [vmem:[%s909 + $0x28] sm:$0xff]
        %v960 = vld [vmem:[%s909 + $0x30] sm:$0xff]
        %v961 = vld [vmem:[%s909 + $0x38] sm:$0xff]
        %v962 = vld [vmem:[%s909 + $0x40] sm:$0xff]
        %v963 = vld [vmem:[%s909 + $0x48] sm:$0xff]
        %v964 = vld [vmem:[%s909 + $0x50] sm:$0xff]
        %v965 = vld [vmem:[%s909 + $0x58] sm:$0xff]
        %v966 = vld [vmem:[%s909 + $0x60] sm:$0xff]
        %v967 = vld [vmem:[%s909 + $0x68] sm:$0xff]
        %v968 = vld [vmem:[%s909 + $0x70] sm:$0xff]
        %v969 = vld [vmem:[%s909 + $0x78] sm:$0xff]
        %v970 = vld [vmem:[%s909 + $0x80] sm:$0xff]
        %v971 = vld [vmem:[%s909 + $0x88] sm:$0xff]
        %v972 = vld [vmem:[%s909 + $0x90] sm:$0xff]
        %v973 = vld [vmem:[%s909 + $0x98] sm:$0xff]
        %v974 = vld [vmem:[%s909 + $0xa0] sm:$0xff]
        %v975 = vld [vmem:[%s909 + $0xa8] sm:$0xff]
        %v976 = vld [vmem:[%s909 + $0xb0] sm:$0xff]
        %v977 = vld [vmem:[%s909 + $0xb8] sm:$0xff]
        %v978 = vld [vmem:[%s909 + $0xc0] sm:$0xff]
        %v979 = vld [vmem:[%s909 + $0xc8] sm:$0xff]
        %v980 = vld [vmem:[%s909 + $0xd0] sm:$0xff]
        %v981 = vld [vmem:[%s909 + $0xd8] sm:$0xff]
        %v982 = vld [vmem:[%s909 + $0xe0] sm:$0xff]
        %v983 = vld [vmem:[%s909 + $0xe8] sm:$0xff]
        %v984 = vld [vmem:[%s909 + $0xf0] sm:$0xff]
        %v985 = vld [vmem:[%s909 + $0xf8] sm:$0xff]
        %v986 = vld [vmem:[%s909 + $0x100] sm:$0xff]
        %v987 = vld [vmem:[%s909 + $0x108] sm:$0xff]
        %v988 = vld [vmem:[%s909 + $0x110] sm:$0xff]
        %v989 = vld [vmem:[%s909 + $0x118] sm:$0xff]
        %v990 = vld [vmem:[%s909 + $0x120] sm:$0xff]
        %v991 = vld [vmem:[%s909 + $0x128] sm:$0xff]
        %v992 = vld [vmem:[%s909 + $0x130] sm:$0xff]
        %v993 = vld [vmem:[%s909 + $0x138] sm:$0xff]
        %v994 = vld [vmem:[%s909 + $0x140] sm:$0xff]
        %v995 = vld [vmem:[%s909 + $0x148] sm:$0xff]
        %v996 = vld [vmem:[%s909 + $0x150] sm:$0xff]
        %v997 = vld [vmem:[%s909 + $0x158] sm:$0xff]
        %v998 = vld [vmem:[%s909 + $0x160] sm:$0xff]
        %v999 = vld [vmem:[%s909 + $0x168] sm:$0xff]
        %v1000 = vld [vmem:[%s909 + $0x170] sm:$0xff]
        %v1001 = vld [vmem:[%s909 + $0x178] sm:$0xff]
        %v1002 = vld [vmem:[%s909 + $0x180] sm:$0xff]
        %v1003 = vld [vmem:[%s909 + $0x188] sm:$0xff]
        %v1004 = vld [vmem:[%s909 + $0x190] sm:$0xff]
        %v1005 = vld [vmem:[%s909 + $0x198] sm:$0xff]
        %v1006 = vld [vmem:[%s909 + $0x1a0] sm:$0xff]
        %v1007 = vld [vmem:[%s909 + $0x1a8] sm:$0xff]
        %v1008 = vld [vmem:[%s909 + $0x1b0] sm:$0xff]
        %v1009 = vld [vmem:[%s909 + $0x1b8] sm:$0xff]
        %v1010 = vld [vmem:[%s909 + $0x1c0] sm:$0xff]
        %v1011 = vld [vmem:[%s909 + $0x1c8] sm:$0xff]
        %v1012 = vld [vmem:[%s909 + $0x1d0] sm:$0xff]
        %v1013 = vld [vmem:[%s909 + $0x1d8] sm:$0xff]
        %v1014 = vld [vmem:[%s909 + $0x1e0] sm:$0xff]
        %v1015 = vld [vmem:[%s909 + $0x1e8] sm:$0xff]
        %v1016 = vld [vmem:[%s909 + $0x1f0] sm:$0xff]
        %v1017 = vld [vmem:[%s909 + $0x1f8] sm:$0xff]
        %v1018 = vld [vmem:[%s909 + $0x200] sm:$0xff]
        %v1019 = vld [vmem:[%s909 + $0x208] sm:$0xff]
        %v1020 = vld [vmem:[%s909 + $0x210] sm:$0xff]
        %v1021 = vld [vmem:[%s909 + $0x218] sm:$0xff]
        %v1022 = vld [vmem:[%s909 + $0x220] sm:$0xff]
        %v1023 = vld [vmem:[%s909 + $0x228] sm:$0xff]
        %v1024 = vld [vmem:[%s909 + $0x230] sm:$0xff]
        %v1025 = vld [vmem:[%s909 + $0x238] sm:$0xff]
        %v1026 = vld [vmem:[%s909 + $0x240] sm:$0xff]
        %v1027 = vld [vmem:[%s909 + $0x248] sm:$0xff]
        %v1028 = vld [vmem:[%s909 + $0x250] sm:$0xff]
        %v1029 = vld [vmem:[%s909 + $0x258] sm:$0xff]
        %v1030 = vld [vmem:[%s909 + $0x260] sm:$0xff]
        %v1031 = vld [vmem:[%s909 + $0x268] sm:$0xff]
        %v1032 = vld [vmem:[%s909 + $0x270] sm:$0xff]
        %v1033 = vld [vmem:[%s909 + $0x278] sm:$0xff]
        %v1034 = vld [vmem:[%s909 + $0x280] sm:$0xff]
        %v1035 = vld [vmem:[%s909 + $0x288] sm:$0xff]
        %v1036 = vld [vmem:[%s909 + $0x290] sm:$0xff]
        %v1037 = vld [vmem:[%s909 + $0x298] sm:$0xff]
        %v1038 = vld [vmem:[%s909 + $0x2a0] sm:$0xff]
        %v1039 = vld [vmem:[%s909 + $0x2a8] sm:$0xff]
        %v1040 = vld [vmem:[%s909 + $0x2b0] sm:$0xff]
        %v1041 = vld [vmem:[%s909 + $0x2b8] sm:$0xff]
        %v1042 = vld [vmem:[%s909 + $0x2c0] sm:$0xff]
        %v1043 = vld [vmem:[%s909 + $0x2c8] sm:$0xff]
        %v1044 = vld [vmem:[%s909 + $0x2d0] sm:$0xff]
        %v1045 = vld [vmem:[%s909 + $0x2d8] sm:$0xff]
        %v1046 = vld [vmem:[%s909 + $0x2e0] sm:$0xff]
        %v1047 = vld [vmem:[%s909 + $0x2e8] sm:$0xff]
        %v1048 = vld [vmem:[%s909 + $0x2f0] sm:$0xff]
        %v1049 = vld [vmem:[%s909 + $0x2f8] sm:$0xff]
        %v1050 = vld [vmem:[%s909 + $0x300] sm:$0xff]
        %v1051 = vld [vmem:[%s909 + $0x308] sm:$0xff]
        %v1052 = vld [vmem:[%s909 + $0x310] sm:$0xff]
        %v1053 = vld [vmem:[%s909 + $0x318] sm:$0xff]
        %v1054 = vld [vmem:[%s909 + $0x320] sm:$0xff]
        %v1055 = vld [vmem:[%s909 + $0x328] sm:$0xff]
        %v1056 = vld [vmem:[%s909 + $0x330] sm:$0xff]
        %v1057 = vld [vmem:[%s909 + $0x338] sm:$0xff]
        %v1058 = vld [vmem:[%s909 + $0x340] sm:$0xff]
        %v1059 = vld [vmem:[%s909 + $0x348] sm:$0xff]
        %v1060 = vld [vmem:[%s909 + $0x350] sm:$0xff]
        %v1061 = vld [vmem:[%s909 + $0x358] sm:$0xff]
        %v1062 = vld [vmem:[%s909 + $0x360] sm:$0xff]
        %v1063 = vld [vmem:[%s909 + $0x368] sm:$0xff]
        %v1064 = vld [vmem:[%s909 + $0x370] sm:$0xff]
        %v1065 = vld [vmem:[%s909 + $0x378] sm:$0xff]
        %v1066 = vld [vmem:[%s909 + $0x380] sm:$0xff]
        %v1067 = vld [vmem:[%s909 + $0x388] sm:$0xff]
        %v1068 = vld [vmem:[%s909 + $0x390] sm:$0xff]
        %v1069 = vld [vmem:[%s909 + $0x398] sm:$0xff]
        %v1070 = vld [vmem:[%s909 + $0x3a0] sm:$0xff]
        %v1071 = vld [vmem:[%s909 + $0x3a8] sm:$0xff]
        %v1072 = vld [vmem:[%s909 + $0x3b0] sm:$0xff]
        %v1073 = vld [vmem:[%s909 + $0x3b8] sm:$0xff]
        %v1074 = vld [vmem:[%s909 + $0x3c0] sm:$0xff]
        %v1075 = vld [vmem:[%s909 + $0x3c8] sm:$0xff]
        %v1076 = vld [vmem:[%s909 + $0x3d0] sm:$0xff]
        %v1077 = vld [vmem:[%s909 + $0x3d8] sm:$0xff]
        %v1078 = vld [vmem:[%s909 + $0x3e0] sm:$0xff]
        %v1079 = vld [vmem:[%s909 + $0x3e8] sm:$0xff]
        %v1080 = vld [vmem:[%s909 + $0x3f0] sm:$0xff]
        %v1081 = vld [vmem:[%s909 + $0x3f8] sm:$0xff]
        %v1082 = vld [vmem:[%s909 + $0x400] sm:$0xff]
        %v1083 = vld [vmem:[%s909 + $0x408] sm:$0xff]
        %v1084 = vld [vmem:[%s909 + $0x410] sm:$0xff]
        %v1085 = vld [vmem:[%s909 + $0x418] sm:$0xff]
        %v1086 = vld [vmem:[%s909 + $0x420] sm:$0xff]
        %v1087 = vld [vmem:[%s909 + $0x428] sm:$0xff]
        %v1088 = vld [vmem:[%s909 + $0x430] sm:$0xff]
        %v1089 = vld [vmem:[%s909 + $0x438] sm:$0xff]
        %v1090 = vld [vmem:[%s909 + $0x440] sm:$0xff]
        %v1091 = vld [vmem:[%s909 + $0x448] sm:$0xff]
        %v1092 = vld [vmem:[%s909 + $0x450] sm:$0xff]
        %v1093 = vld [vmem:[%s909 + $0x458] sm:$0xff]
        %v1094 = vld [vmem:[%s909 + $0x460] sm:$0xff]
        %v1095 = vld [vmem:[%s909 + $0x468] sm:$0xff]
        %v1096 = vld [vmem:[%s909 + $0x470] sm:$0xff]
        %v1097 = vld [vmem:[%s909 + $0x478] sm:$0xff]
        %v1098 = vld [vmem:[%s909 + $0x480] sm:$0xff]
        %v1099 = vld [vmem:[%s909 + $0x488] sm:$0xff]
        %v1100 = vld [vmem:[%s909 + $0x490] sm:$0xff]
        %v1101 = vld [vmem:[%s909 + $0x498] sm:$0xff]
        %v1102 = vld [vmem:[%s909 + $0x4a0] sm:$0xff]
        %v1103 = vld [vmem:[%s909 + $0x4a8] sm:$0xff]
        %v1104 = vld [vmem:[%s909 + $0x4b0] sm:$0xff]
        %v1105 = vld [vmem:[%s909 + $0x4b8] sm:$0xff]
        %v1106 = vld [vmem:[%s909 + $0x4c0] sm:$0xff]
        %v1107 = vld [vmem:[%s909 + $0x4c8] sm:$0xff]
        %v1108 = vld [vmem:[%s909 + $0x4d0] sm:$0xff]
        %v1109 = vld [vmem:[%s909 + $0x4d8] sm:$0xff]
        %v1110 = vld [vmem:[%s909 + $0x4e0] sm:$0xff]
        %v1111 = vld [vmem:[%s909 + $0x4e8] sm:$0xff]
        %v1112 = vld [vmem:[%s909 + $0x4f0] sm:$0xff]
        %v1113 = vld [vmem:[%s909 + $0x4f8] sm:$0xff]
        %v1114 = vld [vmem:[%s909 + $0x500] sm:$0xff]
        %v1115 = vld [vmem:[%s909 + $0x508] sm:$0xff]
        %v1116 = vld [vmem:[%s909 + $0x510] sm:$0xff]
        %v1117 = vld [vmem:[%s909 + $0x518] sm:$0xff]
        %v1118 = vld [vmem:[%s909 + $0x520] sm:$0xff]
        %v1119 = vld [vmem:[%s909 + $0x528] sm:$0xff]
        %v1120 = vld [vmem:[%s909 + $0x530] sm:$0xff]
        %v1121 = vld [vmem:[%s909 + $0x538] sm:$0xff]
        %v1122 = vld [vmem:[%s909 + $0x540] sm:$0xff]
        %v1123 = vld [vmem:[%s909 + $0x548] sm:$0xff]
        %v1124 = vld [vmem:[%s909 + $0x550] sm:$0xff]
        %v1125 = vld [vmem:[%s909 + $0x558] sm:$0xff]
        %v1126 = vld [vmem:[%s909 + $0x560] sm:$0xff]
        %v1127 = vld [vmem:[%s909 + $0x568] sm:$0xff]
        %v1128 = vld [vmem:[%s909 + $0x570] sm:$0xff]
        %v1129 = vld [vmem:[%s909 + $0x578] sm:$0xff]
        %v1130 = vld [vmem:[%s909 + $0x580] sm:$0xff]
        %v1131 = vld [vmem:[%s909 + $0x588] sm:$0xff]
        %v1132 = vld [vmem:[%s909 + $0x590] sm:$0xff]
        %v1133 = vld [vmem:[%s909 + $0x598] sm:$0xff]
        %v1134 = vld [vmem:[%s909 + $0x5a0] sm:$0xff]
        %v1135 = vld [vmem:[%s909 + $0x5a8] sm:$0xff]
        %v1136 = vld [vmem:[%s909 + $0x5b0] sm:$0xff]
        %v1137 = vld [vmem:[%s909 + $0x5b8] sm:$0xff]
        %v1138 = vld [vmem:[%s909 + $0x5c0] sm:$0xff]
        %v1139 = vld [vmem:[%s909 + $0x5c8] sm:$0xff]
        %v1140 = vld [vmem:[%s909 + $0x5d0] sm:$0xff]
        %v1141 = vld [vmem:[%s909 + $0x5d8] sm:$0xff]
        %v1142 = vld [vmem:[%s909 + $0x5e0] sm:$0xff]
        %v1143 = vld [vmem:[%s909 + $0x5e8] sm:$0xff]
        %v1144 = vld [vmem:[%s909 + $0x5f0] sm:$0xff]
        %v1145 = vld [vmem:[%s909 + $0x5f8] sm:$0xff]
        %v1146 = vld [vmem:[%s909 + $0x600] sm:$0xff]
        %v1147 = vld [vmem:[%s909 + $0x608] sm:$0xff]
        %v1148 = vld [vmem:[%s909 + $0x610] sm:$0xff]
        %v1149 = vld [vmem:[%s909 + $0x618] sm:$0xff]
        %v1150 = vld [vmem:[%s909 + $0x620] sm:$0xff]
        %v1151 = vld [vmem:[%s909 + $0x628] sm:$0xff]
        %v1152 = vld [vmem:[%s909 + $0x630] sm:$0xff]
        %v1153 = vld [vmem:[%s909 + $0x638] sm:$0xff]
        %v1154 = vld [vmem:[%s909 + $0x640] sm:$0xff]
        %v1155 = vld [vmem:[%s909 + $0x648] sm:$0xff]
        %v1156 = vld [vmem:[%s909 + $0x650] sm:$0xff]
        %v1157 = vld [vmem:[%s909 + $0x658] sm:$0xff]
        %v1158 = vld [vmem:[%s909 + $0x660] sm:$0xff]
        %v1159 = vld [vmem:[%s909 + $0x668] sm:$0xff]
        %v1160 = vld [vmem:[%s909 + $0x670] sm:$0xff]
        %v1161 = vld [vmem:[%s909 + $0x678] sm:$0xff]
        %v1162 = vld [vmem:[%s909 + $0x680] sm:$0xff]
        %v1163 = vld [vmem:[%s909 + $0x688] sm:$0xff]
        %v1164 = vld [vmem:[%s909 + $0x690] sm:$0xff]
        %v1165 = vld [vmem:[%s909 + $0x698] sm:$0xff]
        %v1166 = vld [vmem:[%s909 + $0x6a0] sm:$0xff]
        %v1167 = vld [vmem:[%s909 + $0x6a8] sm:$0xff]
        %v1168 = vld [vmem:[%s909 + $0x6b0] sm:$0xff]
        %v1169 = vld [vmem:[%s909 + $0x6b8] sm:$0xff]
        %v1170 = vld [vmem:[%s909 + $0x6c0] sm:$0xff]
        %v1171 = vld [vmem:[%s909 + $0x6c8] sm:$0xff]
        %v1172 = vld [vmem:[%s909 + $0x6d0] sm:$0xff]
        %v1173 = vld [vmem:[%s909 + $0x6d8] sm:$0xff]
        %v1174 = vld [vmem:[%s909 + $0x6e0] sm:$0xff]
        %v1175 = vld [vmem:[%s909 + $0x6e8] sm:$0xff]
        %v1176 = vld [vmem:[%s909 + $0x6f0] sm:$0xff]
        %v1177 = vld [vmem:[%s909 + $0x6f8] sm:$0xff]
        %v1178 = vld [vmem:[%s909 + $0x700] sm:$0xff]
        %v1179 = vld [vmem:[%s909 + $0x708] sm:$0xff]
        %v1180 = vld [vmem:[%s909 + $0x710] sm:$0xff]
        %v1181 = vld [vmem:[%s909 + $0x718] sm:$0xff]
        %v1182 = vld [vmem:[%s909 + $0x720] sm:$0xff]
        %v1183 = vld [vmem:[%s909 + $0x728] sm:$0xff]
        %v1184 = vld [vmem:[%s909 + $0x730] sm:$0xff]
        %v1185 = vld [vmem:[%s909 + $0x738] sm:$0xff]
        %v1186 = vld [vmem:[%s909 + $0x740] sm:$0xff]
        %v1187 = vld [vmem:[%s909 + $0x748] sm:$0xff]
        %v1188 = vld [vmem:[%s909 + $0x750] sm:$0xff]
        %v1189 = vld [vmem:[%s909 + $0x758] sm:$0xff]
        %v1190 = vld [vmem:[%s909 + $0x760] sm:$0xff]
        %v1191 = vld [vmem:[%s909 + $0x768] sm:$0xff]
        %v1192 = vld [vmem:[%s909 + $0x770] sm:$0xff]
        %v1193 = vld [vmem:[%s909 + $0x778] sm:$0xff]
        %v1194 = vld [vmem:[%s909 + $0x780] sm:$0xff]
        %v1195 = vld [vmem:[%s909 + $0x788] sm:$0xff]
        %v1196 = vld [vmem:[%s909 + $0x790] sm:$0xff]
        %v1197 = vld [vmem:[%s909 + $0x798] sm:$0xff]
        %v1198 = vld [vmem:[%s909 + $0x7a0] sm:$0xff]
        %v1199 = vld [vmem:[%s909 + $0x7a8] sm:$0xff]
        %v1200 = vld [vmem:[%s909 + $0x7b0] sm:$0xff]
        %v1201 = vld [vmem:[%s909 + $0x7b8] sm:$0xff]
        %v1202 = vld [vmem:[%s909 + $0x7c0] sm:$0xff]
        %v1203 = vld [vmem:[%s909 + $0x7c8] sm:$0xff]
        %v1204 = vld [vmem:[%s909 + $0x7d0] sm:$0xff]
        %v1205 = vld [vmem:[%s909 + $0x7d8] sm:$0xff]
        %v1206 = vld [vmem:[%s909 + $0x7e0] sm:$0xff]
        %v1207 = vld [vmem:[%s909 + $0x7e8] sm:$0xff]
        %v1208 = vld [vmem:[%s909 + $0x7f0] sm:$0xff]
        %v1209 = vld [vmem:[%s909 + $0x7f8] sm:$0xff]
        %v1210 = vld [vmem:[%s909 + $0x800] sm:$0xff]
        %v1211 = vld [vmem:[%s909 + $0x808] sm:$0xff]
        %v1212 = vld [vmem:[%s909 + $0x810] sm:$0xff]
        %v1213 = vld [vmem:[%s909 + $0x818] sm:$0xff]
        %v1214 = vld [vmem:[%s909 + $0x820] sm:$0xff]
        %v1215 = vld [vmem:[%s909 + $0x828] sm:$0xff]
        %v1216 = vld [vmem:[%s909 + $0x830] sm:$0xff]
        %v1217 = vld [vmem:[%s909 + $0x838] sm:$0xff]
        %v1218 = vld [vmem:[%s909 + $0x840] sm:$0xff]
        %v1219 = vld [vmem:[%s909 + $0x848] sm:$0xff]
        %v1220 = vld [vmem:[%s909 + $0x850] sm:$0xff]
        %v1221 = vld [vmem:[%s909 + $0x858] sm:$0xff]
        %v1222 = vld [vmem:[%s909 + $0x860] sm:$0xff]
        %v1223 = vld [vmem:[%s909 + $0x868] sm:$0xff]
        %v1224 = vld [vmem:[%s909 + $0x870] sm:$0xff]
        %v1225 = vld [vmem:[%s909 + $0x878] sm:$0xff]
        %v1226 = vld [vmem:[%s909 + $0x880] sm:$0xff]
        %v1227 = vld [vmem:[%s909 + $0x888] sm:$0xff]
        %v1228 = vld [vmem:[%s909 + $0x890] sm:$0xff]
        %v1229 = vld [vmem:[%s909 + $0x898] sm:$0xff]
        %v1230 = vld [vmem:[%s909 + $0x8a0] sm:$0xff]
        %v1231 = vld [vmem:[%s909 + $0x8a8] sm:$0xff]
        %v1232 = vld [vmem:[%s909 + $0x8b0] sm:$0xff]
        %v1233 = vld [vmem:[%s909 + $0x8b8] sm:$0xff]
        %v1234 = vld [vmem:[%s909 + $0x8c0] sm:$0xff]
        %v1235 = vld [vmem:[%s909 + $0x8c8] sm:$0xff]
        %v1236 = vld [vmem:[%s909 + $0x8d0] sm:$0xff]
        %v1237 = vld [vmem:[%s909 + $0x8d8] sm:$0xff]
        %v1238 = vld [vmem:[%s909 + $0x8e0] sm:$0xff]
        %v1239 = vld [vmem:[%s909 + $0x8e8] sm:$0xff]
        %v1240 = vld [vmem:[%s909 + $0x8f0] sm:$0xff]
        %v1241 = vld [vmem:[%s909 + $0x8f8] sm:$0xff]
        %v1242 = vld [vmem:[%s909 + $0x900] sm:$0xff]
        %v1243 = vld [vmem:[%s909 + $0x908] sm:$0xff]
        %v1244 = vld [vmem:[%s909 + $0x910] sm:$0xff]
        %v1245 = vld [vmem:[%s909 + $0x918] sm:$0xff]
        %v1246 = vld [vmem:[%s909 + $0x920] sm:$0xff]
        %v1247 = vld [vmem:[%s909 + $0x928] sm:$0xff]
        %v1248 = vld [vmem:[%s909 + $0x930] sm:$0xff]
        %v1249 = vld [vmem:[%s909 + $0x938] sm:$0xff]
        %v1250 = vld [vmem:[%s909 + $0x940] sm:$0xff]
        %v1251 = vld [vmem:[%s909 + $0x948] sm:$0xff]
        %v1252 = vld [vmem:[%s909 + $0x950] sm:$0xff]
        %v1253 = vld [vmem:[%s909 + $0x958] sm:$0xff]
        %v1254 = vld [vmem:[%s909 + $0x960] sm:$0xff]
        %v1255 = vld [vmem:[%s909 + $0x968] sm:$0xff]
        %v1256 = vld [vmem:[%s909 + $0x970] sm:$0xff]
        %v1257 = vld [vmem:[%s909 + $0x978] sm:$0xff]
        %v1258 = vld [vmem:[%s909 + $0x980] sm:$0xff]
        %v1259 = vld [vmem:[%s909 + $0x988] sm:$0xff]
        %v1260 = vld [vmem:[%s909 + $0x990] sm:$0xff]
        %v1261 = vld [vmem:[%s909 + $0x998] sm:$0xff]
        %v1262 = vld [vmem:[%s909 + $0x9a0] sm:$0xff]
        %v1263 = vld [vmem:[%s909 + $0x9a8] sm:$0xff]
        %v1264 = vld [vmem:[%s909 + $0x9b0] sm:$0xff]
        %v1265 = vld [vmem:[%s909 + $0x9b8] sm:$0xff]
        %v1266 = vld [vmem:[%s909 + $0x9c0] sm:$0xff]
        %v1267 = vld [vmem:[%s909 + $0x9c8] sm:$0xff]
        %v1268 = vld [vmem:[%s909 + $0x9d0] sm:$0xff]
        %v1269 = vld [vmem:[%s909 + $0x9d8] sm:$0xff]
        %v1270 = vld [vmem:[%s909 + $0x9e0] sm:$0xff]
        %v1271 = vld [vmem:[%s909 + $0x9e8] sm:$0xff]
        %v1272 = vld [vmem:[%s909 + $0x9f0] sm:$0xff]
        %v1273 = vld [vmem:[%s909 + $0x9f8] sm:$0xff]
        %v1277 = vcombine.high %v951, %v951
        %v1279 = vunpack.c.l.s4 1983009808
        %v1280 = vunpack.c.0.s8 %v1279
        %v1281 = vlaneseq
        %v1282 = vshrl.u32 %v1281, 7
        %v1283 = vsub.s32 %v1280, %v1282
        %v1284 = vrot.slane %v951, %v1283
        %v1286 = vunpack.c.l.s4 1983009808
        %v1287 = vunpack.c.0.s8 %v1286
        %v1288 = vlaneseq
        %v1289 = vshrl.u32 %v1288, 7
        %v1290 = vsub.s32 %v1287, %v1289
        %v1291 = vrot.slane %v1277, %v1290
        %v1292 = vcombine.high %v1284, %v1284
        %v1293 = vcombine.high %v1291, %v1291
        %v1294 = vcombine.high %v952, %v952
        %v1296 = vunpack.c.l.s4 1983009808
        %v1297 = vunpack.c.0.s8 %v1296
        %v1298 = vlaneseq
        %v1299 = vshrl.u32 %v1298, 7
        %v1300 = vsub.s32 %v1297, %v1299
        %v1301 = vrot.slane %v952, %v1300
        %v1303 = vunpack.c.l.s4 1983009808
        %v1304 = vunpack.c.0.s8 %v1303
        %v1305 = vlaneseq
        %v1306 = vshrl.u32 %v1305, 7
        %v1307 = vsub.s32 %v1304, %v1306
        %v1308 = vrot.slane %v1294, %v1307
        %v1309 = vcombine.high %v1301, %v1301
        %v1310 = vcombine.high %v1308, %v1308
        %v1312 = vunpack.c.l.s4 1983009808
        %v1313 = vunpack.c.0.s8 %v1312
        %v1314 = vlaneseq
        %v1315 = vshrl.u32 %v1314, 7
        %v1316 = vsub.s32 %v1313, %v1315
        %v1317 = vrot.slane %v953, %v1316
        %v1318 = vcombine.high %v1317, %v1317
        %1329 = vmatprep.subr.mxu0 %v1105
        %1330 = vmatpush1.xpose.msra.mxu0 %v1104
        %1331 = vmatprep.subr.mxu0 %v1095
        %1332 = vmatpush1.xpose.msra.mxu0 %v1094
        %1333 = vmatprep.subr.mxu0 %v1085
        %1334 = vmatpush1.xpose.msra.mxu0 %v1084
        %1335 = vmatprep.subr.mxu0 %v1075
        %1336 = vmatpush1.xpose.msra.mxu0 %v1074
        %1337 = vmatprep.subr.mxu0 %v1065
        %1338 = vmatpush1.xpose.msra.mxu0 %v1064
        %1339 = vmatprep.subr.mxu0 %v1055
        %1340 = vmatpush1.xpose.msra.mxu0 %v1054
        %1341 = vmatprep.subr.mxu0 %v1045
        %1342 = vmatpush1.xpose.msra.mxu0 %v1044
        %1343 = vmatprep.subr.mxu0 %v1035
        %1344 = vmatpush1.xpose.msra.mxu0 %v1034
        %1345 = vmatprep.subr.mxu0 %v1025
        %1346 = vmatpush1.xpose.msra.mxu0 %v1024
        %1347 = vmatprep.subr.mxu0 %v1015
        %1348 = vmatpush1.xpose.msra.mxu0 %v1014
        %1349 = vmatprep.subr.mxu0 %v1005
        %1350 = vmatpush1.xpose.msra.mxu0 %v1004
        %1351 = vmatprep.subr.mxu0 %v995
        %1352 = vmatpush1.xpose.msra.mxu0 %v994
        %1353 = vmatprep.subr.mxu0 %v985
        %1354 = vmatpush1.xpose.msra.mxu0 %v984
        %1355 = vmatprep.subr.mxu0 %v975
        %1356 = vmatpush1.xpose.msra.mxu0 %v974
        %1357 = vmatprep.subr.mxu0 %v965
        %1358 = vmatpush1.xpose.msra.mxu0 %v964
        %1359 = vmatprep.subr.mxu0 %v955
        %1360 = vmatpush1.xpose.msra.mxu0 %v954
        %1361 = vmatprep.subr.mxu0 %v1265
        %1362 = vmatpush2.xpose.msra.mxu0 %v1264
        %1363 = vmatprep.subr.mxu0 %v1255
        %1364 = vmatpush2.xpose.msra.mxu0 %v1254
        %1365 = vmatprep.subr.mxu0 %v1245
        %1366 = vmatpush2.xpose.msra.mxu0 %v1244
        %1367 = vmatprep.subr.mxu0 %v1235
        %1368 = vmatpush2.xpose.msra.mxu0 %v1234
        %1369 = vmatprep.subr.mxu0 %v1225
        %1370 = vmatpush2.xpose.msra.mxu0 %v1224
        %1371 = vmatprep.subr.mxu0 %v1215
        %1372 = vmatpush2.xpose.msra.mxu0 %v1214
        %1373 = vmatprep.subr.mxu0 %v1205
        %1374 = vmatpush2.xpose.msra.mxu0 %v1204
        %1375 = vmatprep.subr.mxu0 %v1195
        %1376 = vmatpush2.xpose.msra.mxu0 %v1194
        %1377 = vmatprep.subr.mxu0 %v1185
        %1378 = vmatpush2.xpose.msra.mxu0 %v1184
        %1379 = vmatprep.subr.mxu0 %v1175
        %1380 = vmatpush2.xpose.msra.mxu0 %v1174
        %1381 = vmatprep.subr.mxu0 %v1165
        %1382 = vmatpush2.xpose.msra.mxu0 %v1164
        %1383 = vmatprep.subr.mxu0 %v1155
        %1384 = vmatpush2.xpose.msra.mxu0 %v1154
        %1385 = vmatprep.subr.mxu0 %v1145
        %1386 = vmatpush2.xpose.msra.mxu0 %v1144
        %1387 = vmatprep.subr.mxu0 %v1135
        %1388 = vmatpush2.xpose.msra.mxu0 %v1134
        %1389 = vmatprep.subr.mxu0 %v1125
        %1390 = vmatpush2.xpose.msra.mxu0 %v1124
        %1391 = vmatprep.subr.mxu0 %v1115
        %1392 = vmatpush2.xpose.msra.mxu0 %v1114
        %1393 = vmatprep.mubr.f32.mxu0 %v1292
        %1394 = vmatmul.mubr.f32.gmra.mxu0 %v1284
        %v1395 = vpop.f32.mrf.mxu0
        %v1396 = vadd.f32 0.0, %v1395
        %v1397 = vpop.f32.mrf.mxu0
        %v1398 = vadd.f32 0.0, %v1397
        %1399 = vdwg.mxu0
        %1400 = vmatprep.subr.mxu0 %v1107
        %1401 = vmatpush1.xpose.msra.mxu0 %v1106
        %1402 = vmatprep.subr.mxu0 %v1097
        %1403 = vmatpush1.xpose.msra.mxu0 %v1096
        %1404 = vmatprep.subr.mxu0 %v1087
        %1405 = vmatpush1.xpose.msra.mxu0 %v1086
        %1406 = vmatprep.subr.mxu0 %v1077
        %1407 = vmatpush1.xpose.msra.mxu0 %v1076
        %1408 = vmatprep.subr.mxu0 %v1067
        %1409 = vmatpush1.xpose.msra.mxu0 %v1066
        %1410 = vmatprep.subr.mxu0 %v1057
        %1411 = vmatpush1.xpose.msra.mxu0 %v1056
        %1412 = vmatprep.subr.mxu0 %v1047
        %1413 = vmatpush1.xpose.msra.mxu0 %v1046
        %1414 = vmatprep.subr.mxu0 %v1037
        %1415 = vmatpush1.xpose.msra.mxu0 %v1036
        %1416 = vmatprep.subr.mxu0 %v1027
        %1417 = vmatpush1.xpose.msra.mxu0 %v1026
        %1418 = vmatprep.subr.mxu0 %v1017
        %1419 = vmatpush1.xpose.msra.mxu0 %v1016
        %1420 = vmatprep.subr.mxu0 %v1007
        %1421 = vmatpush1.xpose.msra.mxu0 %v1006
        %1422 = vmatprep.subr.mxu0 %v997
        %1423 = vmatpush1.xpose.msra.mxu0 %v996
        %1424 = vmatprep.subr.mxu0 %v987
        %1425 = vmatpush1.xpose.msra.mxu0 %v986
        %1426 = vmatprep.subr.mxu0 %v977
        %1427 = vmatpush1.xpose.msra.mxu0 %v976
        %1428 = vmatprep.subr.mxu0 %v967
        %1429 = vmatpush1.xpose.msra.mxu0 %v966
        %1430 = vmatprep.subr.mxu0 %v957
        %1431 = vmatpush1.xpose.msra.mxu0 %v956
        %1432 = vmatprep.subr.mxu0 %v1267
        %1433 = vmatpush2.xpose.msra.mxu0 %v1266
        %1434 = vmatprep.subr.mxu0 %v1257
        %1435 = vmatpush2.xpose.msra.mxu0 %v1256
        %1436 = vmatprep.subr.mxu0 %v1247
        %1437 = vmatpush2.xpose.msra.mxu0 %v1246
        %1438 = vmatprep.subr.mxu0 %v1237
        %1439 = vmatpush2.xpose.msra.mxu0 %v1236
        %1440 = vmatprep.subr.mxu0 %v1227
        %1441 = vmatpush2.xpose.msra.mxu0 %v1226
        %1442 = vmatprep.subr.mxu0 %v1217
        %1443 = vmatpush2.xpose.msra.mxu0 %v1216
        %1444 = vmatprep.subr.mxu0 %v1207
        %1445 = vmatpush2.xpose.msra.mxu0 %v1206
        %1446 = vmatprep.subr.mxu0 %v1197
        %1447 = vmatpush2.xpose.msra.mxu0 %v1196
        %1448 = vmatprep.subr.mxu0 %v1187
        %1449 = vmatpush2.xpose.msra.mxu0 %v1186
        %1450 = vmatprep.subr.mxu0 %v1177
        %1451 = vmatpush2.xpose.msra.mxu0 %v1176
        %1452 = vmatprep.subr.mxu0 %v1167
        %1453 = vmatpush2.xpose.msra.mxu0 %v1166
        %1454 = vmatprep.subr.mxu0 %v1157
        %1455 = vmatpush2.xpose.msra.mxu0 %v1156
        %1456 = vmatprep.subr.mxu0 %v1147
        %1457 = vmatpush2.xpose.msra.mxu0 %v1146
        %1458 = vmatprep.subr.mxu0 %v1137
        %1459 = vmatpush2.xpose.msra.mxu0 %v1136
        %1460 = vmatprep.subr.mxu0 %v1127
        %1461 = vmatpush2.xpose.msra.mxu0 %v1126
        %1462 = vmatprep.subr.mxu0 %v1117
        %1463 = vmatpush2.xpose.msra.mxu0 %v1116
        %1464 = vmatprep.mubr.f32.mxu0 %v1293
        %1465 = vmatmul.mubr.f32.gmra.mxu0 %v1291
        %v1466 = vpop.f32.mrf.mxu0
        %v1467 = vadd.f32 %v1396, %v1466
        %v1468 = vpop.f32.mrf.mxu0
        %v1469 = vadd.f32 %v1398, %v1468
        %1470 = vdwg.mxu0
        %1471 = vmatprep.subr.mxu0 %v1109
        %1472 = vmatpush1.xpose.msra.mxu0 %v1108
        %1473 = vmatprep.subr.mxu0 %v1099
        %1474 = vmatpush1.xpose.msra.mxu0 %v1098
        %1475 = vmatprep.subr.mxu0 %v1089
        %1476 = vmatpush1.xpose.msra.mxu0 %v1088
        %1477 = vmatprep.subr.mxu0 %v1079
        %1478 = vmatpush1.xpose.msra.mxu0 %v1078
        %1479 = vmatprep.subr.mxu0 %v1069
        %1480 = vmatpush1.xpose.msra.mxu0 %v1068
        %1481 = vmatprep.subr.mxu0 %v1059
        %1482 = vmatpush1.xpose.msra.mxu0 %v1058
        %1483 = vmatprep.subr.mxu0 %v1049
        %1484 = vmatpush1.xpose.msra.mxu0 %v1048
        %1485 = vmatprep.subr.mxu0 %v1039
        %1486 = vmatpush1.xpose.msra.mxu0 %v1038
        %1487 = vmatprep.subr.mxu0 %v1029
        %1488 = vmatpush1.xpose.msra.mxu0 %v1028
        %1489 = vmatprep.subr.mxu0 %v1019
        %1490 = vmatpush1.xpose.msra.mxu0 %v1018
        %1491 = vmatprep.subr.mxu0 %v1009
        %1492 = vmatpush1.xpose.msra.mxu0 %v1008
        %1493 = vmatprep.subr.mxu0 %v999
        %1494 = vmatpush1.xpose.msra.mxu0 %v998
        %1495 = vmatprep.subr.mxu0 %v989
        %1496 = vmatpush1.xpose.msra.mxu0 %v988
        %1497 = vmatprep.subr.mxu0 %v979
        %1498 = vmatpush1.xpose.msra.mxu0 %v978
        %1499 = vmatprep.subr.mxu0 %v969
        %1500 = vmatpush1.xpose.msra.mxu0 %v968
        %1501 = vmatprep.subr.mxu0 %v959
        %1502 = vmatpush1.xpose.msra.mxu0 %v958
        %1503 = vmatprep.subr.mxu0 %v1269
        %1504 = vmatpush2.xpose.msra.mxu0 %v1268
        %1505 = vmatprep.subr.mxu0 %v1259
        %1506 = vmatpush2.xpose.msra.mxu0 %v1258
        %1507 = vmatprep.subr.mxu0 %v1249
        %1508 = vmatpush2.xpose.msra.mxu0 %v1248
        %1509 = vmatprep.subr.mxu0 %v1239
        %1510 = vmatpush2.xpose.msra.mxu0 %v1238
        %1511 = vmatprep.subr.mxu0 %v1229
        %1512 = vmatpush2.xpose.msra.mxu0 %v1228
        %1513 = vmatprep.subr.mxu0 %v1219
        %1514 = vmatpush2.xpose.msra.mxu0 %v1218
        %1515 = vmatprep.subr.mxu0 %v1209
        %1516 = vmatpush2.xpose.msra.mxu0 %v1208
        %1517 = vmatprep.subr.mxu0 %v1199
        %1518 = vmatpush2.xpose.msra.mxu0 %v1198
        %1519 = vmatprep.subr.mxu0 %v1189
        %1520 = vmatpush2.xpose.msra.mxu0 %v1188
        %1521 = vmatprep.subr.mxu0 %v1179
        %1522 = vmatpush2.xpose.msra.mxu0 %v1178
        %1523 = vmatprep.subr.mxu0 %v1169
        %1524 = vmatpush2.xpose.msra.mxu0 %v1168
        %1525 = vmatprep.subr.mxu0 %v1159
        %1526 = vmatpush2.xpose.msra.mxu0 %v1158
        %1527 = vmatprep.subr.mxu0 %v1149
        %1528 = vmatpush2.xpose.msra.mxu0 %v1148
        %1529 = vmatprep.subr.mxu0 %v1139
        %1530 = vmatpush2.xpose.msra.mxu0 %v1138
        %1531 = vmatprep.subr.mxu0 %v1129
        %1532 = vmatpush2.xpose.msra.mxu0 %v1128
        %1533 = vmatprep.subr.mxu0 %v1119
        %1534 = vmatpush2.xpose.msra.mxu0 %v1118
        %1535 = vmatprep.mubr.f32.mxu0 %v1309
        %1536 = vmatmul.mubr.f32.gmra.mxu0 %v1301
        %v1537 = vpop.f32.mrf.mxu0
        %v1538 = vadd.f32 %v1467, %v1537
        %v1539 = vpop.f32.mrf.mxu0
        %v1540 = vadd.f32 %v1469, %v1539
        %1541 = vdwg.mxu0
        %1542 = vmatprep.subr.mxu0 %v1111
        %1543 = vmatpush1.xpose.msra.mxu0 %v1110
        %1544 = vmatprep.subr.mxu0 %v1101
        %1545 = vmatpush1.xpose.msra.mxu0 %v1100
        %1546 = vmatprep.subr.mxu0 %v1091
        %1547 = vmatpush1.xpose.msra.mxu0 %v1090
        %1548 = vmatprep.subr.mxu0 %v1081
        %1549 = vmatpush1.xpose.msra.mxu0 %v1080
        %1550 = vmatprep.subr.mxu0 %v1071
        %1551 = vmatpush1.xpose.msra.mxu0 %v1070
        %1552 = vmatprep.subr.mxu0 %v1061
        %1553 = vmatpush1.xpose.msra.mxu0 %v1060
        %1554 = vmatprep.subr.mxu0 %v1051
        %1555 = vmatpush1.xpose.msra.mxu0 %v1050
        %1556 = vmatprep.subr.mxu0 %v1041
        %1557 = vmatpush1.xpose.msra.mxu0 %v1040
        %1558 = vmatprep.subr.mxu0 %v1031
        %1559 = vmatpush1.xpose.msra.mxu0 %v1030
        %1560 = vmatprep.subr.mxu0 %v1021
        %1561 = vmatpush1.xpose.msra.mxu0 %v1020
        %1562 = vmatprep.subr.mxu0 %v1011
        %1563 = vmatpush1.xpose.msra.mxu0 %v1010
        %1564 = vmatprep.subr.mxu0 %v1001
        %1565 = vmatpush1.xpose.msra.mxu0 %v1000
        %1566 = vmatprep.subr.mxu0 %v991
        %1567 = vmatpush1.xpose.msra.mxu0 %v990
        %1568 = vmatprep.subr.mxu0 %v981
        %1569 = vmatpush1.xpose.msra.mxu0 %v980
        %1570 = vmatprep.subr.mxu0 %v971
        %1571 = vmatpush1.xpose.msra.mxu0 %v970
        %1572 = vmatprep.subr.mxu0 %v961
        %1573 = vmatpush1.xpose.msra.mxu0 %v960
        %1574 = vmatprep.subr.mxu0 %v1271
        %1575 = vmatpush2.xpose.msra.mxu0 %v1270
        %1576 = vmatprep.subr.mxu0 %v1261
        %1577 = vmatpush2.xpose.msra.mxu0 %v1260
        %1578 = vmatprep.subr.mxu0 %v1251
        %1579 = vmatpush2.xpose.msra.mxu0 %v1250
        %1580 = vmatprep.subr.mxu0 %v1241
        %1581 = vmatpush2.xpose.msra.mxu0 %v1240
        %1582 = vmatprep.subr.mxu0 %v1231
        %1583 = vmatpush2.xpose.msra.mxu0 %v1230
        %1584 = vmatprep.subr.mxu0 %v1221
        %1585 = vmatpush2.xpose.msra.mxu0 %v1220
        %1586 = vmatprep.subr.mxu0 %v1211
        %1587 = vmatpush2.xpose.msra.mxu0 %v1210
        %1588 = vmatprep.subr.mxu0 %v1201
        %1589 = vmatpush2.xpose.msra.mxu0 %v1200
        %1590 = vmatprep.subr.mxu0 %v1191
        %1591 = vmatpush2.xpose.msra.mxu0 %v1190
        %1592 = vmatprep.subr.mxu0 %v1181
        %1593 = vmatpush2.xpose.msra.mxu0 %v1180
        %1594 = vmatprep.subr.mxu0 %v1171
        %1595 = vmatpush2.xpose.msra.mxu0 %v1170
        %1596 = vmatprep.subr.mxu0 %v1161
        %1597 = vmatpush2.xpose.msra.mxu0 %v1160
        %1598 = vmatprep.subr.mxu0 %v1151
        %1599 = vmatpush2.xpose.msra.mxu0 %v1150
        %1600 = vmatprep.subr.mxu0 %v1141
        %1601 = vmatpush2.xpose.msra.mxu0 %v1140
        %1602 = vmatprep.subr.mxu0 %v1131
        %1603 = vmatpush2.xpose.msra.mxu0 %v1130
        %1604 = vmatprep.subr.mxu0 %v1121
        %1605 = vmatpush2.xpose.msra.mxu0 %v1120
        %1606 = vmatprep.mubr.f32.mxu0 %v1310
        %1607 = vmatmul.mubr.f32.gmra.mxu0 %v1308
        %v1608 = vpop.f32.mrf.mxu0
        %v1609 = vadd.f32 %v1538, %v1608
        %v1610 = vpop.f32.mrf.mxu0
        %v1611 = vadd.f32 %v1540, %v1610
        %1612 = vdwg.mxu0
        %1613 = vmatprep.subr.mxu0 %v1113
        %1614 = vmatpush1.xpose.msra.mxu0 %v1112
        %1615 = vmatprep.subr.mxu0 %v1103
        %1616 = vmatpush1.xpose.msra.mxu0 %v1102
        %1617 = vmatprep.subr.mxu0 %v1093
        %1618 = vmatpush1.xpose.msra.mxu0 %v1092
        %1619 = vmatprep.subr.mxu0 %v1083
        %1620 = vmatpush1.xpose.msra.mxu0 %v1082
        %1621 = vmatprep.subr.mxu0 %v1073
        %1622 = vmatpush1.xpose.msra.mxu0 %v1072
        %1623 = vmatprep.subr.mxu0 %v1063
        %1624 = vmatpush1.xpose.msra.mxu0 %v1062
        %1625 = vmatprep.subr.mxu0 %v1053
        %1626 = vmatpush1.xpose.msra.mxu0 %v1052
        %1627 = vmatprep.subr.mxu0 %v1043
        %1628 = vmatpush1.xpose.msra.mxu0 %v1042
        %1629 = vmatprep.subr.mxu0 %v1033
        %1630 = vmatpush1.xpose.msra.mxu0 %v1032
        %1631 = vmatprep.subr.mxu0 %v1023
        %1632 = vmatpush1.xpose.msra.mxu0 %v1022
        %1633 = vmatprep.subr.mxu0 %v1013
        %1634 = vmatpush1.xpose.msra.mxu0 %v1012
        %1635 = vmatprep.subr.mxu0 %v1003
        %1636 = vmatpush1.xpose.msra.mxu0 %v1002
        %1637 = vmatprep.subr.mxu0 %v993
        %1638 = vmatpush1.xpose.msra.mxu0 %v992
        %1639 = vmatprep.subr.mxu0 %v983
        %1640 = vmatpush1.xpose.msra.mxu0 %v982
        %1641 = vmatprep.subr.mxu0 %v973
        %1642 = vmatpush1.xpose.msra.mxu0 %v972
        %1643 = vmatprep.subr.mxu0 %v963
        %1644 = vmatpush1.xpose.msra.mxu0 %v962
        %1645 = vmatprep.subr.mxu0 %v1273
        %1646 = vmatpush2.xpose.msra.mxu0 %v1272
        %1647 = vmatprep.subr.mxu0 %v1263
        %1648 = vmatpush2.xpose.msra.mxu0 %v1262
        %1649 = vmatprep.subr.mxu0 %v1253
        %1650 = vmatpush2.xpose.msra.mxu0 %v1252
        %1651 = vmatprep.subr.mxu0 %v1243
        %1652 = vmatpush2.xpose.msra.mxu0 %v1242
        %1653 = vmatprep.subr.mxu0 %v1233
        %1654 = vmatpush2.xpose.msra.mxu0 %v1232
        %1655 = vmatprep.subr.mxu0 %v1223
        %1656 = vmatpush2.xpose.msra.mxu0 %v1222
        %1657 = vmatprep.subr.mxu0 %v1213
        %1658 = vmatpush2.xpose.msra.mxu0 %v1212
        %1659 = vmatprep.subr.mxu0 %v1203
        %1660 = vmatpush2.xpose.msra.mxu0 %v1202
        %1661 = vmatprep.subr.mxu0 %v1193
        %1662 = vmatpush2.xpose.msra.mxu0 %v1192
        %1663 = vmatprep.subr.mxu0 %v1183
        %1664 = vmatpush2.xpose.msra.mxu0 %v1182
        %1665 = vmatprep.subr.mxu0 %v1173
        %1666 = vmatpush2.xpose.msra.mxu0 %v1172
        %1667 = vmatprep.subr.mxu0 %v1163
        %1668 = vmatpush2.xpose.msra.mxu0 %v1162
        %1669 = vmatprep.subr.mxu0 %v1153
        %1670 = vmatpush2.xpose.msra.mxu0 %v1152
        %1671 = vmatprep.subr.mxu0 %v1143
        %1672 = vmatpush2.xpose.msra.mxu0 %v1142
        %1673 = vmatprep.subr.mxu0 %v1133
        %1674 = vmatpush2.xpose.msra.mxu0 %v1132
        %1675 = vmatprep.subr.mxu0 %v1123
        %1676 = vmatpush2.xpose.msra.mxu0 %v1122
        %1677 = vmatprep.mubr.f32.mxu0 %v1318
        %1678 = vmatmul.mubr.f32.gmra.mxu0 %v1317
        %v1679 = vpop.f32.mrf.mxu0
        %v1680 = vadd.f32 %v1609, %v1679
        %v1681 = vpop.f32.mrf.mxu0
        %v1682 = vadd.f32 %v1611, %v1681
        %1683 = vdwg.mxu0
        %v1686 = vcombine.low %v1680, %v1682
        %v1688 = vunpack.c.l.s4 1983009808
        %v1689 = vunpack.c.0.s8 %v1688
        %v1690 = vlaneseq
        %v1691 = vshrl.u32 %v1690, 7
        %v1692 = vsub.s32 %v1689, %v1691
        %v1693 = vrot.slane %v1686, %v1692
        %v1695 = vadd.f32 %v950, %v1693
        %1696 = vst [vmem:[#allocation2] sm:$0xf] %v1695
        %p1697 = scmp.eq.s32.totalorder %s18, 4
        // Predicated region
        $region76: #{encoder_forward.9} parent=66 // pred_check
          %p1698 = pneg %p1697
        $region77: #{encoder_forward.9} parent=66 // pred_check_branch
          %1700 = sbr.rel (%p1698) target = $region79
        $region78: #{encoder_forward.9} parent=66 // pred_region
          %v1701 = vld [vmem:[#allocation2] sm:$0xf]
          %v1702 = vld [vmem:[%s2] sm:$0x3]
          %v1704 = vlaneseq
          %v1705 = vshrl.u32 %v1704, 7
          %v1706 = vsub.s32 0, %v1705
          %v1707 = vrot.slane %v1702, %v1706
          %v1708 = vlaneseq
          %v1709 = vshrl.u32 %v1708, 7
          %v1710 = vsub.s32 1, %v1709
          %v1711 = vrot.slane %v1702, %v1710
          %v1712 = vcombine.low %v1707, %v1711
          %v1714 = vunpack.c.l.s4 1983009808
          %v1715 = vunpack.c.0.s8 %v1714
          %v1716 = vlaneseq
          %v1717 = vshrl.u32 %v1716, 7
          %v1718 = vsub.s32 %v1715, %v1717
          %v1719 = vrot.slane %v1712, %v1718
          %v1721 = vadd.f32 %v1701, %v1719
          %v1722 = vmul.f32 %v1721, 0.70710677
          %vm1723 = vcmp.ge.f32.partialorder %v1722, 0.0
          %v1724 = vsel %vm1723, 1.0, -1.0
          %v1725 = vand.u32 2147483647, %v1722
          %v1726 = vmul.f32 %v1725, 0.3275911
          %v1727 = vadd.f32 %v1726, 1.0
          %v1728 = vrcp.pop %v1727
          %v1729 = vmul.f32 %v1728, 1.0614054
          %v1730 = vadd.f32 %v1729, -1.4531521
          %v1731 = vmul.f32 %v1730, %v1728
          %v1732 = vadd.f32 %v1731, 1.4214138
          %v1733 = vmul.f32 %v1732, %v1728
          %v1734 = vadd.f32 %v1733, -0.28449672
          %v1735 = vmul.f32 %v1734, %v1728
          %v1736 = vadd.f32 %v1735, 0.2548296
          %v1737 = vmul.f32 %v1736, %v1728
          %v1738 = vsub.f32 0.0, %v1725
          %v1739 = vmul.f32 %v1738, %v1725
          %v1740 = vmul.f32 %v1739, 1.442695
          %v1741 = vpow.pop %v1740
          %v1742 = vmul.f32 %v1737, %v1741
          %v1743 = vsub.f32 1.0, %v1742
          %v1744 = vmul.f32 %v1724, %v1743
          %v1745 = vmul.f32 %v1721, 0.5
          %v1746 = vadd.f32 %v1744, 1.0
          %v1747 = vmul.f32 %v1745, %v1746
          %v1748 = vld [vmem:[%s3] sm:$0xff]
          %v1749 = vld [vmem:[%s3 + $0x8] sm:$0xff]
          %v1750 = vld [vmem:[%s3 + $0x10] sm:$0xff]
          %v1751 = vld [vmem:[%s3 + $0x18] sm:$0xff]
          %v1752 = vld [vmem:[%s3 + $0x20] sm:$0xff]
          %v1753 = vld [vmem:[%s3 + $0x28] sm:$0xff]
          %v1754 = vld [vmem:[%s3 + $0x30] sm:$0xff]
          %v1755 = vld [vmem:[%s3 + $0x38] sm:$0xff]
          %v1756 = vld [vmem:[%s3 + $0x40] sm:$0xff]
          %v1757 = vld [vmem:[%s3 + $0x48] sm:$0xff]
          %v1758 = vld [vmem:[%s3 + $0x50] sm:$0xff]
          %v1759 = vld [vmem:[%s3 + $0x58] sm:$0xff]
          %v1760 = vld [vmem:[%s3 + $0x60] sm:$0xff]
          %v1761 = vld [vmem:[%s3 + $0x68] sm:$0xff]
          %v1762 = vld [vmem:[%s3 + $0x70] sm:$0xff]
          %v1763 = vld [vmem:[%s3 + $0x78] sm:$0xff]
          %v1764 = vld [vmem:[%s3 + $0x80] sm:$0xff]
          %v1765 = vld [vmem:[%s3 + $0x88] sm:$0xff]
          %v1766 = vld [vmem:[%s3 + $0x90] sm:$0xff]
          %v1767 = vld [vmem:[%s3 + $0x98] sm:$0xff]
          %v1768 = vld [vmem:[%s3 + $0xa0] sm:$0xff]
          %v1769 = vld [vmem:[%s3 + $0xa8] sm:$0xff]
          %v1770 = vld [vmem:[%s3 + $0xb0] sm:$0xff]
          %v1771 = vld [vmem:[%s3 + $0xb8] sm:$0xff]
          %v1772 = vld [vmem:[%s3 + $0xc0] sm:$0xff]
          %v1773 = vld [vmem:[%s3 + $0xc8] sm:$0xff]
          %v1774 = vld [vmem:[%s3 + $0xd0] sm:$0xff]
          %v1775 = vld [vmem:[%s3 + $0xd8] sm:$0xff]
          %v1776 = vld [vmem:[%s3 + $0xe0] sm:$0xff]
          %v1777 = vld [vmem:[%s3 + $0xe8] sm:$0xff]
          %v1778 = vld [vmem:[%s3 + $0xf0] sm:$0xff]
          %v1779 = vld [vmem:[%s3 + $0xf8] sm:$0xff]
          %v1780 = vld [vmem:[%s4] sm:$0x1]
          %v1782 = vlaneseq
          %v1783 = vshrl.u32 %v1782, 7
          %v1784 = vsub.s32 0, %v1783
          %v1785 = vrot.slane %v1780, %v1784
          %v1789 = vunpack.c.l.s4 1983009808
          %v1790 = vunpack.c.0.s8 %v1789
          %v1791 = vlaneseq
          %v1792 = vshrl.u32 %v1791, 7
          %v1793 = vsub.s32 %v1790, %v1792
          %v1794 = vrot.slane %v1747, %v1793
          %v1795 = vcombine.high %v1794, %v1794
          %1798 = vmatprep.subr.mxu0 %v1779
          %1799 = vmatpush1.xpose.msra.mxu0 %v1778
          %1800 = vmatprep.subr.mxu0 %v1777
          %1801 = vmatpush1.xpose.msra.mxu0 %v1776
          %1802 = vmatprep.subr.mxu0 %v1775
          %1803 = vmatpush1.xpose.msra.mxu0 %v1774
          %1804 = vmatprep.subr.mxu0 %v1773
          %1805 = vmatpush1.xpose.msra.mxu0 %v1772
          %1806 = vmatprep.subr.mxu0 %v1771
          %1807 = vmatpush1.xpose.msra.mxu0 %v1770
          %1808 = vmatprep.subr.mxu0 %v1769
          %1809 = vmatpush1.xpose.msra.mxu0 %v1768
          %1810 = vmatprep.subr.mxu0 %v1767
          %1811 = vmatpush1.xpose.msra.mxu0 %v1766
          %1812 = vmatprep.subr.mxu0 %v1765
          %1813 = vmatpush1.xpose.msra.mxu0 %v1764
          %1814 = vmatprep.subr.mxu0 %v1763
          %1815 = vmatpush1.xpose.msra.mxu0 %v1762
          %1816 = vmatprep.subr.mxu0 %v1761
          %1817 = vmatpush1.xpose.msra.mxu0 %v1760
          %1818 = vmatprep.subr.mxu0 %v1759
          %1819 = vmatpush1.xpose.msra.mxu0 %v1758
          %1820 = vmatprep.subr.mxu0 %v1757
          %1821 = vmatpush1.xpose.msra.mxu0 %v1756
          %1822 = vmatprep.subr.mxu0 %v1755
          %1823 = vmatpush1.xpose.msra.mxu0 %v1754
          %1824 = vmatprep.subr.mxu0 %v1753
          %1825 = vmatpush1.xpose.msra.mxu0 %v1752
          %1826 = vmatprep.subr.mxu0 %v1751
          %1827 = vmatpush1.xpose.msra.mxu0 %v1750
          %1828 = vmatprep.subr.mxu0 %v1749
          %1829 = vmatpush1.xpose.msra.mxu0 %v1748
          %1830 = vmatprep.subr.mxu0 0.0
          %1831 = vmatpush2.xpose.msra.mxu0 0.0
          %1832 = vmatprep.subr.mxu0 0.0
          %1833 = vmatpush2.xpose.msra.mxu0 0.0
          %1834 = vmatprep.subr.mxu0 0.0
          %1835 = vmatpush2.xpose.msra.mxu0 0.0
          %1836 = vmatprep.subr.mxu0 0.0
          %1837 = vmatpush2.xpose.msra.mxu0 0.0
          %1838 = vmatprep.subr.mxu0 0.0
          %1839 = vmatpush2.xpose.msra.mxu0 0.0
          %1840 = vmatprep.subr.mxu0 0.0
          %1841 = vmatpush2.xpose.msra.mxu0 0.0
          %1842 = vmatprep.subr.mxu0 0.0
          %1843 = vmatpush2.xpose.msra.mxu0 0.0
          %1844 = vmatprep.subr.mxu0 0.0
          %1845 = vmatpush2.xpose.msra.mxu0 0.0
          %1846 = vmatprep.subr.mxu0 0.0
          %1847 = vmatpush2.xpose.msra.mxu0 0.0
          %1848 = vmatprep.subr.mxu0 0.0
          %1849 = vmatpush2.xpose.msra.mxu0 0.0
          %1850 = vmatprep.subr.mxu0 0.0
          %1851 = vmatpush2.xpose.msra.mxu0 0.0
          %1852 = vmatprep.subr.mxu0 0.0
          %1853 = vmatpush2.xpose.msra.mxu0 0.0
          %1854 = vmatprep.subr.mxu0 0.0
          %1855 = vmatpush2.xpose.msra.mxu0 0.0
          %1856 = vmatprep.subr.mxu0 0.0
          %1857 = vmatpush2.xpose.msra.mxu0 0.0
          %1858 = vmatprep.subr.mxu0 0.0
          %1859 = vmatpush2.xpose.msra.mxu0 0.0
          %1860 = vmatprep.subr.mxu0 0.0
          %1861 = vmatpush2.xpose.msra.mxu0 0.0
          %1862 = vmatprep.mubr.f32.mxu0 %v1795
          %1863 = vmatmul.mubr.f32.gmra.mxu0 %v1794
          %v1864 = vpop.f32.mrf.mxu0
          %v1865 = vadd.f32 %v1785, %v1864
          %v1866 = vpop.f32.mrf.mxu0
          %1867 = vdwg.mxu0
          %v1868 = vmul.f32 %v1865, 0.70710677
          %vm1869 = vcmp.ge.f32.partialorder %v1868, 0.0
          %v1870 = vsel %vm1869, 1.0, -1.0
          %v1871 = vand.u32 2147483647, %v1868
          %v1872 = vmul.f32 %v1871, 0.3275911
          %v1873 = vadd.f32 %v1872, 1.0
          %v1874 = vrcp.pop %v1873
          %v1875 = vmul.f32 %v1874, 1.0614054
          %v1876 = vadd.f32 %v1875, -1.4531521
          %v1877 = vmul.f32 %v1876, %v1874
          %v1878 = vadd.f32 %v1877, 1.4214138
          %v1879 = vmul.f32 %v1878, %v1874
          %v1880 = vadd.f32 %v1879, -0.28449672
          %v1881 = vmul.f32 %v1880, %v1874
          %v1882 = vadd.f32 %v1881, 0.2548296
          %v1883 = vmul.f32 %v1882, %v1874
          %v1884 = vsub.f32 0.0, %v1871
          %v1885 = vmul.f32 %v1884, %v1871
          %v1886 = vmul.f32 %v1885, 1.442695
          %v1887 = vpow.pop %v1886
          %v1888 = vmul.f32 %v1883, %v1887
          %v1889 = vsub.f32 1.0, %v1888
          %v1890 = vmul.f32 %v1870, %v1889
          %v1891 = vmul.f32 %v1865, 0.5
          %v1892 = vadd.f32 %v1890, 1.0
          %v1893 = vmul.f32 %v1891, %v1892
          %v1894 = vld [vmem:[%s5] sm:$0xff]
          %v1895 = vld [vmem:[%s5 + $0x8] sm:$0xff]
          %v1896 = vld [vmem:[%s5 + $0x10] sm:$0xff]
          %v1897 = vld [vmem:[%s5 + $0x18] sm:$0xff]
          %v1898 = vld [vmem:[%s5 + $0x20] sm:$0xff]
          %v1899 = vld [vmem:[%s5 + $0x28] sm:$0xff]
          %v1900 = vld [vmem:[%s5 + $0x30] sm:$0xff]
          %v1901 = vld [vmem:[%s5 + $0x38] sm:$0xff]
          %v1902 = vld [vmem:[%s6] sm:$0x1]
          %v1904 = vlaneseq
          %v1905 = vshrl.u32 %v1904, 7
          %v1906 = vsub.s32 0, %v1905
          %v1907 = vrot.slane %v1902, %v1906
          %1909 = vmatprep.subr.mxu0 0.0
          %1910 = vmatpush1.xpose.msra.mxu0 0.0
          %1911 = vmatprep.subr.mxu0 0.0
          %1912 = vmatpush1.xpose.msra.mxu0 0.0
          %1913 = vmatprep.subr.mxu0 0.0
          %1914 = vmatpush1.xpose.msra.mxu0 0.0
          %1915 = vmatprep.subr.mxu0 0.0
          %1916 = vmatpush1.xpose.msra.mxu0 0.0
          %1917 = vmatprep.subr.mxu0 0.0
          %1918 = vmatpush1.xpose.msra.mxu0 0.0
          %1919 = vmatprep.subr.mxu0 0.0
          %1920 = vmatpush1.xpose.msra.mxu0 0.0
          %1921 = vmatprep.subr.mxu0 0.0
          %1922 = vmatpush1.xpose.msra.mxu0 0.0
          %1923 = vmatprep.subr.mxu0 0.0
          %1924 = vmatpush1.xpose.msra.mxu0 0.0
          %1925 = vmatprep.subr.mxu0 0.0
          %1926 = vmatpush1.xpose.msra.mxu0 %v1901
          %1927 = vmatprep.subr.mxu0 0.0
          %1928 = vmatpush1.xpose.msra.mxu0 %v1900
          %1929 = vmatprep.subr.mxu0 0.0
          %1930 = vmatpush1.xpose.msra.mxu0 %v1899
          %1931 = vmatprep.subr.mxu0 0.0
          %1932 = vmatpush1.xpose.msra.mxu0 %v1898
          %1933 = vmatprep.subr.mxu0 0.0
          %1934 = vmatpush1.xpose.msra.mxu0 %v1897
          %1935 = vmatprep.subr.mxu0 0.0
          %1936 = vmatpush1.xpose.msra.mxu0 %v1896
          %1937 = vmatprep.subr.mxu0 0.0
          %1938 = vmatpush1.xpose.msra.mxu0 %v1895
          %1939 = vmatprep.subr.mxu0 0.0
          %1940 = vmatpush1.xpose.msra.mxu0 %v1894
          %1941 = vmatprep.subr.mxu0 0.0
          %1942 = vmatpush2.xpose.msra.mxu0 0.0
          %1943 = vmatprep.subr.mxu0 0.0
          %1944 = vmatpush2.xpose.msra.mxu0 0.0
          %1945 = vmatprep.subr.mxu0 0.0
          %1946 = vmatpush2.xpose.msra.mxu0 0.0
          %1947 = vmatprep.subr.mxu0 0.0
          %1948 = vmatpush2.xpose.msra.mxu0 0.0
          %1949 = vmatprep.subr.mxu0 0.0
          %1950 = vmatpush2.xpose.msra.mxu0 0.0
          %1951 = vmatprep.subr.mxu0 0.0
          %1952 = vmatpush2.xpose.msra.mxu0 0.0
          %1953 = vmatprep.subr.mxu0 0.0
          %1954 = vmatpush2.xpose.msra.mxu0 0.0
          %1955 = vmatprep.subr.mxu0 0.0
          %1956 = vmatpush2.xpose.msra.mxu0 0.0
          %1957 = vmatprep.subr.mxu0 0.0
          %1958 = vmatpush2.xpose.msra.mxu0 0.0
          %1959 = vmatprep.subr.mxu0 0.0
          %1960 = vmatpush2.xpose.msra.mxu0 0.0
          %1961 = vmatprep.subr.mxu0 0.0
          %1962 = vmatpush2.xpose.msra.mxu0 0.0
          %1963 = vmatprep.subr.mxu0 0.0
          %1964 = vmatpush2.xpose.msra.mxu0 0.0
          %1965 = vmatprep.subr.mxu0 0.0
          %1966 = vmatpush2.xpose.msra.mxu0 0.0
          %1967 = vmatprep.subr.mxu0 0.0
          %1968 = vmatpush2.xpose.msra.mxu0 0.0
          %1969 = vmatprep.subr.mxu0 0.0
          %1970 = vmatpush2.xpose.msra.mxu0 0.0
          %1971 = vmatprep.subr.mxu0 0.0
          %1972 = vmatpush2.xpose.msra.mxu0 0.0
          %1973 = vmatprep.mubr.f32.mxu0 0.0
          %1974 = vmatmul.mubr.f32.gmra.mxu0 %v1893
          %v1975 = vpop.f32.mrf.mxu0
          %v1976 = vadd.f32 %v1907, %v1975
          %v1977 = vpop.f32.mrf.mxu0
          %1978 = vdwg.mxu0
          %vm1979 = vcmask 517120
          %1980 = vst.msk [vmem:[%s7] sm:$0x3] %vm1979, %v1976
        $region79: #{encoder_forward.9} parent=66 // pred_fallthru
          _
        // Predicated region
        $region80: #{encoder_forward.9} parent=66 // pred_check
          %p1981 = pneg %p188
        $region81: #{encoder_forward.9} parent=66 // pred_check_branch
          %1983 = sbr.rel (%p1981) target = $region83
        $region82: #{encoder_forward.9} parent=66 // pred_region
          _
        $region83: #{encoder_forward.9} parent=66 // pred_fallthru
          _
        // Predicated region
        $region84: #{encoder_forward.9} parent=66 // pred_check
          %p1984 = pneg %p188
        $region85: #{encoder_forward.9} parent=66 // pred_check_branch
          %1986 = sbr.rel (%p1984) target = $region87
        $region86: #{encoder_forward.9} parent=66 // pred_region
          _
        $region87: #{encoder_forward.9} parent=66 // pred_fallthru
          _
      $region67: #{encoder_forward.9} parent=5 // pred_fallthru
        _
      %p1987 = scmp.le.s32.totalorder 2, %s13
      // Predicated region
      $region88: #{encoder_forward.9} parent=5 // pred_check
        %p1988 = pneg %p1987
      $region89: #{encoder_forward.9} parent=5 // pred_check_branch
        %1990 = sbr.rel (%p1988) target = $region91
      $region90: #{encoder_forward.9} parent=5 // pred_region
        %s1991 = ssub.s32 %s13, 2
      $region91: #{encoder_forward.9} parent=5 // pred_fallthru
        _
    $region6: #{encoder_forward.9} parent=1 // loop_footer
      %s17 = sadd.s32 1, %s13
    $region7: #{encoder_forward.9} parent=1 // loop_footer_branch
      %12 = sbr.rel target = $region3
    $region8: #{encoder_forward.9} parent=1 // loop_exit
      _

</llo_original>
